<compile_context>
chip_gen: v5e
topology: v5e:2x2
jax: 0.10.0
libtpu: 0.0.40
codegen_flags: <defaults>
</compile_context>

<pallas_src>
import functools
import math

import jax
import jax.numpy as jnp
from jax.experimental import pallas as pl
from jax.experimental.pallas import tpu as pltpu

A_BIT = 4   # activation bits
W_BIT = 4   # weight bits
BN_EPS = 1e-5
LANE = 128


def _round_up(x, m):
    return (x + m - 1) // m * m


def _vmem_capacity_bytes():
    try:
        info = pltpu.get_tpu_info()
        for attr in ("vmem_capacity_bytes", "vmem_size_bytes"):
            cap = getattr(info, attr, None)
            if cap:
                return int(cap)
    except Exception:
        pass
    return 64 * 1024 * 1024   # conservative default (v7x per-core VMEM)


# ---------------------------------------------------------------------------
# Pallas kernel: fused 3x3 conv + BN shift [+ residual] + DoReFa activation
# quantization.  The conv is a single K=9*Cin MXU matmul when Cin is
# lane-aligned, otherwise nine register-accumulated taps.
# ---------------------------------------------------------------------------
def _conv3x3_kernel(x_ref, w_ref, shift_ref, *rest, taps, hc, th, wo, a_bit,
                    with_residual):
    # x_ref     (1, ss*hc, wc, cin)  bf16  polyphase components, resident per image
    # w_ref     (9, cin, cout_p)     bf16  quantized weights, BN scale folded, resident
    # shift_ref (1, cout_p)          f32   folded BN shift
    # [sc_ref   (1, th*wo, cout_p)   bf16] residual (conv2 only)
    # out_ref   (1, th*wo, cout_p)
    if with_residual:
        sc_ref, out_ref = rest
    else:
        (out_ref,) = rest

    cin = x_ref.shape[-1]
    m = th * wo
    row0 = pl.multiple_of(pl.program_id(1) * th, th)

    def window(t):
        comp, dh, dw = taps[t]
        return x_ref[0, pl.ds(comp * hc + row0 + dh, th), pl.ds(dw, wo), :]

    if cin % LANE == 0:
        # Lane-aligned channels: build the im2col LHS (m, 9*cin) in registers
        # (aligned lane-dim concat) and run one MXU contraction with K=9*cin.
        patches = jnp.concatenate([window(t) for t in range(9)], axis=-1)
        patches = patches.reshape(m, 9 * cin)
        w2d = w_ref[...].reshape(9 * cin, w_ref.shape[-1])   # layout-preserving
        y = jnp.dot(patches, w2d, preferred_element_type=jnp.float32)
    else:
        # Narrow-channel input (conv1 of thin blocks): nine statically
        # unrolled taps accumulated in registers (no VMEM scratch RMW).
        y = None
        for t in range(9):
            win = window(t).reshape(m, cin)
            part = jnp.dot(win, w_ref[t], preferred_element_type=jnp.float32)
            y = part if y is None else y + part

    y = y + shift_ref[...]                          # BN shift (broadcast over rows)
    if with_residual:
        y = y + sc_ref[0].astype(jnp.float32)

    if a_bit >= 32:
        y = jnp.maximum(y, 0.0)                     # Activate() uses ReLU at 32 bits
    else:
        n = float(2 ** a_bit - 1)
        y = jnp.round(jnp.clip(y, 0.0, 1.0) * n) * (1.0 / n)
    out_ref[0] = y.astype(out_ref.dtype)


def _conv3x3_bn_act(x_comp, w_taps, shift, shortcut=None, *, stride, ho, wo,
                    a_bit, out_dtype):
    """x_comp  : (N, ss*hc, wc, cin)   bf16 polyphase components (ss = stride**2)
       w_taps  : (9, cin, cout_p)      bf16, BN scale folded
       shift   : (1, cout_p)           f32
       shortcut: (N, ho*wo, cout_p)    bf16 or None
       returns : (N, ho*wo, cout_p)    out_dtype"""
    N, _, wc, cin = x_comp.shape
    ss = stride * stride
    hc = x_comp.shape[1] // ss
    cout_p = w_taps.shape[-1]
    assert w_taps.shape[1] == cin
    with_residual = shortcut is not None
    out_isz = jnp.dtype(out_dtype).itemsize

    # tap (kh, kw) -> (polyphase component, row offset, col offset)
    taps = tuple(((kh % stride) * stride + (kw % stride), kh // stride, kw // stride)
                 for kh in range(3) for kw in range(3))

    cap = _vmem_capacity_bytes()
    budget = int(0.70 * cap)

    def step_bytes(th):
        # conservative per-step VMEM estimate (lane/sublane padding + the
        # double-buffered pipelined operands)
        m = th * wo
        b = 2 * ss * hc * _round_up(wc, 16) * _round_up(cin, LANE) * 2    # x block
        b += 2 * 9 * _round_up(cin, 16) * cout_p * 2                      # weights
        b += 2 * _round_up(m, 16) * cout_p * out_isz                      # out block
        if with_residual:
            b += 2 * _round_up(m, 16) * cout_p * 2                        # shortcut
        b += _round_up(m, 16) * _round_up(9 * cin, LANE) * 2              # im2col value
        b += _round_up(m, 8) * cout_p * 4                                 # f32 result
        return b + (2 << 20)

    # Spatial (output-row) tiling: largest divisor of ho whose block fits the
    # VMEM budget and keeps the flattened row block sublane-aligned.
    divisors = [d for d in range(1, ho + 1) if ho % d == 0]
    aligned = [d for d in divisors if d == ho or (d * wo) % 8 == 0] or [ho]
    th = aligned[0]
    for d in sorted(aligned, reverse=True):
        if step_bytes(d) <= budget:
            th = d
            break
    num_m = ho // th
    vmem_limit = int(min(cap, max(32 * 1024 * 1024, int(1.25 * step_bytes(th)))))

    kernel = functools.partial(_conv3x3_kernel, taps=taps, hc=hc, th=th, wo=wo,
                               a_bit=a_bit, with_residual=with_residual)

    in_specs = [
        # per-image activation block, resident across the row-tile axis
        pl.BlockSpec((1, ss * hc, wc, cin), lambda n, m: (n, 0, 0, 0)),
        # full weight tensor, resident for the whole grid (no per-image re-DMA)
        pl.BlockSpec((9, cin, cout_p), lambda n, m: (0, 0, 0)),
        pl.BlockSpec((1, cout_p), lambda n, m: (0, 0)),
    ]
    args = [x_comp, w_taps, shift]
    if with_residual:
        in_specs.append(pl.BlockSpec((1, th * wo, cout_p), lambda n, m: (n, m, 0)))
        args.append(shortcut)

    return pl.pallas_call(
        kernel,
        out_shape=jax.ShapeDtypeStruct((N, ho * wo, cout_p), out_dtype),
        grid=(N, num_m),
        in_specs=in_specs,
        out_specs=pl.BlockSpec((1, th * wo, cout_p), lambda n, m: (n, m, 0)),
        compiler_params=pltpu.CompilerParams(
            # batch is megacore-shardable (keeps each core's x block + weights
            # resident exactly once); the row-tile axis stays on-core.
            dimension_semantics=("parallel", "arbitrary"),
            vmem_limit_bytes=vmem_limit),
    )(*args)


# ---------------------------------------------------------------------------
# Glue: DoReFa weight quantization, BN folding, polyphase components, shortcut
# ---------------------------------------------------------------------------
def _weight_quant(w, w_bit):
    # Conv2d_Q_ / weight_quantize_fn (DoReFa)
    if w_bit >= 32:
        return w
    t = jnp.tanh(w)
    t = t / (2.0 * jnp.maximum(jnp.max(jnp.abs(t)), 1e-8)) + 0.5
    n = float(2 ** w_bit - 1)
    return 2.0 * (jnp.round(t * n) / n) - 1.0


def _fold_bn(gamma, beta, mean, var):
    scale = gamma / jnp.sqrt(var + BN_EPS)
    shift = beta - mean * scale
    return scale, shift


def _prep_weights(w_oihw, bn_scale, cin_pad, cout_pad, w_bit):
    """(Cout, Cin, 3, 3) -> (9, cin_pad, cout_pad) bf16 with the BN scale folded;
    tap index t = kh*3 + kw matches the in-kernel im2col ordering."""
    cout, cin = w_oihw.shape[0], w_oihw.shape[1]
    wq = _weight_quant(w_oihw, w_bit) * bn_scale[:, None, None, None]
    w_taps = jnp.transpose(wq, (2, 3, 1, 0)).reshape(9, cin, cout)
    w_taps = jnp.pad(w_taps, ((0, 0), (0, cin_pad - cin), (0, cout_pad - cout)))
    return w_taps.astype(jnp.bfloat16)


def _pad_hw(x_nhwc):
    return jnp.pad(x_nhwc, ((0, 0), (1, 1), (1, 1), (0, 0)))


def _make_components(xp, stride, ho, wo):
    """Polyphase decomposition of the spatially padded input: component (a, b)
    holds xp[:, a::s, b::s, :], sized so tap (kh, kw) reads a dense (ho, wo)
    window at offset (kh//s, kw//s) of component (kh%s, kw%s).
    Returns (N, s*s*hc, wc, C)."""
    s = stride
    hc = ho + 2 // s
    wc = wo + 2 // s
    need_h = (s - 1) + s * (hc - 1) + 1
    need_w = (s - 1) + s * (wc - 1) + 1
    ph = max(0, need_h - xp.shape[1])
    pw = max(0, need_w - xp.shape[2])
    if ph or pw:
        xp = jnp.pad(xp, ((0, 0), (0, ph), (0, pw), (0, 0)))
    comps = [xp[:, a:a + s * hc:s, b:b + s * wc:s, :]
             for a in range(s) for b in range(s)]
    x = jnp.stack(comps, axis=1)                              # (N, ss, hc, wc, C)
    return x.reshape(xp.shape[0], s * s * hc, wc, xp.shape[-1])


def basic_block_q_forward(x_nchw, params, *, stride=1, a_bit=A_BIT, w_bit=W_BIT):
    N, in_planes, H, W = x_nchw.shape
    planes = params["conv1_w"].shape[0]
    cout_p = _round_up(planes, LANE)
    ho = (H - 1) // stride + 1
    wo = (W - 1) // stride + 1

    x = jnp.transpose(x_nchw, (0, 2, 3, 1))                   # NHWC f32

    # --- out = act1(bn1(conv1(x))) -------------------------------------------
    s1, b1 = _fold_bn(*params["bn1"])
    w1 = _prep_weights(params["conv1_w"], s1, in_planes, cout_p, w_bit)
    shift1 = jnp.pad(b1, (0, cout_p - planes)).reshape(1, cout_p).astype(jnp.float32)
    xc1 = _make_components(_pad_hw(x).astype(jnp.bfloat16), stride, ho, wo)
    out1 = _conv3x3_bn_act(xc1, w1, shift1, stride=stride, ho=ho, wo=wo,
                           a_bit=a_bit, out_dtype=jnp.bfloat16)

    # --- out = act2(bn2(conv2(out)) + shortcut(x)) ----------------------------
    s2, b2 = _fold_bn(*params["bn2"])
    # conv2 consumes out1 with its zero-padded channels -> zero-pad Cin too.
    w2 = _prep_weights(params["conv2_w"], s2, cout_p, cout_p, w_bit)
    shift2 = jnp.pad(b2, (0, cout_p - planes)).reshape(1, cout_p).astype(jnp.float32)
    out1_nhwc = out1.reshape(N, ho, wo, cout_p)
    xc2 = _make_components(_pad_hw(out1_nhwc), 1, ho, wo)     # bf16 already

    if stride != 1 or in_planes != planes:
        # option 'A' shortcut: spatial ::2 subsample + zero-pad channels
        sc = x_nchw[:, :, ::2, ::2]
        p = planes // 4
        sc = jnp.pad(sc, ((0, 0), (p, p), (0, 0), (0, 0)))
        sc = jnp.transpose(sc, (0, 2, 3, 1))
    else:
        sc = x
    sc = jnp.pad(sc, ((0, 0), (0, 0), (0, 0), (0, cout_p - sc.shape[-1])))
    sc = sc.reshape(N, ho * wo, cout_p).astype(jnp.bfloat16)  # bf16 residual

    out2 = _conv3x3_bn_act(xc2, w2, shift2, sc, stride=1, ho=ho, wo=wo,
                           a_bit=a_bit, out_dtype=jnp.bfloat16)
    out2 = out2.reshape(N, ho, wo, cout_p)[..., :planes]
    return jnp.transpose(out2, (0, 3, 1, 2)).astype(jnp.float32)   # NCHW f32


# ---------------------------------------------------------------------------
# Pure-JAX reference (matching bf16 operand precision) and deterministic init
# ---------------------------------------------------------------------------
def _ref_forward(x_nchw, params, *, stride=1, a_bit=A_BIT, w_bit=W_BIT):
    def act(y):
        if a_bit >= 32:
            return jnp.maximum(y, 0.0)
        n = float(2 ** a_bit - 1)
        return jnp.round(jnp.clip(y, 0.0, 1.0) * n) / n

    def conv_bn(x_nhwc, w_oihw, bn, s):
        scale, shift = _fold_bn(*bn)
        wq = _weight_quant(w_oihw, w_bit) * scale[:, None, None, None]
        w_hwio = jnp.transpose(wq, (2, 3, 1, 0)).astype(jnp.bfloat16)
        y = jax.lax.conv_general_dilated(
            x_nhwc.astype(jnp.bfloat16), w_hwio, window_strides=(s, s),
            padding=((1, 1), (1, 1)),
            dimension_numbers=("NHWC", "HWIO", "NHWC"),
            preferred_element_type=jnp.float32)
        return y + shift

    N, in_planes, H, W = x_nchw.shape
    planes = params["conv1_w"].shape[0]
    x = jnp.transpose(x_nchw, (0, 2, 3, 1))
    out = act(conv_bn(x, params["conv1_w"], params["bn1"], stride))
    out = conv_bn(out, params["conv2_w"], params["bn2"], 1)
    if stride != 1 or in_planes != planes:
        sc = x_nchw[:, :, ::2, ::2]
        p = planes // 4
        sc = jnp.pad(sc, ((0, 0), (p, p), (0, 0), (0, 0)))
        sc = jnp.transpose(sc, (0, 2, 3, 1))
    else:
        sc = x
    sc = sc.astype(jnp.bfloat16).astype(jnp.float32)   # match kernel residual dtype
    out = act(out + sc)
    return jnp.transpose(out, (0, 3, 1, 2)).astype(jnp.float32)


def init_params(key, in_planes, planes):
    k1, k2, k3, k4 = jax.random.split(key, 4)

    def conv_init(k, cin, cout):
        bound = 1.0 / math.sqrt(cin * 9)
        return jax.random.uniform(k, (cout, cin, 3, 3), jnp.float32, -bound, bound)

    def bn_init(k, c):
        kg, kb, km, kv = jax.random.split(k, 4)
        gamma = jax.random.uniform(kg, (c,), jnp.float32, 0.5, 1.5)
        beta = 0.1 * jax.random.normal(kb, (c,), jnp.float32)
        mean = 0.1 * jax.random.normal(km, (c,), jnp.float32)
        var = jax.random.uniform(kv, (c,), jnp.float32, 0.5, 1.5)
        return gamma, beta, mean, var

    return {
        "conv1_w": conv_init(k1, in_planes, planes),
        "bn1": bn_init(k2, planes),
        "conv2_w": conv_init(k3, planes, planes),
        "bn2": bn_init(k4, planes),
    }


if __name__ == "__main__":
    key = jax.random.PRNGKey(0)
    kx, kp = jax.random.split(key)

    N, C, H, W = 2, 8, 16, 16                 # in_planes == planes, stride = 1
    x = jax.random.normal(kx, (N, C, H, W), jnp.float32)
    params = init_params(kp, C, C)

    fwd = jax.jit(functools.partial(basic_block_q_forward,
                                    stride=1, a_bit=A_BIT, w_bit=W_BIT))
    out = jax.block_until_ready(fwd(x, params))

    assert out.shape == (N, C, H, W), out.shape
    assert bool(jnp.all(jnp.isfinite(out)))

    # Tolerance check against a pure-JAX reference with matching bf16 operands.
    ref = jax.jit(functools.partial(_ref_forward, stride=1,
                                    a_bit=A_BIT, w_bit=W_BIT))(x, params)
    ref = jax.block_until_ready(ref)
    err = jnp.abs(out - ref)
    mean_err, max_err = float(jnp.mean(err)), float(jnp.max(err))
    # differences are bf16 rounding of the k/(2^a_bit-1) levels plus rare
    # one-level flips at quantization boundaries
    assert mean_err < 1e-2 and max_err < 0.5, (mean_err, max_err)
    print("KERNEL_OK")
</pallas_src>

<mosaic_0001>
module attributes {stable_mosaic.version = 11 : i64} {
  func.func @_conv3x3_kernel(%arg0: i32, %arg1: i32, %arg2: memref<1x18x18x8xbf16, #tpu.memory_space<vmem>>, %arg3: memref<9x8x128xbf16, #tpu.memory_space<vmem>>, %arg4: memref<1x128xf32, #tpu.memory_space<vmem>>, %arg5: memref<1x256x128xbf16, #tpu.memory_space<vmem>>) attributes {dimension_semantics = [#tpu.dimension_semantics<parallel>, #tpu.dimension_semantics<arbitrary>], iteration_bounds = array<i64: 2, 1>, scalar_prefetch = 0 : i64, scratch_operands = 0 : i64, tpu.core_type = #tpu.core_type<tc>, window_params = [{transform_indices = @transform_0, window_bounds = array<i64: 1, 18, 18, 8>}, {pipeline_mode = #tpu.pipeline_mode<synchronous>, transform_indices = @transform_1, window_bounds = array<i64: 9, 8, 128>}, {pipeline_mode = #tpu.pipeline_mode<synchronous>, transform_indices = @transform_2, window_bounds = array<i64: 1, 128>}, {transform_indices = @transform_3, window_bounds = array<i64: 1, 256, 128>}]} {
    %c16_i32 = arith.constant 16 : i32
    %0 = arith.muli %arg1, %c16_i32 : i32
    %1 = tpu.assume_multiple %0, 16 : i32
    %c0_i32 = arith.constant 0 : i32
    %2 = arith.addi %c0_i32, %1 : i32
    %c0_i32_0 = arith.constant 0 : i32
    %3 = arith.addi %2, %c0_i32_0 : i32
    %c0 = arith.constant 0 : index
    %4 = arith.index_cast %3 : i32 to index
    %c0_1 = arith.constant 0 : index
    %c0_2 = arith.constant 0 : index
    %5 = vector.load %arg2[%c0, %4, %c0_1, %c0_2] : memref<1x18x18x8xbf16, #tpu.memory_space<vmem>>, vector<1x16x16x8xbf16>
    %6 = vector.shape_cast %5 : vector<1x16x16x8xbf16> to vector<16x16x8xbf16>
    %7 = vector.shape_cast %6 : vector<16x16x8xbf16> to vector<256x8xbf16>
    %c0_3 = arith.constant 0 : index
    %c0_4 = arith.constant 0 : index
    %c0_5 = arith.constant 0 : index
    %8 = vector.load %arg3[%c0_3, %c0_4, %c0_5] : memref<9x8x128xbf16, #tpu.memory_space<vmem>>, vector<1x8x128xbf16>
    %9 = vector.shape_cast %8 : vector<1x8x128xbf16> to vector<8x128xbf16>
    %cst = arith.constant dense<0.000000e+00> : vector<256x128xf32>
    %10 = tpu.matmul %7, %9, %cst {dimension_numbers = #tpu.dot_dimension_numbers<[1], [0], [0], [1], [0, 0, 1, 1], [], []>} : vector<256x8xbf16>, vector<8x128xbf16>, vector<256x128xf32> -> vector<256x128xf32>
    %c0_i32_6 = arith.constant 0 : i32
    %11 = arith.addi %c0_i32_6, %1 : i32
    %c0_i32_7 = arith.constant 0 : i32
    %12 = arith.addi %11, %c0_i32_7 : i32
    %c0_8 = arith.constant 0 : index
    %13 = arith.index_cast %12 : i32 to index
    %c1 = arith.constant 1 : index
    %c0_9 = arith.constant 0 : index
    %14 = vector.load %arg2[%c0_8, %13, %c1, %c0_9] : memref<1x18x18x8xbf16, #tpu.memory_space<vmem>>, vector<1x16x16x8xbf16>
    %15 = vector.shape_cast %14 : vector<1x16x16x8xbf16> to vector<16x16x8xbf16>
    %16 = vector.shape_cast %15 : vector<16x16x8xbf16> to vector<256x8xbf16>
    %c1_10 = arith.constant 1 : index
    %c0_11 = arith.constant 0 : index
    %c0_12 = arith.constant 0 : index
    %17 = vector.load %arg3[%c1_10, %c0_11, %c0_12] : memref<9x8x128xbf16, #tpu.memory_space<vmem>>, vector<1x8x128xbf16>
    %18 = vector.shape_cast %17 : vector<1x8x128xbf16> to vector<8x128xbf16>
    %cst_13 = arith.constant dense<0.000000e+00> : vector<256x128xf32>
    %19 = tpu.matmul %16, %18, %cst_13 {dimension_numbers = #tpu.dot_dimension_numbers<[1], [0], [0], [1], [0, 0, 1, 1], [], []>} : vector<256x8xbf16>, vector<8x128xbf16>, vector<256x128xf32> -> vector<256x128xf32>
    %20 = arith.addf %10, %19 : vector<256x128xf32>
    %c0_i32_14 = arith.constant 0 : i32
    %21 = arith.addi %c0_i32_14, %1 : i32
    %c0_i32_15 = arith.constant 0 : i32
    %22 = arith.addi %21, %c0_i32_15 : i32
    %c0_16 = arith.constant 0 : index
    %23 = arith.index_cast %22 : i32 to index
    %c2 = arith.constant 2 : index
    %c0_17 = arith.constant 0 : index
    %24 = vector.load %arg2[%c0_16, %23, %c2, %c0_17] : memref<1x18x18x8xbf16, #tpu.memory_space<vmem>>, vector<1x16x16x8xbf16>
    %25 = vector.shape_cast %24 : vector<1x16x16x8xbf16> to vector<16x16x8xbf16>
    %26 = vector.shape_cast %25 : vector<16x16x8xbf16> to vector<256x8xbf16>
    %c2_18 = arith.constant 2 : index
    %c0_19 = arith.constant 0 : index
    %c0_20 = arith.constant 0 : index
    %27 = vector.load %arg3[%c2_18, %c0_19, %c0_20] : memref<9x8x128xbf16, #tpu.memory_space<vmem>>, vector<1x8x128xbf16>
    %28 = vector.shape_cast %27 : vector<1x8x128xbf16> to vector<8x128xbf16>
    %cst_21 = arith.constant dense<0.000000e+00> : vector<256x128xf32>
    %29 = tpu.matmul %26, %28, %cst_21 {dimension_numbers = #tpu.dot_dimension_numbers<[1], [0], [0], [1], [0, 0, 1, 1], [], []>} : vector<256x8xbf16>, vector<8x128xbf16>, vector<256x128xf32> -> vector<256x128xf32>
    %30 = arith.addf %20, %29 : vector<256x128xf32>
    %c0_i32_22 = arith.constant 0 : i32
    %31 = arith.addi %c0_i32_22, %1 : i32
    %c1_i32 = arith.constant 1 : i32
    %32 = arith.addi %31, %c1_i32 : i32
    %c0_23 = arith.constant 0 : index
    %33 = arith.index_cast %32 : i32 to index
    %c0_24 = arith.constant 0 : index
    %c0_25 = arith.constant 0 : index
    %34 = vector.load %arg2[%c0_23, %33, %c0_24, %c0_25] : memref<1x18x18x8xbf16, #tpu.memory_space<vmem>>, vector<1x16x16x8xbf16>
    %35 = vector.shape_cast %34 : vector<1x16x16x8xbf16> to vector<16x16x8xbf16>
    %36 = vector.shape_cast %35 : vector<16x16x8xbf16> to vector<256x8xbf16>
    %c3 = arith.constant 3 : index
    %c0_26 = arith.constant 0 : index
    %c0_27 = arith.constant 0 : index
    %37 = vector.load %arg3[%c3, %c0_26, %c0_27] : memref<9x8x128xbf16, #tpu.memory_space<vmem>>, vector<1x8x128xbf16>
    %38 = vector.shape_cast %37 : vector<1x8x128xbf16> to vector<8x128xbf16>
    %cst_28 = arith.constant dense<0.000000e+00> : vector<256x128xf32>
    %39 = tpu.matmul %36, %38, %cst_28 {dimension_numbers = #tpu.dot_dimension_numbers<[1], [0], [0], [1], [0, 0, 1, 1], [], []>} : vector<256x8xbf16>, vector<8x128xbf16>, vector<256x128xf32> -> vector<256x128xf32>
    %40 = arith.addf %30, %39 : vector<256x128xf32>
    %c0_i32_29 = arith.constant 0 : i32
    %41 = arith.addi %c0_i32_29, %1 : i32
    %c1_i32_30 = arith.constant 1 : i32
    %42 = arith.addi %41, %c1_i32_30 : i32
    %c0_31 = arith.constant 0 : index
    %43 = arith.index_cast %42 : i32 to index
    %c1_32 = arith.constant 1 : index
    %c0_33 = arith.constant 0 : index
    %44 = vector.load %arg2[%c0_31, %43, %c1_32, %c0_33] : memref<1x18x18x8xbf16, #tpu.memory_space<vmem>>, vector<1x16x16x8xbf16>
    %45 = vector.shape_cast %44 : vector<1x16x16x8xbf16> to vector<16x16x8xbf16>
    %46 = vector.shape_cast %45 : vector<16x16x8xbf16> to vector<256x8xbf16>
    %c4 = arith.constant 4 : index
    %c0_34 = arith.constant 0 : index
    %c0_35 = arith.constant 0 : index
    %47 = vector.load %arg3[%c4, %c0_34, %c0_35] : memref<9x8x128xbf16, #tpu.memory_space<vmem>>, vector<1x8x128xbf16>
    %48 = vector.shape_cast %47 : vector<1x8x128xbf16> to vector<8x128xbf16>
    %cst_36 = arith.constant dense<0.000000e+00> : vector<256x128xf32>
    %49 = tpu.matmul %46, %48, %cst_36 {dimension_numbers = #tpu.dot_dimension_numbers<[1], [0], [0], [1], [0, 0, 1, 1], [], []>} : vector<256x8xbf16>, vector<8x128xbf16>, vector<256x128xf32> -> vector<256x128xf32>
    %50 = arith.addf %40, %49 : vector<256x128xf32>
    %c0_i32_37 = arith.constant 0 : i32
    %51 = arith.addi %c0_i32_37, %1 : i32
    %c1_i32_38 = arith.constant 1 : i32
    %52 = arith.addi %51, %c1_i32_38 : i32
    %c0_39 = arith.constant 0 : index
    %53 = arith.index_cast %52 : i32 to index
    %c2_40 = arith.constant 2 : index
    %c0_41 = arith.constant 0 : index
    %54 = vector.load %arg2[%c0_39, %53, %c2_40, %c0_41] : memref<1x18x18x8xbf16, #tpu.memory_space<vmem>>, vector<1x16x16x8xbf16>
    %55 = vector.shape_cast %54 : vector<1x16x16x8xbf16> to vector<16x16x8xbf16>
    %56 = vector.shape_cast %55 : vector<16x16x8xbf16> to vector<256x8xbf16>
    %c5 = arith.constant 5 : index
    %c0_42 = arith.constant 0 : index
    %c0_43 = arith.constant 0 : index
    %57 = vector.load %arg3[%c5, %c0_42, %c0_43] : memref<9x8x128xbf16, #tpu.memory_space<vmem>>, vector<1x8x128xbf16>
    %58 = vector.shape_cast %57 : vector<1x8x128xbf16> to vector<8x128xbf16>
    %cst_44 = arith.constant dense<0.000000e+00> : vector<256x128xf32>
    %59 = tpu.matmul %56, %58, %cst_44 {dimension_numbers = #tpu.dot_dimension_numbers<[1], [0], [0], [1], [0, 0, 1, 1], [], []>} : vector<256x8xbf16>, vector<8x128xbf16>, vector<256x128xf32> -> vector<256x128xf32>
    %60 = arith.addf %50, %59 : vector<256x128xf32>
    %c0_i32_45 = arith.constant 0 : i32
    %61 = arith.addi %c0_i32_45, %1 : i32
    %c2_i32 = arith.constant 2 : i32
    %62 = arith.addi %61, %c2_i32 : i32
    %c0_46 = arith.constant 0 : index
    %63 = arith.index_cast %62 : i32 to index
    %c0_47 = arith.constant 0 : index
    %c0_48 = arith.constant 0 : index
    %64 = vector.load %arg2[%c0_46, %63, %c0_47, %c0_48] : memref<1x18x18x8xbf16, #tpu.memory_space<vmem>>, vector<1x16x16x8xbf16>
    %65 = vector.shape_cast %64 : vector<1x16x16x8xbf16> to vector<16x16x8xbf16>
    %66 = vector.shape_cast %65 : vector<16x16x8xbf16> to vector<256x8xbf16>
    %c6 = arith.constant 6 : index
    %c0_49 = arith.constant 0 : index
    %c0_50 = arith.constant 0 : index
    %67 = vector.load %arg3[%c6, %c0_49, %c0_50] : memref<9x8x128xbf16, #tpu.memory_space<vmem>>, vector<1x8x128xbf16>
    %68 = vector.shape_cast %67 : vector<1x8x128xbf16> to vector<8x128xbf16>
    %cst_51 = arith.constant dense<0.000000e+00> : vector<256x128xf32>
    %69 = tpu.matmul %66, %68, %cst_51 {dimension_numbers = #tpu.dot_dimension_numbers<[1], [0], [0], [1], [0, 0, 1, 1], [], []>} : vector<256x8xbf16>, vector<8x128xbf16>, vector<256x128xf32> -> vector<256x128xf32>
    %70 = arith.addf %60, %69 : vector<256x128xf32>
    %c0_i32_52 = arith.constant 0 : i32
    %71 = arith.addi %c0_i32_52, %1 : i32
    %c2_i32_53 = arith.constant 2 : i32
    %72 = arith.addi %71, %c2_i32_53 : i32
    %c0_54 = arith.constant 0 : index
    %73 = arith.index_cast %72 : i32 to index
    %c1_55 = arith.constant 1 : index
    %c0_56 = arith.constant 0 : index
    %74 = vector.load %arg2[%c0_54, %73, %c1_55, %c0_56] : memref<1x18x18x8xbf16, #tpu.memory_space<vmem>>, vector<1x16x16x8xbf16>
    %75 = vector.shape_cast %74 : vector<1x16x16x8xbf16> to vector<16x16x8xbf16>
    %76 = vector.shape_cast %75 : vector<16x16x8xbf16> to vector<256x8xbf16>
    %c7 = arith.constant 7 : index
    %c0_57 = arith.constant 0 : index
    %c0_58 = arith.constant 0 : index
    %77 = vector.load %arg3[%c7, %c0_57, %c0_58] : memref<9x8x128xbf16, #tpu.memory_space<vmem>>, vector<1x8x128xbf16>
    %78 = vector.shape_cast %77 : vector<1x8x128xbf16> to vector<8x128xbf16>
    %cst_59 = arith.constant dense<0.000000e+00> : vector<256x128xf32>
    %79 = tpu.matmul %76, %78, %cst_59 {dimension_numbers = #tpu.dot_dimension_numbers<[1], [0], [0], [1], [0, 0, 1, 1], [], []>} : vector<256x8xbf16>, vector<8x128xbf16>, vector<256x128xf32> -> vector<256x128xf32>
    %80 = arith.addf %70, %79 : vector<256x128xf32>
    %c0_i32_60 = arith.constant 0 : i32
    %81 = arith.addi %c0_i32_60, %1 : i32
    %c2_i32_61 = arith.constant 2 : i32
    %82 = arith.addi %81, %c2_i32_61 : i32
    %c0_62 = arith.constant 0 : index
    %83 = arith.index_cast %82 : i32 to index
    %c2_63 = arith.constant 2 : index
    %c0_64 = arith.constant 0 : index
    %84 = vector.load %arg2[%c0_62, %83, %c2_63, %c0_64] : memref<1x18x18x8xbf16, #tpu.memory_space<vmem>>, vector<1x16x16x8xbf16>
    %85 = vector.shape_cast %84 : vector<1x16x16x8xbf16> to vector<16x16x8xbf16>
    %86 = vector.shape_cast %85 : vector<16x16x8xbf16> to vector<256x8xbf16>
    %c8 = arith.constant 8 : index
    %c0_65 = arith.constant 0 : index
    %c0_66 = arith.constant 0 : index
    %87 = vector.load %arg3[%c8, %c0_65, %c0_66] : memref<9x8x128xbf16, #tpu.memory_space<vmem>>, vector<1x8x128xbf16>
    %88 = vector.shape_cast %87 : vector<1x8x128xbf16> to vector<8x128xbf16>
    %cst_67 = arith.constant dense<0.000000e+00> : vector<256x128xf32>
    %89 = tpu.matmul %86, %88, %cst_67 {dimension_numbers = #tpu.dot_dimension_numbers<[1], [0], [0], [1], [0, 0, 1, 1], [], []>} : vector<256x8xbf16>, vector<8x128xbf16>, vector<256x128xf32> -> vector<256x128xf32>
    %90 = arith.addf %80, %89 : vector<256x128xf32>
    %c0_68 = arith.constant 0 : index
    %c0_69 = arith.constant 0 : index
    %91 = vector.load %arg4[%c0_68, %c0_69] : memref<1x128xf32, #tpu.memory_space<vmem>>, vector<1x128xf32>
    %92 = vector.broadcast %91 : vector<1x128xf32> to vector<256x128xf32>
    %93 = arith.addf %90, %92 : vector<256x128xf32>
    %cst_70 = arith.constant 0.000000e+00 : f32
    %cst_71 = arith.constant 1.000000e+00 : f32
    %94 = vector.broadcast %cst_70 : f32 to vector<256x128xf32>
    %95 = arith.maximumf %94, %93 : vector<256x128xf32>
    %96 = vector.broadcast %cst_71 : f32 to vector<256x128xf32>
    %97 = arith.minimumf %96, %95 : vector<256x128xf32>
    %cst_72 = arith.constant 1.500000e+01 : f32
    %98 = vector.broadcast %cst_72 : f32 to vector<256x128xf32>
    %99 = arith.mulf %97, %98 : vector<256x128xf32>
    %100 = math.roundeven %99 : vector<256x128xf32>
    %cst_73 = arith.constant 0.0666666701 : f32
    %101 = vector.broadcast %cst_73 : f32 to vector<256x128xf32>
    %102 = arith.mulf %100, %101 : vector<256x128xf32>
    %103 = arith.truncf %102 : vector<256x128xf32> to vector<256x128xbf16>
    %c0_74 = arith.constant 0 : index
    %c0_75 = arith.constant 0 : index
    %c0_76 = arith.constant 0 : index
    %104 = vector.load %arg5[%c0_74, %c0_75, %c0_76] : memref<1x256x128xbf16, #tpu.memory_space<vmem>>, vector<1x256x128xbf16>
    %105 = vector.shape_cast %104 : vector<1x256x128xbf16> to vector<256x128xbf16>
    %106 = vector.shape_cast %103 : vector<256x128xbf16> to vector<1x256x128xbf16>
    tpu.vector_store %arg5[%c0_74, %c0_75, %c0_76], %106 {strides = array<i32>} : memref<1x256x128xbf16, #tpu.memory_space<vmem>>, vector<1x256x128xbf16>,
    return
  }
  func.func @transform_0(%arg0: i32, %arg1: i32) -> (i32, i32, i32, i32) {
    %c0_i32 = arith.constant 0 : i32
    %c0_i32_0 = arith.constant 0 : i32
    %c0_i32_1 = arith.constant 0 : i32
    %c0_i32_2 = arith.constant 0 : i32
    return %arg0, %c0_i32, %c0_i32_0, %c0_i32_1 : i32, i32, i32, i32
  }
  func.func @transform_1(%arg0: i32, %arg1: i32) -> (i32, i32, i32) {
    %c0_i32 = arith.constant 0 : i32
    %c0_i32_0 = arith.constant 0 : i32
    %c0_i32_1 = arith.constant 0 : i32
    %c0_i32_2 = arith.constant 0 : i32
    return %c0_i32, %c0_i32_0, %c0_i32_1 : i32, i32, i32
  }
  func.func @transform_2(%arg0: i32, %arg1: i32) -> (i32, i32) {
    %c0_i32 = arith.constant 0 : i32
    %c0_i32_0 = arith.constant 0 : i32
    %c0_i32_1 = arith.constant 0 : i32
    return %c0_i32, %c0_i32_0 : i32, i32
  }
  func.func @transform_3(%arg0: i32, %arg1: i32) -> (i32, i32, i32) {
    %c0_i32 = arith.constant 0 : i32
    %c0_i32_0 = arith.constant 0 : i32
    return %arg0, %arg1, %c0_i32 : i32, i32, i32
  }
}

module attributes {stable_mosaic.version = 11 : i64} {
  func.func @_conv3x3_kernel(%arg0: i32, %arg1: i32, %arg2: memref<1x18x18x128xbf16, #tpu.memory_space<vmem>>, %arg3: memref<9x128x128xbf16, #tpu.memory_space<vmem>>, %arg4: memref<1x128xf32, #tpu.memory_space<vmem>>, %arg5: memref<1x256x128xbf16, #tpu.memory_space<vmem>>, %arg6: memref<1x256x128xbf16, #tpu.memory_space<vmem>>) attributes {dimension_semantics = [#tpu.dimension_semantics<parallel>, #tpu.dimension_semantics<arbitrary>], iteration_bounds = array<i64: 2, 1>, scalar_prefetch = 0 : i64, scratch_operands = 0 : i64, tpu.core_type = #tpu.core_type<tc>, window_params = [{transform_indices = @transform_0, window_bounds = array<i64: 1, 18, 18, 128>}, {pipeline_mode = #tpu.pipeline_mode<synchronous>, transform_indices = @transform_1, window_bounds = array<i64: 9, 128, 128>}, {pipeline_mode = #tpu.pipeline_mode<synchronous>, transform_indices = @transform_2, window_bounds = array<i64: 1, 128>}, {transform_indices = @transform_3, window_bounds = array<i64: 1, 256, 128>}, {transform_indices = @transform_4, window_bounds = array<i64: 1, 256, 128>}]} {
    %c16_i32 = arith.constant 16 : i32
    %0 = arith.muli %arg1, %c16_i32 : i32
    %1 = tpu.assume_multiple %0, 16 : i32
    %c0_i32 = arith.constant 0 : i32
    %2 = arith.addi %c0_i32, %1 : i32
    %c0_i32_0 = arith.constant 0 : i32
    %3 = arith.addi %2, %c0_i32_0 : i32
    %c0 = arith.constant 0 : index
    %4 = arith.index_cast %3 : i32 to index
    %c0_1 = arith.constant 0 : index
    %c0_2 = arith.constant 0 : index
    %5 = vector.load %arg2[%c0, %4, %c0_1, %c0_2] : memref<1x18x18x128xbf16, #tpu.memory_space<vmem>>, vector<1x16x16x128xbf16>
    %6 = vector.shape_cast %5 : vector<1x16x16x128xbf16> to vector<16x16x128xbf16>
    %c0_i32_3 = arith.constant 0 : i32
    %7 = arith.addi %c0_i32_3, %1 : i32
    %c0_i32_4 = arith.constant 0 : i32
    %8 = arith.addi %7, %c0_i32_4 : i32
    %c0_5 = arith.constant 0 : index
    %9 = arith.index_cast %8 : i32 to index
    %c1 = arith.constant 1 : index
    %c0_6 = arith.constant 0 : index
    %10 = vector.load %arg2[%c0_5, %9, %c1, %c0_6] : memref<1x18x18x128xbf16, #tpu.memory_space<vmem>>, vector<1x16x16x128xbf16>
    %11 = vector.shape_cast %10 : vector<1x16x16x128xbf16> to vector<16x16x128xbf16>
    %c0_i32_7 = arith.constant 0 : i32
    %12 = arith.addi %c0_i32_7, %1 : i32
    %c0_i32_8 = arith.constant 0 : i32
    %13 = arith.addi %12, %c0_i32_8 : i32
    %c0_9 = arith.constant 0 : index
    %14 = arith.index_cast %13 : i32 to index
    %c2 = arith.constant 2 : index
    %c0_10 = arith.constant 0 : index
    %15 = vector.load %arg2[%c0_9, %14, %c2, %c0_10] : memref<1x18x18x128xbf16, #tpu.memory_space<vmem>>, vector<1x16x16x128xbf16>
    %16 = vector.shape_cast %15 : vector<1x16x16x128xbf16> to vector<16x16x128xbf16>
    %c0_i32_11 = arith.constant 0 : i32
    %17 = arith.addi %c0_i32_11, %1 : i32
    %c1_i32 = arith.constant 1 : i32
    %18 = arith.addi %17, %c1_i32 : i32
    %c0_12 = arith.constant 0 : index
    %19 = arith.index_cast %18 : i32 to index
    %c0_13 = arith.constant 0 : index
    %c0_14 = arith.constant 0 : index
    %20 = vector.load %arg2[%c0_12, %19, %c0_13, %c0_14] : memref<1x18x18x128xbf16, #tpu.memory_space<vmem>>, vector<1x16x16x128xbf16>
    %21 = vector.shape_cast %20 : vector<1x16x16x128xbf16> to vector<16x16x128xbf16>
    %c0_i32_15 = arith.constant 0 : i32
    %22 = arith.addi %c0_i32_15, %1 : i32
    %c1_i32_16 = arith.constant 1 : i32
    %23 = arith.addi %22, %c1_i32_16 : i32
    %c0_17 = arith.constant 0 : index
    %24 = arith.index_cast %23 : i32 to index
    %c1_18 = arith.constant 1 : index
    %c0_19 = arith.constant 0 : index
    %25 = vector.load %arg2[%c0_17, %24, %c1_18, %c0_19] : memref<1x18x18x128xbf16, #tpu.memory_space<vmem>>, vector<1x16x16x128xbf16>
    %26 = vector.shape_cast %25 : vector<1x16x16x128xbf16> to vector<16x16x128xbf16>
    %c0_i32_20 = arith.constant 0 : i32
    %27 = arith.addi %c0_i32_20, %1 : i32
    %c1_i32_21 = arith.constant 1 : i32
    %28 = arith.addi %27, %c1_i32_21 : i32
    %c0_22 = arith.constant 0 : index
    %29 = arith.index_cast %28 : i32 to index
    %c2_23 = arith.constant 2 : index
    %c0_24 = arith.constant 0 : index
    %30 = vector.load %arg2[%c0_22, %29, %c2_23, %c0_24] : memref<1x18x18x128xbf16, #tpu.memory_space<vmem>>, vector<1x16x16x128xbf16>
    %31 = vector.shape_cast %30 : vector<1x16x16x128xbf16> to vector<16x16x128xbf16>
    %c0_i32_25 = arith.constant 0 : i32
    %32 = arith.addi %c0_i32_25, %1 : i32
    %c2_i32 = arith.constant 2 : i32
    %33 = arith.addi %32, %c2_i32 : i32
    %c0_26 = arith.constant 0 : index
    %34 = arith.index_cast %33 : i32 to index
    %c0_27 = arith.constant 0 : index
    %c0_28 = arith.constant 0 : index
    %35 = vector.load %arg2[%c0_26, %34, %c0_27, %c0_28] : memref<1x18x18x128xbf16, #tpu.memory_space<vmem>>, vector<1x16x16x128xbf16>
    %36 = vector.shape_cast %35 : vector<1x16x16x128xbf16> to vector<16x16x128xbf16>
    %c0_i32_29 = arith.constant 0 : i32
    %37 = arith.addi %c0_i32_29, %1 : i32
    %c2_i32_30 = arith.constant 2 : i32
    %38 = arith.addi %37, %c2_i32_30 : i32
    %c0_31 = arith.constant 0 : index
    %39 = arith.index_cast %38 : i32 to index
    %c1_32 = arith.constant 1 : index
    %c0_33 = arith.constant 0 : index
    %40 = vector.load %arg2[%c0_31, %39, %c1_32, %c0_33] : memref<1x18x18x128xbf16, #tpu.memory_space<vmem>>, vector<1x16x16x128xbf16>
    %41 = vector.shape_cast %40 : vector<1x16x16x128xbf16> to vector<16x16x128xbf16>
    %c0_i32_34 = arith.constant 0 : i32
    %42 = arith.addi %c0_i32_34, %1 : i32
    %c2_i32_35 = arith.constant 2 : i32
    %43 = arith.addi %42, %c2_i32_35 : i32
    %c0_36 = arith.constant 0 : index
    %44 = arith.index_cast %43 : i32 to index
    %c2_37 = arith.constant 2 : index
    %c0_38 = arith.constant 0 : index
    %45 = vector.load %arg2[%c0_36, %44, %c2_37, %c0_38] : memref<1x18x18x128xbf16, #tpu.memory_space<vmem>>, vector<1x16x16x128xbf16>
    %46 = vector.shape_cast %45 : vector<1x16x16x128xbf16> to vector<16x16x128xbf16>
    %47 = tpu.concatenate %6, %11, %16, %21, %26, %31, %36, %41, %46 in 2 : vector<16x16x128xbf16>, vector<16x16x128xbf16>, vector<16x16x128xbf16>, vector<16x16x128xbf16>, vector<16x16x128xbf16>, vector<16x16x128xbf16>, vector<16x16x128xbf16>, vector<16x16x128xbf16>, vector<16x16x128xbf16> -> vector<16x16x1152xbf16>
    %48 = vector.shape_cast %47 : vector<16x16x1152xbf16> to vector<256x1152xbf16>
    %c0_39 = arith.constant 0 : index
    %c0_40 = arith.constant 0 : index
    %c0_41 = arith.constant 0 : index
    %49 = vector.load %arg3[%c0_39, %c0_40, %c0_41] : memref<9x128x128xbf16, #tpu.memory_space<vmem>>, vector<9x128x128xbf16>
    %50 = vector.shape_cast %49 : vector<9x128x128xbf16> to vector<1152x128xbf16>
    %cst = arith.constant dense<0.000000e+00> : vector<256x128xf32>
    %51 = tpu.matmul %48, %50, %cst {dimension_numbers = #tpu.dot_dimension_numbers<[1], [0], [0], [1], [0, 0, 1, 1], [], []>} : vector<256x1152xbf16>, vector<1152x128xbf16>, vector<256x128xf32> -> vector<256x128xf32>
    %c0_42 = arith.constant 0 : index
    %c0_43 = arith.constant 0 : index
    %52 = vector.load %arg4[%c0_42, %c0_43] : memref<1x128xf32, #tpu.memory_space<vmem>>, vector<1x128xf32>
    %53 = vector.broadcast %52 : vector<1x128xf32> to vector<256x128xf32>
    %54 = arith.addf %51, %53 : vector<256x128xf32>
    %c0_44 = arith.constant 0 : index
    %c0_45 = arith.constant 0 : index
    %c0_46 = arith.constant 0 : index
    %55 = vector.load %arg5[%c0_44, %c0_45, %c0_46] : memref<1x256x128xbf16, #tpu.memory_space<vmem>>, vector<1x256x128xbf16>
    %56 = vector.shape_cast %55 : vector<1x256x128xbf16> to vector<256x128xbf16>
    %57 = arith.extf %56 : vector<256x128xbf16> to vector<256x128xf32>
    %58 = arith.addf %54, %57 : vector<256x128xf32>
    %cst_47 = arith.constant 0.000000e+00 : f32
    %cst_48 = arith.constant 1.000000e+00 : f32
    %59 = vector.broadcast %cst_47 : f32 to vector<256x128xf32>
    %60 = arith.maximumf %59, %58 : vector<256x128xf32>
    %61 = vector.broadcast %cst_48 : f32 to vector<256x128xf32>
    %62 = arith.minimumf %61, %60 : vector<256x128xf32>
    %cst_49 = arith.constant 1.500000e+01 : f32
    %63 = vector.broadcast %cst_49 : f32 to vector<256x128xf32>
    %64 = arith.mulf %62, %63 : vector<256x128xf32>
    %65 = math.roundeven %64 : vector<256x128xf32>
    %cst_50 = arith.constant 0.0666666701 : f32
    %66 = vector.broadcast %cst_50 : f32 to vector<256x128xf32>
    %67 = arith.mulf %65, %66 : vector<256x128xf32>
    %68 = arith.truncf %67 : vector<256x128xf32> to vector<256x128xbf16>
    %c0_51 = arith.constant 0 : index
    %c0_52 = arith.constant 0 : index
    %c0_53 = arith.constant 0 : index
    %69 = vector.load %arg6[%c0_51, %c0_52, %c0_53] : memref<1x256x128xbf16, #tpu.memory_space<vmem>>, vector<1x256x128xbf16>
    %70 = vector.shape_cast %69 : vector<1x256x128xbf16> to vector<256x128xbf16>
    %71 = vector.shape_cast %68 : vector<256x128xbf16> to vector<1x256x128xbf16>
    tpu.vector_store %arg6[%c0_51, %c0_52, %c0_53], %71 {strides = array<i32>} : memref<1x256x128xbf16, #tpu.memory_space<vmem>>, vector<1x256x128xbf16>,
    return
  }
  func.func @transform_0(%arg0: i32, %arg1: i32) -> (i32, i32, i32, i32) {
    %c0_i32 = arith.constant 0 : i32
    %c0_i32_0 = arith.constant 0 : i32
    %c0_i32_1 = arith.constant 0 : i32
    %c0_i32_2 = arith.constant 0 : i32
    return %arg0, %c0_i32, %c0_i32_0, %c0_i32_1 : i32, i32, i32, i32
  }
  func.func @transform_1(%arg0: i32, %arg1: i32) -> (i32, i32, i32) {
    %c0_i32 = arith.constant 0 : i32
    %c0_i32_0 = arith.constant 0 : i32
    %c0_i32_1 = arith.constant 0 : i32
    %c0_i32_2 = arith.constant 0 : i32
    return %c0_i32, %c0_i32_0, %c0_i32_1 : i32, i32, i32
  }
  func.func @transform_2(%arg0: i32, %arg1: i32) -> (i32, i32) {
    %c0_i32 = arith.constant 0 : i32
    %c0_i32_0 = arith.constant 0 : i32
    %c0_i32_1 = arith.constant 0 : i32
    return %c0_i32, %c0_i32_0 : i32, i32
  }
  func.func @transform_3(%arg0: i32, %arg1: i32) -> (i32, i32, i32) {
    %c0_i32 = arith.constant 0 : i32
    %c0_i32_0 = arith.constant 0 : i32
    return %arg0, %arg1, %c0_i32 : i32, i32, i32
  }
  func.func @transform_4(%arg0: i32, %arg1: i32) -> (i32, i32, i32) {
    %c0_i32 = arith.constant 0 : i32
    %c0_i32_0 = arith.constant 0 : i32
    return %arg0, %arg1, %c0_i32 : i32, i32, i32
  }
}

</mosaic_0001>

<llo_original>
// kernel: basic_block_q_forward.2
$region0: #{basic_block_q_forward.2}
  #allocation0 [shape = 'u32[]', space=smem, size = 0x4, offset = 0x4, fixed_abs, tag = 'smem constant byte address 0x4 - core index']
  #allocation1 [shape = 'u32[72,128]{1,0:T(1,128)}', space=vmem, size = 0x9000, scoped, tag = 'internal scratch']
  %s0 = inlined_call_operand.vmem [shape: bf16[2,18,18,8], index: 0, kind: input, shape index: {}]
  %s1 = inlined_call_operand.vmem [shape: bf16[9,8,128], index: 1, kind: input, shape index: {}]
  %s2 = inlined_call_operand.vmem [shape: f32[1,128], index: 2, kind: input, shape index: {}]
  %s3 = inlined_call_operand.vmem [shape: bf16[2,256,128], index: 3, kind: output, shape index: {}]
  %s4 = sld [smem:[#allocation0]]
  $region45: #{basic_block_q_forward.2} parent=0
    _
  %s6 = ssub.s32 1, %s4
  %s7 = scalar_select 0, %s6, %s4
  loop: start=0, step=1, limit=4
  $region2: #{basic_block_q_forward.2} parent=0 // loop_pre_header
    _
  $region3: #{basic_block_q_forward.2} parent=0 // loop_header
    %s9 = sphi 0, %s13
    %p10 = scmp.ge.s32.totalorder %s9, 4
    %s16 = sphi 0, %s28
    %s17 = sphi 0, %s24
    %s18 = sphi 0, %s16
    %s19 = sphi 0, %s17
    %s20 = sphi 0, %s18
    %s21 = sphi 0, %s19
    %s31 = sphi 0, %s33
    %s34 = sphi 0, %s31
    %s35 = sphi 0, %s34
    %s51 = sphi 0, %s35
    %s55 = sphi 0, %s55
    %s57 = sphi 0, %s55
    %s58 = sphi 0, %s57
    %s72 = sphi 0, %s58
    %s76 = sphi 0, %s76
    %s78 = sphi 0, %s76
    %s79 = sphi 0, %s78
    %s93 = sphi 0, %s79
    %s101 = sphi 0, %s103
    %s104 = sphi 0, %s101
    %s105 = sphi 0, %s104
    %s121 = sphi 0, %s105
  $region4: #{basic_block_q_forward.2} parent=0 // loop_header_branch
    %12 = sbr.rel (%p10) target = $region8
  $region5: #{basic_block_q_forward.2} parent=0 // loop_body
    %s14 = ssub.s32 %s9, 1
    %s15 = ssub.s32 %s9, 2
    %s22 = sadd.s32 1, %s17
    %p23 = scmp.ge.s32.totalorder %s22, 1
    %s24 = scalar_select %p23, 0, %s22
    %s25 = sadd.s32 1, %s16
    %s26 = scalar_select %p23, %s25, %s16
    %p27 = scmp.ge.s32.totalorder %s26, 2
    %s28 = scalar_select %p27, 0, %s26
    %s29 = ssub.s32 %s16, %s28
    %p30 = scmp.eq.s32.totalorder %s29, 0
    %s32 = sadd.s32 %s31, 1
    %s33 = scalar_select %p30, %s31, %s32
    %p36 = pneg %p30
    %p37 = scmp.eq.s32.totalorder %s9, 1
    %p38 = por %p36, %p37
    %p39 = scmp.ne.s32.totalorder %s31, %s34
    %p40 = scmp.eq.s32.totalorder %s9, 0
    %p41 = por %p39, %p40
    %p42 = scmp.ne.s32.totalorder %s31, %s34
    %p43 = scmp.eq.s32.totalorder %s14, 1
    %p44 = por %p42, %p43
    %p45 = scmp.ne.s32.totalorder %s34, %s35
    %p46 = scmp.eq.s32.totalorder %s14, 0
    %p47 = por %p45, %p46
    %p48 = scmp.ne.s32.totalorder %s34, %s35
    %p49 = scmp.eq.s32.totalorder %s15, 1
    %p50 = por %p48, %p49
    %p52 = scmp.ne.s32.totalorder %s35, %s51
    %p53 = scmp.eq.s32.totalorder %s15, 0
    %p54 = por %p52, %p53
    %s56 = sadd.s32 %s55, 1
    %p59 = scmp.eq.s32.totalorder %s9, 1
    %p60 = scmp.ne.s32.totalorder %s55, %s57
    %p61 = scmp.eq.s32.totalorder %s9, 0
    %p62 = por %p60, %p61
    %p63 = scmp.ne.s32.totalorder %s55, %s57
    %p64 = scmp.eq.s32.totalorder %s14, 1
    %p65 = por %p63, %p64
    %p66 = scmp.ne.s32.totalorder %s57, %s58
    %p67 = scmp.eq.s32.totalorder %s14, 0
    %p68 = por %p66, %p67
    %p69 = scmp.ne.s32.totalorder %s57, %s58
    %p70 = scmp.eq.s32.totalorder %s15, 1
    %p71 = por %p69, %p70
    %p73 = scmp.ne.s32.totalorder %s58, %s72
    %p74 = scmp.eq.s32.totalorder %s15, 0
    %p75 = por %p73, %p74
    %s77 = sadd.s32 %s76, 1
    %p80 = scmp.eq.s32.totalorder %s9, 1
    %p81 = scmp.ne.s32.totalorder %s76, %s78
    %p82 = scmp.eq.s32.totalorder %s9, 0
    %p83 = por %p81, %p82
    %p84 = scmp.ne.s32.totalorder %s76, %s78
    %p85 = scmp.eq.s32.totalorder %s14, 1
    %p86 = por %p84, %p85
    %p87 = scmp.ne.s32.totalorder %s78, %s79
    %p88 = scmp.eq.s32.totalorder %s14, 0
    %p89 = por %p87, %p88
    %p90 = scmp.ne.s32.totalorder %s78, %s79
    %p91 = scmp.eq.s32.totalorder %s15, 1
    %p92 = por %p90, %p91
    %p94 = scmp.ne.s32.totalorder %s79, %s93
    %p95 = scmp.eq.s32.totalorder %s15, 0
    %p96 = por %p94, %p95
    %s97 = ssub.s32 %s16, %s28
    %s98 = ssub.s32 %s17, %s24
    %s99 = sor.u32 %s97, %s98
    %p100 = scmp.eq.s32.totalorder %s99, 0
    %s102 = sadd.s32 %s101, 1
    %s103 = scalar_select %p100, %s101, %s102
    %p106 = pneg %p100
    %p107 = scmp.eq.s32.totalorder %s9, 1
    %p108 = por %p106, %p107
    %p109 = scmp.ne.s32.totalorder %s101, %s104
    %p110 = scmp.eq.s32.totalorder %s9, 0
    %p111 = por %p109, %p110
    %p112 = scmp.ne.s32.totalorder %s101, %s104
    %p113 = scmp.eq.s32.totalorder %s14, 1
    %p114 = por %p112, %p113
    %p115 = scmp.ne.s32.totalorder %s104, %s105
    %p116 = scmp.eq.s32.totalorder %s14, 0
    %p117 = por %p115, %p116
    %p118 = scmp.ne.s32.totalorder %s104, %s105
    %p119 = scmp.eq.s32.totalorder %s15, 1
    %p120 = por %p118, %p119
    %p122 = scmp.ne.s32.totalorder %s105, %s121
    %p123 = scmp.eq.s32.totalorder %s15, 0
    %p124 = por %p122, %p123
    %p125 = scmp.le.s32.totalorder 1, %s9
    %p126 = scmp.lt.s32.totalorder %s9, 3
    %p127 = pnand %p125, %p126
    %p128 = pneg %p127
    // Predicated region
    $region9: #{basic_block_q_forward.2} parent=5 // pred_check
      _
    $region10: #{basic_block_q_forward.2} parent=5 // pred_check_branch
      %130 = sbr.rel (%p127) target = $region12
    $region11: #{basic_block_q_forward.2} parent=5 // pred_region
      %s131 = ssub.s32 %s9, 1
      // Predicated region
      $region13: #{basic_block_q_forward.2} parent=11 // pred_check
        %p132 = pneg %p68
      $region14: #{basic_block_q_forward.2} parent=11 // pred_check_branch
        %134 = sbr.rel (%p132) target = $region16
      $region15: #{basic_block_q_forward.2} parent=11 // pred_region
        _
      $region16: #{basic_block_q_forward.2} parent=11 // pred_fallthru
        _
      // Predicated region
      $region17: #{basic_block_q_forward.2} parent=11 // pred_check
        %p135 = pneg %p89
      $region18: #{basic_block_q_forward.2} parent=11 // pred_check_branch
        %137 = sbr.rel (%p135) target = $region20
      $region19: #{basic_block_q_forward.2} parent=11 // pred_region
        _
      $region20: #{basic_block_q_forward.2} parent=11 // pred_fallthru
        _
    $region12: #{basic_block_q_forward.2} parent=5 // pred_fallthru
      _
    %p138 = scmp.lt.s32.totalorder %s9, 2
    // Predicated region
    $region21: #{basic_block_q_forward.2} parent=5 // pred_check
      %p139 = pneg %p138
    $region22: #{basic_block_q_forward.2} parent=5 // pred_check_branch
      %141 = sbr.rel (%p139) target = $region24
    $region23: #{basic_block_q_forward.2} parent=5 // pred_region
      // Predicated region
      $region25: #{basic_block_q_forward.2} parent=23 // pred_check
        %p142 = pneg %p41
      $region26: #{basic_block_q_forward.2} parent=23 // pred_check_branch
        %144 = sbr.rel (%p142) target = $region28
      $region27: #{basic_block_q_forward.2} parent=23 // pred_region
        %p145 = scmp.lt.s32.totalorder %s16, 1
        %s146 = scalar_select %p145, %s16, 1
        %s147 = smul.addr %s146, 54
        %s148 = smul.addr %s147, 4
        %s149 = scalar_lea.vmem %s0, %s148
      $region28: #{basic_block_q_forward.2} parent=23 // pred_fallthru
        _
    $region24: #{basic_block_q_forward.2} parent=5 // pred_fallthru
      _
    %p150 = scmp.le.s32.totalorder 1, %s9
    %p151 = scmp.lt.s32.totalorder %s9, 3
    %p152 = pnand %p150, %p151
    %p153 = pneg %p152
    // Predicated region
    $region29: #{basic_block_q_forward.2} parent=5 // pred_check
      _
    $region30: #{basic_block_q_forward.2} parent=5 // pred_check_branch
      %155 = sbr.rel (%p152) target = $region32
    $region31: #{basic_block_q_forward.2} parent=5 // pred_region
      %s156 = ssub.s32 %s9, 1
      %p157 = scmp.lt.s32.totalorder %s18, 1
      %s158 = scalar_select %p157, %s18, 1
      %s159 = smul.addr %s158, 54
      %s160 = smul.addr %s159, 4
      %s161 = scalar_lea.vmem %s0, %s160
      %p162 = pneg %p47
      %p163 = pneg %p44
      %p164 = pneg %p68
      %p165 = pneg %p65
      %p166 = pneg %p89
      %p167 = pneg %p86
      %p168 = pneg %p117
      %p169 = pneg %p114
      %s170 = smul.u32 32, %s19
      %p171 = scmp.lt.s32.totalorder %s18, 1
      %s172 = scalar_select %p171, %s18, 1
      %p173 = scmp.lt.s32.totalorder %s170, 31
      %s174 = scalar_select %p173, %s170, 31
      %s175 = smul.addr %s172, 32
      %s176 = sadd.s32 %s174, %s175
      %s177 = smul.addr %s176, 4
      %s178 = scalar_lea.vmem %s3, %s177
      %p179 = scmp.lt.s32.totalorder %s18, 1
      %s180 = scalar_select %p179, %s18, 1
      %s181 = smul.addr %s180, 54
      %s182 = smul.addr %s181, 4
      %s183 = scalar_lea.vmem %s0, %s182
      %s184 = smul.u32 32, %s19
      %p185 = scmp.lt.s32.totalorder %s18, 1
      %s186 = scalar_select %p185, %s18, 1
      %p187 = scmp.lt.s32.totalorder %s184, 31
      %s188 = scalar_select %p187, %s184, 31
      %s189 = smul.addr %s186, 32
      %s190 = sadd.s32 %s188, %s189
      %s191 = smul.addr %s190, 4
      %s192 = scalar_lea.vmem %s3, %s191
      %s193 = smul.u32 32, %s19
      %s195 = smul.u32 %s19, 16
      %s196 = smul.u32 %s195, 3
      %s197 = smul.addr %s196, 4
      %s198 = scalar_lea.vmem %s183, %s197
      %v199 = vld [vmem:[%s198] sm:$0xf]
      %v200 = vld [vmem:[%s198 + $0x4] sm:$0xf]
      %v201 = vld [vmem:[%s198 + $0xc] sm:$0xf]
      %v202 = vld [vmem:[%s198 + $0x10] sm:$0xf]
      %v203 = vld [vmem:[%s198 + $0x18] sm:$0xf]
      %v204 = vld [vmem:[%s198 + $0x1c] sm:$0xf]
      %v205 = vld [vmem:[%s198 + $0x24] sm:$0xf]
      %v206 = vld [vmem:[%s198 + $0x28] sm:$0xf]
      %v207 = vld [vmem:[%s198 + $0x30] sm:$0xf]
      %v208 = vld [vmem:[%s198 + $0x34] sm:$0xf]
      %v209 = vld [vmem:[%s198 + $0x3c] sm:$0xf]
      %v210 = vld [vmem:[%s198 + $0x40] sm:$0xf]
      %v211 = vld [vmem:[%s198 + $0x48] sm:$0xf]
      %v212 = vld [vmem:[%s198 + $0x4c] sm:$0xf]
      %v213 = vld [vmem:[%s198 + $0x54] sm:$0xf]
      %v214 = vld [vmem:[%s198 + $0x58] sm:$0xf]
      %v215 = vld [vmem:[%s198 + $0x60] sm:$0xf]
      %v216 = vld [vmem:[%s198 + $0x64] sm:$0xf]
      %v217 = vld [vmem:[%s198 + $0x6c] sm:$0xf]
      %v218 = vld [vmem:[%s198 + $0x70] sm:$0xf]
      %v219 = vld [vmem:[%s198 + $0x78] sm:$0xf]
      %v220 = vld [vmem:[%s198 + $0x7c] sm:$0xf]
      %v221 = vld [vmem:[%s198 + $0x84] sm:$0xf]
      %v222 = vld [vmem:[%s198 + $0x88] sm:$0xf]
      %v223 = vld [vmem:[%s198 + $0x90] sm:$0xf]
      %v224 = vld [vmem:[%s198 + $0x94] sm:$0xf]
      %v225 = vld [vmem:[%s198 + $0x9c] sm:$0xf]
      %v226 = vld [vmem:[%s198 + $0xa0] sm:$0xf]
      %v227 = vld [vmem:[%s198 + $0xa8] sm:$0xf]
      %v228 = vld [vmem:[%s198 + $0xac] sm:$0xf]
      %v229 = vld [vmem:[%s198 + $0xb4] sm:$0xf]
      %v230 = vld [vmem:[%s198 + $0xb8] sm:$0xf]
      %v231 = vld [vmem:[%s1] sm:$0xf]
      %v232 = vld [vmem:[%s198 + $0x8] sm:$0x1]
      %v233 = vld [vmem:[%s198 + $0x14] sm:$0x1]
      %v234 = vld [vmem:[%s198 + $0x20] sm:$0x1]
      %v235 = vld [vmem:[%s198 + $0x2c] sm:$0x1]
      %v236 = vld [vmem:[%s198 + $0x38] sm:$0x1]
      %v237 = vld [vmem:[%s198 + $0x44] sm:$0x1]
      %v238 = vld [vmem:[%s198 + $0x50] sm:$0x1]
      %v239 = vld [vmem:[%s198 + $0x5c] sm:$0x1]
      %v240 = vld [vmem:[%s198 + $0x68] sm:$0x1]
      %v241 = vld [vmem:[%s198 + $0x74] sm:$0x1]
      %v242 = vld [vmem:[%s198 + $0x80] sm:$0x1]
      %v243 = vld [vmem:[%s198 + $0x8c] sm:$0x1]
      %v244 = vld [vmem:[%s198 + $0x98] sm:$0x1]
      %v245 = vld [vmem:[%s198 + $0xa4] sm:$0x1]
      %v246 = vld [vmem:[%s198 + $0xb0] sm:$0x1]
      %v247 = vld [vmem:[%s198 + $0xbc] sm:$0x1]
      %vm248 = vsmask.f32 3328
      %vm249 = vsmask.f32 7440
      %vm250 = vmor %vm248, %vm249
      %v252 = vshrl.u32 %v199, 16
      %v254 = vrot.slane %v252, 4
      %v255 = vshll.u32 %v199, 16
      %v257 = vrot.slane %v255, 5
      %v258 = vor.u32 %v254, %v257
      %v259 = vrot.slane %v258, 4
      %v261 = vshll.u32 %v200, 16
      %v263 = vrot.slane %v261, 5
      %v264 = vsel %vm250, %v259, %v263
      %v265 = vshrl.u32 %v200, 16
      %v267 = vrot.slane %v265, 4
      %v268 = vor.u32 %v267, %v263
      %v269 = vrot.slane %v268, 4
      %v271 = vshll.u32 %v232, 16
      %v273 = vrot.slane %v271, 5
      %v274 = vsel %vm250, %v269, %v273
      %v276 = vshrl.u32 %v201, 16
      %v278 = vrot.slane %v276, 4
      %v279 = vshll.u32 %v201, 16
      %v281 = vrot.slane %v279, 5
      %v282 = vor.u32 %v278, %v281
      %v283 = vrot.slane %v282, 4
      %v285 = vshll.u32 %v202, 16
      %v287 = vrot.slane %v285, 5
      %v288 = vsel %vm250, %v283, %v287
      %v289 = vshrl.u32 %v202, 16
      %v291 = vrot.slane %v289, 4
      %v292 = vor.u32 %v291, %v287
      %v293 = vrot.slane %v292, 4
      %v295 = vshll.u32 %v233, 16
      %v297 = vrot.slane %v295, 5
      %v298 = vsel %vm250, %v293, %v297
      %v300 = vshrl.u32 %v203, 16
      %v302 = vrot.slane %v300, 4
      %v303 = vshll.u32 %v203, 16
      %v305 = vrot.slane %v303, 5
      %v306 = vor.u32 %v302, %v305
      %v307 = vrot.slane %v306, 4
      %v309 = vshll.u32 %v204, 16
      %v311 = vrot.slane %v309, 5
      %v312 = vsel %vm250, %v307, %v311
      %v313 = vshrl.u32 %v204, 16
      %v315 = vrot.slane %v313, 4
      %v316 = vor.u32 %v315, %v311
      %v317 = vrot.slane %v316, 4
      %v319 = vshll.u32 %v234, 16
      %v321 = vrot.slane %v319, 5
      %v322 = vsel %vm250, %v317, %v321
      %v324 = vshrl.u32 %v205, 16
      %v326 = vrot.slane %v324, 4
      %v327 = vshll.u32 %v205, 16
      %v329 = vrot.slane %v327, 5
      %v330 = vor.u32 %v326, %v329
      %v331 = vrot.slane %v330, 4
      %v333 = vshll.u32 %v206, 16
      %v335 = vrot.slane %v333, 5
      %v336 = vsel %vm250, %v331, %v335
      %v337 = vshrl.u32 %v206, 16
      %v339 = vrot.slane %v337, 4
      %v340 = vor.u32 %v339, %v335
      %v341 = vrot.slane %v340, 4
      %v343 = vshll.u32 %v235, 16
      %v345 = vrot.slane %v343, 5
      %v346 = vsel %vm250, %v341, %v345
      %v348 = vshrl.u32 %v207, 16
      %v350 = vrot.slane %v348, 4
      %v351 = vshll.u32 %v207, 16
      %v353 = vrot.slane %v351, 5
      %v354 = vor.u32 %v350, %v353
      %v355 = vrot.slane %v354, 4
      %v357 = vshll.u32 %v208, 16
      %v359 = vrot.slane %v357, 5
      %v360 = vsel %vm250, %v355, %v359
      %v361 = vshrl.u32 %v208, 16
      %v363 = vrot.slane %v361, 4
      %v364 = vor.u32 %v363, %v359
      %v365 = vrot.slane %v364, 4
      %v367 = vshll.u32 %v236, 16
      %v369 = vrot.slane %v367, 5
      %v370 = vsel %vm250, %v365, %v369
      %v372 = vshrl.u32 %v209, 16
      %v374 = vrot.slane %v372, 4
      %v375 = vshll.u32 %v209, 16
      %v377 = vrot.slane %v375, 5
      %v378 = vor.u32 %v374, %v377
      %v379 = vrot.slane %v378, 4
      %v381 = vshll.u32 %v210, 16
      %v383 = vrot.slane %v381, 5
      %v384 = vsel %vm250, %v379, %v383
      %v385 = vshrl.u32 %v210, 16
      %v387 = vrot.slane %v385, 4
      %v388 = vor.u32 %v387, %v383
      %v389 = vrot.slane %v388, 4
      %v391 = vshll.u32 %v237, 16
      %v393 = vrot.slane %v391, 5
      %v394 = vsel %vm250, %v389, %v393
      %v396 = vshrl.u32 %v211, 16
      %v398 = vrot.slane %v396, 4
      %v399 = vshll.u32 %v211, 16
      %v401 = vrot.slane %v399, 5
      %v402 = vor.u32 %v398, %v401
      %v403 = vrot.slane %v402, 4
      %v405 = vshll.u32 %v212, 16
      %v407 = vrot.slane %v405, 5
      %v408 = vsel %vm250, %v403, %v407
      %v409 = vshrl.u32 %v212, 16
      %v411 = vrot.slane %v409, 4
      %v412 = vor.u32 %v411, %v407
      %v413 = vrot.slane %v412, 4
      %v415 = vshll.u32 %v238, 16
      %v417 = vrot.slane %v415, 5
      %v418 = vsel %vm250, %v413, %v417
      %v420 = vshrl.u32 %v213, 16
      %v422 = vrot.slane %v420, 4
      %v423 = vshll.u32 %v213, 16
      %v425 = vrot.slane %v423, 5
      %v426 = vor.u32 %v422, %v425
      %v427 = vrot.slane %v426, 4
      %v429 = vshll.u32 %v214, 16
      %v431 = vrot.slane %v429, 5
      %v432 = vsel %vm250, %v427, %v431
      %v433 = vshrl.u32 %v214, 16
      %v435 = vrot.slane %v433, 4
      %v436 = vor.u32 %v435, %v431
      %v437 = vrot.slane %v436, 4
      %v439 = vshll.u32 %v239, 16
      %v441 = vrot.slane %v439, 5
      %v442 = vsel %vm250, %v437, %v441
      %v444 = vshrl.u32 %v215, 16
      %v446 = vrot.slane %v444, 4
      %v447 = vshll.u32 %v215, 16
      %v449 = vrot.slane %v447, 5
      %v450 = vor.u32 %v446, %v449
      %v451 = vrot.slane %v450, 4
      %v453 = vshll.u32 %v216, 16
      %v455 = vrot.slane %v453, 5
      %v456 = vsel %vm250, %v451, %v455
      %v457 = vshrl.u32 %v216, 16
      %v459 = vrot.slane %v457, 4
      %v460 = vor.u32 %v459, %v455
      %v461 = vrot.slane %v460, 4
      %v463 = vshll.u32 %v240, 16
      %v465 = vrot.slane %v463, 5
      %v466 = vsel %vm250, %v461, %v465
      %v468 = vshrl.u32 %v217, 16
      %v470 = vrot.slane %v468, 4
      %v471 = vshll.u32 %v217, 16
      %v473 = vrot.slane %v471, 5
      %v474 = vor.u32 %v470, %v473
      %v475 = vrot.slane %v474, 4
      %v477 = vshll.u32 %v218, 16
      %v479 = vrot.slane %v477, 5
      %v480 = vsel %vm250, %v475, %v479
      %v481 = vshrl.u32 %v218, 16
      %v483 = vrot.slane %v481, 4
      %v484 = vor.u32 %v483, %v479
      %v485 = vrot.slane %v484, 4
      %v487 = vshll.u32 %v241, 16
      %v489 = vrot.slane %v487, 5
      %v490 = vsel %vm250, %v485, %v489
      %v492 = vshrl.u32 %v219, 16
      %v494 = vrot.slane %v492, 4
      %v495 = vshll.u32 %v219, 16
      %v497 = vrot.slane %v495, 5
      %v498 = vor.u32 %v494, %v497
      %v499 = vrot.slane %v498, 4
      %v501 = vshll.u32 %v220, 16
      %v503 = vrot.slane %v501, 5
      %v504 = vsel %vm250, %v499, %v503
      %v505 = vshrl.u32 %v220, 16
      %v507 = vrot.slane %v505, 4
      %v508 = vor.u32 %v507, %v503
      %v509 = vrot.slane %v508, 4
      %v511 = vshll.u32 %v242, 16
      %v513 = vrot.slane %v511, 5
      %v514 = vsel %vm250, %v509, %v513
      %v516 = vshrl.u32 %v221, 16
      %v518 = vrot.slane %v516, 4
      %v519 = vshll.u32 %v221, 16
      %v521 = vrot.slane %v519, 5
      %v522 = vor.u32 %v518, %v521
      %v523 = vrot.slane %v522, 4
      %v525 = vshll.u32 %v222, 16
      %v527 = vrot.slane %v525, 5
      %v528 = vsel %vm250, %v523, %v527
      %v529 = vshrl.u32 %v222, 16
      %v531 = vrot.slane %v529, 4
      %v532 = vor.u32 %v531, %v527
      %v533 = vrot.slane %v532, 4
      %v535 = vshll.u32 %v243, 16
      %v537 = vrot.slane %v535, 5
      %v538 = vsel %vm250, %v533, %v537
      %v540 = vshrl.u32 %v223, 16
      %v542 = vrot.slane %v540, 4
      %v543 = vshll.u32 %v223, 16
      %v545 = vrot.slane %v543, 5
      %v546 = vor.u32 %v542, %v545
      %v547 = vrot.slane %v546, 4
      %v549 = vshll.u32 %v224, 16
      %v551 = vrot.slane %v549, 5
      %v552 = vsel %vm250, %v547, %v551
      %v553 = vshrl.u32 %v224, 16
      %v555 = vrot.slane %v553, 4
      %v556 = vor.u32 %v555, %v551
      %v557 = vrot.slane %v556, 4
      %v559 = vshll.u32 %v244, 16
      %v561 = vrot.slane %v559, 5
      %v562 = vsel %vm250, %v557, %v561
      %v564 = vshrl.u32 %v225, 16
      %v566 = vrot.slane %v564, 4
      %v567 = vshll.u32 %v225, 16
      %v569 = vrot.slane %v567, 5
      %v570 = vor.u32 %v566, %v569
      %v571 = vrot.slane %v570, 4
      %v573 = vshll.u32 %v226, 16
      %v575 = vrot.slane %v573, 5
      %v576 = vsel %vm250, %v571, %v575
      %v577 = vshrl.u32 %v226, 16
      %v579 = vrot.slane %v577, 4
      %v580 = vor.u32 %v579, %v575
      %v581 = vrot.slane %v580, 4
      %v583 = vshll.u32 %v245, 16
      %v585 = vrot.slane %v583, 5
      %v586 = vsel %vm250, %v581, %v585
      %v588 = vshrl.u32 %v227, 16
      %v590 = vrot.slane %v588, 4
      %v591 = vshll.u32 %v227, 16
      %v593 = vrot.slane %v591, 5
      %v594 = vor.u32 %v590, %v593
      %v595 = vrot.slane %v594, 4
      %v597 = vshll.u32 %v228, 16
      %v599 = vrot.slane %v597, 5
      %v600 = vsel %vm250, %v595, %v599
      %v601 = vshrl.u32 %v228, 16
      %v603 = vrot.slane %v601, 4
      %v604 = vor.u32 %v603, %v599
      %v605 = vrot.slane %v604, 4
      %v607 = vshll.u32 %v246, 16
      %v609 = vrot.slane %v607, 5
      %v610 = vsel %vm250, %v605, %v609
      %v612 = vshrl.u32 %v229, 16
      %v614 = vrot.slane %v612, 4
      %v615 = vshll.u32 %v229, 16
      %v617 = vrot.slane %v615, 5
      %v618 = vor.u32 %v614, %v617
      %v619 = vrot.slane %v618, 4
      %v621 = vshll.u32 %v230, 16
      %v623 = vrot.slane %v621, 5
      %v624 = vsel %vm250, %v619, %v623
      %v625 = vshrl.u32 %v230, 16
      %v627 = vrot.slane %v625, 4
      %v628 = vor.u32 %v627, %v623
      %v629 = vrot.slane %v628, 4
      %v631 = vshll.u32 %v247, 16
      %v633 = vrot.slane %v631, 5
      %v634 = vsel %vm250, %v629, %v633
      %s635 = scalar_lea.vmem %s1, 4
      %v636 = vld [vmem:[%s635] sm:$0xf]
      %v637 = vunpack.c.l.b16 %v264
      %v638 = vunpack.c.l.b16 %v274
      %v639 = vunpack.c.l.b16 %v288
      %v640 = vunpack.c.l.b16 %v298
      %v641 = vunpack.c.l.b16 %v312
      %v642 = vunpack.c.l.b16 %v322
      %v643 = vunpack.c.l.b16 %v336
      %v644 = vunpack.c.l.b16 %v346
      %v645 = vunpack.c.l.b16 %v360
      %v646 = vunpack.c.l.b16 %v370
      %v647 = vunpack.c.l.b16 %v384
      %v648 = vunpack.c.l.b16 %v394
      %v649 = vunpack.c.l.b16 %v408
      %v650 = vunpack.c.l.b16 %v418
      %v651 = vunpack.c.l.b16 %v432
      %v652 = vunpack.c.l.b16 %v442
      %v653 = vunpack.c.l.b16 %v456
      %v654 = vunpack.c.l.b16 %v466
      %v655 = vunpack.c.l.b16 %v480
      %v656 = vunpack.c.l.b16 %v490
      %v657 = vunpack.c.l.b16 %v504
      %v658 = vunpack.c.l.b16 %v514
      %v659 = vunpack.c.l.b16 %v528
      %v660 = vunpack.c.l.b16 %v538
      %v661 = vunpack.c.l.b16 %v552
      %v662 = vunpack.c.l.b16 %v562
      %v663 = vunpack.c.l.b16 %v576
      %v664 = vunpack.c.l.b16 %v586
      %v665 = vunpack.c.l.b16 %v600
      %v666 = vunpack.c.l.b16 %v610
      %v667 = vunpack.c.l.b16 %v624
      %v668 = vunpack.c.l.b16 %v634
      %v669 = vpack.c.b16 %v638, %v637
      %v670 = vpack.c.b16 %v640, %v639
      %v671 = vpack.c.b16 %v642, %v641
      %v672 = vpack.c.b16 %v644, %v643
      %v673 = vpack.c.b16 %v646, %v645
      %v674 = vpack.c.b16 %v648, %v647
      %v675 = vpack.c.b16 %v650, %v649
      %v676 = vpack.c.b16 %v652, %v651
      %v677 = vpack.c.b16 %v654, %v653
      %v678 = vpack.c.b16 %v656, %v655
      %v679 = vpack.c.b16 %v658, %v657
      %v680 = vpack.c.b16 %v660, %v659
      %v681 = vpack.c.b16 %v662, %v661
      %v682 = vpack.c.b16 %v664, %v663
      %v683 = vpack.c.b16 %v666, %v665
      %v684 = vpack.c.b16 %v668, %v667
      %vm685 = vcmask 64512
      %v687 = vsel %vm685, %v669, 0
      %v690 = vsel %vm685, %v670, 0
      %v693 = vsel %vm685, %v671, 0
      %v696 = vsel %vm685, %v672, 0
      %v699 = vsel %vm685, %v673, 0
      %v702 = vsel %vm685, %v674, 0
      %v705 = vsel %vm685, %v675, 0
      %v708 = vsel %vm685, %v676, 0
      %v711 = vsel %vm685, %v677, 0
      %v714 = vsel %vm685, %v678, 0
      %v717 = vsel %vm685, %v679, 0
      %v720 = vsel %vm685, %v680, 0
      %v723 = vsel %vm685, %v681, 0
      %v726 = vsel %vm685, %v682, 0
      %v729 = vsel %vm685, %v683, 0
      %v732 = vsel %vm685, %v684, 0
      %vm734 = vcmask 1043456
      %v736 = vsel %vm734, %v636, 0
      %738 = vmatpush.bf16.msra.mxu0 0
      %739 = vmatpush.bf16.msra.mxu0 0
      %740 = vmatpush.bf16.msra.mxu0 0
      %741 = vmatpush.bf16.msra.mxu0 0
      %742 = vmatpush.bf16.msra.mxu0 0
      %743 = vmatpush.bf16.msra.mxu0 0
      %744 = vmatpush.bf16.msra.mxu0 0
      %745 = vmatpush.bf16.msra.mxu0 %v736
      %746 = vmatmul.bf16.gmra.mxu0 %v687
      %v747 = vpop.f32.mrf.mxu0
      %v748 = vadd.f32 0.0, %v747
      %v749 = vpop.f32.mrf.mxu0
      %v750 = vadd.f32 0.0, %v749
      %751 = vmatmul.bf16.gmra.mxu0 %v690
      %v752 = vpop.f32.mrf.mxu0
      %v753 = vadd.f32 0.0, %v752
      %v754 = vpop.f32.mrf.mxu0
      %v755 = vadd.f32 0.0, %v754
      %756 = vmatmul.bf16.gmra.mxu0 %v693
      %v757 = vpop.f32.mrf.mxu0
      %v758 = vadd.f32 0.0, %v757
      %v759 = vpop.f32.mrf.mxu0
      %v760 = vadd.f32 0.0, %v759
      %761 = vmatmul.bf16.gmra.mxu0 %v696
      %v762 = vpop.f32.mrf.mxu0
      %v763 = vadd.f32 0.0, %v762
      %v764 = vpop.f32.mrf.mxu0
      %v765 = vadd.f32 0.0, %v764
      %766 = vmatmul.bf16.gmra.mxu0 %v699
      %v767 = vpop.f32.mrf.mxu0
      %v768 = vadd.f32 0.0, %v767
      %v769 = vpop.f32.mrf.mxu0
      %v770 = vadd.f32 0.0, %v769
      %771 = vmatmul.bf16.gmra.mxu0 %v702
      %v772 = vpop.f32.mrf.mxu0
      %v773 = vadd.f32 0.0, %v772
      %v774 = vpop.f32.mrf.mxu0
      %v775 = vadd.f32 0.0, %v774
      %776 = vmatmul.bf16.gmra.mxu0 %v705
      %v777 = vpop.f32.mrf.mxu0
      %v778 = vadd.f32 0.0, %v777
      %v779 = vpop.f32.mrf.mxu0
      %v780 = vadd.f32 0.0, %v779
      %781 = vmatmul.bf16.gmra.mxu0 %v708
      %v782 = vpop.f32.mrf.mxu0
      %v783 = vadd.f32 0.0, %v782
      %v784 = vpop.f32.mrf.mxu0
      %v785 = vadd.f32 0.0, %v784
      %786 = vmatmul.bf16.gmra.mxu0 %v711
      %v787 = vpop.f32.mrf.mxu0
      %v788 = vadd.f32 0.0, %v787
      %v789 = vpop.f32.mrf.mxu0
      %v790 = vadd.f32 0.0, %v789
      %791 = vmatmul.bf16.gmra.mxu0 %v714
      %v792 = vpop.f32.mrf.mxu0
      %v793 = vadd.f32 0.0, %v792
      %v794 = vpop.f32.mrf.mxu0
      %v795 = vadd.f32 0.0, %v794
      %796 = vmatmul.bf16.gmra.mxu0 %v717
      %v797 = vpop.f32.mrf.mxu0
      %v798 = vadd.f32 0.0, %v797
      %v799 = vpop.f32.mrf.mxu0
      %v800 = vadd.f32 0.0, %v799
      %801 = vmatmul.bf16.gmra.mxu0 %v720
      %v802 = vpop.f32.mrf.mxu0
      %v803 = vadd.f32 0.0, %v802
      %v804 = vpop.f32.mrf.mxu0
      %v805 = vadd.f32 0.0, %v804
      %806 = vmatmul.bf16.gmra.mxu0 %v723
      %v807 = vpop.f32.mrf.mxu0
      %v808 = vadd.f32 0.0, %v807
      %v809 = vpop.f32.mrf.mxu0
      %v810 = vadd.f32 0.0, %v809
      %811 = vmatmul.bf16.gmra.mxu0 %v726
      %v812 = vpop.f32.mrf.mxu0
      %v813 = vadd.f32 0.0, %v812
      %v814 = vpop.f32.mrf.mxu0
      %v815 = vadd.f32 0.0, %v814
      %816 = vmatmul.bf16.gmra.mxu0 %v729
      %v817 = vpop.f32.mrf.mxu0
      %v818 = vadd.f32 0.0, %v817
      %v819 = vpop.f32.mrf.mxu0
      %v820 = vadd.f32 0.0, %v819
      %821 = vmatmul.bf16.gmra.mxu0 %v732
      %v822 = vpop.f32.mrf.mxu0
      %v823 = vadd.f32 0.0, %v822
      %v824 = vpop.f32.mrf.mxu0
      %v825 = vadd.f32 0.0, %v824
      %826 = vdwg.mxu0
      %v859 = vunpack.c.l.b16 %v199
      %v860 = vunpack.c.l.b16 %v200
      %v861 = vunpack.c.l.b16 %v201
      %v862 = vunpack.c.l.b16 %v202
      %v863 = vunpack.c.l.b16 %v203
      %v864 = vunpack.c.l.b16 %v204
      %v865 = vunpack.c.l.b16 %v205
      %v866 = vunpack.c.l.b16 %v206
      %v867 = vunpack.c.l.b16 %v207
      %v868 = vunpack.c.l.b16 %v208
      %v869 = vunpack.c.l.b16 %v209
      %v870 = vunpack.c.l.b16 %v210
      %v871 = vunpack.c.l.b16 %v211
      %v872 = vunpack.c.l.b16 %v212
      %v873 = vunpack.c.l.b16 %v213
      %v874 = vunpack.c.l.b16 %v214
      %v875 = vunpack.c.l.b16 %v215
      %v876 = vunpack.c.l.b16 %v216
      %v877 = vunpack.c.l.b16 %v217
      %v878 = vunpack.c.l.b16 %v218
      %v879 = vunpack.c.l.b16 %v219
      %v880 = vunpack.c.l.b16 %v220
      %v881 = vunpack.c.l.b16 %v221
      %v882 = vunpack.c.l.b16 %v222
      %v883 = vunpack.c.l.b16 %v223
      %v884 = vunpack.c.l.b16 %v224
      %v885 = vunpack.c.l.b16 %v225
      %v886 = vunpack.c.l.b16 %v226
      %v887 = vunpack.c.l.b16 %v227
      %v888 = vunpack.c.l.b16 %v228
      %v889 = vunpack.c.l.b16 %v229
      %v890 = vunpack.c.l.b16 %v230
      %v891 = vpack.c.b16 %v860, %v859
      %v892 = vpack.c.b16 %v862, %v861
      %v893 = vpack.c.b16 %v864, %v863
      %v894 = vpack.c.b16 %v866, %v865
      %v895 = vpack.c.b16 %v868, %v867
      %v896 = vpack.c.b16 %v870, %v869
      %v897 = vpack.c.b16 %v872, %v871
      %v898 = vpack.c.b16 %v874, %v873
      %v899 = vpack.c.b16 %v876, %v875
      %v900 = vpack.c.b16 %v878, %v877
      %v901 = vpack.c.b16 %v880, %v879
      %v902 = vpack.c.b16 %v882, %v881
      %v903 = vpack.c.b16 %v884, %v883
      %v904 = vpack.c.b16 %v886, %v885
      %v905 = vpack.c.b16 %v888, %v887
      %v906 = vpack.c.b16 %v890, %v889
      %v908 = vsel %vm685, %v891, 0
      %v911 = vsel %vm685, %v892, 0
      %v914 = vsel %vm685, %v893, 0
      %v917 = vsel %vm685, %v894, 0
      %v920 = vsel %vm685, %v895, 0
      %v923 = vsel %vm685, %v896, 0
      %v926 = vsel %vm685, %v897, 0
      %v929 = vsel %vm685, %v898, 0
      %v932 = vsel %vm685, %v899, 0
      %v935 = vsel %vm685, %v900, 0
      %v938 = vsel %vm685, %v901, 0
      %v941 = vsel %vm685, %v902, 0
      %v944 = vsel %vm685, %v903, 0
      %v947 = vsel %vm685, %v904, 0
      %v950 = vsel %vm685, %v905, 0
      %v953 = vsel %vm685, %v906, 0
      %v956 = vsel %vm734, %v231, 0
      %958 = vmatpush.bf16.msra.mxu0 0
      %959 = vmatpush.bf16.msra.mxu0 0
      %960 = vmatpush.bf16.msra.mxu0 0
      %961 = vmatpush.bf16.msra.mxu0 0
      %962 = vmatpush.bf16.msra.mxu0 0
      %963 = vmatpush.bf16.msra.mxu0 0
      %964 = vmatpush.bf16.msra.mxu0 0
      %965 = vmatpush.bf16.msra.mxu0 %v956
      %966 = vmatmul.bf16.gmra.mxu0 %v908
      %v967 = vpop.f32.mrf.mxu0
      %v968 = vadd.f32 %v748, %v967
      %v969 = vpop.f32.mrf.mxu0
      %v970 = vadd.f32 %v750, %v969
      %971 = vmatmul.bf16.gmra.mxu0 %v911
      %v972 = vpop.f32.mrf.mxu0
      %v973 = vadd.f32 %v753, %v972
      %v974 = vpop.f32.mrf.mxu0
      %v975 = vadd.f32 %v755, %v974
      %976 = vmatmul.bf16.gmra.mxu0 %v914
      %v977 = vpop.f32.mrf.mxu0
      %v978 = vadd.f32 %v758, %v977
      %v979 = vpop.f32.mrf.mxu0
      %v980 = vadd.f32 %v760, %v979
      %981 = vmatmul.bf16.gmra.mxu0 %v917
      %v982 = vpop.f32.mrf.mxu0
      %v983 = vadd.f32 %v763, %v982
      %v984 = vpop.f32.mrf.mxu0
      %v985 = vadd.f32 %v765, %v984
      %986 = vmatmul.bf16.gmra.mxu0 %v920
      %v987 = vpop.f32.mrf.mxu0
      %v988 = vadd.f32 %v768, %v987
      %v989 = vpop.f32.mrf.mxu0
      %v990 = vadd.f32 %v770, %v989
      %991 = vmatmul.bf16.gmra.mxu0 %v923
      %v992 = vpop.f32.mrf.mxu0
      %v993 = vadd.f32 %v773, %v992
      %v994 = vpop.f32.mrf.mxu0
      %v995 = vadd.f32 %v775, %v994
      %996 = vmatmul.bf16.gmra.mxu0 %v926
      %v997 = vpop.f32.mrf.mxu0
      %v998 = vadd.f32 %v778, %v997
      %v999 = vpop.f32.mrf.mxu0
      %v1000 = vadd.f32 %v780, %v999
      %1001 = vmatmul.bf16.gmra.mxu0 %v929
      %v1002 = vpop.f32.mrf.mxu0
      %v1003 = vadd.f32 %v783, %v1002
      %v1004 = vpop.f32.mrf.mxu0
      %v1005 = vadd.f32 %v785, %v1004
      %1006 = vmatmul.bf16.gmra.mxu0 %v932
      %v1007 = vpop.f32.mrf.mxu0
      %v1008 = vadd.f32 %v788, %v1007
      %v1009 = vpop.f32.mrf.mxu0
      %v1010 = vadd.f32 %v790, %v1009
      %1011 = vmatmul.bf16.gmra.mxu0 %v935
      %v1012 = vpop.f32.mrf.mxu0
      %v1013 = vadd.f32 %v793, %v1012
      %v1014 = vpop.f32.mrf.mxu0
      %v1015 = vadd.f32 %v795, %v1014
      %1016 = vmatmul.bf16.gmra.mxu0 %v938
      %v1017 = vpop.f32.mrf.mxu0
      %v1018 = vadd.f32 %v798, %v1017
      %v1019 = vpop.f32.mrf.mxu0
      %v1020 = vadd.f32 %v800, %v1019
      %1021 = vmatmul.bf16.gmra.mxu0 %v941
      %v1022 = vpop.f32.mrf.mxu0
      %v1023 = vadd.f32 %v803, %v1022
      %v1024 = vpop.f32.mrf.mxu0
      %v1025 = vadd.f32 %v805, %v1024
      %1026 = vmatmul.bf16.gmra.mxu0 %v944
      %v1027 = vpop.f32.mrf.mxu0
      %v1028 = vadd.f32 %v808, %v1027
      %v1029 = vpop.f32.mrf.mxu0
      %v1030 = vadd.f32 %v810, %v1029
      %1031 = vmatmul.bf16.gmra.mxu0 %v947
      %v1032 = vpop.f32.mrf.mxu0
      %v1033 = vadd.f32 %v813, %v1032
      %v1034 = vpop.f32.mrf.mxu0
      %v1035 = vadd.f32 %v815, %v1034
      %1036 = vmatmul.bf16.gmra.mxu0 %v950
      %v1037 = vpop.f32.mrf.mxu0
      %v1038 = vadd.f32 %v818, %v1037
      %v1039 = vpop.f32.mrf.mxu0
      %v1040 = vadd.f32 %v820, %v1039
      %1041 = vmatmul.bf16.gmra.mxu0 %v953
      %v1042 = vpop.f32.mrf.mxu0
      %v1043 = vadd.f32 %v823, %v1042
      %v1044 = vpop.f32.mrf.mxu0
      %v1045 = vadd.f32 %v825, %v1044
      %1046 = vdwg.mxu0
      %v1047 = vld [vmem:[%s198] sm:$0xe]
      %v1048 = vld [vmem:[%s198 + $0xc] sm:$0xe]
      %v1049 = vld [vmem:[%s198 + $0x18] sm:$0xe]
      %v1050 = vld [vmem:[%s198 + $0x24] sm:$0xe]
      %v1051 = vld [vmem:[%s198 + $0x30] sm:$0xe]
      %v1052 = vld [vmem:[%s198 + $0x3c] sm:$0xe]
      %v1053 = vld [vmem:[%s198 + $0x48] sm:$0xe]
      %v1054 = vld [vmem:[%s198 + $0x54] sm:$0xe]
      %v1055 = vld [vmem:[%s198 + $0x60] sm:$0xe]
      %v1056 = vld [vmem:[%s198 + $0x6c] sm:$0xe]
      %v1057 = vld [vmem:[%s198 + $0x78] sm:$0xe]
      %v1058 = vld [vmem:[%s198 + $0x84] sm:$0xe]
      %v1059 = vld [vmem:[%s198 + $0x90] sm:$0xe]
      %v1060 = vld [vmem:[%s198 + $0x9c] sm:$0xe]
      %v1061 = vld [vmem:[%s198 + $0xa8] sm:$0xe]
      %v1062 = vld [vmem:[%s198 + $0xb4] sm:$0xe]
      %vm1095 = vcmask 1042432
      %vm1096 = vcmask 1046532
      %vm1097 = vmor %vm1095, %vm1096
      %v1098 = vrot.slane %v1047, 5
      %v1099 = vrot.slane %v1098, 4
      %v1100 = vrot.slane %v200, 5
      %v1101 = vsel %vm1097, %v1099, %v1100
      %v1102 = vrot.slane %v1100, 4
      %v1103 = vrot.slane %v232, 5
      %v1104 = vsel %vm1097, %v1102, %v1103
      %v1105 = vrot.slane %v1048, 5
      %v1106 = vrot.slane %v1105, 4
      %v1107 = vrot.slane %v202, 5
      %v1108 = vsel %vm1097, %v1106, %v1107
      %v1109 = vrot.slane %v1107, 4
      %v1110 = vrot.slane %v233, 5
      %v1111 = vsel %vm1097, %v1109, %v1110
      %v1112 = vrot.slane %v1049, 5
      %v1113 = vrot.slane %v1112, 4
      %v1114 = vrot.slane %v204, 5
      %v1115 = vsel %vm1097, %v1113, %v1114
      %v1116 = vrot.slane %v1114, 4
      %v1117 = vrot.slane %v234, 5
      %v1118 = vsel %vm1097, %v1116, %v1117
      %v1119 = vrot.slane %v1050, 5
      %v1120 = vrot.slane %v1119, 4
      %v1121 = vrot.slane %v206, 5
      %v1122 = vsel %vm1097, %v1120, %v1121
      %v1123 = vrot.slane %v1121, 4
      %v1124 = vrot.slane %v235, 5
      %v1125 = vsel %vm1097, %v1123, %v1124
      %v1126 = vrot.slane %v1051, 5
      %v1127 = vrot.slane %v1126, 4
      %v1128 = vrot.slane %v208, 5
      %v1129 = vsel %vm1097, %v1127, %v1128
      %v1130 = vrot.slane %v1128, 4
      %v1131 = vrot.slane %v236, 5
      %v1132 = vsel %vm1097, %v1130, %v1131
      %v1133 = vrot.slane %v1052, 5
      %v1134 = vrot.slane %v1133, 4
      %v1135 = vrot.slane %v210, 5
      %v1136 = vsel %vm1097, %v1134, %v1135
      %v1137 = vrot.slane %v1135, 4
      %v1138 = vrot.slane %v237, 5
      %v1139 = vsel %vm1097, %v1137, %v1138
      %v1140 = vrot.slane %v1053, 5
      %v1141 = vrot.slane %v1140, 4
      %v1142 = vrot.slane %v212, 5
      %v1143 = vsel %vm1097, %v1141, %v1142
      %v1144 = vrot.slane %v1142, 4
      %v1145 = vrot.slane %v238, 5
      %v1146 = vsel %vm1097, %v1144, %v1145
      %v1147 = vrot.slane %v1054, 5
      %v1148 = vrot.slane %v1147, 4
      %v1149 = vrot.slane %v214, 5
      %v1150 = vsel %vm1097, %v1148, %v1149
      %v1151 = vrot.slane %v1149, 4
      %v1152 = vrot.slane %v239, 5
      %v1153 = vsel %vm1097, %v1151, %v1152
      %v1154 = vrot.slane %v1055, 5
      %v1155 = vrot.slane %v1154, 4
      %v1156 = vrot.slane %v216, 5
      %v1157 = vsel %vm1097, %v1155, %v1156
      %v1158 = vrot.slane %v1156, 4
      %v1159 = vrot.slane %v240, 5
      %v1160 = vsel %vm1097, %v1158, %v1159
      %v1161 = vrot.slane %v1056, 5
      %v1162 = vrot.slane %v1161, 4
      %v1163 = vrot.slane %v218, 5
      %v1164 = vsel %vm1097, %v1162, %v1163
      %v1165 = vrot.slane %v1163, 4
      %v1166 = vrot.slane %v241, 5
      %v1167 = vsel %vm1097, %v1165, %v1166
      %v1168 = vrot.slane %v1057, 5
      %v1169 = vrot.slane %v1168, 4
      %v1170 = vrot.slane %v220, 5
      %v1171 = vsel %vm1097, %v1169, %v1170
      %v1172 = vrot.slane %v1170, 4
      %v1173 = vrot.slane %v242, 5
      %v1174 = vsel %vm1097, %v1172, %v1173
      %v1175 = vrot.slane %v1058, 5
      %v1176 = vrot.slane %v1175, 4
      %v1177 = vrot.slane %v222, 5
      %v1178 = vsel %vm1097, %v1176, %v1177
      %v1179 = vrot.slane %v1177, 4
      %v1180 = vrot.slane %v243, 5
      %v1181 = vsel %vm1097, %v1179, %v1180
      %v1182 = vrot.slane %v1059, 5
      %v1183 = vrot.slane %v1182, 4
      %v1184 = vrot.slane %v224, 5
      %v1185 = vsel %vm1097, %v1183, %v1184
      %v1186 = vrot.slane %v1184, 4
      %v1187 = vrot.slane %v244, 5
      %v1188 = vsel %vm1097, %v1186, %v1187
      %v1189 = vrot.slane %v1060, 5
      %v1190 = vrot.slane %v1189, 4
      %v1191 = vrot.slane %v226, 5
      %v1192 = vsel %vm1097, %v1190, %v1191
      %v1193 = vrot.slane %v1191, 4
      %v1194 = vrot.slane %v245, 5
      %v1195 = vsel %vm1097, %v1193, %v1194
      %v1196 = vrot.slane %v1061, 5
      %v1197 = vrot.slane %v1196, 4
      %v1198 = vrot.slane %v228, 5
      %v1199 = vsel %vm1097, %v1197, %v1198
      %v1200 = vrot.slane %v1198, 4
      %v1201 = vrot.slane %v246, 5
      %v1202 = vsel %vm1097, %v1200, %v1201
      %v1203 = vrot.slane %v1062, 5
      %v1204 = vrot.slane %v1203, 4
      %v1205 = vrot.slane %v230, 5
      %v1206 = vsel %vm1097, %v1204, %v1205
      %v1207 = vrot.slane %v1205, 4
      %v1208 = vrot.slane %v247, 5
      %v1209 = vsel %vm1097, %v1207, %v1208
      %s1210 = scalar_lea.vmem %s1, 8
      %v1211 = vld [vmem:[%s1210] sm:$0xf]
      %v1212 = vunpack.c.l.b16 %v1101
      %v1213 = vunpack.c.l.b16 %v1104
      %v1214 = vunpack.c.l.b16 %v1108
      %v1215 = vunpack.c.l.b16 %v1111
      %v1216 = vunpack.c.l.b16 %v1115
      %v1217 = vunpack.c.l.b16 %v1118
      %v1218 = vunpack.c.l.b16 %v1122
      %v1219 = vunpack.c.l.b16 %v1125
      %v1220 = vunpack.c.l.b16 %v1129
      %v1221 = vunpack.c.l.b16 %v1132
      %v1222 = vunpack.c.l.b16 %v1136
      %v1223 = vunpack.c.l.b16 %v1139
      %v1224 = vunpack.c.l.b16 %v1143
      %v1225 = vunpack.c.l.b16 %v1146
      %v1226 = vunpack.c.l.b16 %v1150
      %v1227 = vunpack.c.l.b16 %v1153
      %v1228 = vunpack.c.l.b16 %v1157
      %v1229 = vunpack.c.l.b16 %v1160
      %v1230 = vunpack.c.l.b16 %v1164
      %v1231 = vunpack.c.l.b16 %v1167
      %v1232 = vunpack.c.l.b16 %v1171
      %v1233 = vunpack.c.l.b16 %v1174
      %v1234 = vunpack.c.l.b16 %v1178
      %v1235 = vunpack.c.l.b16 %v1181
      %v1236 = vunpack.c.l.b16 %v1185
      %v1237 = vunpack.c.l.b16 %v1188
      %v1238 = vunpack.c.l.b16 %v1192
      %v1239 = vunpack.c.l.b16 %v1195
      %v1240 = vunpack.c.l.b16 %v1199
      %v1241 = vunpack.c.l.b16 %v1202
      %v1242 = vunpack.c.l.b16 %v1206
      %v1243 = vunpack.c.l.b16 %v1209
      %v1244 = vpack.c.b16 %v1213, %v1212
      %v1245 = vpack.c.b16 %v1215, %v1214
      %v1246 = vpack.c.b16 %v1217, %v1216
      %v1247 = vpack.c.b16 %v1219, %v1218
      %v1248 = vpack.c.b16 %v1221, %v1220
      %v1249 = vpack.c.b16 %v1223, %v1222
      %v1250 = vpack.c.b16 %v1225, %v1224
      %v1251 = vpack.c.b16 %v1227, %v1226
      %v1252 = vpack.c.b16 %v1229, %v1228
      %v1253 = vpack.c.b16 %v1231, %v1230
      %v1254 = vpack.c.b16 %v1233, %v1232
      %v1255 = vpack.c.b16 %v1235, %v1234
      %v1256 = vpack.c.b16 %v1237, %v1236
      %v1257 = vpack.c.b16 %v1239, %v1238
      %v1258 = vpack.c.b16 %v1241, %v1240
      %v1259 = vpack.c.b16 %v1243, %v1242
      %v1261 = vsel %vm685, %v1244, 0
      %v1264 = vsel %vm685, %v1245, 0
      %v1267 = vsel %vm685, %v1246, 0
      %v1270 = vsel %vm685, %v1247, 0
      %v1273 = vsel %vm685, %v1248, 0
      %v1276 = vsel %vm685, %v1249, 0
      %v1279 = vsel %vm685, %v1250, 0
      %v1282 = vsel %vm685, %v1251, 0
      %v1285 = vsel %vm685, %v1252, 0
      %v1288 = vsel %vm685, %v1253, 0
      %v1291 = vsel %vm685, %v1254, 0
      %v1294 = vsel %vm685, %v1255, 0
      %v1297 = vsel %vm685, %v1256, 0
      %v1300 = vsel %vm685, %v1257, 0
      %v1303 = vsel %vm685, %v1258, 0
      %v1306 = vsel %vm685, %v1259, 0
      %v1309 = vsel %vm734, %v1211, 0
      %1311 = vmatpush.bf16.msra.mxu0 0
      %1312 = vmatpush.bf16.msra.mxu0 0
      %1313 = vmatpush.bf16.msra.mxu0 0
      %1314 = vmatpush.bf16.msra.mxu0 0
      %1315 = vmatpush.bf16.msra.mxu0 0
      %1316 = vmatpush.bf16.msra.mxu0 0
      %1317 = vmatpush.bf16.msra.mxu0 0
      %1318 = vmatpush.bf16.msra.mxu0 %v1309
      %1319 = vmatmul.bf16.gmra.mxu0 %v1261
      %v1320 = vpop.f32.mrf.mxu0
      %v1321 = vadd.f32 0.0, %v1320
      %v1322 = vpop.f32.mrf.mxu0
      %v1323 = vadd.f32 0.0, %v1322
      %1324 = vmatmul.bf16.gmra.mxu0 %v1264
      %v1325 = vpop.f32.mrf.mxu0
      %v1326 = vadd.f32 0.0, %v1325
      %v1327 = vpop.f32.mrf.mxu0
      %v1328 = vadd.f32 0.0, %v1327
      %1329 = vmatmul.bf16.gmra.mxu0 %v1267
      %v1330 = vpop.f32.mrf.mxu0
      %v1331 = vadd.f32 0.0, %v1330
      %v1332 = vpop.f32.mrf.mxu0
      %v1333 = vadd.f32 0.0, %v1332
      %1334 = vmatmul.bf16.gmra.mxu0 %v1270
      %v1335 = vpop.f32.mrf.mxu0
      %v1336 = vadd.f32 0.0, %v1335
      %v1337 = vpop.f32.mrf.mxu0
      %v1338 = vadd.f32 0.0, %v1337
      %1339 = vmatmul.bf16.gmra.mxu0 %v1273
      %v1340 = vpop.f32.mrf.mxu0
      %v1341 = vadd.f32 0.0, %v1340
      %v1342 = vpop.f32.mrf.mxu0
      %v1343 = vadd.f32 0.0, %v1342
      %1344 = vmatmul.bf16.gmra.mxu0 %v1276
      %v1345 = vpop.f32.mrf.mxu0
      %v1346 = vadd.f32 0.0, %v1345
      %v1347 = vpop.f32.mrf.mxu0
      %v1348 = vadd.f32 0.0, %v1347
      %1349 = vmatmul.bf16.gmra.mxu0 %v1279
      %v1350 = vpop.f32.mrf.mxu0
      %v1351 = vadd.f32 0.0, %v1350
      %v1352 = vpop.f32.mrf.mxu0
      %v1353 = vadd.f32 0.0, %v1352
      %1354 = vmatmul.bf16.gmra.mxu0 %v1282
      %v1355 = vpop.f32.mrf.mxu0
      %v1356 = vadd.f32 0.0, %v1355
      %v1357 = vpop.f32.mrf.mxu0
      %v1358 = vadd.f32 0.0, %v1357
      %1359 = vmatmul.bf16.gmra.mxu0 %v1285
      %v1360 = vpop.f32.mrf.mxu0
      %v1361 = vadd.f32 0.0, %v1360
      %v1362 = vpop.f32.mrf.mxu0
      %v1363 = vadd.f32 0.0, %v1362
      %1364 = vmatmul.bf16.gmra.mxu0 %v1288
      %v1365 = vpop.f32.mrf.mxu0
      %v1366 = vadd.f32 0.0, %v1365
      %v1367 = vpop.f32.mrf.mxu0
      %v1368 = vadd.f32 0.0, %v1367
      %1369 = vmatmul.bf16.gmra.mxu0 %v1291
      %v1370 = vpop.f32.mrf.mxu0
      %v1371 = vadd.f32 0.0, %v1370
      %v1372 = vpop.f32.mrf.mxu0
      %v1373 = vadd.f32 0.0, %v1372
      %1374 = vmatmul.bf16.gmra.mxu0 %v1294
      %v1375 = vpop.f32.mrf.mxu0
      %v1376 = vadd.f32 0.0, %v1375
      %v1377 = vpop.f32.mrf.mxu0
      %v1378 = vadd.f32 0.0, %v1377
      %1379 = vmatmul.bf16.gmra.mxu0 %v1297
      %v1380 = vpop.f32.mrf.mxu0
      %v1381 = vadd.f32 0.0, %v1380
      %v1382 = vpop.f32.mrf.mxu0
      %v1383 = vadd.f32 0.0, %v1382
      %1384 = vmatmul.bf16.gmra.mxu0 %v1300
      %v1385 = vpop.f32.mrf.mxu0
      %v1386 = vadd.f32 0.0, %v1385
      %v1387 = vpop.f32.mrf.mxu0
      %v1388 = vadd.f32 0.0, %v1387
      %1389 = vmatmul.bf16.gmra.mxu0 %v1303
      %v1390 = vpop.f32.mrf.mxu0
      %v1391 = vadd.f32 0.0, %v1390
      %v1392 = vpop.f32.mrf.mxu0
      %v1393 = vadd.f32 0.0, %v1392
      %1394 = vmatmul.bf16.gmra.mxu0 %v1306
      %v1395 = vpop.f32.mrf.mxu0
      %v1396 = vadd.f32 0.0, %v1395
      %v1397 = vpop.f32.mrf.mxu0
      %v1398 = vadd.f32 0.0, %v1397
      %1399 = vdwg.mxu0
      %v1400 = vadd.f32 %v968, %v1321
      %v1401 = vadd.f32 %v970, %v1323
      %v1402 = vadd.f32 %v973, %v1326
      %v1403 = vadd.f32 %v975, %v1328
      %v1404 = vadd.f32 %v978, %v1331
      %v1405 = vadd.f32 %v980, %v1333
      %v1406 = vadd.f32 %v983, %v1336
      %v1407 = vadd.f32 %v985, %v1338
      %v1408 = vadd.f32 %v988, %v1341
      %v1409 = vadd.f32 %v990, %v1343
      %v1410 = vadd.f32 %v993, %v1346
      %v1411 = vadd.f32 %v995, %v1348
      %v1412 = vadd.f32 %v998, %v1351
      %v1413 = vadd.f32 %v1000, %v1353
      %v1414 = vadd.f32 %v1003, %v1356
      %v1415 = vadd.f32 %v1005, %v1358
      %v1416 = vadd.f32 %v1008, %v1361
      %v1417 = vadd.f32 %v1010, %v1363
      %v1418 = vadd.f32 %v1013, %v1366
      %v1419 = vadd.f32 %v1015, %v1368
      %v1420 = vadd.f32 %v1018, %v1371
      %v1421 = vadd.f32 %v1020, %v1373
      %v1422 = vadd.f32 %v1023, %v1376
      %v1423 = vadd.f32 %v1025, %v1378
      %v1424 = vadd.f32 %v1028, %v1381
      %v1425 = vadd.f32 %v1030, %v1383
      %v1426 = vadd.f32 %v1033, %v1386
      %v1427 = vadd.f32 %v1035, %v1388
      %v1428 = vadd.f32 %v1038, %v1391
      %v1429 = vadd.f32 %v1040, %v1393
      %v1430 = vadd.f32 %v1043, %v1396
      %v1431 = vadd.f32 %v1045, %v1398
      %s1432 = sadd.s32 %s195, 1
      %s1433 = smul.u32 %s1432, 3
      %s1434 = smul.addr %s1433, 4
      %s1435 = scalar_lea.vmem %s183, %s1434
      %v1436 = vld [vmem:[%s1435] sm:$0xf]
      %v1437 = vld [vmem:[%s1435 + $0x4] sm:$0xf]
      %v1438 = vld [vmem:[%s1435 + $0xc] sm:$0xf]
      %v1439 = vld [vmem:[%s1435 + $0x10] sm:$0xf]
      %v1440 = vld [vmem:[%s1435 + $0x18] sm:$0xf]
      %v1441 = vld [vmem:[%s1435 + $0x1c] sm:$0xf]
      %v1442 = vld [vmem:[%s1435 + $0x24] sm:$0xf]
      %v1443 = vld [vmem:[%s1435 + $0x28] sm:$0xf]
      %v1444 = vld [vmem:[%s1435 + $0x30] sm:$0xf]
      %v1445 = vld [vmem:[%s1435 + $0x34] sm:$0xf]
      %v1446 = vld [vmem:[%s1435 + $0x3c] sm:$0xf]
      %v1447 = vld [vmem:[%s1435 + $0x40] sm:$0xf]
      %v1448 = vld [vmem:[%s1435 + $0x48] sm:$0xf]
      %v1449 = vld [vmem:[%s1435 + $0x4c] sm:$0xf]
      %v1450 = vld [vmem:[%s1435 + $0x54] sm:$0xf]
      %v1451 = vld [vmem:[%s1435 + $0x58] sm:$0xf]
      %v1452 = vld [vmem:[%s1435 + $0x60] sm:$0xf]
      %v1453 = vld [vmem:[%s1435 + $0x64] sm:$0xf]
      %v1454 = vld [vmem:[%s1435 + $0x6c] sm:$0xf]
      %v1455 = vld [vmem:[%s1435 + $0x70] sm:$0xf]
      %v1456 = vld [vmem:[%s1435 + $0x78] sm:$0xf]
      %v1457 = vld [vmem:[%s1435 + $0x7c] sm:$0xf]
      %v1458 = vld [vmem:[%s1435 + $0x84] sm:$0xf]
      %v1459 = vld [vmem:[%s1435 + $0x88] sm:$0xf]
      %v1460 = vld [vmem:[%s1435 + $0x90] sm:$0xf]
      %v1461 = vld [vmem:[%s1435 + $0x94] sm:$0xf]
      %v1462 = vld [vmem:[%s1435 + $0x9c] sm:$0xf]
      %v1463 = vld [vmem:[%s1435 + $0xa0] sm:$0xf]
      %v1464 = vld [vmem:[%s1435 + $0xa8] sm:$0xf]
      %v1465 = vld [vmem:[%s1435 + $0xac] sm:$0xf]
      %v1466 = vld [vmem:[%s1435 + $0xb4] sm:$0xf]
      %v1467 = vld [vmem:[%s1435 + $0xb8] sm:$0xf]
      %s1468 = scalar_lea.vmem %s1, 12
      %v1469 = vld [vmem:[%s1468] sm:$0xf]
      %v1502 = vunpack.c.l.b16 %v1436
      %v1503 = vunpack.c.l.b16 %v1437
      %v1504 = vunpack.c.l.b16 %v1438
      %v1505 = vunpack.c.l.b16 %v1439
      %v1506 = vunpack.c.l.b16 %v1440
      %v1507 = vunpack.c.l.b16 %v1441
      %v1508 = vunpack.c.l.b16 %v1442
      %v1509 = vunpack.c.l.b16 %v1443
      %v1510 = vunpack.c.l.b16 %v1444
      %v1511 = vunpack.c.l.b16 %v1445
      %v1512 = vunpack.c.l.b16 %v1446
      %v1513 = vunpack.c.l.b16 %v1447
      %v1514 = vunpack.c.l.b16 %v1448
      %v1515 = vunpack.c.l.b16 %v1449
      %v1516 = vunpack.c.l.b16 %v1450
      %v1517 = vunpack.c.l.b16 %v1451
      %v1518 = vunpack.c.l.b16 %v1452
      %v1519 = vunpack.c.l.b16 %v1453
      %v1520 = vunpack.c.l.b16 %v1454
      %v1521 = vunpack.c.l.b16 %v1455
      %v1522 = vunpack.c.l.b16 %v1456
      %v1523 = vunpack.c.l.b16 %v1457
      %v1524 = vunpack.c.l.b16 %v1458
      %v1525 = vunpack.c.l.b16 %v1459
      %v1526 = vunpack.c.l.b16 %v1460
      %v1527 = vunpack.c.l.b16 %v1461
      %v1528 = vunpack.c.l.b16 %v1462
      %v1529 = vunpack.c.l.b16 %v1463
      %v1530 = vunpack.c.l.b16 %v1464
      %v1531 = vunpack.c.l.b16 %v1465
      %v1532 = vunpack.c.l.b16 %v1466
      %v1533 = vunpack.c.l.b16 %v1467
      %v1534 = vpack.c.b16 %v1503, %v1502
      %v1535 = vpack.c.b16 %v1505, %v1504
      %v1536 = vpack.c.b16 %v1507, %v1506
      %v1537 = vpack.c.b16 %v1509, %v1508
      %v1538 = vpack.c.b16 %v1511, %v1510
      %v1539 = vpack.c.b16 %v1513, %v1512
      %v1540 = vpack.c.b16 %v1515, %v1514
      %v1541 = vpack.c.b16 %v1517, %v1516
      %v1542 = vpack.c.b16 %v1519, %v1518
      %v1543 = vpack.c.b16 %v1521, %v1520
      %v1544 = vpack.c.b16 %v1523, %v1522
      %v1545 = vpack.c.b16 %v1525, %v1524
      %v1546 = vpack.c.b16 %v1527, %v1526
      %v1547 = vpack.c.b16 %v1529, %v1528
      %v1548 = vpack.c.b16 %v1531, %v1530
      %v1549 = vpack.c.b16 %v1533, %v1532
      %v1551 = vsel %vm685, %v1534, 0
      %v1554 = vsel %vm685, %v1535, 0
      %v1557 = vsel %vm685, %v1536, 0
      %v1560 = vsel %vm685, %v1537, 0
      %v1563 = vsel %vm685, %v1538, 0
      %v1566 = vsel %vm685, %v1539, 0
      %v1569 = vsel %vm685, %v1540, 0
      %v1572 = vsel %vm685, %v1541, 0
      %v1575 = vsel %vm685, %v1542, 0
      %v1578 = vsel %vm685, %v1543, 0
      %v1581 = vsel %vm685, %v1544, 0
      %v1584 = vsel %vm685, %v1545, 0
      %v1587 = vsel %vm685, %v1546, 0
      %v1590 = vsel %vm685, %v1547, 0
      %v1593 = vsel %vm685, %v1548, 0
      %v1596 = vsel %vm685, %v1549, 0
      %v1599 = vsel %vm734, %v1469, 0
      %1601 = vmatpush.bf16.msra.mxu0 0
      %1602 = vmatpush.bf16.msra.mxu0 0
      %1603 = vmatpush.bf16.msra.mxu0 0
      %1604 = vmatpush.bf16.msra.mxu0 0
      %1605 = vmatpush.bf16.msra.mxu0 0
      %1606 = vmatpush.bf16.msra.mxu0 0
      %1607 = vmatpush.bf16.msra.mxu0 0
      %1608 = vmatpush.bf16.msra.mxu0 %v1599
      %1609 = vmatmul.bf16.gmra.mxu0 %v1551
      %v1610 = vpop.f32.mrf.mxu0
      %v1611 = vadd.f32 0.0, %v1610
      %v1612 = vpop.f32.mrf.mxu0
      %v1613 = vadd.f32 0.0, %v1612
      %1614 = vmatmul.bf16.gmra.mxu0 %v1554
      %v1615 = vpop.f32.mrf.mxu0
      %v1616 = vadd.f32 0.0, %v1615
      %v1617 = vpop.f32.mrf.mxu0
      %v1618 = vadd.f32 0.0, %v1617
      %1619 = vmatmul.bf16.gmra.mxu0 %v1557
      %v1620 = vpop.f32.mrf.mxu0
      %v1621 = vadd.f32 0.0, %v1620
      %v1622 = vpop.f32.mrf.mxu0
      %v1623 = vadd.f32 0.0, %v1622
      %1624 = vmatmul.bf16.gmra.mxu0 %v1560
      %v1625 = vpop.f32.mrf.mxu0
      %v1626 = vadd.f32 0.0, %v1625
      %v1627 = vpop.f32.mrf.mxu0
      %v1628 = vadd.f32 0.0, %v1627
      %1629 = vmatmul.bf16.gmra.mxu0 %v1563
      %v1630 = vpop.f32.mrf.mxu0
      %v1631 = vadd.f32 0.0, %v1630
      %v1632 = vpop.f32.mrf.mxu0
      %v1633 = vadd.f32 0.0, %v1632
      %1634 = vmatmul.bf16.gmra.mxu0 %v1566
      %v1635 = vpop.f32.mrf.mxu0
      %v1636 = vadd.f32 0.0, %v1635
      %v1637 = vpop.f32.mrf.mxu0
      %v1638 = vadd.f32 0.0, %v1637
      %1639 = vmatmul.bf16.gmra.mxu0 %v1569
      %v1640 = vpop.f32.mrf.mxu0
      %v1641 = vadd.f32 0.0, %v1640
      %v1642 = vpop.f32.mrf.mxu0
      %v1643 = vadd.f32 0.0, %v1642
      %1644 = vmatmul.bf16.gmra.mxu0 %v1572
      %v1645 = vpop.f32.mrf.mxu0
      %v1646 = vadd.f32 0.0, %v1645
      %v1647 = vpop.f32.mrf.mxu0
      %v1648 = vadd.f32 0.0, %v1647
      %1649 = vmatmul.bf16.gmra.mxu0 %v1575
      %v1650 = vpop.f32.mrf.mxu0
      %v1651 = vadd.f32 0.0, %v1650
      %v1652 = vpop.f32.mrf.mxu0
      %v1653 = vadd.f32 0.0, %v1652
      %1654 = vmatmul.bf16.gmra.mxu0 %v1578
      %v1655 = vpop.f32.mrf.mxu0
      %v1656 = vadd.f32 0.0, %v1655
      %v1657 = vpop.f32.mrf.mxu0
      %v1658 = vadd.f32 0.0, %v1657
      %1659 = vmatmul.bf16.gmra.mxu0 %v1581
      %v1660 = vpop.f32.mrf.mxu0
      %v1661 = vadd.f32 0.0, %v1660
      %v1662 = vpop.f32.mrf.mxu0
      %v1663 = vadd.f32 0.0, %v1662
      %1664 = vmatmul.bf16.gmra.mxu0 %v1584
      %v1665 = vpop.f32.mrf.mxu0
      %v1666 = vadd.f32 0.0, %v1665
      %v1667 = vpop.f32.mrf.mxu0
      %v1668 = vadd.f32 0.0, %v1667
      %1669 = vmatmul.bf16.gmra.mxu0 %v1587
      %v1670 = vpop.f32.mrf.mxu0
      %v1671 = vadd.f32 0.0, %v1670
      %v1672 = vpop.f32.mrf.mxu0
      %v1673 = vadd.f32 0.0, %v1672
      %1674 = vmatmul.bf16.gmra.mxu0 %v1590
      %v1675 = vpop.f32.mrf.mxu0
      %v1676 = vadd.f32 0.0, %v1675
      %v1677 = vpop.f32.mrf.mxu0
      %v1678 = vadd.f32 0.0, %v1677
      %1679 = vmatmul.bf16.gmra.mxu0 %v1593
      %v1680 = vpop.f32.mrf.mxu0
      %v1681 = vadd.f32 0.0, %v1680
      %v1682 = vpop.f32.mrf.mxu0
      %v1683 = vadd.f32 0.0, %v1682
      %1684 = vmatmul.bf16.gmra.mxu0 %v1596
      %v1685 = vpop.f32.mrf.mxu0
      %v1686 = vadd.f32 0.0, %v1685
      %v1687 = vpop.f32.mrf.mxu0
      %v1688 = vadd.f32 0.0, %v1687
      %1689 = vdwg.mxu0
      %v1690 = vadd.f32 %v1400, %v1611
      %v1691 = vadd.f32 %v1401, %v1613
      %v1692 = vadd.f32 %v1402, %v1616
      %v1693 = vadd.f32 %v1403, %v1618
      %v1694 = vadd.f32 %v1404, %v1621
      %v1695 = vadd.f32 %v1405, %v1623
      %v1696 = vadd.f32 %v1406, %v1626
      %v1697 = vadd.f32 %v1407, %v1628
      %v1698 = vadd.f32 %v1408, %v1631
      %v1699 = vadd.f32 %v1409, %v1633
      %v1700 = vadd.f32 %v1410, %v1636
      %v1701 = vadd.f32 %v1411, %v1638
      %v1702 = vadd.f32 %v1412, %v1641
      %v1703 = vadd.f32 %v1413, %v1643
      %v1704 = vadd.f32 %v1414, %v1646
      %v1705 = vadd.f32 %v1415, %v1648
      %v1706 = vadd.f32 %v1416, %v1651
      %v1707 = vadd.f32 %v1417, %v1653
      %v1708 = vadd.f32 %v1418, %v1656
      %v1709 = vadd.f32 %v1419, %v1658
      %v1710 = vadd.f32 %v1420, %v1661
      %v1711 = vadd.f32 %v1421, %v1663
      %v1712 = vadd.f32 %v1422, %v1666
      %v1713 = vadd.f32 %v1423, %v1668
      %v1714 = vadd.f32 %v1424, %v1671
      %v1715 = vadd.f32 %v1425, %v1673
      %v1716 = vadd.f32 %v1426, %v1676
      %v1717 = vadd.f32 %v1427, %v1678
      %v1718 = vadd.f32 %v1428, %v1681
      %v1719 = vadd.f32 %v1429, %v1683
      %v1720 = vadd.f32 %v1430, %v1686
      %v1721 = vadd.f32 %v1431, %v1688
      %v1722 = vld [vmem:[%s1435] sm:$0xf]
      %v1723 = vld [vmem:[%s1435 + $0x4] sm:$0xf]
      %v1724 = vld [vmem:[%s1435 + $0x8] sm:$0x1]
      %v1725 = vld [vmem:[%s1435 + $0xc] sm:$0xf]
      %v1726 = vld [vmem:[%s1435 + $0x10] sm:$0xf]
      %v1727 = vld [vmem:[%s1435 + $0x14] sm:$0x1]
      %v1728 = vld [vmem:[%s1435 + $0x18] sm:$0xf]
      %v1729 = vld [vmem:[%s1435 + $0x1c] sm:$0xf]
      %v1730 = vld [vmem:[%s1435 + $0x20] sm:$0x1]
      %v1731 = vld [vmem:[%s1435 + $0x24] sm:$0xf]
      %v1732 = vld [vmem:[%s1435 + $0x28] sm:$0xf]
      %v1733 = vld [vmem:[%s1435 + $0x2c] sm:$0x1]
      %v1734 = vld [vmem:[%s1435 + $0x30] sm:$0xf]
      %v1735 = vld [vmem:[%s1435 + $0x34] sm:$0xf]
      %v1736 = vld [vmem:[%s1435 + $0x38] sm:$0x1]
      %v1737 = vld [vmem:[%s1435 + $0x3c] sm:$0xf]
      %v1738 = vld [vmem:[%s1435 + $0x40] sm:$0xf]
      %v1739 = vld [vmem:[%s1435 + $0x44] sm:$0x1]
      %v1740 = vld [vmem:[%s1435 + $0x48] sm:$0xf]
      %v1741 = vld [vmem:[%s1435 + $0x4c] sm:$0xf]
      %v1742 = vld [vmem:[%s1435 + $0x50] sm:$0x1]
      %v1743 = vld [vmem:[%s1435 + $0x54] sm:$0xf]
      %v1744 = vld [vmem:[%s1435 + $0x58] sm:$0xf]
      %v1745 = vld [vmem:[%s1435 + $0x5c] sm:$0x1]
      %v1746 = vld [vmem:[%s1435 + $0x60] sm:$0xf]
      %v1747 = vld [vmem:[%s1435 + $0x64] sm:$0xf]
      %v1748 = vld [vmem:[%s1435 + $0x68] sm:$0x1]
      %v1749 = vld [vmem:[%s1435 + $0x6c] sm:$0xf]
      %v1750 = vld [vmem:[%s1435 + $0x70] sm:$0xf]
      %v1751 = vld [vmem:[%s1435 + $0x74] sm:$0x1]
      %v1752 = vld [vmem:[%s1435 + $0x78] sm:$0xf]
      %v1753 = vld [vmem:[%s1435 + $0x7c] sm:$0xf]
      %v1754 = vld [vmem:[%s1435 + $0x80] sm:$0x1]
      %v1755 = vld [vmem:[%s1435 + $0x84] sm:$0xf]
      %v1756 = vld [vmem:[%s1435 + $0x88] sm:$0xf]
      %v1757 = vld [vmem:[%s1435 + $0x8c] sm:$0x1]
      %v1758 = vld [vmem:[%s1435 + $0x90] sm:$0xf]
      %v1759 = vld [vmem:[%s1435 + $0x94] sm:$0xf]
      %v1760 = vld [vmem:[%s1435 + $0x98] sm:$0x1]
      %v1761 = vld [vmem:[%s1435 + $0x9c] sm:$0xf]
      %v1762 = vld [vmem:[%s1435 + $0xa0] sm:$0xf]
      %v1763 = vld [vmem:[%s1435 + $0xa4] sm:$0x1]
      %v1764 = vld [vmem:[%s1435 + $0xa8] sm:$0xf]
      %v1765 = vld [vmem:[%s1435 + $0xac] sm:$0xf]
      %v1766 = vld [vmem:[%s1435 + $0xb0] sm:$0x1]
      %v1767 = vld [vmem:[%s1435 + $0xb4] sm:$0xf]
      %v1768 = vld [vmem:[%s1435 + $0xb8] sm:$0xf]
      %v1769 = vld [vmem:[%s1435 + $0xbc] sm:$0x1]
      %v1771 = vshrl.u32 %v1722, 16
      %v1773 = vrot.slane %v1771, 4
      %v1774 = vshll.u32 %v1722, 16
      %v1776 = vrot.slane %v1774, 5
      %v1777 = vor.u32 %v1773, %v1776
      %v1778 = vrot.slane %v1777, 4
      %v1780 = vshll.u32 %v1723, 16
      %v1782 = vrot.slane %v1780, 5
      %v1783 = vsel %vm250, %v1778, %v1782
      %v1784 = vshrl.u32 %v1723, 16
      %v1786 = vrot.slane %v1784, 4
      %v1787 = vor.u32 %v1786, %v1782
      %v1788 = vrot.slane %v1787, 4
      %v1790 = vshll.u32 %v1724, 16
      %v1792 = vrot.slane %v1790, 5
      %v1793 = vsel %vm250, %v1788, %v1792
      %v1795 = vshrl.u32 %v1725, 16
      %v1797 = vrot.slane %v1795, 4
      %v1798 = vshll.u32 %v1725, 16
      %v1800 = vrot.slane %v1798, 5
      %v1801 = vor.u32 %v1797, %v1800
      %v1802 = vrot.slane %v1801, 4
      %v1804 = vshll.u32 %v1726, 16
      %v1806 = vrot.slane %v1804, 5
      %v1807 = vsel %vm250, %v1802, %v1806
      %v1808 = vshrl.u32 %v1726, 16
      %v1810 = vrot.slane %v1808, 4
      %v1811 = vor.u32 %v1810, %v1806
      %v1812 = vrot.slane %v1811, 4
      %v1814 = vshll.u32 %v1727, 16
      %v1816 = vrot.slane %v1814, 5
      %v1817 = vsel %vm250, %v1812, %v1816
      %v1819 = vshrl.u32 %v1728, 16
      %v1821 = vrot.slane %v1819, 4
      %v1822 = vshll.u32 %v1728, 16
      %v1824 = vrot.slane %v1822, 5
      %v1825 = vor.u32 %v1821, %v1824
      %v1826 = vrot.slane %v1825, 4
      %v1828 = vshll.u32 %v1729, 16
      %v1830 = vrot.slane %v1828, 5
      %v1831 = vsel %vm250, %v1826, %v1830
      %v1832 = vshrl.u32 %v1729, 16
      %v1834 = vrot.slane %v1832, 4
      %v1835 = vor.u32 %v1834, %v1830
      %v1836 = vrot.slane %v1835, 4
      %v1838 = vshll.u32 %v1730, 16
      %v1840 = vrot.slane %v1838, 5
      %v1841 = vsel %vm250, %v1836, %v1840
      %v1843 = vshrl.u32 %v1731, 16
      %v1845 = vrot.slane %v1843, 4
      %v1846 = vshll.u32 %v1731, 16
      %v1848 = vrot.slane %v1846, 5
      %v1849 = vor.u32 %v1845, %v1848
      %v1850 = vrot.slane %v1849, 4
      %v1852 = vshll.u32 %v1732, 16
      %v1854 = vrot.slane %v1852, 5
      %v1855 = vsel %vm250, %v1850, %v1854
      %v1856 = vshrl.u32 %v1732, 16
      %v1858 = vrot.slane %v1856, 4
      %v1859 = vor.u32 %v1858, %v1854
      %v1860 = vrot.slane %v1859, 4
      %v1862 = vshll.u32 %v1733, 16
      %v1864 = vrot.slane %v1862, 5
      %v1865 = vsel %vm250, %v1860, %v1864
      %v1867 = vshrl.u32 %v1734, 16
      %v1869 = vrot.slane %v1867, 4
      %v1870 = vshll.u32 %v1734, 16
      %v1872 = vrot.slane %v1870, 5
      %v1873 = vor.u32 %v1869, %v1872
      %v1874 = vrot.slane %v1873, 4
      %v1876 = vshll.u32 %v1735, 16
      %v1878 = vrot.slane %v1876, 5
      %v1879 = vsel %vm250, %v1874, %v1878
      %v1880 = vshrl.u32 %v1735, 16
      %v1882 = vrot.slane %v1880, 4
      %v1883 = vor.u32 %v1882, %v1878
      %v1884 = vrot.slane %v1883, 4
      %v1886 = vshll.u32 %v1736, 16
      %v1888 = vrot.slane %v1886, 5
      %v1889 = vsel %vm250, %v1884, %v1888
      %v1891 = vshrl.u32 %v1737, 16
      %v1893 = vrot.slane %v1891, 4
      %v1894 = vshll.u32 %v1737, 16
      %v1896 = vrot.slane %v1894, 5
      %v1897 = vor.u32 %v1893, %v1896
      %v1898 = vrot.slane %v1897, 4
      %v1900 = vshll.u32 %v1738, 16
      %v1902 = vrot.slane %v1900, 5
      %v1903 = vsel %vm250, %v1898, %v1902
      %v1904 = vshrl.u32 %v1738, 16
      %v1906 = vrot.slane %v1904, 4
      %v1907 = vor.u32 %v1906, %v1902
      %v1908 = vrot.slane %v1907, 4
      %v1910 = vshll.u32 %v1739, 16
      %v1912 = vrot.slane %v1910, 5
      %v1913 = vsel %vm250, %v1908, %v1912
      %v1915 = vshrl.u32 %v1740, 16
      %v1917 = vrot.slane %v1915, 4
      %v1918 = vshll.u32 %v1740, 16
      %v1920 = vrot.slane %v1918, 5
      %v1921 = vor.u32 %v1917, %v1920
      %v1922 = vrot.slane %v1921, 4
      %v1924 = vshll.u32 %v1741, 16
      %v1926 = vrot.slane %v1924, 5
      %v1927 = vsel %vm250, %v1922, %v1926
      %v1928 = vshrl.u32 %v1741, 16
      %v1930 = vrot.slane %v1928, 4
      %v1931 = vor.u32 %v1930, %v1926
      %v1932 = vrot.slane %v1931, 4
      %v1934 = vshll.u32 %v1742, 16
      %v1936 = vrot.slane %v1934, 5
      %v1937 = vsel %vm250, %v1932, %v1936
      %v1939 = vshrl.u32 %v1743, 16
      %v1941 = vrot.slane %v1939, 4
      %v1942 = vshll.u32 %v1743, 16
      %v1944 = vrot.slane %v1942, 5
      %v1945 = vor.u32 %v1941, %v1944
      %v1946 = vrot.slane %v1945, 4
      %v1948 = vshll.u32 %v1744, 16
      %v1950 = vrot.slane %v1948, 5
      %v1951 = vsel %vm250, %v1946, %v1950
      %v1952 = vshrl.u32 %v1744, 16
      %v1954 = vrot.slane %v1952, 4
      %v1955 = vor.u32 %v1954, %v1950
      %v1956 = vrot.slane %v1955, 4
      %v1958 = vshll.u32 %v1745, 16
      %v1960 = vrot.slane %v1958, 5
      %v1961 = vsel %vm250, %v1956, %v1960
      %v1963 = vshrl.u32 %v1746, 16
      %v1965 = vrot.slane %v1963, 4
      %v1966 = vshll.u32 %v1746, 16
      %v1968 = vrot.slane %v1966, 5
      %v1969 = vor.u32 %v1965, %v1968
      %v1970 = vrot.slane %v1969, 4
      %v1972 = vshll.u32 %v1747, 16
      %v1974 = vrot.slane %v1972, 5
      %v1975 = vsel %vm250, %v1970, %v1974
      %v1976 = vshrl.u32 %v1747, 16
      %v1978 = vrot.slane %v1976, 4
      %v1979 = vor.u32 %v1978, %v1974
      %v1980 = vrot.slane %v1979, 4
      %v1982 = vshll.u32 %v1748, 16
      %v1984 = vrot.slane %v1982, 5
      %v1985 = vsel %vm250, %v1980, %v1984
      %v1987 = vshrl.u32 %v1749, 16
      %v1989 = vrot.slane %v1987, 4
      %v1990 = vshll.u32 %v1749, 16
      %v1992 = vrot.slane %v1990, 5
      %v1993 = vor.u32 %v1989, %v1992
      %v1994 = vrot.slane %v1993, 4
      %v1996 = vshll.u32 %v1750, 16
      %v1998 = vrot.slane %v1996, 5
      %v1999 = vsel %vm250, %v1994, %v1998
      %v2000 = vshrl.u32 %v1750, 16
      %v2002 = vrot.slane %v2000, 4
      %v2003 = vor.u32 %v2002, %v1998
      %v2004 = vrot.slane %v2003, 4
      %v2006 = vshll.u32 %v1751, 16
      %v2008 = vrot.slane %v2006, 5
      %v2009 = vsel %vm250, %v2004, %v2008
      %v2011 = vshrl.u32 %v1752, 16
      %v2013 = vrot.slane %v2011, 4
      %v2014 = vshll.u32 %v1752, 16
      %v2016 = vrot.slane %v2014, 5
      %v2017 = vor.u32 %v2013, %v2016
      %v2018 = vrot.slane %v2017, 4
      %v2020 = vshll.u32 %v1753, 16
      %v2022 = vrot.slane %v2020, 5
      %v2023 = vsel %vm250, %v2018, %v2022
      %v2024 = vshrl.u32 %v1753, 16
      %v2026 = vrot.slane %v2024, 4
      %v2027 = vor.u32 %v2026, %v2022
      %v2028 = vrot.slane %v2027, 4
      %v2030 = vshll.u32 %v1754, 16
      %v2032 = vrot.slane %v2030, 5
      %v2033 = vsel %vm250, %v2028, %v2032
      %v2035 = vshrl.u32 %v1755, 16
      %v2037 = vrot.slane %v2035, 4
      %v2038 = vshll.u32 %v1755, 16
      %v2040 = vrot.slane %v2038, 5
      %v2041 = vor.u32 %v2037, %v2040
      %v2042 = vrot.slane %v2041, 4
      %v2044 = vshll.u32 %v1756, 16
      %v2046 = vrot.slane %v2044, 5
      %v2047 = vsel %vm250, %v2042, %v2046
      %v2048 = vshrl.u32 %v1756, 16
      %v2050 = vrot.slane %v2048, 4
      %v2051 = vor.u32 %v2050, %v2046
      %v2052 = vrot.slane %v2051, 4
      %v2054 = vshll.u32 %v1757, 16
      %v2056 = vrot.slane %v2054, 5
      %v2057 = vsel %vm250, %v2052, %v2056
      %v2059 = vshrl.u32 %v1758, 16
      %v2061 = vrot.slane %v2059, 4
      %v2062 = vshll.u32 %v1758, 16
      %v2064 = vrot.slane %v2062, 5
      %v2065 = vor.u32 %v2061, %v2064
      %v2066 = vrot.slane %v2065, 4
      %v2068 = vshll.u32 %v1759, 16
      %v2070 = vrot.slane %v2068, 5
      %v2071 = vsel %vm250, %v2066, %v2070
      %v2072 = vshrl.u32 %v1759, 16
      %v2074 = vrot.slane %v2072, 4
      %v2075 = vor.u32 %v2074, %v2070
      %v2076 = vrot.slane %v2075, 4
      %v2078 = vshll.u32 %v1760, 16
      %v2080 = vrot.slane %v2078, 5
      %v2081 = vsel %vm250, %v2076, %v2080
      %v2083 = vshrl.u32 %v1761, 16
      %v2085 = vrot.slane %v2083, 4
      %v2086 = vshll.u32 %v1761, 16
      %v2088 = vrot.slane %v2086, 5
      %v2089 = vor.u32 %v2085, %v2088
      %v2090 = vrot.slane %v2089, 4
      %v2092 = vshll.u32 %v1762, 16
      %v2094 = vrot.slane %v2092, 5
      %v2095 = vsel %vm250, %v2090, %v2094
      %v2096 = vshrl.u32 %v1762, 16
      %v2098 = vrot.slane %v2096, 4
      %v2099 = vor.u32 %v2098, %v2094
      %v2100 = vrot.slane %v2099, 4
      %v2102 = vshll.u32 %v1763, 16
      %v2104 = vrot.slane %v2102, 5
      %v2105 = vsel %vm250, %v2100, %v2104
      %v2107 = vshrl.u32 %v1764, 16
      %v2109 = vrot.slane %v2107, 4
      %v2110 = vshll.u32 %v1764, 16
      %v2112 = vrot.slane %v2110, 5
      %v2113 = vor.u32 %v2109, %v2112
      %v2114 = vrot.slane %v2113, 4
      %v2116 = vshll.u32 %v1765, 16
      %v2118 = vrot.slane %v2116, 5
      %v2119 = vsel %vm250, %v2114, %v2118
      %v2120 = vshrl.u32 %v1765, 16
      %v2122 = vrot.slane %v2120, 4
      %v2123 = vor.u32 %v2122, %v2118
      %v2124 = vrot.slane %v2123, 4
      %v2126 = vshll.u32 %v1766, 16
      %v2128 = vrot.slane %v2126, 5
      %v2129 = vsel %vm250, %v2124, %v2128
      %v2131 = vshrl.u32 %v1767, 16
      %v2133 = vrot.slane %v2131, 4
      %v2134 = vshll.u32 %v1767, 16
      %v2136 = vrot.slane %v2134, 5
      %v2137 = vor.u32 %v2133, %v2136
      %v2138 = vrot.slane %v2137, 4
      %v2140 = vshll.u32 %v1768, 16
      %v2142 = vrot.slane %v2140, 5
      %v2143 = vsel %vm250, %v2138, %v2142
      %v2144 = vshrl.u32 %v1768, 16
      %v2146 = vrot.slane %v2144, 4
      %v2147 = vor.u32 %v2146, %v2142
      %v2148 = vrot.slane %v2147, 4
      %v2150 = vshll.u32 %v1769, 16
      %v2152 = vrot.slane %v2150, 5
      %v2153 = vsel %vm250, %v2148, %v2152
      %s2154 = scalar_lea.vmem %s1, 16
      %v2155 = vld [vmem:[%s2154] sm:$0xf]
      %v2156 = vunpack.c.l.b16 %v1783
      %v2157 = vunpack.c.l.b16 %v1793
      %v2158 = vunpack.c.l.b16 %v1807
      %v2159 = vunpack.c.l.b16 %v1817
      %v2160 = vunpack.c.l.b16 %v1831
      %v2161 = vunpack.c.l.b16 %v1841
      %v2162 = vunpack.c.l.b16 %v1855
      %v2163 = vunpack.c.l.b16 %v1865
      %v2164 = vunpack.c.l.b16 %v1879
      %v2165 = vunpack.c.l.b16 %v1889
      %v2166 = vunpack.c.l.b16 %v1903
      %v2167 = vunpack.c.l.b16 %v1913
      %v2168 = vunpack.c.l.b16 %v1927
      %v2169 = vunpack.c.l.b16 %v1937
      %v2170 = vunpack.c.l.b16 %v1951
      %v2171 = vunpack.c.l.b16 %v1961
      %v2172 = vunpack.c.l.b16 %v1975
      %v2173 = vunpack.c.l.b16 %v1985
      %v2174 = vunpack.c.l.b16 %v1999
      %v2175 = vunpack.c.l.b16 %v2009
      %v2176 = vunpack.c.l.b16 %v2023
      %v2177 = vunpack.c.l.b16 %v2033
      %v2178 = vunpack.c.l.b16 %v2047
      %v2179 = vunpack.c.l.b16 %v2057
      %v2180 = vunpack.c.l.b16 %v2071
      %v2181 = vunpack.c.l.b16 %v2081
      %v2182 = vunpack.c.l.b16 %v2095
      %v2183 = vunpack.c.l.b16 %v2105
      %v2184 = vunpack.c.l.b16 %v2119
      %v2185 = vunpack.c.l.b16 %v2129
      %v2186 = vunpack.c.l.b16 %v2143
      %v2187 = vunpack.c.l.b16 %v2153
      %v2188 = vpack.c.b16 %v2157, %v2156
      %v2189 = vpack.c.b16 %v2159, %v2158
      %v2190 = vpack.c.b16 %v2161, %v2160
      %v2191 = vpack.c.b16 %v2163, %v2162
      %v2192 = vpack.c.b16 %v2165, %v2164
      %v2193 = vpack.c.b16 %v2167, %v2166
      %v2194 = vpack.c.b16 %v2169, %v2168
      %v2195 = vpack.c.b16 %v2171, %v2170
      %v2196 = vpack.c.b16 %v2173, %v2172
      %v2197 = vpack.c.b16 %v2175, %v2174
      %v2198 = vpack.c.b16 %v2177, %v2176
      %v2199 = vpack.c.b16 %v2179, %v2178
      %v2200 = vpack.c.b16 %v2181, %v2180
      %v2201 = vpack.c.b16 %v2183, %v2182
      %v2202 = vpack.c.b16 %v2185, %v2184
      %v2203 = vpack.c.b16 %v2187, %v2186
      %v2205 = vsel %vm685, %v2188, 0
      %v2208 = vsel %vm685, %v2189, 0
      %v2211 = vsel %vm685, %v2190, 0
      %v2214 = vsel %vm685, %v2191, 0
      %v2217 = vsel %vm685, %v2192, 0
      %v2220 = vsel %vm685, %v2193, 0
      %v2223 = vsel %vm685, %v2194, 0
      %v2226 = vsel %vm685, %v2195, 0
      %v2229 = vsel %vm685, %v2196, 0
      %v2232 = vsel %vm685, %v2197, 0
      %v2235 = vsel %vm685, %v2198, 0
      %v2238 = vsel %vm685, %v2199, 0
      %v2241 = vsel %vm685, %v2200, 0
      %v2244 = vsel %vm685, %v2201, 0
      %v2247 = vsel %vm685, %v2202, 0
      %v2250 = vsel %vm685, %v2203, 0
      %v2253 = vsel %vm734, %v2155, 0
      %2255 = vmatpush.bf16.msra.mxu0 0
      %2256 = vmatpush.bf16.msra.mxu0 0
      %2257 = vmatpush.bf16.msra.mxu0 0
      %2258 = vmatpush.bf16.msra.mxu0 0
      %2259 = vmatpush.bf16.msra.mxu0 0
      %2260 = vmatpush.bf16.msra.mxu0 0
      %2261 = vmatpush.bf16.msra.mxu0 0
      %2262 = vmatpush.bf16.msra.mxu0 %v2253
      %2263 = vmatmul.bf16.gmra.mxu0 %v2205
      %v2264 = vpop.f32.mrf.mxu0
      %v2265 = vadd.f32 0.0, %v2264
      %v2266 = vpop.f32.mrf.mxu0
      %v2267 = vadd.f32 0.0, %v2266
      %2268 = vmatmul.bf16.gmra.mxu0 %v2208
      %v2269 = vpop.f32.mrf.mxu0
      %v2270 = vadd.f32 0.0, %v2269
      %v2271 = vpop.f32.mrf.mxu0
      %v2272 = vadd.f32 0.0, %v2271
      %2273 = vmatmul.bf16.gmra.mxu0 %v2211
      %v2274 = vpop.f32.mrf.mxu0
      %v2275 = vadd.f32 0.0, %v2274
      %v2276 = vpop.f32.mrf.mxu0
      %v2277 = vadd.f32 0.0, %v2276
      %2278 = vmatmul.bf16.gmra.mxu0 %v2214
      %v2279 = vpop.f32.mrf.mxu0
      %v2280 = vadd.f32 0.0, %v2279
      %v2281 = vpop.f32.mrf.mxu0
      %v2282 = vadd.f32 0.0, %v2281
      %2283 = vmatmul.bf16.gmra.mxu0 %v2217
      %v2284 = vpop.f32.mrf.mxu0
      %v2285 = vadd.f32 0.0, %v2284
      %v2286 = vpop.f32.mrf.mxu0
      %v2287 = vadd.f32 0.0, %v2286
      %2288 = vmatmul.bf16.gmra.mxu0 %v2220
      %v2289 = vpop.f32.mrf.mxu0
      %v2290 = vadd.f32 0.0, %v2289
      %v2291 = vpop.f32.mrf.mxu0
      %v2292 = vadd.f32 0.0, %v2291
      %2293 = vmatmul.bf16.gmra.mxu0 %v2223
      %v2294 = vpop.f32.mrf.mxu0
      %v2295 = vadd.f32 0.0, %v2294
      %v2296 = vpop.f32.mrf.mxu0
      %v2297 = vadd.f32 0.0, %v2296
      %2298 = vmatmul.bf16.gmra.mxu0 %v2226
      %v2299 = vpop.f32.mrf.mxu0
      %v2300 = vadd.f32 0.0, %v2299
      %v2301 = vpop.f32.mrf.mxu0
      %v2302 = vadd.f32 0.0, %v2301
      %2303 = vmatmul.bf16.gmra.mxu0 %v2229
      %v2304 = vpop.f32.mrf.mxu0
      %v2305 = vadd.f32 0.0, %v2304
      %v2306 = vpop.f32.mrf.mxu0
      %v2307 = vadd.f32 0.0, %v2306
      %2308 = vmatmul.bf16.gmra.mxu0 %v2232
      %v2309 = vpop.f32.mrf.mxu0
      %v2310 = vadd.f32 0.0, %v2309
      %v2311 = vpop.f32.mrf.mxu0
      %v2312 = vadd.f32 0.0, %v2311
      %2313 = vmatmul.bf16.gmra.mxu0 %v2235
      %v2314 = vpop.f32.mrf.mxu0
      %v2315 = vadd.f32 0.0, %v2314
      %v2316 = vpop.f32.mrf.mxu0
      %v2317 = vadd.f32 0.0, %v2316
      %2318 = vmatmul.bf16.gmra.mxu0 %v2238
      %v2319 = vpop.f32.mrf.mxu0
      %v2320 = vadd.f32 0.0, %v2319
      %v2321 = vpop.f32.mrf.mxu0
      %v2322 = vadd.f32 0.0, %v2321
      %2323 = vmatmul.bf16.gmra.mxu0 %v2241
      %v2324 = vpop.f32.mrf.mxu0
      %v2325 = vadd.f32 0.0, %v2324
      %v2326 = vpop.f32.mrf.mxu0
      %v2327 = vadd.f32 0.0, %v2326
      %2328 = vmatmul.bf16.gmra.mxu0 %v2244
      %v2329 = vpop.f32.mrf.mxu0
      %v2330 = vadd.f32 0.0, %v2329
      %v2331 = vpop.f32.mrf.mxu0
      %v2332 = vadd.f32 0.0, %v2331
      %2333 = vmatmul.bf16.gmra.mxu0 %v2247
      %v2334 = vpop.f32.mrf.mxu0
      %v2335 = vadd.f32 0.0, %v2334
      %v2336 = vpop.f32.mrf.mxu0
      %v2337 = vadd.f32 0.0, %v2336
      %2338 = vmatmul.bf16.gmra.mxu0 %v2250
      %v2339 = vpop.f32.mrf.mxu0
      %v2340 = vadd.f32 0.0, %v2339
      %v2341 = vpop.f32.mrf.mxu0
      %v2342 = vadd.f32 0.0, %v2341
      %2343 = vdwg.mxu0
      %v2344 = vadd.f32 %v1690, %v2265
      %v2345 = vadd.f32 %v1691, %v2267
      %v2346 = vadd.f32 %v1692, %v2270
      %v2347 = vadd.f32 %v1693, %v2272
      %v2348 = vadd.f32 %v1694, %v2275
      %v2349 = vadd.f32 %v1695, %v2277
      %v2350 = vadd.f32 %v1696, %v2280
      %v2351 = vadd.f32 %v1697, %v2282
      %v2352 = vadd.f32 %v1698, %v2285
      %v2353 = vadd.f32 %v1699, %v2287
      %v2354 = vadd.f32 %v1700, %v2290
      %v2355 = vadd.f32 %v1701, %v2292
      %v2356 = vadd.f32 %v1702, %v2295
      %v2357 = vadd.f32 %v1703, %v2297
      %v2358 = vadd.f32 %v1704, %v2300
      %v2359 = vadd.f32 %v1705, %v2302
      %v2360 = vadd.f32 %v1706, %v2305
      %v2361 = vadd.f32 %v1707, %v2307
      %v2362 = vadd.f32 %v1708, %v2310
      %v2363 = vadd.f32 %v1709, %v2312
      %v2364 = vadd.f32 %v1710, %v2315
      %v2365 = vadd.f32 %v1711, %v2317
      %v2366 = vadd.f32 %v1712, %v2320
      %v2367 = vadd.f32 %v1713, %v2322
      %v2368 = vadd.f32 %v1714, %v2325
      %v2369 = vadd.f32 %v1715, %v2327
      %v2370 = vadd.f32 %v1716, %v2330
      %v2371 = vadd.f32 %v1717, %v2332
      %v2372 = vadd.f32 %v1718, %v2335
      %v2373 = vadd.f32 %v1719, %v2337
      %v2374 = vadd.f32 %v1720, %v2340
      %v2375 = vadd.f32 %v1721, %v2342
      %v2376 = vld [vmem:[%s1435] sm:$0xe]
      %v2377 = vld [vmem:[%s1435 + $0xc] sm:$0xe]
      %v2378 = vld [vmem:[%s1435 + $0x18] sm:$0xe]
      %v2379 = vld [vmem:[%s1435 + $0x24] sm:$0xe]
      %v2380 = vld [vmem:[%s1435 + $0x30] sm:$0xe]
      %v2381 = vld [vmem:[%s1435 + $0x3c] sm:$0xe]
      %v2382 = vld [vmem:[%s1435 + $0x48] sm:$0xe]
      %v2383 = vld [vmem:[%s1435 + $0x54] sm:$0xe]
      %v2384 = vld [vmem:[%s1435 + $0x60] sm:$0xe]
      %v2385 = vld [vmem:[%s1435 + $0x6c] sm:$0xe]
      %v2386 = vld [vmem:[%s1435 + $0x78] sm:$0xe]
      %v2387 = vld [vmem:[%s1435 + $0x84] sm:$0xe]
      %v2388 = vld [vmem:[%s1435 + $0x90] sm:$0xe]
      %v2389 = vld [vmem:[%s1435 + $0x9c] sm:$0xe]
      %v2390 = vld [vmem:[%s1435 + $0xa8] sm:$0xe]
      %v2391 = vld [vmem:[%s1435 + $0xb4] sm:$0xe]
      %v2440 = vrot.slane %v2376, 5
      %v2441 = vrot.slane %v2440, 4
      %v2442 = vrot.slane %v1723, 5
      %v2443 = vsel %vm1097, %v2441, %v2442
      %v2444 = vrot.slane %v2442, 4
      %v2445 = vrot.slane %v1724, 5
      %v2446 = vsel %vm1097, %v2444, %v2445
      %v2447 = vrot.slane %v2377, 5
      %v2448 = vrot.slane %v2447, 4
      %v2449 = vrot.slane %v1726, 5
      %v2450 = vsel %vm1097, %v2448, %v2449
      %v2451 = vrot.slane %v2449, 4
      %v2452 = vrot.slane %v1727, 5
      %v2453 = vsel %vm1097, %v2451, %v2452
      %v2454 = vrot.slane %v2378, 5
      %v2455 = vrot.slane %v2454, 4
      %v2456 = vrot.slane %v1729, 5
      %v2457 = vsel %vm1097, %v2455, %v2456
      %v2458 = vrot.slane %v2456, 4
      %v2459 = vrot.slane %v1730, 5
      %v2460 = vsel %vm1097, %v2458, %v2459
      %v2461 = vrot.slane %v2379, 5
      %v2462 = vrot.slane %v2461, 4
      %v2463 = vrot.slane %v1732, 5
      %v2464 = vsel %vm1097, %v2462, %v2463
      %v2465 = vrot.slane %v2463, 4
      %v2466 = vrot.slane %v1733, 5
      %v2467 = vsel %vm1097, %v2465, %v2466
      %v2468 = vrot.slane %v2380, 5
      %v2469 = vrot.slane %v2468, 4
      %v2470 = vrot.slane %v1735, 5
      %v2471 = vsel %vm1097, %v2469, %v2470
      %v2472 = vrot.slane %v2470, 4
      %v2473 = vrot.slane %v1736, 5
      %v2474 = vsel %vm1097, %v2472, %v2473
      %v2475 = vrot.slane %v2381, 5
      %v2476 = vrot.slane %v2475, 4
      %v2477 = vrot.slane %v1738, 5
      %v2478 = vsel %vm1097, %v2476, %v2477
      %v2479 = vrot.slane %v2477, 4
      %v2480 = vrot.slane %v1739, 5
      %v2481 = vsel %vm1097, %v2479, %v2480
      %v2482 = vrot.slane %v2382, 5
      %v2483 = vrot.slane %v2482, 4
      %v2484 = vrot.slane %v1741, 5
      %v2485 = vsel %vm1097, %v2483, %v2484
      %v2486 = vrot.slane %v2484, 4
      %v2487 = vrot.slane %v1742, 5
      %v2488 = vsel %vm1097, %v2486, %v2487
      %v2489 = vrot.slane %v2383, 5
      %v2490 = vrot.slane %v2489, 4
      %v2491 = vrot.slane %v1744, 5
      %v2492 = vsel %vm1097, %v2490, %v2491
      %v2493 = vrot.slane %v2491, 4
      %v2494 = vrot.slane %v1745, 5
      %v2495 = vsel %vm1097, %v2493, %v2494
      %v2496 = vrot.slane %v2384, 5
      %v2497 = vrot.slane %v2496, 4
      %v2498 = vrot.slane %v1747, 5
      %v2499 = vsel %vm1097, %v2497, %v2498
      %v2500 = vrot.slane %v2498, 4
      %v2501 = vrot.slane %v1748, 5
      %v2502 = vsel %vm1097, %v2500, %v2501
      %v2503 = vrot.slane %v2385, 5
      %v2504 = vrot.slane %v2503, 4
      %v2505 = vrot.slane %v1750, 5
      %v2506 = vsel %vm1097, %v2504, %v2505
      %v2507 = vrot.slane %v2505, 4
      %v2508 = vrot.slane %v1751, 5
      %v2509 = vsel %vm1097, %v2507, %v2508
      %v2510 = vrot.slane %v2386, 5
      %v2511 = vrot.slane %v2510, 4
      %v2512 = vrot.slane %v1753, 5
      %v2513 = vsel %vm1097, %v2511, %v2512
      %v2514 = vrot.slane %v2512, 4
      %v2515 = vrot.slane %v1754, 5
      %v2516 = vsel %vm1097, %v2514, %v2515
      %v2517 = vrot.slane %v2387, 5
      %v2518 = vrot.slane %v2517, 4
      %v2519 = vrot.slane %v1756, 5
      %v2520 = vsel %vm1097, %v2518, %v2519
      %v2521 = vrot.slane %v2519, 4
      %v2522 = vrot.slane %v1757, 5
      %v2523 = vsel %vm1097, %v2521, %v2522
      %v2524 = vrot.slane %v2388, 5
      %v2525 = vrot.slane %v2524, 4
      %v2526 = vrot.slane %v1759, 5
      %v2527 = vsel %vm1097, %v2525, %v2526
      %v2528 = vrot.slane %v2526, 4
      %v2529 = vrot.slane %v1760, 5
      %v2530 = vsel %vm1097, %v2528, %v2529
      %v2531 = vrot.slane %v2389, 5
      %v2532 = vrot.slane %v2531, 4
      %v2533 = vrot.slane %v1762, 5
      %v2534 = vsel %vm1097, %v2532, %v2533
      %v2535 = vrot.slane %v2533, 4
      %v2536 = vrot.slane %v1763, 5
      %v2537 = vsel %vm1097, %v2535, %v2536
      %v2538 = vrot.slane %v2390, 5
      %v2539 = vrot.slane %v2538, 4
      %v2540 = vrot.slane %v1765, 5
      %v2541 = vsel %vm1097, %v2539, %v2540
      %v2542 = vrot.slane %v2540, 4
      %v2543 = vrot.slane %v1766, 5
      %v2544 = vsel %vm1097, %v2542, %v2543
      %v2545 = vrot.slane %v2391, 5
      %v2546 = vrot.slane %v2545, 4
      %v2547 = vrot.slane %v1768, 5
      %v2548 = vsel %vm1097, %v2546, %v2547
      %v2549 = vrot.slane %v2547, 4
      %v2550 = vrot.slane %v1769, 5
      %v2551 = vsel %vm1097, %v2549, %v2550
      %s2552 = scalar_lea.vmem %s1, 20
      %v2553 = vld [vmem:[%s2552] sm:$0xf]
      %v2554 = vunpack.c.l.b16 %v2443
      %v2555 = vunpack.c.l.b16 %v2446
      %v2556 = vunpack.c.l.b16 %v2450
      %v2557 = vunpack.c.l.b16 %v2453
      %v2558 = vunpack.c.l.b16 %v2457
      %v2559 = vunpack.c.l.b16 %v2460
      %v2560 = vunpack.c.l.b16 %v2464
      %v2561 = vunpack.c.l.b16 %v2467
      %v2562 = vunpack.c.l.b16 %v2471
      %v2563 = vunpack.c.l.b16 %v2474
      %v2564 = vunpack.c.l.b16 %v2478
      %v2565 = vunpack.c.l.b16 %v2481
      %v2566 = vunpack.c.l.b16 %v2485
      %v2567 = vunpack.c.l.b16 %v2488
      %v2568 = vunpack.c.l.b16 %v2492
      %v2569 = vunpack.c.l.b16 %v2495
      %v2570 = vunpack.c.l.b16 %v2499
      %v2571 = vunpack.c.l.b16 %v2502
      %v2572 = vunpack.c.l.b16 %v2506
      %v2573 = vunpack.c.l.b16 %v2509
      %v2574 = vunpack.c.l.b16 %v2513
      %v2575 = vunpack.c.l.b16 %v2516
      %v2576 = vunpack.c.l.b16 %v2520
      %v2577 = vunpack.c.l.b16 %v2523
      %v2578 = vunpack.c.l.b16 %v2527
      %v2579 = vunpack.c.l.b16 %v2530
      %v2580 = vunpack.c.l.b16 %v2534
      %v2581 = vunpack.c.l.b16 %v2537
      %v2582 = vunpack.c.l.b16 %v2541
      %v2583 = vunpack.c.l.b16 %v2544
      %v2584 = vunpack.c.l.b16 %v2548
      %v2585 = vunpack.c.l.b16 %v2551
      %v2586 = vpack.c.b16 %v2555, %v2554
      %v2587 = vpack.c.b16 %v2557, %v2556
      %v2588 = vpack.c.b16 %v2559, %v2558
      %v2589 = vpack.c.b16 %v2561, %v2560
      %v2590 = vpack.c.b16 %v2563, %v2562
      %v2591 = vpack.c.b16 %v2565, %v2564
      %v2592 = vpack.c.b16 %v2567, %v2566
      %v2593 = vpack.c.b16 %v2569, %v2568
      %v2594 = vpack.c.b16 %v2571, %v2570
      %v2595 = vpack.c.b16 %v2573, %v2572
      %v2596 = vpack.c.b16 %v2575, %v2574
      %v2597 = vpack.c.b16 %v2577, %v2576
      %v2598 = vpack.c.b16 %v2579, %v2578
      %v2599 = vpack.c.b16 %v2581, %v2580
      %v2600 = vpack.c.b16 %v2583, %v2582
      %v2601 = vpack.c.b16 %v2585, %v2584
      %v2603 = vsel %vm685, %v2586, 0
      %v2606 = vsel %vm685, %v2587, 0
      %v2609 = vsel %vm685, %v2588, 0
      %v2612 = vsel %vm685, %v2589, 0
      %v2615 = vsel %vm685, %v2590, 0
      %v2618 = vsel %vm685, %v2591, 0
      %v2621 = vsel %vm685, %v2592, 0
      %v2624 = vsel %vm685, %v2593, 0
      %v2627 = vsel %vm685, %v2594, 0
      %v2630 = vsel %vm685, %v2595, 0
      %v2633 = vsel %vm685, %v2596, 0
      %v2636 = vsel %vm685, %v2597, 0
      %v2639 = vsel %vm685, %v2598, 0
      %v2642 = vsel %vm685, %v2599, 0
      %v2645 = vsel %vm685, %v2600, 0
      %v2648 = vsel %vm685, %v2601, 0
      %v2651 = vsel %vm734, %v2553, 0
      %2653 = vmatpush.bf16.msra.mxu0 0
      %2654 = vmatpush.bf16.msra.mxu0 0
      %2655 = vmatpush.bf16.msra.mxu0 0
      %2656 = vmatpush.bf16.msra.mxu0 0
      %2657 = vmatpush.bf16.msra.mxu0 0
      %2658 = vmatpush.bf16.msra.mxu0 0
      %2659 = vmatpush.bf16.msra.mxu0 0
      %2660 = vmatpush.bf16.msra.mxu0 %v2651
      %2661 = vmatmul.bf16.gmra.mxu0 %v2603
      %v2662 = vpop.f32.mrf.mxu0
      %v2663 = vadd.f32 0.0, %v2662
      %v2664 = vpop.f32.mrf.mxu0
      %v2665 = vadd.f32 0.0, %v2664
      %2666 = vmatmul.bf16.gmra.mxu0 %v2606
      %v2667 = vpop.f32.mrf.mxu0
      %v2668 = vadd.f32 0.0, %v2667
      %v2669 = vpop.f32.mrf.mxu0
      %v2670 = vadd.f32 0.0, %v2669
      %2671 = vmatmul.bf16.gmra.mxu0 %v2609
      %v2672 = vpop.f32.mrf.mxu0
      %v2673 = vadd.f32 0.0, %v2672
      %v2674 = vpop.f32.mrf.mxu0
      %v2675 = vadd.f32 0.0, %v2674
      %2676 = vmatmul.bf16.gmra.mxu0 %v2612
      %v2677 = vpop.f32.mrf.mxu0
      %v2678 = vadd.f32 0.0, %v2677
      %v2679 = vpop.f32.mrf.mxu0
      %v2680 = vadd.f32 0.0, %v2679
      %2681 = vmatmul.bf16.gmra.mxu0 %v2615
      %v2682 = vpop.f32.mrf.mxu0
      %v2683 = vadd.f32 0.0, %v2682
      %v2684 = vpop.f32.mrf.mxu0
      %v2685 = vadd.f32 0.0, %v2684
      %2686 = vmatmul.bf16.gmra.mxu0 %v2618
      %v2687 = vpop.f32.mrf.mxu0
      %v2688 = vadd.f32 0.0, %v2687
      %v2689 = vpop.f32.mrf.mxu0
      %v2690 = vadd.f32 0.0, %v2689
      %2691 = vmatmul.bf16.gmra.mxu0 %v2621
      %v2692 = vpop.f32.mrf.mxu0
      %v2693 = vadd.f32 0.0, %v2692
      %v2694 = vpop.f32.mrf.mxu0
      %v2695 = vadd.f32 0.0, %v2694
      %2696 = vmatmul.bf16.gmra.mxu0 %v2624
      %v2697 = vpop.f32.mrf.mxu0
      %v2698 = vadd.f32 0.0, %v2697
      %v2699 = vpop.f32.mrf.mxu0
      %v2700 = vadd.f32 0.0, %v2699
      %2701 = vmatmul.bf16.gmra.mxu0 %v2627
      %v2702 = vpop.f32.mrf.mxu0
      %v2703 = vadd.f32 0.0, %v2702
      %v2704 = vpop.f32.mrf.mxu0
      %v2705 = vadd.f32 0.0, %v2704
      %2706 = vmatmul.bf16.gmra.mxu0 %v2630
      %v2707 = vpop.f32.mrf.mxu0
      %v2708 = vadd.f32 0.0, %v2707
      %v2709 = vpop.f32.mrf.mxu0
      %v2710 = vadd.f32 0.0, %v2709
      %2711 = vmatmul.bf16.gmra.mxu0 %v2633
      %v2712 = vpop.f32.mrf.mxu0
      %v2713 = vadd.f32 0.0, %v2712
      %v2714 = vpop.f32.mrf.mxu0
      %v2715 = vadd.f32 0.0, %v2714
      %2716 = vmatmul.bf16.gmra.mxu0 %v2636
      %v2717 = vpop.f32.mrf.mxu0
      %v2718 = vadd.f32 0.0, %v2717
      %v2719 = vpop.f32.mrf.mxu0
      %v2720 = vadd.f32 0.0, %v2719
      %2721 = vmatmul.bf16.gmra.mxu0 %v2639
      %v2722 = vpop.f32.mrf.mxu0
      %v2723 = vadd.f32 0.0, %v2722
      %v2724 = vpop.f32.mrf.mxu0
      %v2725 = vadd.f32 0.0, %v2724
      %2726 = vmatmul.bf16.gmra.mxu0 %v2642
      %v2727 = vpop.f32.mrf.mxu0
      %v2728 = vadd.f32 0.0, %v2727
      %v2729 = vpop.f32.mrf.mxu0
      %v2730 = vadd.f32 0.0, %v2729
      %2731 = vmatmul.bf16.gmra.mxu0 %v2645
      %v2732 = vpop.f32.mrf.mxu0
      %v2733 = vadd.f32 0.0, %v2732
      %v2734 = vpop.f32.mrf.mxu0
      %v2735 = vadd.f32 0.0, %v2734
      %2736 = vmatmul.bf16.gmra.mxu0 %v2648
      %v2737 = vpop.f32.mrf.mxu0
      %v2738 = vadd.f32 0.0, %v2737
      %v2739 = vpop.f32.mrf.mxu0
      %v2740 = vadd.f32 0.0, %v2739
      %2741 = vdwg.mxu0
      %v2742 = vadd.f32 %v2344, %v2663
      %v2743 = vadd.f32 %v2345, %v2665
      %v2744 = vadd.f32 %v2346, %v2668
      %v2745 = vadd.f32 %v2347, %v2670
      %v2746 = vadd.f32 %v2348, %v2673
      %v2747 = vadd.f32 %v2349, %v2675
      %v2748 = vadd.f32 %v2350, %v2678
      %v2749 = vadd.f32 %v2351, %v2680
      %v2750 = vadd.f32 %v2352, %v2683
      %v2751 = vadd.f32 %v2353, %v2685
      %v2752 = vadd.f32 %v2354, %v2688
      %v2753 = vadd.f32 %v2355, %v2690
      %v2754 = vadd.f32 %v2356, %v2693
      %v2755 = vadd.f32 %v2357, %v2695
      %v2756 = vadd.f32 %v2358, %v2698
      %v2757 = vadd.f32 %v2359, %v2700
      %v2758 = vadd.f32 %v2360, %v2703
      %v2759 = vadd.f32 %v2361, %v2705
      %v2760 = vadd.f32 %v2362, %v2708
      %v2761 = vadd.f32 %v2363, %v2710
      %v2762 = vadd.f32 %v2364, %v2713
      %v2763 = vadd.f32 %v2365, %v2715
      %v2764 = vadd.f32 %v2366, %v2718
      %v2765 = vadd.f32 %v2367, %v2720
      %v2766 = vadd.f32 %v2368, %v2723
      %v2767 = vadd.f32 %v2369, %v2725
      %v2768 = vadd.f32 %v2370, %v2728
      %v2769 = vadd.f32 %v2371, %v2730
      %v2770 = vadd.f32 %v2372, %v2733
      %v2771 = vadd.f32 %v2373, %v2735
      %v2772 = vadd.f32 %v2374, %v2738
      %v2773 = vadd.f32 %v2375, %v2740
      %s2774 = sadd.s32 %s195, 2
      %s2775 = smul.u32 %s2774, 3
      %s2776 = smul.addr %s2775, 4
      %s2777 = scalar_lea.vmem %s183, %s2776
      %v2778 = vld [vmem:[%s2777] sm:$0xf]
      %v2779 = vld [vmem:[%s2777 + $0x4] sm:$0xf]
      %v2780 = vld [vmem:[%s2777 + $0xc] sm:$0xf]
      %v2781 = vld [vmem:[%s2777 + $0x10] sm:$0xf]
      %v2782 = vld [vmem:[%s2777 + $0x18] sm:$0xf]
      %v2783 = vld [vmem:[%s2777 + $0x1c] sm:$0xf]
      %v2784 = vld [vmem:[%s2777 + $0x24] sm:$0xf]
      %v2785 = vld [vmem:[%s2777 + $0x28] sm:$0xf]
      %v2786 = vld [vmem:[%s2777 + $0x30] sm:$0xf]
      %v2787 = vld [vmem:[%s2777 + $0x34] sm:$0xf]
      %v2788 = vld [vmem:[%s2777 + $0x3c] sm:$0xf]
      %v2789 = vld [vmem:[%s2777 + $0x40] sm:$0xf]
      %v2790 = vld [vmem:[%s2777 + $0x48] sm:$0xf]
      %v2791 = vld [vmem:[%s2777 + $0x4c] sm:$0xf]
      %v2792 = vld [vmem:[%s2777 + $0x54] sm:$0xf]
      %v2793 = vld [vmem:[%s2777 + $0x58] sm:$0xf]
      %v2794 = vld [vmem:[%s2777 + $0x60] sm:$0xf]
      %v2795 = vld [vmem:[%s2777 + $0x64] sm:$0xf]
      %v2796 = vld [vmem:[%s2777 + $0x6c] sm:$0xf]
      %v2797 = vld [vmem:[%s2777 + $0x70] sm:$0xf]
      %v2798 = vld [vmem:[%s2777 + $0x78] sm:$0xf]
      %v2799 = vld [vmem:[%s2777 + $0x7c] sm:$0xf]
      %v2800 = vld [vmem:[%s2777 + $0x84] sm:$0xf]
      %v2801 = vld [vmem:[%s2777 + $0x88] sm:$0xf]
      %v2802 = vld [vmem:[%s2777 + $0x90] sm:$0xf]
      %v2803 = vld [vmem:[%s2777 + $0x94] sm:$0xf]
      %v2804 = vld [vmem:[%s2777 + $0x9c] sm:$0xf]
      %v2805 = vld [vmem:[%s2777 + $0xa0] sm:$0xf]
      %v2806 = vld [vmem:[%s2777 + $0xa8] sm:$0xf]
      %v2807 = vld [vmem:[%s2777 + $0xac] sm:$0xf]
      %v2808 = vld [vmem:[%s2777 + $0xb4] sm:$0xf]
      %v2809 = vld [vmem:[%s2777 + $0xb8] sm:$0xf]
      %s2810 = scalar_lea.vmem %s1, 24
      %v2811 = vld [vmem:[%s2810] sm:$0xf]
      %v2844 = vunpack.c.l.b16 %v2778
      %v2845 = vunpack.c.l.b16 %v2779
      %v2846 = vunpack.c.l.b16 %v2780
      %v2847 = vunpack.c.l.b16 %v2781
      %v2848 = vunpack.c.l.b16 %v2782
      %v2849 = vunpack.c.l.b16 %v2783
      %v2850 = vunpack.c.l.b16 %v2784
      %v2851 = vunpack.c.l.b16 %v2785
      %v2852 = vunpack.c.l.b16 %v2786
      %v2853 = vunpack.c.l.b16 %v2787
      %v2854 = vunpack.c.l.b16 %v2788
      %v2855 = vunpack.c.l.b16 %v2789
      %v2856 = vunpack.c.l.b16 %v2790
      %v2857 = vunpack.c.l.b16 %v2791
      %v2858 = vunpack.c.l.b16 %v2792
      %v2859 = vunpack.c.l.b16 %v2793
      %v2860 = vunpack.c.l.b16 %v2794
      %v2861 = vunpack.c.l.b16 %v2795
      %v2862 = vunpack.c.l.b16 %v2796
      %v2863 = vunpack.c.l.b16 %v2797
      %v2864 = vunpack.c.l.b16 %v2798
      %v2865 = vunpack.c.l.b16 %v2799
      %v2866 = vunpack.c.l.b16 %v2800
      %v2867 = vunpack.c.l.b16 %v2801
      %v2868 = vunpack.c.l.b16 %v2802
      %v2869 = vunpack.c.l.b16 %v2803
      %v2870 = vunpack.c.l.b16 %v2804
      %v2871 = vunpack.c.l.b16 %v2805
      %v2872 = vunpack.c.l.b16 %v2806
      %v2873 = vunpack.c.l.b16 %v2807
      %v2874 = vunpack.c.l.b16 %v2808
      %v2875 = vunpack.c.l.b16 %v2809
      %v2876 = vpack.c.b16 %v2845, %v2844
      %v2877 = vpack.c.b16 %v2847, %v2846
      %v2878 = vpack.c.b16 %v2849, %v2848
      %v2879 = vpack.c.b16 %v2851, %v2850
      %v2880 = vpack.c.b16 %v2853, %v2852
      %v2881 = vpack.c.b16 %v2855, %v2854
      %v2882 = vpack.c.b16 %v2857, %v2856
      %v2883 = vpack.c.b16 %v2859, %v2858
      %v2884 = vpack.c.b16 %v2861, %v2860
      %v2885 = vpack.c.b16 %v2863, %v2862
      %v2886 = vpack.c.b16 %v2865, %v2864
      %v2887 = vpack.c.b16 %v2867, %v2866
      %v2888 = vpack.c.b16 %v2869, %v2868
      %v2889 = vpack.c.b16 %v2871, %v2870
      %v2890 = vpack.c.b16 %v2873, %v2872
      %v2891 = vpack.c.b16 %v2875, %v2874
      %v2893 = vsel %vm685, %v2876, 0
      %v2896 = vsel %vm685, %v2877, 0
      %v2899 = vsel %vm685, %v2878, 0
      %v2902 = vsel %vm685, %v2879, 0
      %v2905 = vsel %vm685, %v2880, 0
      %v2908 = vsel %vm685, %v2881, 0
      %v2911 = vsel %vm685, %v2882, 0
      %v2914 = vsel %vm685, %v2883, 0
      %v2917 = vsel %vm685, %v2884, 0
      %v2920 = vsel %vm685, %v2885, 0
      %v2923 = vsel %vm685, %v2886, 0
      %v2926 = vsel %vm685, %v2887, 0
      %v2929 = vsel %vm685, %v2888, 0
      %v2932 = vsel %vm685, %v2889, 0
      %v2935 = vsel %vm685, %v2890, 0
      %v2938 = vsel %vm685, %v2891, 0
      %v2941 = vsel %vm734, %v2811, 0
      %2943 = vmatpush.bf16.msra.mxu0 0
      %2944 = vmatpush.bf16.msra.mxu0 0
      %2945 = vmatpush.bf16.msra.mxu0 0
      %2946 = vmatpush.bf16.msra.mxu0 0
      %2947 = vmatpush.bf16.msra.mxu0 0
      %2948 = vmatpush.bf16.msra.mxu0 0
      %2949 = vmatpush.bf16.msra.mxu0 0
      %2950 = vmatpush.bf16.msra.mxu0 %v2941
      %2951 = vmatmul.bf16.gmra.mxu0 %v2893
      %v2952 = vpop.f32.mrf.mxu0
      %v2953 = vadd.f32 0.0, %v2952
      %v2954 = vpop.f32.mrf.mxu0
      %v2955 = vadd.f32 0.0, %v2954
      %2956 = vmatmul.bf16.gmra.mxu0 %v2896
      %v2957 = vpop.f32.mrf.mxu0
      %v2958 = vadd.f32 0.0, %v2957
      %v2959 = vpop.f32.mrf.mxu0
      %v2960 = vadd.f32 0.0, %v2959
      %2961 = vmatmul.bf16.gmra.mxu0 %v2899
      %v2962 = vpop.f32.mrf.mxu0
      %v2963 = vadd.f32 0.0, %v2962
      %v2964 = vpop.f32.mrf.mxu0
      %v2965 = vadd.f32 0.0, %v2964
      %2966 = vmatmul.bf16.gmra.mxu0 %v2902
      %v2967 = vpop.f32.mrf.mxu0
      %v2968 = vadd.f32 0.0, %v2967
      %v2969 = vpop.f32.mrf.mxu0
      %v2970 = vadd.f32 0.0, %v2969
      %2971 = vmatmul.bf16.gmra.mxu0 %v2905
      %v2972 = vpop.f32.mrf.mxu0
      %v2973 = vadd.f32 0.0, %v2972
      %v2974 = vpop.f32.mrf.mxu0
      %v2975 = vadd.f32 0.0, %v2974
      %2976 = vmatmul.bf16.gmra.mxu0 %v2908
      %v2977 = vpop.f32.mrf.mxu0
      %v2978 = vadd.f32 0.0, %v2977
      %v2979 = vpop.f32.mrf.mxu0
      %v2980 = vadd.f32 0.0, %v2979
      %2981 = vmatmul.bf16.gmra.mxu0 %v2911
      %v2982 = vpop.f32.mrf.mxu0
      %v2983 = vadd.f32 0.0, %v2982
      %v2984 = vpop.f32.mrf.mxu0
      %v2985 = vadd.f32 0.0, %v2984
      %2986 = vmatmul.bf16.gmra.mxu0 %v2914
      %v2987 = vpop.f32.mrf.mxu0
      %v2988 = vadd.f32 0.0, %v2987
      %v2989 = vpop.f32.mrf.mxu0
      %v2990 = vadd.f32 0.0, %v2989
      %2991 = vmatmul.bf16.gmra.mxu0 %v2917
      %v2992 = vpop.f32.mrf.mxu0
      %v2993 = vadd.f32 0.0, %v2992
      %v2994 = vpop.f32.mrf.mxu0
      %v2995 = vadd.f32 0.0, %v2994
      %2996 = vmatmul.bf16.gmra.mxu0 %v2920
      %v2997 = vpop.f32.mrf.mxu0
      %v2998 = vadd.f32 0.0, %v2997
      %v2999 = vpop.f32.mrf.mxu0
      %v3000 = vadd.f32 0.0, %v2999
      %3001 = vmatmul.bf16.gmra.mxu0 %v2923
      %v3002 = vpop.f32.mrf.mxu0
      %v3003 = vadd.f32 0.0, %v3002
      %v3004 = vpop.f32.mrf.mxu0
      %v3005 = vadd.f32 0.0, %v3004
      %3006 = vmatmul.bf16.gmra.mxu0 %v2926
      %v3007 = vpop.f32.mrf.mxu0
      %v3008 = vadd.f32 0.0, %v3007
      %v3009 = vpop.f32.mrf.mxu0
      %v3010 = vadd.f32 0.0, %v3009
      %3011 = vmatmul.bf16.gmra.mxu0 %v2929
      %v3012 = vpop.f32.mrf.mxu0
      %v3013 = vadd.f32 0.0, %v3012
      %v3014 = vpop.f32.mrf.mxu0
      %v3015 = vadd.f32 0.0, %v3014
      %3016 = vmatmul.bf16.gmra.mxu0 %v2932
      %v3017 = vpop.f32.mrf.mxu0
      %v3018 = vadd.f32 0.0, %v3017
      %v3019 = vpop.f32.mrf.mxu0
      %v3020 = vadd.f32 0.0, %v3019
      %3021 = vmatmul.bf16.gmra.mxu0 %v2935
      %v3022 = vpop.f32.mrf.mxu0
      %v3023 = vadd.f32 0.0, %v3022
      %v3024 = vpop.f32.mrf.mxu0
      %v3025 = vadd.f32 0.0, %v3024
      %3026 = vmatmul.bf16.gmra.mxu0 %v2938
      %v3027 = vpop.f32.mrf.mxu0
      %v3028 = vadd.f32 0.0, %v3027
      %v3029 = vpop.f32.mrf.mxu0
      %v3030 = vadd.f32 0.0, %v3029
      %3031 = vdwg.mxu0
      %v3032 = vadd.f32 %v2742, %v2953
      %v3033 = vadd.f32 %v2743, %v2955
      %v3034 = vadd.f32 %v2744, %v2958
      %v3035 = vadd.f32 %v2745, %v2960
      %v3036 = vadd.f32 %v2746, %v2963
      %v3037 = vadd.f32 %v2747, %v2965
      %v3038 = vadd.f32 %v2748, %v2968
      %v3039 = vadd.f32 %v2749, %v2970
      %v3040 = vadd.f32 %v2750, %v2973
      %v3041 = vadd.f32 %v2751, %v2975
      %v3042 = vadd.f32 %v2752, %v2978
      %v3043 = vadd.f32 %v2753, %v2980
      %v3044 = vadd.f32 %v2754, %v2983
      %v3045 = vadd.f32 %v2755, %v2985
      %v3046 = vadd.f32 %v2756, %v2988
      %v3047 = vadd.f32 %v2757, %v2990
      %v3048 = vadd.f32 %v2758, %v2993
      %v3049 = vadd.f32 %v2759, %v2995
      %v3050 = vadd.f32 %v2760, %v2998
      %v3051 = vadd.f32 %v2761, %v3000
      %v3052 = vadd.f32 %v2762, %v3003
      %v3053 = vadd.f32 %v2763, %v3005
      %v3054 = vadd.f32 %v2764, %v3008
      %v3055 = vadd.f32 %v2765, %v3010
      %v3056 = vadd.f32 %v2766, %v3013
      %v3057 = vadd.f32 %v2767, %v3015
      %v3058 = vadd.f32 %v2768, %v3018
      %v3059 = vadd.f32 %v2769, %v3020
      %v3060 = vadd.f32 %v2770, %v3023
      %v3061 = vadd.f32 %v2771, %v3025
      %v3062 = vadd.f32 %v2772, %v3028
      %v3063 = vadd.f32 %v2773, %v3030
      %v3064 = vld [vmem:[%s2777] sm:$0xf]
      %v3065 = vld [vmem:[%s2777 + $0x4] sm:$0xf]
      %v3066 = vld [vmem:[%s2777 + $0x8] sm:$0x1]
      %v3067 = vld [vmem:[%s2777 + $0xc] sm:$0xf]
      %v3068 = vld [vmem:[%s2777 + $0x10] sm:$0xf]
      %v3069 = vld [vmem:[%s2777 + $0x14] sm:$0x1]
      %v3070 = vld [vmem:[%s2777 + $0x18] sm:$0xf]
      %v3071 = vld [vmem:[%s2777 + $0x1c] sm:$0xf]
      %v3072 = vld [vmem:[%s2777 + $0x20] sm:$0x1]
      %v3073 = vld [vmem:[%s2777 + $0x24] sm:$0xf]
      %v3074 = vld [vmem:[%s2777 + $0x28] sm:$0xf]
      %v3075 = vld [vmem:[%s2777 + $0x2c] sm:$0x1]
      %v3076 = vld [vmem:[%s2777 + $0x30] sm:$0xf]
      %v3077 = vld [vmem:[%s2777 + $0x34] sm:$0xf]
      %v3078 = vld [vmem:[%s2777 + $0x38] sm:$0x1]
      %v3079 = vld [vmem:[%s2777 + $0x3c] sm:$0xf]
      %v3080 = vld [vmem:[%s2777 + $0x40] sm:$0xf]
      %v3081 = vld [vmem:[%s2777 + $0x44] sm:$0x1]
      %v3082 = vld [vmem:[%s2777 + $0x48] sm:$0xf]
      %v3083 = vld [vmem:[%s2777 + $0x4c] sm:$0xf]
      %v3084 = vld [vmem:[%s2777 + $0x50] sm:$0x1]
      %v3085 = vld [vmem:[%s2777 + $0x54] sm:$0xf]
      %v3086 = vld [vmem:[%s2777 + $0x58] sm:$0xf]
      %v3087 = vld [vmem:[%s2777 + $0x5c] sm:$0x1]
      %v3088 = vld [vmem:[%s2777 + $0x60] sm:$0xf]
      %v3089 = vld [vmem:[%s2777 + $0x64] sm:$0xf]
      %v3090 = vld [vmem:[%s2777 + $0x68] sm:$0x1]
      %v3091 = vld [vmem:[%s2777 + $0x6c] sm:$0xf]
      %v3092 = vld [vmem:[%s2777 + $0x70] sm:$0xf]
      %v3093 = vld [vmem:[%s2777 + $0x74] sm:$0x1]
      %v3094 = vld [vmem:[%s2777 + $0x78] sm:$0xf]
      %v3095 = vld [vmem:[%s2777 + $0x7c] sm:$0xf]
      %v3096 = vld [vmem:[%s2777 + $0x80] sm:$0x1]
      %v3097 = vld [vmem:[%s2777 + $0x84] sm:$0xf]
      %v3098 = vld [vmem:[%s2777 + $0x88] sm:$0xf]
      %v3099 = vld [vmem:[%s2777 + $0x8c] sm:$0x1]
      %v3100 = vld [vmem:[%s2777 + $0x90] sm:$0xf]
      %v3101 = vld [vmem:[%s2777 + $0x94] sm:$0xf]
      %v3102 = vld [vmem:[%s2777 + $0x98] sm:$0x1]
      %v3103 = vld [vmem:[%s2777 + $0x9c] sm:$0xf]
      %v3104 = vld [vmem:[%s2777 + $0xa0] sm:$0xf]
      %v3105 = vld [vmem:[%s2777 + $0xa4] sm:$0x1]
      %v3106 = vld [vmem:[%s2777 + $0xa8] sm:$0xf]
      %v3107 = vld [vmem:[%s2777 + $0xac] sm:$0xf]
      %v3108 = vld [vmem:[%s2777 + $0xb0] sm:$0x1]
      %v3109 = vld [vmem:[%s2777 + $0xb4] sm:$0xf]
      %v3110 = vld [vmem:[%s2777 + $0xb8] sm:$0xf]
      %v3111 = vld [vmem:[%s2777 + $0xbc] sm:$0x1]
      %v3113 = vshrl.u32 %v3064, 16
      %v3115 = vrot.slane %v3113, 4
      %v3116 = vshll.u32 %v3064, 16
      %v3118 = vrot.slane %v3116, 5
      %v3119 = vor.u32 %v3115, %v3118
      %v3120 = vrot.slane %v3119, 4
      %v3122 = vshll.u32 %v3065, 16
      %v3124 = vrot.slane %v3122, 5
      %v3125 = vsel %vm250, %v3120, %v3124
      %v3126 = vshrl.u32 %v3065, 16
      %v3128 = vrot.slane %v3126, 4
      %v3129 = vor.u32 %v3128, %v3124
      %v3130 = vrot.slane %v3129, 4
      %v3132 = vshll.u32 %v3066, 16
      %v3134 = vrot.slane %v3132, 5
      %v3135 = vsel %vm250, %v3130, %v3134
      %v3137 = vshrl.u32 %v3067, 16
      %v3139 = vrot.slane %v3137, 4
      %v3140 = vshll.u32 %v3067, 16
      %v3142 = vrot.slane %v3140, 5
      %v3143 = vor.u32 %v3139, %v3142
      %v3144 = vrot.slane %v3143, 4
      %v3146 = vshll.u32 %v3068, 16
      %v3148 = vrot.slane %v3146, 5
      %v3149 = vsel %vm250, %v3144, %v3148
      %v3150 = vshrl.u32 %v3068, 16
      %v3152 = vrot.slane %v3150, 4
      %v3153 = vor.u32 %v3152, %v3148
      %v3154 = vrot.slane %v3153, 4
      %v3156 = vshll.u32 %v3069, 16
      %v3158 = vrot.slane %v3156, 5
      %v3159 = vsel %vm250, %v3154, %v3158
      %v3161 = vshrl.u32 %v3070, 16
      %v3163 = vrot.slane %v3161, 4
      %v3164 = vshll.u32 %v3070, 16
      %v3166 = vrot.slane %v3164, 5
      %v3167 = vor.u32 %v3163, %v3166
      %v3168 = vrot.slane %v3167, 4
      %v3170 = vshll.u32 %v3071, 16
      %v3172 = vrot.slane %v3170, 5
      %v3173 = vsel %vm250, %v3168, %v3172
      %v3174 = vshrl.u32 %v3071, 16
      %v3176 = vrot.slane %v3174, 4
      %v3177 = vor.u32 %v3176, %v3172
      %v3178 = vrot.slane %v3177, 4
      %v3180 = vshll.u32 %v3072, 16
      %v3182 = vrot.slane %v3180, 5
      %v3183 = vsel %vm250, %v3178, %v3182
      %v3185 = vshrl.u32 %v3073, 16
      %v3187 = vrot.slane %v3185, 4
      %v3188 = vshll.u32 %v3073, 16
      %v3190 = vrot.slane %v3188, 5
      %v3191 = vor.u32 %v3187, %v3190
      %v3192 = vrot.slane %v3191, 4
      %v3194 = vshll.u32 %v3074, 16
      %v3196 = vrot.slane %v3194, 5
      %v3197 = vsel %vm250, %v3192, %v3196
      %v3198 = vshrl.u32 %v3074, 16
      %v3200 = vrot.slane %v3198, 4
      %v3201 = vor.u32 %v3200, %v3196
      %v3202 = vrot.slane %v3201, 4
      %v3204 = vshll.u32 %v3075, 16
      %v3206 = vrot.slane %v3204, 5
      %v3207 = vsel %vm250, %v3202, %v3206
      %v3209 = vshrl.u32 %v3076, 16
      %v3211 = vrot.slane %v3209, 4
      %v3212 = vshll.u32 %v3076, 16
      %v3214 = vrot.slane %v3212, 5
      %v3215 = vor.u32 %v3211, %v3214
      %v3216 = vrot.slane %v3215, 4
      %v3218 = vshll.u32 %v3077, 16
      %v3220 = vrot.slane %v3218, 5
      %v3221 = vsel %vm250, %v3216, %v3220
      %v3222 = vshrl.u32 %v3077, 16
      %v3224 = vrot.slane %v3222, 4
      %v3225 = vor.u32 %v3224, %v3220
      %v3226 = vrot.slane %v3225, 4
      %v3228 = vshll.u32 %v3078, 16
      %v3230 = vrot.slane %v3228, 5
      %v3231 = vsel %vm250, %v3226, %v3230
      %v3233 = vshrl.u32 %v3079, 16
      %v3235 = vrot.slane %v3233, 4
      %v3236 = vshll.u32 %v3079, 16
      %v3238 = vrot.slane %v3236, 5
      %v3239 = vor.u32 %v3235, %v3238
      %v3240 = vrot.slane %v3239, 4
      %v3242 = vshll.u32 %v3080, 16
      %v3244 = vrot.slane %v3242, 5
      %v3245 = vsel %vm250, %v3240, %v3244
      %v3246 = vshrl.u32 %v3080, 16
      %v3248 = vrot.slane %v3246, 4
      %v3249 = vor.u32 %v3248, %v3244
      %v3250 = vrot.slane %v3249, 4
      %v3252 = vshll.u32 %v3081, 16
      %v3254 = vrot.slane %v3252, 5
      %v3255 = vsel %vm250, %v3250, %v3254
      %v3257 = vshrl.u32 %v3082, 16
      %v3259 = vrot.slane %v3257, 4
      %v3260 = vshll.u32 %v3082, 16
      %v3262 = vrot.slane %v3260, 5
      %v3263 = vor.u32 %v3259, %v3262
      %v3264 = vrot.slane %v3263, 4
      %v3266 = vshll.u32 %v3083, 16
      %v3268 = vrot.slane %v3266, 5
      %v3269 = vsel %vm250, %v3264, %v3268
      %v3270 = vshrl.u32 %v3083, 16
      %v3272 = vrot.slane %v3270, 4
      %v3273 = vor.u32 %v3272, %v3268
      %v3274 = vrot.slane %v3273, 4
      %v3276 = vshll.u32 %v3084, 16
      %v3278 = vrot.slane %v3276, 5
      %v3279 = vsel %vm250, %v3274, %v3278
      %v3281 = vshrl.u32 %v3085, 16
      %v3283 = vrot.slane %v3281, 4
      %v3284 = vshll.u32 %v3085, 16
      %v3286 = vrot.slane %v3284, 5
      %v3287 = vor.u32 %v3283, %v3286
      %v3288 = vrot.slane %v3287, 4
      %v3290 = vshll.u32 %v3086, 16
      %v3292 = vrot.slane %v3290, 5
      %v3293 = vsel %vm250, %v3288, %v3292
      %v3294 = vshrl.u32 %v3086, 16
      %v3296 = vrot.slane %v3294, 4
      %v3297 = vor.u32 %v3296, %v3292
      %v3298 = vrot.slane %v3297, 4
      %v3300 = vshll.u32 %v3087, 16
      %v3302 = vrot.slane %v3300, 5
      %v3303 = vsel %vm250, %v3298, %v3302
      %v3305 = vshrl.u32 %v3088, 16
      %v3307 = vrot.slane %v3305, 4
      %v3308 = vshll.u32 %v3088, 16
      %v3310 = vrot.slane %v3308, 5
      %v3311 = vor.u32 %v3307, %v3310
      %v3312 = vrot.slane %v3311, 4
      %v3314 = vshll.u32 %v3089, 16
      %v3316 = vrot.slane %v3314, 5
      %v3317 = vsel %vm250, %v3312, %v3316
      %v3318 = vshrl.u32 %v3089, 16
      %v3320 = vrot.slane %v3318, 4
      %v3321 = vor.u32 %v3320, %v3316
      %v3322 = vrot.slane %v3321, 4
      %v3324 = vshll.u32 %v3090, 16
      %v3326 = vrot.slane %v3324, 5
      %v3327 = vsel %vm250, %v3322, %v3326
      %v3329 = vshrl.u32 %v3091, 16
      %v3331 = vrot.slane %v3329, 4
      %v3332 = vshll.u32 %v3091, 16
      %v3334 = vrot.slane %v3332, 5
      %v3335 = vor.u32 %v3331, %v3334
      %v3336 = vrot.slane %v3335, 4
      %v3338 = vshll.u32 %v3092, 16
      %v3340 = vrot.slane %v3338, 5
      %v3341 = vsel %vm250, %v3336, %v3340
      %v3342 = vshrl.u32 %v3092, 16
      %v3344 = vrot.slane %v3342, 4
      %v3345 = vor.u32 %v3344, %v3340
      %v3346 = vrot.slane %v3345, 4
      %v3348 = vshll.u32 %v3093, 16
      %v3350 = vrot.slane %v3348, 5
      %v3351 = vsel %vm250, %v3346, %v3350
      %v3353 = vshrl.u32 %v3094, 16
      %v3355 = vrot.slane %v3353, 4
      %v3356 = vshll.u32 %v3094, 16
      %v3358 = vrot.slane %v3356, 5
      %v3359 = vor.u32 %v3355, %v3358
      %v3360 = vrot.slane %v3359, 4
      %v3362 = vshll.u32 %v3095, 16
      %v3364 = vrot.slane %v3362, 5
      %v3365 = vsel %vm250, %v3360, %v3364
      %v3366 = vshrl.u32 %v3095, 16
      %v3368 = vrot.slane %v3366, 4
      %v3369 = vor.u32 %v3368, %v3364
      %v3370 = vrot.slane %v3369, 4
      %v3372 = vshll.u32 %v3096, 16
      %v3374 = vrot.slane %v3372, 5
      %v3375 = vsel %vm250, %v3370, %v3374
      %v3377 = vshrl.u32 %v3097, 16
      %v3379 = vrot.slane %v3377, 4
      %v3380 = vshll.u32 %v3097, 16
      %v3382 = vrot.slane %v3380, 5
      %v3383 = vor.u32 %v3379, %v3382
      %v3384 = vrot.slane %v3383, 4
      %v3386 = vshll.u32 %v3098, 16
      %v3388 = vrot.slane %v3386, 5
      %v3389 = vsel %vm250, %v3384, %v3388
      %v3390 = vshrl.u32 %v3098, 16
      %v3392 = vrot.slane %v3390, 4
      %v3393 = vor.u32 %v3392, %v3388
      %v3394 = vrot.slane %v3393, 4
      %v3396 = vshll.u32 %v3099, 16
      %v3398 = vrot.slane %v3396, 5
      %v3399 = vsel %vm250, %v3394, %v3398
      %v3401 = vshrl.u32 %v3100, 16
      %v3403 = vrot.slane %v3401, 4
      %v3404 = vshll.u32 %v3100, 16
      %v3406 = vrot.slane %v3404, 5
      %v3407 = vor.u32 %v3403, %v3406
      %v3408 = vrot.slane %v3407, 4
      %v3410 = vshll.u32 %v3101, 16
      %v3412 = vrot.slane %v3410, 5
      %v3413 = vsel %vm250, %v3408, %v3412
      %v3414 = vshrl.u32 %v3101, 16
      %v3416 = vrot.slane %v3414, 4
      %v3417 = vor.u32 %v3416, %v3412
      %v3418 = vrot.slane %v3417, 4
      %v3420 = vshll.u32 %v3102, 16
      %v3422 = vrot.slane %v3420, 5
      %v3423 = vsel %vm250, %v3418, %v3422
      %v3425 = vshrl.u32 %v3103, 16
      %v3427 = vrot.slane %v3425, 4
      %v3428 = vshll.u32 %v3103, 16
      %v3430 = vrot.slane %v3428, 5
      %v3431 = vor.u32 %v3427, %v3430
      %v3432 = vrot.slane %v3431, 4
      %v3434 = vshll.u32 %v3104, 16
      %v3436 = vrot.slane %v3434, 5
      %v3437 = vsel %vm250, %v3432, %v3436
      %v3438 = vshrl.u32 %v3104, 16
      %v3440 = vrot.slane %v3438, 4
      %v3441 = vor.u32 %v3440, %v3436
      %v3442 = vrot.slane %v3441, 4
      %v3444 = vshll.u32 %v3105, 16
      %v3446 = vrot.slane %v3444, 5
      %v3447 = vsel %vm250, %v3442, %v3446
      %v3449 = vshrl.u32 %v3106, 16
      %v3451 = vrot.slane %v3449, 4
      %v3452 = vshll.u32 %v3106, 16
      %v3454 = vrot.slane %v3452, 5
      %v3455 = vor.u32 %v3451, %v3454
      %v3456 = vrot.slane %v3455, 4
      %v3458 = vshll.u32 %v3107, 16
      %v3460 = vrot.slane %v3458, 5
      %v3461 = vsel %vm250, %v3456, %v3460
      %v3462 = vshrl.u32 %v3107, 16
      %v3464 = vrot.slane %v3462, 4
      %v3465 = vor.u32 %v3464, %v3460
      %v3466 = vrot.slane %v3465, 4
      %v3468 = vshll.u32 %v3108, 16
      %v3470 = vrot.slane %v3468, 5
      %v3471 = vsel %vm250, %v3466, %v3470
      %v3473 = vshrl.u32 %v3109, 16
      %v3475 = vrot.slane %v3473, 4
      %v3476 = vshll.u32 %v3109, 16
      %v3478 = vrot.slane %v3476, 5
      %v3479 = vor.u32 %v3475, %v3478
      %v3480 = vrot.slane %v3479, 4
      %v3482 = vshll.u32 %v3110, 16
      %v3484 = vrot.slane %v3482, 5
      %v3485 = vsel %vm250, %v3480, %v3484
      %v3486 = vshrl.u32 %v3110, 16
      %v3488 = vrot.slane %v3486, 4
      %v3489 = vor.u32 %v3488, %v3484
      %v3490 = vrot.slane %v3489, 4
      %v3492 = vshll.u32 %v3111, 16
      %v3494 = vrot.slane %v3492, 5
      %v3495 = vsel %vm250, %v3490, %v3494
      %s3496 = scalar_lea.vmem %s1, 28
      %v3497 = vld [vmem:[%s3496] sm:$0xf]
      %v3498 = vunpack.c.l.b16 %v3125
      %v3499 = vunpack.c.l.b16 %v3135
      %v3500 = vunpack.c.l.b16 %v3149
      %v3501 = vunpack.c.l.b16 %v3159
      %v3502 = vunpack.c.l.b16 %v3173
      %v3503 = vunpack.c.l.b16 %v3183
      %v3504 = vunpack.c.l.b16 %v3197
      %v3505 = vunpack.c.l.b16 %v3207
      %v3506 = vunpack.c.l.b16 %v3221
      %v3507 = vunpack.c.l.b16 %v3231
      %v3508 = vunpack.c.l.b16 %v3245
      %v3509 = vunpack.c.l.b16 %v3255
      %v3510 = vunpack.c.l.b16 %v3269
      %v3511 = vunpack.c.l.b16 %v3279
      %v3512 = vunpack.c.l.b16 %v3293
      %v3513 = vunpack.c.l.b16 %v3303
      %v3514 = vunpack.c.l.b16 %v3317
      %v3515 = vunpack.c.l.b16 %v3327
      %v3516 = vunpack.c.l.b16 %v3341
      %v3517 = vunpack.c.l.b16 %v3351
      %v3518 = vunpack.c.l.b16 %v3365
      %v3519 = vunpack.c.l.b16 %v3375
      %v3520 = vunpack.c.l.b16 %v3389
      %v3521 = vunpack.c.l.b16 %v3399
      %v3522 = vunpack.c.l.b16 %v3413
      %v3523 = vunpack.c.l.b16 %v3423
      %v3524 = vunpack.c.l.b16 %v3437
      %v3525 = vunpack.c.l.b16 %v3447
      %v3526 = vunpack.c.l.b16 %v3461
      %v3527 = vunpack.c.l.b16 %v3471
      %v3528 = vunpack.c.l.b16 %v3485
      %v3529 = vunpack.c.l.b16 %v3495
      %v3530 = vpack.c.b16 %v3499, %v3498
      %v3531 = vpack.c.b16 %v3501, %v3500
      %v3532 = vpack.c.b16 %v3503, %v3502
      %v3533 = vpack.c.b16 %v3505, %v3504
      %v3534 = vpack.c.b16 %v3507, %v3506
      %v3535 = vpack.c.b16 %v3509, %v3508
      %v3536 = vpack.c.b16 %v3511, %v3510
      %v3537 = vpack.c.b16 %v3513, %v3512
      %v3538 = vpack.c.b16 %v3515, %v3514
      %v3539 = vpack.c.b16 %v3517, %v3516
      %v3540 = vpack.c.b16 %v3519, %v3518
      %v3541 = vpack.c.b16 %v3521, %v3520
      %v3542 = vpack.c.b16 %v3523, %v3522
      %v3543 = vpack.c.b16 %v3525, %v3524
      %v3544 = vpack.c.b16 %v3527, %v3526
      %v3545 = vpack.c.b16 %v3529, %v3528
      %v3547 = vsel %vm685, %v3530, 0
      %v3550 = vsel %vm685, %v3531, 0
      %v3553 = vsel %vm685, %v3532, 0
      %v3556 = vsel %vm685, %v3533, 0
      %v3559 = vsel %vm685, %v3534, 0
      %v3562 = vsel %vm685, %v3535, 0
      %v3565 = vsel %vm685, %v3536, 0
      %v3568 = vsel %vm685, %v3537, 0
      %v3571 = vsel %vm685, %v3538, 0
      %v3574 = vsel %vm685, %v3539, 0
      %v3577 = vsel %vm685, %v3540, 0
      %v3580 = vsel %vm685, %v3541, 0
      %v3583 = vsel %vm685, %v3542, 0
      %v3586 = vsel %vm685, %v3543, 0
      %v3589 = vsel %vm685, %v3544, 0
      %v3592 = vsel %vm685, %v3545, 0
      %v3595 = vsel %vm734, %v3497, 0
      %3597 = vmatpush.bf16.msra.mxu0 0
      %3598 = vmatpush.bf16.msra.mxu0 0
      %3599 = vmatpush.bf16.msra.mxu0 0
      %3600 = vmatpush.bf16.msra.mxu0 0
      %3601 = vmatpush.bf16.msra.mxu0 0
      %3602 = vmatpush.bf16.msra.mxu0 0
      %3603 = vmatpush.bf16.msra.mxu0 0
      %3604 = vmatpush.bf16.msra.mxu0 %v3595
      %3605 = vmatmul.bf16.gmra.mxu0 %v3547
      %v3606 = vpop.f32.mrf.mxu0
      %v3607 = vadd.f32 0.0, %v3606
      %v3608 = vpop.f32.mrf.mxu0
      %v3609 = vadd.f32 0.0, %v3608
      %3610 = vmatmul.bf16.gmra.mxu0 %v3550
      %v3611 = vpop.f32.mrf.mxu0
      %v3612 = vadd.f32 0.0, %v3611
      %v3613 = vpop.f32.mrf.mxu0
      %v3614 = vadd.f32 0.0, %v3613
      %3615 = vmatmul.bf16.gmra.mxu0 %v3553
      %v3616 = vpop.f32.mrf.mxu0
      %v3617 = vadd.f32 0.0, %v3616
      %v3618 = vpop.f32.mrf.mxu0
      %v3619 = vadd.f32 0.0, %v3618
      %3620 = vmatmul.bf16.gmra.mxu0 %v3556
      %v3621 = vpop.f32.mrf.mxu0
      %v3622 = vadd.f32 0.0, %v3621
      %v3623 = vpop.f32.mrf.mxu0
      %v3624 = vadd.f32 0.0, %v3623
      %3625 = vmatmul.bf16.gmra.mxu0 %v3559
      %v3626 = vpop.f32.mrf.mxu0
      %v3627 = vadd.f32 0.0, %v3626
      %v3628 = vpop.f32.mrf.mxu0
      %v3629 = vadd.f32 0.0, %v3628
      %3630 = vmatmul.bf16.gmra.mxu0 %v3562
      %v3631 = vpop.f32.mrf.mxu0
      %v3632 = vadd.f32 0.0, %v3631
      %v3633 = vpop.f32.mrf.mxu0
      %v3634 = vadd.f32 0.0, %v3633
      %3635 = vmatmul.bf16.gmra.mxu0 %v3565
      %v3636 = vpop.f32.mrf.mxu0
      %v3637 = vadd.f32 0.0, %v3636
      %v3638 = vpop.f32.mrf.mxu0
      %v3639 = vadd.f32 0.0, %v3638
      %3640 = vmatmul.bf16.gmra.mxu0 %v3568
      %v3641 = vpop.f32.mrf.mxu0
      %v3642 = vadd.f32 0.0, %v3641
      %v3643 = vpop.f32.mrf.mxu0
      %v3644 = vadd.f32 0.0, %v3643
      %3645 = vmatmul.bf16.gmra.mxu0 %v3571
      %v3646 = vpop.f32.mrf.mxu0
      %v3647 = vadd.f32 0.0, %v3646
      %v3648 = vpop.f32.mrf.mxu0
      %v3649 = vadd.f32 0.0, %v3648
      %3650 = vmatmul.bf16.gmra.mxu0 %v3574
      %v3651 = vpop.f32.mrf.mxu0
      %v3652 = vadd.f32 0.0, %v3651
      %v3653 = vpop.f32.mrf.mxu0
      %v3654 = vadd.f32 0.0, %v3653
      %3655 = vmatmul.bf16.gmra.mxu0 %v3577
      %v3656 = vpop.f32.mrf.mxu0
      %v3657 = vadd.f32 0.0, %v3656
      %v3658 = vpop.f32.mrf.mxu0
      %v3659 = vadd.f32 0.0, %v3658
      %3660 = vmatmul.bf16.gmra.mxu0 %v3580
      %v3661 = vpop.f32.mrf.mxu0
      %v3662 = vadd.f32 0.0, %v3661
      %v3663 = vpop.f32.mrf.mxu0
      %v3664 = vadd.f32 0.0, %v3663
      %3665 = vmatmul.bf16.gmra.mxu0 %v3583
      %v3666 = vpop.f32.mrf.mxu0
      %v3667 = vadd.f32 0.0, %v3666
      %v3668 = vpop.f32.mrf.mxu0
      %v3669 = vadd.f32 0.0, %v3668
      %3670 = vmatmul.bf16.gmra.mxu0 %v3586
      %v3671 = vpop.f32.mrf.mxu0
      %v3672 = vadd.f32 0.0, %v3671
      %v3673 = vpop.f32.mrf.mxu0
      %v3674 = vadd.f32 0.0, %v3673
      %3675 = vmatmul.bf16.gmra.mxu0 %v3589
      %v3676 = vpop.f32.mrf.mxu0
      %v3677 = vadd.f32 0.0, %v3676
      %v3678 = vpop.f32.mrf.mxu0
      %v3679 = vadd.f32 0.0, %v3678
      %3680 = vmatmul.bf16.gmra.mxu0 %v3592
      %v3681 = vpop.f32.mrf.mxu0
      %v3682 = vadd.f32 0.0, %v3681
      %v3683 = vpop.f32.mrf.mxu0
      %v3684 = vadd.f32 0.0, %v3683
      %3685 = vdwg.mxu0
      %v3686 = vadd.f32 %v3032, %v3607
      %v3687 = vadd.f32 %v3033, %v3609
      %v3688 = vadd.f32 %v3034, %v3612
      %v3689 = vadd.f32 %v3035, %v3614
      %v3690 = vadd.f32 %v3036, %v3617
      %v3691 = vadd.f32 %v3037, %v3619
      %v3692 = vadd.f32 %v3038, %v3622
      %v3693 = vadd.f32 %v3039, %v3624
      %v3694 = vadd.f32 %v3040, %v3627
      %v3695 = vadd.f32 %v3041, %v3629
      %v3696 = vadd.f32 %v3042, %v3632
      %v3697 = vadd.f32 %v3043, %v3634
      %v3698 = vadd.f32 %v3044, %v3637
      %v3699 = vadd.f32 %v3045, %v3639
      %v3700 = vadd.f32 %v3046, %v3642
      %v3701 = vadd.f32 %v3047, %v3644
      %v3702 = vadd.f32 %v3048, %v3647
      %v3703 = vadd.f32 %v3049, %v3649
      %v3704 = vadd.f32 %v3050, %v3652
      %v3705 = vadd.f32 %v3051, %v3654
      %v3706 = vadd.f32 %v3052, %v3657
      %v3707 = vadd.f32 %v3053, %v3659
      %v3708 = vadd.f32 %v3054, %v3662
      %v3709 = vadd.f32 %v3055, %v3664
      %v3710 = vadd.f32 %v3056, %v3667
      %v3711 = vadd.f32 %v3057, %v3669
      %v3712 = vadd.f32 %v3058, %v3672
      %v3713 = vadd.f32 %v3059, %v3674
      %v3714 = vadd.f32 %v3060, %v3677
      %v3715 = vadd.f32 %v3061, %v3679
      %v3716 = vadd.f32 %v3062, %v3682
      %v3717 = vadd.f32 %v3063, %v3684
      %v3718 = vld [vmem:[%s2777] sm:$0xe]
      %v3719 = vld [vmem:[%s2777 + $0xc] sm:$0xe]
      %v3720 = vld [vmem:[%s2777 + $0x18] sm:$0xe]
      %v3721 = vld [vmem:[%s2777 + $0x24] sm:$0xe]
      %v3722 = vld [vmem:[%s2777 + $0x30] sm:$0xe]
      %v3723 = vld [vmem:[%s2777 + $0x3c] sm:$0xe]
      %v3724 = vld [vmem:[%s2777 + $0x48] sm:$0xe]
      %v3725 = vld [vmem:[%s2777 + $0x54] sm:$0xe]
      %v3726 = vld [vmem:[%s2777 + $0x60] sm:$0xe]
      %v3727 = vld [vmem:[%s2777 + $0x6c] sm:$0xe]
      %v3728 = vld [vmem:[%s2777 + $0x78] sm:$0xe]
      %v3729 = vld [vmem:[%s2777 + $0x84] sm:$0xe]
      %v3730 = vld [vmem:[%s2777 + $0x90] sm:$0xe]
      %v3731 = vld [vmem:[%s2777 + $0x9c] sm:$0xe]
      %v3732 = vld [vmem:[%s2777 + $0xa8] sm:$0xe]
      %v3733 = vld [vmem:[%s2777 + $0xb4] sm:$0xe]
      %v3782 = vrot.slane %v3718, 5
      %v3783 = vrot.slane %v3782, 4
      %v3784 = vrot.slane %v3065, 5
      %v3785 = vsel %vm1097, %v3783, %v3784
      %v3786 = vrot.slane %v3784, 4
      %v3787 = vrot.slane %v3066, 5
      %v3788 = vsel %vm1097, %v3786, %v3787
      %v3789 = vrot.slane %v3719, 5
      %v3790 = vrot.slane %v3789, 4
      %v3791 = vrot.slane %v3068, 5
      %v3792 = vsel %vm1097, %v3790, %v3791
      %v3793 = vrot.slane %v3791, 4
      %v3794 = vrot.slane %v3069, 5
      %v3795 = vsel %vm1097, %v3793, %v3794
      %v3796 = vrot.slane %v3720, 5
      %v3797 = vrot.slane %v3796, 4
      %v3798 = vrot.slane %v3071, 5
      %v3799 = vsel %vm1097, %v3797, %v3798
      %v3800 = vrot.slane %v3798, 4
      %v3801 = vrot.slane %v3072, 5
      %v3802 = vsel %vm1097, %v3800, %v3801
      %v3803 = vrot.slane %v3721, 5
      %v3804 = vrot.slane %v3803, 4
      %v3805 = vrot.slane %v3074, 5
      %v3806 = vsel %vm1097, %v3804, %v3805
      %v3807 = vrot.slane %v3805, 4
      %v3808 = vrot.slane %v3075, 5
      %v3809 = vsel %vm1097, %v3807, %v3808
      %v3810 = vrot.slane %v3722, 5
      %v3811 = vrot.slane %v3810, 4
      %v3812 = vrot.slane %v3077, 5
      %v3813 = vsel %vm1097, %v3811, %v3812
      %v3814 = vrot.slane %v3812, 4
      %v3815 = vrot.slane %v3078, 5
      %v3816 = vsel %vm1097, %v3814, %v3815
      %v3817 = vrot.slane %v3723, 5
      %v3818 = vrot.slane %v3817, 4
      %v3819 = vrot.slane %v3080, 5
      %v3820 = vsel %vm1097, %v3818, %v3819
      %v3821 = vrot.slane %v3819, 4
      %v3822 = vrot.slane %v3081, 5
      %v3823 = vsel %vm1097, %v3821, %v3822
      %v3824 = vrot.slane %v3724, 5
      %v3825 = vrot.slane %v3824, 4
      %v3826 = vrot.slane %v3083, 5
      %v3827 = vsel %vm1097, %v3825, %v3826
      %v3828 = vrot.slane %v3826, 4
      %v3829 = vrot.slane %v3084, 5
      %v3830 = vsel %vm1097, %v3828, %v3829
      %v3831 = vrot.slane %v3725, 5
      %v3832 = vrot.slane %v3831, 4
      %v3833 = vrot.slane %v3086, 5
      %v3834 = vsel %vm1097, %v3832, %v3833
      %v3835 = vrot.slane %v3833, 4
      %v3836 = vrot.slane %v3087, 5
      %v3837 = vsel %vm1097, %v3835, %v3836
      %v3838 = vrot.slane %v3726, 5
      %v3839 = vrot.slane %v3838, 4
      %v3840 = vrot.slane %v3089, 5
      %v3841 = vsel %vm1097, %v3839, %v3840
      %v3842 = vrot.slane %v3840, 4
      %v3843 = vrot.slane %v3090, 5
      %v3844 = vsel %vm1097, %v3842, %v3843
      %v3845 = vrot.slane %v3727, 5
      %v3846 = vrot.slane %v3845, 4
      %v3847 = vrot.slane %v3092, 5
      %v3848 = vsel %vm1097, %v3846, %v3847
      %v3849 = vrot.slane %v3847, 4
      %v3850 = vrot.slane %v3093, 5
      %v3851 = vsel %vm1097, %v3849, %v3850
      %v3852 = vrot.slane %v3728, 5
      %v3853 = vrot.slane %v3852, 4
      %v3854 = vrot.slane %v3095, 5
      %v3855 = vsel %vm1097, %v3853, %v3854
      %v3856 = vrot.slane %v3854, 4
      %v3857 = vrot.slane %v3096, 5
      %v3858 = vsel %vm1097, %v3856, %v3857
      %v3859 = vrot.slane %v3729, 5
      %v3860 = vrot.slane %v3859, 4
      %v3861 = vrot.slane %v3098, 5
      %v3862 = vsel %vm1097, %v3860, %v3861
      %v3863 = vrot.slane %v3861, 4
      %v3864 = vrot.slane %v3099, 5
      %v3865 = vsel %vm1097, %v3863, %v3864
      %v3866 = vrot.slane %v3730, 5
      %v3867 = vrot.slane %v3866, 4
      %v3868 = vrot.slane %v3101, 5
      %v3869 = vsel %vm1097, %v3867, %v3868
      %v3870 = vrot.slane %v3868, 4
      %v3871 = vrot.slane %v3102, 5
      %v3872 = vsel %vm1097, %v3870, %v3871
      %v3873 = vrot.slane %v3731, 5
      %v3874 = vrot.slane %v3873, 4
      %v3875 = vrot.slane %v3104, 5
      %v3876 = vsel %vm1097, %v3874, %v3875
      %v3877 = vrot.slane %v3875, 4
      %v3878 = vrot.slane %v3105, 5
      %v3879 = vsel %vm1097, %v3877, %v3878
      %v3880 = vrot.slane %v3732, 5
      %v3881 = vrot.slane %v3880, 4
      %v3882 = vrot.slane %v3107, 5
      %v3883 = vsel %vm1097, %v3881, %v3882
      %v3884 = vrot.slane %v3882, 4
      %v3885 = vrot.slane %v3108, 5
      %v3886 = vsel %vm1097, %v3884, %v3885
      %v3887 = vrot.slane %v3733, 5
      %v3888 = vrot.slane %v3887, 4
      %v3889 = vrot.slane %v3110, 5
      %v3890 = vsel %vm1097, %v3888, %v3889
      %v3891 = vrot.slane %v3889, 4
      %v3892 = vrot.slane %v3111, 5
      %v3893 = vsel %vm1097, %v3891, %v3892
      %s3894 = scalar_lea.vmem %s1, 32
      %v3895 = vld [vmem:[%s3894] sm:$0xf]
      %v3896 = vunpack.c.l.b16 %v3785
      %v3897 = vunpack.c.l.b16 %v3788
      %v3898 = vunpack.c.l.b16 %v3792
      %v3899 = vunpack.c.l.b16 %v3795
      %v3900 = vunpack.c.l.b16 %v3799
      %v3901 = vunpack.c.l.b16 %v3802
      %v3902 = vunpack.c.l.b16 %v3806
      %v3903 = vunpack.c.l.b16 %v3809
      %v3904 = vunpack.c.l.b16 %v3813
      %v3905 = vunpack.c.l.b16 %v3816
      %v3906 = vunpack.c.l.b16 %v3820
      %v3907 = vunpack.c.l.b16 %v3823
      %v3908 = vunpack.c.l.b16 %v3827
      %v3909 = vunpack.c.l.b16 %v3830
      %v3910 = vunpack.c.l.b16 %v3834
      %v3911 = vunpack.c.l.b16 %v3837
      %v3912 = vunpack.c.l.b16 %v3841
      %v3913 = vunpack.c.l.b16 %v3844
      %v3914 = vunpack.c.l.b16 %v3848
      %v3915 = vunpack.c.l.b16 %v3851
      %v3916 = vunpack.c.l.b16 %v3855
      %v3917 = vunpack.c.l.b16 %v3858
      %v3918 = vunpack.c.l.b16 %v3862
      %v3919 = vunpack.c.l.b16 %v3865
      %v3920 = vunpack.c.l.b16 %v3869
      %v3921 = vunpack.c.l.b16 %v3872
      %v3922 = vunpack.c.l.b16 %v3876
      %v3923 = vunpack.c.l.b16 %v3879
      %v3924 = vunpack.c.l.b16 %v3883
      %v3925 = vunpack.c.l.b16 %v3886
      %v3926 = vunpack.c.l.b16 %v3890
      %v3927 = vunpack.c.l.b16 %v3893
      %v3928 = vpack.c.b16 %v3897, %v3896
      %v3929 = vpack.c.b16 %v3899, %v3898
      %v3930 = vpack.c.b16 %v3901, %v3900
      %v3931 = vpack.c.b16 %v3903, %v3902
      %v3932 = vpack.c.b16 %v3905, %v3904
      %v3933 = vpack.c.b16 %v3907, %v3906
      %v3934 = vpack.c.b16 %v3909, %v3908
      %v3935 = vpack.c.b16 %v3911, %v3910
      %v3936 = vpack.c.b16 %v3913, %v3912
      %v3937 = vpack.c.b16 %v3915, %v3914
      %v3938 = vpack.c.b16 %v3917, %v3916
      %v3939 = vpack.c.b16 %v3919, %v3918
      %v3940 = vpack.c.b16 %v3921, %v3920
      %v3941 = vpack.c.b16 %v3923, %v3922
      %v3942 = vpack.c.b16 %v3925, %v3924
      %v3943 = vpack.c.b16 %v3927, %v3926
      %v3945 = vsel %vm685, %v3928, 0
      %v3948 = vsel %vm685, %v3929, 0
      %v3951 = vsel %vm685, %v3930, 0
      %v3954 = vsel %vm685, %v3931, 0
      %v3957 = vsel %vm685, %v3932, 0
      %v3960 = vsel %vm685, %v3933, 0
      %v3963 = vsel %vm685, %v3934, 0
      %v3966 = vsel %vm685, %v3935, 0
      %v3969 = vsel %vm685, %v3936, 0
      %v3972 = vsel %vm685, %v3937, 0
      %v3975 = vsel %vm685, %v3938, 0
      %v3978 = vsel %vm685, %v3939, 0
      %v3981 = vsel %vm685, %v3940, 0
      %v3984 = vsel %vm685, %v3941, 0
      %v3987 = vsel %vm685, %v3942, 0
      %v3990 = vsel %vm685, %v3943, 0
      %v3993 = vsel %vm734, %v3895, 0
      %3995 = vmatpush.bf16.msra.mxu0 0
      %3996 = vmatpush.bf16.msra.mxu0 0
      %3997 = vmatpush.bf16.msra.mxu0 0
      %3998 = vmatpush.bf16.msra.mxu0 0
      %3999 = vmatpush.bf16.msra.mxu0 0
      %4000 = vmatpush.bf16.msra.mxu0 0
      %4001 = vmatpush.bf16.msra.mxu0 0
      %4002 = vmatpush.bf16.msra.mxu0 %v3993
      %4003 = vmatmul.bf16.gmra.mxu0 %v3945
      %v4004 = vpop.f32.mrf.mxu0
      %v4005 = vadd.f32 0.0, %v4004
      %v4006 = vpop.f32.mrf.mxu0
      %v4007 = vadd.f32 0.0, %v4006
      %4008 = vmatmul.bf16.gmra.mxu0 %v3948
      %v4009 = vpop.f32.mrf.mxu0
      %v4010 = vadd.f32 0.0, %v4009
      %v4011 = vpop.f32.mrf.mxu0
      %v4012 = vadd.f32 0.0, %v4011
      %4013 = vmatmul.bf16.gmra.mxu0 %v3951
      %v4014 = vpop.f32.mrf.mxu0
      %v4015 = vadd.f32 0.0, %v4014
      %v4016 = vpop.f32.mrf.mxu0
      %v4017 = vadd.f32 0.0, %v4016
      %4018 = vmatmul.bf16.gmra.mxu0 %v3954
      %v4019 = vpop.f32.mrf.mxu0
      %v4020 = vadd.f32 0.0, %v4019
      %v4021 = vpop.f32.mrf.mxu0
      %v4022 = vadd.f32 0.0, %v4021
      %4023 = vmatmul.bf16.gmra.mxu0 %v3957
      %v4024 = vpop.f32.mrf.mxu0
      %v4025 = vadd.f32 0.0, %v4024
      %v4026 = vpop.f32.mrf.mxu0
      %v4027 = vadd.f32 0.0, %v4026
      %4028 = vmatmul.bf16.gmra.mxu0 %v3960
      %v4029 = vpop.f32.mrf.mxu0
      %v4030 = vadd.f32 0.0, %v4029
      %v4031 = vpop.f32.mrf.mxu0
      %v4032 = vadd.f32 0.0, %v4031
      %4033 = vmatmul.bf16.gmra.mxu0 %v3963
      %v4034 = vpop.f32.mrf.mxu0
      %v4035 = vadd.f32 0.0, %v4034
      %v4036 = vpop.f32.mrf.mxu0
      %v4037 = vadd.f32 0.0, %v4036
      %4038 = vmatmul.bf16.gmra.mxu0 %v3966
      %v4039 = vpop.f32.mrf.mxu0
      %v4040 = vadd.f32 0.0, %v4039
      %v4041 = vpop.f32.mrf.mxu0
      %v4042 = vadd.f32 0.0, %v4041
      %4043 = vmatmul.bf16.gmra.mxu0 %v3969
      %v4044 = vpop.f32.mrf.mxu0
      %v4045 = vadd.f32 0.0, %v4044
      %v4046 = vpop.f32.mrf.mxu0
      %v4047 = vadd.f32 0.0, %v4046
      %4048 = vmatmul.bf16.gmra.mxu0 %v3972
      %v4049 = vpop.f32.mrf.mxu0
      %v4050 = vadd.f32 0.0, %v4049
      %v4051 = vpop.f32.mrf.mxu0
      %v4052 = vadd.f32 0.0, %v4051
      %4053 = vmatmul.bf16.gmra.mxu0 %v3975
      %v4054 = vpop.f32.mrf.mxu0
      %v4055 = vadd.f32 0.0, %v4054
      %v4056 = vpop.f32.mrf.mxu0
      %v4057 = vadd.f32 0.0, %v4056
      %4058 = vmatmul.bf16.gmra.mxu0 %v3978
      %v4059 = vpop.f32.mrf.mxu0
      %v4060 = vadd.f32 0.0, %v4059
      %v4061 = vpop.f32.mrf.mxu0
      %v4062 = vadd.f32 0.0, %v4061
      %4063 = vmatmul.bf16.gmra.mxu0 %v3981
      %v4064 = vpop.f32.mrf.mxu0
      %v4065 = vadd.f32 0.0, %v4064
      %v4066 = vpop.f32.mrf.mxu0
      %v4067 = vadd.f32 0.0, %v4066
      %4068 = vmatmul.bf16.gmra.mxu0 %v3984
      %v4069 = vpop.f32.mrf.mxu0
      %v4070 = vadd.f32 0.0, %v4069
      %v4071 = vpop.f32.mrf.mxu0
      %v4072 = vadd.f32 0.0, %v4071
      %4073 = vmatmul.bf16.gmra.mxu0 %v3987
      %v4074 = vpop.f32.mrf.mxu0
      %v4075 = vadd.f32 0.0, %v4074
      %v4076 = vpop.f32.mrf.mxu0
      %v4077 = vadd.f32 0.0, %v4076
      %4078 = vmatmul.bf16.gmra.mxu0 %v3990
      %v4079 = vpop.f32.mrf.mxu0
      %v4080 = vadd.f32 0.0, %v4079
      %v4081 = vpop.f32.mrf.mxu0
      %v4082 = vadd.f32 0.0, %v4081
      %4083 = vdwg.mxu0
      %v4084 = vadd.f32 %v3686, %v4005
      %v4085 = vadd.f32 %v3687, %v4007
      %v4086 = vadd.f32 %v3688, %v4010
      %v4087 = vadd.f32 %v3689, %v4012
      %v4088 = vadd.f32 %v3690, %v4015
      %v4089 = vadd.f32 %v3691, %v4017
      %v4090 = vadd.f32 %v3692, %v4020
      %v4091 = vadd.f32 %v3693, %v4022
      %v4092 = vadd.f32 %v3694, %v4025
      %v4093 = vadd.f32 %v3695, %v4027
      %v4094 = vadd.f32 %v3696, %v4030
      %v4095 = vadd.f32 %v3697, %v4032
      %v4096 = vadd.f32 %v3698, %v4035
      %v4097 = vadd.f32 %v3699, %v4037
      %v4098 = vadd.f32 %v3700, %v4040
      %v4099 = vadd.f32 %v3701, %v4042
      %v4100 = vadd.f32 %v3702, %v4045
      %v4101 = vadd.f32 %v3703, %v4047
      %v4102 = vadd.f32 %v3704, %v4050
      %v4103 = vadd.f32 %v3705, %v4052
      %v4104 = vadd.f32 %v3706, %v4055
      %v4105 = vadd.f32 %v3707, %v4057
      %v4106 = vadd.f32 %v3708, %v4060
      %v4107 = vadd.f32 %v3709, %v4062
      %v4108 = vadd.f32 %v3710, %v4065
      %v4109 = vadd.f32 %v3711, %v4067
      %v4110 = vadd.f32 %v3712, %v4070
      %v4111 = vadd.f32 %v3713, %v4072
      %v4112 = vadd.f32 %v3714, %v4075
      %v4113 = vadd.f32 %v3715, %v4077
      %v4114 = vadd.f32 %v3716, %v4080
      %v4115 = vadd.f32 %v3717, %v4082
      %v4116 = vld [vmem:[%s2] sm:$0x1]
      %v4118 = vperm.slane %v4116, 0
      %v4120 = vadd.f32 %v4084, %v4118
      %v4121 = vadd.f32 %v4085, %v4118
      %v4122 = vadd.f32 %v4086, %v4118
      %v4123 = vadd.f32 %v4087, %v4118
      %v4124 = vadd.f32 %v4088, %v4118
      %v4125 = vadd.f32 %v4089, %v4118
      %v4126 = vadd.f32 %v4090, %v4118
      %v4127 = vadd.f32 %v4091, %v4118
      %v4128 = vadd.f32 %v4092, %v4118
      %v4129 = vadd.f32 %v4093, %v4118
      %v4130 = vadd.f32 %v4094, %v4118
      %v4131 = vadd.f32 %v4095, %v4118
      %v4132 = vadd.f32 %v4096, %v4118
      %v4133 = vadd.f32 %v4097, %v4118
      %v4134 = vadd.f32 %v4098, %v4118
      %v4135 = vadd.f32 %v4099, %v4118
      %v4136 = vadd.f32 %v4100, %v4118
      %v4137 = vadd.f32 %v4101, %v4118
      %v4138 = vadd.f32 %v4102, %v4118
      %v4139 = vadd.f32 %v4103, %v4118
      %v4140 = vadd.f32 %v4104, %v4118
      %v4141 = vadd.f32 %v4105, %v4118
      %v4142 = vadd.f32 %v4106, %v4118
      %v4143 = vadd.f32 %v4107, %v4118
      %v4144 = vadd.f32 %v4108, %v4118
      %v4145 = vadd.f32 %v4109, %v4118
      %v4146 = vadd.f32 %v4110, %v4118
      %v4147 = vadd.f32 %v4111, %v4118
      %v4148 = vadd.f32 %v4112, %v4118
      %v4149 = vadd.f32 %v4113, %v4118
      %v4150 = vadd.f32 %v4114, %v4118
      %v4151 = vadd.f32 %v4115, %v4118
      %v4152 = vmax.f32 %v4120, 0.0
      %v4153 = vmax.f32 %v4121, 0.0
      %v4154 = vmax.f32 %v4122, 0.0
      %v4155 = vmax.f32 %v4123, 0.0
      %v4156 = vmax.f32 %v4124, 0.0
      %v4157 = vmax.f32 %v4125, 0.0
      %v4158 = vmax.f32 %v4126, 0.0
      %v4159 = vmax.f32 %v4127, 0.0
      %v4160 = vmax.f32 %v4128, 0.0
      %v4161 = vmax.f32 %v4129, 0.0
      %v4162 = vmax.f32 %v4130, 0.0
      %v4163 = vmax.f32 %v4131, 0.0
      %v4164 = vmax.f32 %v4132, 0.0
      %v4165 = vmax.f32 %v4133, 0.0
      %v4166 = vmax.f32 %v4134, 0.0
      %v4167 = vmax.f32 %v4135, 0.0
      %v4168 = vmax.f32 %v4136, 0.0
      %v4169 = vmax.f32 %v4137, 0.0
      %v4170 = vmax.f32 %v4138, 0.0
      %v4171 = vmax.f32 %v4139, 0.0
      %v4172 = vmax.f32 %v4140, 0.0
      %v4173 = vmax.f32 %v4141, 0.0
      %v4174 = vmax.f32 %v4142, 0.0
      %v4175 = vmax.f32 %v4143, 0.0
      %v4176 = vmax.f32 %v4144, 0.0
      %v4177 = vmax.f32 %v4145, 0.0
      %v4178 = vmax.f32 %v4146, 0.0
      %v4179 = vmax.f32 %v4147, 0.0
      %v4180 = vmax.f32 %v4148, 0.0
      %v4181 = vmax.f32 %v4149, 0.0
      %v4182 = vmax.f32 %v4150, 0.0
      %v4183 = vmax.f32 %v4151, 0.0
      %v4184 = vmin.f32 %v4152, 1.0
      %v4185 = vmin.f32 %v4153, 1.0
      %v4186 = vmin.f32 %v4154, 1.0
      %v4187 = vmin.f32 %v4155, 1.0
      %v4188 = vmin.f32 %v4156, 1.0
      %v4189 = vmin.f32 %v4157, 1.0
      %v4190 = vmin.f32 %v4158, 1.0
      %v4191 = vmin.f32 %v4159, 1.0
      %v4192 = vmin.f32 %v4160, 1.0
      %v4193 = vmin.f32 %v4161, 1.0
      %v4194 = vmin.f32 %v4162, 1.0
      %v4195 = vmin.f32 %v4163, 1.0
      %v4196 = vmin.f32 %v4164, 1.0
      %v4197 = vmin.f32 %v4165, 1.0
      %v4198 = vmin.f32 %v4166, 1.0
      %v4199 = vmin.f32 %v4167, 1.0
      %v4200 = vmin.f32 %v4168, 1.0
      %v4201 = vmin.f32 %v4169, 1.0
      %v4202 = vmin.f32 %v4170, 1.0
      %v4203 = vmin.f32 %v4171, 1.0
      %v4204 = vmin.f32 %v4172, 1.0
      %v4205 = vmin.f32 %v4173, 1.0
      %v4206 = vmin.f32 %v4174, 1.0
      %v4207 = vmin.f32 %v4175, 1.0
      %v4208 = vmin.f32 %v4176, 1.0
      %v4209 = vmin.f32 %v4177, 1.0
      %v4210 = vmin.f32 %v4178, 1.0
      %v4211 = vmin.f32 %v4179, 1.0
      %v4212 = vmin.f32 %v4180, 1.0
      %v4213 = vmin.f32 %v4181, 1.0
      %v4214 = vmin.f32 %v4182, 1.0
      %v4215 = vmin.f32 %v4183, 1.0
      %v4216 = vmul.f32 %v4184, 15.0
      %v4217 = vmul.f32 %v4185, 15.0
      %v4218 = vmul.f32 %v4186, 15.0
      %v4219 = vmul.f32 %v4187, 15.0
      %v4220 = vmul.f32 %v4188, 15.0
      %v4221 = vmul.f32 %v4189, 15.0
      %v4222 = vmul.f32 %v4190, 15.0
      %v4223 = vmul.f32 %v4191, 15.0
      %v4224 = vmul.f32 %v4192, 15.0
      %v4225 = vmul.f32 %v4193, 15.0
      %v4226 = vmul.f32 %v4194, 15.0
      %v4227 = vmul.f32 %v4195, 15.0
      %v4228 = vmul.f32 %v4196, 15.0
      %v4229 = vmul.f32 %v4197, 15.0
      %v4230 = vmul.f32 %v4198, 15.0
      %v4231 = vmul.f32 %v4199, 15.0
      %v4232 = vmul.f32 %v4200, 15.0
      %v4233 = vmul.f32 %v4201, 15.0
      %v4234 = vmul.f32 %v4202, 15.0
      %v4235 = vmul.f32 %v4203, 15.0
      %v4236 = vmul.f32 %v4204, 15.0
      %v4237 = vmul.f32 %v4205, 15.0
      %v4238 = vmul.f32 %v4206, 15.0
      %v4239 = vmul.f32 %v4207, 15.0
      %v4240 = vmul.f32 %v4208, 15.0
      %v4241 = vmul.f32 %v4209, 15.0
      %v4242 = vmul.f32 %v4210, 15.0
      %v4243 = vmul.f32 %v4211, 15.0
      %v4244 = vmul.f32 %v4212, 15.0
      %v4245 = vmul.f32 %v4213, 15.0
      %v4246 = vmul.f32 %v4214, 15.0
      %v4247 = vmul.f32 %v4215, 15.0
      %v4248 = vround.ne.pseudo %v4216
      %v4249 = vround.ne.pseudo %v4217
      %v4250 = vround.ne.pseudo %v4218
      %v4251 = vround.ne.pseudo %v4219
      %v4252 = vround.ne.pseudo %v4220
      %v4253 = vround.ne.pseudo %v4221
      %v4254 = vround.ne.pseudo %v4222
      %v4255 = vround.ne.pseudo %v4223
      %v4256 = vround.ne.pseudo %v4224
      %v4257 = vround.ne.pseudo %v4225
      %v4258 = vround.ne.pseudo %v4226
      %v4259 = vround.ne.pseudo %v4227
      %v4260 = vround.ne.pseudo %v4228
      %v4261 = vround.ne.pseudo %v4229
      %v4262 = vround.ne.pseudo %v4230
      %v4263 = vround.ne.pseudo %v4231
      %v4264 = vround.ne.pseudo %v4232
      %v4265 = vround.ne.pseudo %v4233
      %v4266 = vround.ne.pseudo %v4234
      %v4267 = vround.ne.pseudo %v4235
      %v4268 = vround.ne.pseudo %v4236
      %v4269 = vround.ne.pseudo %v4237
      %v4270 = vround.ne.pseudo %v4238
      %v4271 = vround.ne.pseudo %v4239
      %v4272 = vround.ne.pseudo %v4240
      %v4273 = vround.ne.pseudo %v4241
      %v4274 = vround.ne.pseudo %v4242
      %v4275 = vround.ne.pseudo %v4243
      %v4276 = vround.ne.pseudo %v4244
      %v4277 = vround.ne.pseudo %v4245
      %v4278 = vround.ne.pseudo %v4246
      %v4279 = vround.ne.pseudo %v4247
      %v4280 = vmul.f32 %v4248, 0.06666667
      %v4281 = vmul.f32 %v4249, 0.06666667
      %v4282 = vmul.f32 %v4250, 0.06666667
      %v4283 = vmul.f32 %v4251, 0.06666667
      %v4284 = vmul.f32 %v4252, 0.06666667
      %v4285 = vmul.f32 %v4253, 0.06666667
      %v4286 = vmul.f32 %v4254, 0.06666667
      %v4287 = vmul.f32 %v4255, 0.06666667
      %v4288 = vmul.f32 %v4256, 0.06666667
      %v4289 = vmul.f32 %v4257, 0.06666667
      %v4290 = vmul.f32 %v4258, 0.06666667
      %v4291 = vmul.f32 %v4259, 0.06666667
      %v4292 = vmul.f32 %v4260, 0.06666667
      %v4293 = vmul.f32 %v4261, 0.06666667
      %v4294 = vmul.f32 %v4262, 0.06666667
      %v4295 = vmul.f32 %v4263, 0.06666667
      %v4296 = vmul.f32 %v4264, 0.06666667
      %v4297 = vmul.f32 %v4265, 0.06666667
      %v4298 = vmul.f32 %v4266, 0.06666667
      %v4299 = vmul.f32 %v4267, 0.06666667
      %v4300 = vmul.f32 %v4268, 0.06666667
      %v4301 = vmul.f32 %v4269, 0.06666667
      %v4302 = vmul.f32 %v4270, 0.06666667
      %v4303 = vmul.f32 %v4271, 0.06666667
      %v4304 = vmul.f32 %v4272, 0.06666667
      %v4305 = vmul.f32 %v4273, 0.06666667
      %v4306 = vmul.f32 %v4274, 0.06666667
      %v4307 = vmul.f32 %v4275, 0.06666667
      %v4308 = vmul.f32 %v4276, 0.06666667
      %v4309 = vmul.f32 %v4277, 0.06666667
      %v4310 = vmul.f32 %v4278, 0.06666667
      %v4311 = vmul.f32 %v4279, 0.06666667
      %v4312 = vpack.c.bf16 %v4280, %v4280
      %v4313 = vpack.c.bf16 %v4281, %v4281
      %v4314 = vpack.c.bf16 %v4282, %v4282
      %v4315 = vpack.c.bf16 %v4283, %v4283
      %v4316 = vpack.c.bf16 %v4284, %v4284
      %v4317 = vpack.c.bf16 %v4285, %v4285
      %v4318 = vpack.c.bf16 %v4286, %v4286
      %v4319 = vpack.c.bf16 %v4287, %v4287
      %v4320 = vpack.c.bf16 %v4288, %v4288
      %v4321 = vpack.c.bf16 %v4289, %v4289
      %v4322 = vpack.c.bf16 %v4290, %v4290
      %v4323 = vpack.c.bf16 %v4291, %v4291
      %v4324 = vpack.c.bf16 %v4292, %v4292
      %v4325 = vpack.c.bf16 %v4293, %v4293
      %v4326 = vpack.c.bf16 %v4294, %v4294
      %v4327 = vpack.c.bf16 %v4295, %v4295
      %v4328 = vpack.c.bf16 %v4296, %v4296
      %v4329 = vpack.c.bf16 %v4297, %v4297
      %v4330 = vpack.c.bf16 %v4298, %v4298
      %v4331 = vpack.c.bf16 %v4299, %v4299
      %v4332 = vpack.c.bf16 %v4300, %v4300
      %v4333 = vpack.c.bf16 %v4301, %v4301
      %v4334 = vpack.c.bf16 %v4302, %v4302
      %v4335 = vpack.c.bf16 %v4303, %v4303
      %v4336 = vpack.c.bf16 %v4304, %v4304
      %v4337 = vpack.c.bf16 %v4305, %v4305
      %v4338 = vpack.c.bf16 %v4306, %v4306
      %v4339 = vpack.c.bf16 %v4307, %v4307
      %v4340 = vpack.c.bf16 %v4308, %v4308
      %v4341 = vpack.c.bf16 %v4309, %v4309
      %v4342 = vpack.c.bf16 %v4310, %v4310
      %v4343 = vpack.c.bf16 %v4311, %v4311
      %4344 = vst [vmem:[%s192] sm:$0xf] %v4312
      %4345 = vst [vmem:[%s192 + $0x4] sm:$0xf] %v4313
      %4346 = vst [vmem:[%s192 + $0x8] sm:$0xf] %v4314
      %4347 = vst [vmem:[%s192 + $0xc] sm:$0xf] %v4315
      %4348 = vst [vmem:[%s192 + $0x10] sm:$0xf] %v4316
      %4349 = vst [vmem:[%s192 + $0x14] sm:$0xf] %v4317
      %4350 = vst [vmem:[%s192 + $0x18] sm:$0xf] %v4318
      %4351 = vst [vmem:[%s192 + $0x1c] sm:$0xf] %v4319
      %4352 = vst [vmem:[%s192 + $0x20] sm:$0xf] %v4320
      %4353 = vst [vmem:[%s192 + $0x24] sm:$0xf] %v4321
      %4354 = vst [vmem:[%s192 + $0x28] sm:$0xf] %v4322
      %4355 = vst [vmem:[%s192 + $0x2c] sm:$0xf] %v4323
      %4356 = vst [vmem:[%s192 + $0x30] sm:$0xf] %v4324
      %4357 = vst [vmem:[%s192 + $0x34] sm:$0xf] %v4325
      %4358 = vst [vmem:[%s192 + $0x38] sm:$0xf] %v4326
      %4359 = vst [vmem:[%s192 + $0x3c] sm:$0xf] %v4327
      %4360 = vst [vmem:[%s192 + $0x40] sm:$0xf] %v4328
      %4361 = vst [vmem:[%s192 + $0x44] sm:$0xf] %v4329
      %4362 = vst [vmem:[%s192 + $0x48] sm:$0xf] %v4330
      %4363 = vst [vmem:[%s192 + $0x4c] sm:$0xf] %v4331
      %4364 = vst [vmem:[%s192 + $0x50] sm:$0xf] %v4332
      %4365 = vst [vmem:[%s192 + $0x54] sm:$0xf] %v4333
      %4366 = vst [vmem:[%s192 + $0x58] sm:$0xf] %v4334
      %4367 = vst [vmem:[%s192 + $0x5c] sm:$0xf] %v4335
      %4368 = vst [vmem:[%s192 + $0x60] sm:$0xf] %v4336
      %4369 = vst [vmem:[%s192 + $0x64] sm:$0xf] %v4337
      %4370 = vst [vmem:[%s192 + $0x68] sm:$0xf] %v4338
      %4371 = vst [vmem:[%s192 + $0x6c] sm:$0xf] %v4339
      %4372 = vst [vmem:[%s192 + $0x70] sm:$0xf] %v4340
      %4373 = vst [vmem:[%s192 + $0x74] sm:$0xf] %v4341
      %4374 = vst [vmem:[%s192 + $0x78] sm:$0xf] %v4342
      %4375 = vst [vmem:[%s192 + $0x7c] sm:$0xf] %v4343
      %s4376 = smul.u32 32, %s19
      %p4377 = scmp.lt.s32.totalorder %s18, 1
      %s4378 = scalar_select %p4377, %s18, 1
      %p4379 = scmp.lt.s32.totalorder %s4376, 31
      %s4380 = scalar_select %p4379, %s4376, 31
      %s4381 = smul.addr %s4378, 32
      %s4382 = sadd.s32 %s4380, %s4381
      %s4383 = smul.addr %s4382, 4
      %s4384 = scalar_lea.vmem %s3, %s4383
      // Predicated region
      $region33: #{basic_block_q_forward.2} parent=31 // pred_check
        %p4385 = pneg %p114
      $region34: #{basic_block_q_forward.2} parent=31 // pred_check_branch
        %4387 = sbr.rel (%p4385) target = $region36
      $region35: #{basic_block_q_forward.2} parent=31 // pred_region
        %s4388 = smul.u32 32, %s19
      $region36: #{basic_block_q_forward.2} parent=31 // pred_fallthru
        _
    $region32: #{basic_block_q_forward.2} parent=5 // pred_fallthru
      _
    %p4389 = scmp.le.s32.totalorder 2, %s9
    // Predicated region
    $region37: #{basic_block_q_forward.2} parent=5 // pred_check
      %p4390 = pneg %p4389
    $region38: #{basic_block_q_forward.2} parent=5 // pred_check_branch
      %4392 = sbr.rel (%p4390) target = $region40
    $region39: #{basic_block_q_forward.2} parent=5 // pred_region
      %s4393 = ssub.s32 %s9, 2
      // Predicated region
      $region41: #{basic_block_q_forward.2} parent=39 // pred_check
        %p4394 = pneg %p120
      $region42: #{basic_block_q_forward.2} parent=39 // pred_check_branch
        %4396 = sbr.rel (%p4394) target = $region44
      $region43: #{basic_block_q_forward.2} parent=39 // pred_region
        %s4397 = smul.u32 32, %s21
        %p4398 = scmp.lt.s32.totalorder %s20, 1
        %s4399 = scalar_select %p4398, %s20, 1
        %p4400 = scmp.lt.s32.totalorder %s4397, 31
        %s4401 = scalar_select %p4400, %s4397, 31
        %s4402 = smul.addr %s4399, 32
        %s4403 = sadd.s32 %s4401, %s4402
        %s4404 = smul.addr %s4403, 4
        %s4405 = scalar_lea.vmem %s3, %s4404
      $region44: #{basic_block_q_forward.2} parent=39 // pred_fallthru
        _
    $region40: #{basic_block_q_forward.2} parent=5 // pred_fallthru
      _
  $region6: #{basic_block_q_forward.2} parent=0 // loop_footer
    %s13 = sadd.s32 1, %s9
  $region7: #{basic_block_q_forward.2} parent=0 // loop_footer_branch
    %8 = sbr.rel target = $region3
  $region8: #{basic_block_q_forward.2} parent=0 // loop_exit
    _

// kernel: basic_block_q_forward.3
$region0: #{basic_block_q_forward.3}
  #allocation0 [shape = 'u32[]', space=smem, size = 0x4, offset = 0x4, fixed_abs, tag = 'smem constant byte address 0x4 - core index']
  #allocation1 [shape = 'u32[72,128]{1,0:T(1,128)}', space=vmem, size = 0x9000, scoped, tag = 'internal scratch']
  %s0 = inlined_call_operand.vmem [shape: bf16[2,18,18,128], index: 0, kind: input, shape index: {}]
  %s1 = inlined_call_operand.vmem [shape: bf16[9,128,128], index: 1, kind: input, shape index: {}]
  %s2 = inlined_call_operand.vmem [shape: f32[1,128], index: 2, kind: input, shape index: {}]
  %s3 = inlined_call_operand.vmem [shape: bf16[2,256,128], index: 3, kind: input, shape index: {}]
  %s4 = inlined_call_operand.vmem [shape: bf16[2,256,128], index: 4, kind: output, shape index: {}]
  %s5 = sld [smem:[#allocation0]]
  $region49: #{basic_block_q_forward.3} parent=0
    _
  %s7 = ssub.s32 1, %s5
  %s8 = scalar_select 0, %s7, %s5
  loop: start=0, step=1, limit=4
  $region2: #{basic_block_q_forward.3} parent=0 // loop_pre_header
    _
  $region3: #{basic_block_q_forward.3} parent=0 // loop_header
    %s10 = sphi 0, %s14
    %p11 = scmp.ge.s32.totalorder %s10, 4
    %s17 = sphi 0, %s29
    %s18 = sphi 0, %s25
    %s19 = sphi 0, %s17
    %s20 = sphi 0, %s18
    %s21 = sphi 0, %s19
    %s22 = sphi 0, %s20
    %s32 = sphi 0, %s34
    %s35 = sphi 0, %s32
    %s36 = sphi 0, %s35
    %s52 = sphi 0, %s36
    %s56 = sphi 0, %s56
    %s58 = sphi 0, %s56
    %s59 = sphi 0, %s58
    %s73 = sphi 0, %s59
    %s77 = sphi 0, %s77
    %s79 = sphi 0, %s77
    %s80 = sphi 0, %s79
    %s94 = sphi 0, %s80
    %s102 = sphi 0, %s104
    %s105 = sphi 0, %s102
    %s106 = sphi 0, %s105
    %s122 = sphi 0, %s106
    %s130 = sphi 0, %s132
    %s133 = sphi 0, %s130
    %s134 = sphi 0, %s133
    %s150 = sphi 0, %s134
  $region4: #{basic_block_q_forward.3} parent=0 // loop_header_branch
    %13 = sbr.rel (%p11) target = $region8
  $region5: #{basic_block_q_forward.3} parent=0 // loop_body
    %s15 = ssub.s32 %s10, 1
    %s16 = ssub.s32 %s10, 2
    %s23 = sadd.s32 1, %s18
    %p24 = scmp.ge.s32.totalorder %s23, 1
    %s25 = scalar_select %p24, 0, %s23
    %s26 = sadd.s32 1, %s17
    %s27 = scalar_select %p24, %s26, %s17
    %p28 = scmp.ge.s32.totalorder %s27, 2
    %s29 = scalar_select %p28, 0, %s27
    %s30 = ssub.s32 %s17, %s29
    %p31 = scmp.eq.s32.totalorder %s30, 0
    %s33 = sadd.s32 %s32, 1
    %s34 = scalar_select %p31, %s32, %s33
    %p37 = pneg %p31
    %p38 = scmp.eq.s32.totalorder %s10, 1
    %p39 = por %p37, %p38
    %p40 = scmp.ne.s32.totalorder %s32, %s35
    %p41 = scmp.eq.s32.totalorder %s10, 0
    %p42 = por %p40, %p41
    %p43 = scmp.ne.s32.totalorder %s32, %s35
    %p44 = scmp.eq.s32.totalorder %s15, 1
    %p45 = por %p43, %p44
    %p46 = scmp.ne.s32.totalorder %s35, %s36
    %p47 = scmp.eq.s32.totalorder %s15, 0
    %p48 = por %p46, %p47
    %p49 = scmp.ne.s32.totalorder %s35, %s36
    %p50 = scmp.eq.s32.totalorder %s16, 1
    %p51 = por %p49, %p50
    %p53 = scmp.ne.s32.totalorder %s36, %s52
    %p54 = scmp.eq.s32.totalorder %s16, 0
    %p55 = por %p53, %p54
    %s57 = sadd.s32 %s56, 1
    %p60 = scmp.eq.s32.totalorder %s10, 1
    %p61 = scmp.ne.s32.totalorder %s56, %s58
    %p62 = scmp.eq.s32.totalorder %s10, 0
    %p63 = por %p61, %p62
    %p64 = scmp.ne.s32.totalorder %s56, %s58
    %p65 = scmp.eq.s32.totalorder %s15, 1
    %p66 = por %p64, %p65
    %p67 = scmp.ne.s32.totalorder %s58, %s59
    %p68 = scmp.eq.s32.totalorder %s15, 0
    %p69 = por %p67, %p68
    %p70 = scmp.ne.s32.totalorder %s58, %s59
    %p71 = scmp.eq.s32.totalorder %s16, 1
    %p72 = por %p70, %p71
    %p74 = scmp.ne.s32.totalorder %s59, %s73
    %p75 = scmp.eq.s32.totalorder %s16, 0
    %p76 = por %p74, %p75
    %s78 = sadd.s32 %s77, 1
    %p81 = scmp.eq.s32.totalorder %s10, 1
    %p82 = scmp.ne.s32.totalorder %s77, %s79
    %p83 = scmp.eq.s32.totalorder %s10, 0
    %p84 = por %p82, %p83
    %p85 = scmp.ne.s32.totalorder %s77, %s79
    %p86 = scmp.eq.s32.totalorder %s15, 1
    %p87 = por %p85, %p86
    %p88 = scmp.ne.s32.totalorder %s79, %s80
    %p89 = scmp.eq.s32.totalorder %s15, 0
    %p90 = por %p88, %p89
    %p91 = scmp.ne.s32.totalorder %s79, %s80
    %p92 = scmp.eq.s32.totalorder %s16, 1
    %p93 = por %p91, %p92
    %p95 = scmp.ne.s32.totalorder %s80, %s94
    %p96 = scmp.eq.s32.totalorder %s16, 0
    %p97 = por %p95, %p96
    %s98 = ssub.s32 %s17, %s29
    %s99 = ssub.s32 %s18, %s25
    %s100 = sor.u32 %s98, %s99
    %p101 = scmp.eq.s32.totalorder %s100, 0
    %s103 = sadd.s32 %s102, 1
    %s104 = scalar_select %p101, %s102, %s103
    %p107 = pneg %p101
    %p108 = scmp.eq.s32.totalorder %s10, 1
    %p109 = por %p107, %p108
    %p110 = scmp.ne.s32.totalorder %s102, %s105
    %p111 = scmp.eq.s32.totalorder %s10, 0
    %p112 = por %p110, %p111
    %p113 = scmp.ne.s32.totalorder %s102, %s105
    %p114 = scmp.eq.s32.totalorder %s15, 1
    %p115 = por %p113, %p114
    %p116 = scmp.ne.s32.totalorder %s105, %s106
    %p117 = scmp.eq.s32.totalorder %s15, 0
    %p118 = por %p116, %p117
    %p119 = scmp.ne.s32.totalorder %s105, %s106
    %p120 = scmp.eq.s32.totalorder %s16, 1
    %p121 = por %p119, %p120
    %p123 = scmp.ne.s32.totalorder %s106, %s122
    %p124 = scmp.eq.s32.totalorder %s16, 0
    %p125 = por %p123, %p124
    %s126 = ssub.s32 %s17, %s29
    %s127 = ssub.s32 %s18, %s25
    %s128 = sor.u32 %s126, %s127
    %p129 = scmp.eq.s32.totalorder %s128, 0
    %s131 = sadd.s32 %s130, 1
    %s132 = scalar_select %p129, %s130, %s131
    %p135 = pneg %p129
    %p136 = scmp.eq.s32.totalorder %s10, 1
    %p137 = por %p135, %p136
    %p138 = scmp.ne.s32.totalorder %s130, %s133
    %p139 = scmp.eq.s32.totalorder %s10, 0
    %p140 = por %p138, %p139
    %p141 = scmp.ne.s32.totalorder %s130, %s133
    %p142 = scmp.eq.s32.totalorder %s15, 1
    %p143 = por %p141, %p142
    %p144 = scmp.ne.s32.totalorder %s133, %s134
    %p145 = scmp.eq.s32.totalorder %s15, 0
    %p146 = por %p144, %p145
    %p147 = scmp.ne.s32.totalorder %s133, %s134
    %p148 = scmp.eq.s32.totalorder %s16, 1
    %p149 = por %p147, %p148
    %p151 = scmp.ne.s32.totalorder %s134, %s150
    %p152 = scmp.eq.s32.totalorder %s16, 0
    %p153 = por %p151, %p152
    %p154 = scmp.le.s32.totalorder 1, %s10
    %p155 = scmp.lt.s32.totalorder %s10, 3
    %p156 = pnand %p154, %p155
    %p157 = pneg %p156
    // Predicated region
    $region9: #{basic_block_q_forward.3} parent=5 // pred_check
      _
    $region10: #{basic_block_q_forward.3} parent=5 // pred_check_branch
      %159 = sbr.rel (%p156) target = $region12
    $region11: #{basic_block_q_forward.3} parent=5 // pred_region
      %s160 = ssub.s32 %s10, 1
      // Predicated region
      $region13: #{basic_block_q_forward.3} parent=11 // pred_check
        %p161 = pneg %p69
      $region14: #{basic_block_q_forward.3} parent=11 // pred_check_branch
        %163 = sbr.rel (%p161) target = $region16
      $region15: #{basic_block_q_forward.3} parent=11 // pred_region
        _
      $region16: #{basic_block_q_forward.3} parent=11 // pred_fallthru
        _
      // Predicated region
      $region17: #{basic_block_q_forward.3} parent=11 // pred_check
        %p164 = pneg %p90
      $region18: #{basic_block_q_forward.3} parent=11 // pred_check_branch
        %166 = sbr.rel (%p164) target = $region20
      $region19: #{basic_block_q_forward.3} parent=11 // pred_region
        _
      $region20: #{basic_block_q_forward.3} parent=11 // pred_fallthru
        _
    $region12: #{basic_block_q_forward.3} parent=5 // pred_fallthru
      _
    %p167 = scmp.lt.s32.totalorder %s10, 2
    // Predicated region
    $region21: #{basic_block_q_forward.3} parent=5 // pred_check
      %p168 = pneg %p167
    $region22: #{basic_block_q_forward.3} parent=5 // pred_check_branch
      %170 = sbr.rel (%p168) target = $region24
    $region23: #{basic_block_q_forward.3} parent=5 // pred_region
      // Predicated region
      $region25: #{basic_block_q_forward.3} parent=23 // pred_check
        %p171 = pneg %p42
      $region26: #{basic_block_q_forward.3} parent=23 // pred_check_branch
        %173 = sbr.rel (%p171) target = $region28
      $region27: #{basic_block_q_forward.3} parent=23 // pred_region
        %p174 = scmp.lt.s32.totalorder %s17, 1
        %s175 = scalar_select %p174, %s17, 1
        %s176 = smul.addr %s175, 54
        %s177 = smul.addr %s176, 4
        %s178 = scalar_lea.vmem %s0, %s177
      $region28: #{basic_block_q_forward.3} parent=23 // pred_fallthru
        _
      // Predicated region
      $region29: #{basic_block_q_forward.3} parent=23 // pred_check
        %p179 = pneg %p112
      $region30: #{basic_block_q_forward.3} parent=23 // pred_check_branch
        %181 = sbr.rel (%p179) target = $region32
      $region31: #{basic_block_q_forward.3} parent=23 // pred_region
        %s182 = smul.u32 32, %s18
        %p183 = scmp.lt.s32.totalorder %s17, 1
        %s184 = scalar_select %p183, %s17, 1
        %p185 = scmp.lt.s32.totalorder %s182, 31
        %s186 = scalar_select %p185, %s182, 31
        %s187 = smul.addr %s184, 32
        %s188 = sadd.s32 %s186, %s187
        %s189 = smul.addr %s188, 4
        %s190 = scalar_lea.vmem %s3, %s189
        %s191 = smul.u32 32, %s18
      $region32: #{basic_block_q_forward.3} parent=23 // pred_fallthru
        _
    $region24: #{basic_block_q_forward.3} parent=5 // pred_fallthru
      _
    %p192 = scmp.le.s32.totalorder 1, %s10
    %p193 = scmp.lt.s32.totalorder %s10, 3
    %p194 = pnand %p192, %p193
    %p195 = pneg %p194
    // Predicated region
    $region33: #{basic_block_q_forward.3} parent=5 // pred_check
      _
    $region34: #{basic_block_q_forward.3} parent=5 // pred_check_branch
      %197 = sbr.rel (%p194) target = $region36
    $region35: #{basic_block_q_forward.3} parent=5 // pred_region
      %s198 = ssub.s32 %s10, 1
      %p199 = scmp.lt.s32.totalorder %s19, 1
      %s200 = scalar_select %p199, %s19, 1
      %s201 = smul.addr %s200, 54
      %s202 = smul.addr %s201, 4
      %s203 = scalar_lea.vmem %s0, %s202
      %p204 = pneg %p48
      %p205 = pneg %p45
      %p206 = pneg %p69
      %p207 = pneg %p66
      %p208 = pneg %p90
      %p209 = pneg %p87
      %s210 = smul.u32 32, %s20
      %p211 = scmp.lt.s32.totalorder %s19, 1
      %s212 = scalar_select %p211, %s19, 1
      %p213 = scmp.lt.s32.totalorder %s210, 31
      %s214 = scalar_select %p213, %s210, 31
      %s215 = smul.addr %s212, 32
      %s216 = sadd.s32 %s214, %s215
      %s217 = smul.addr %s216, 4
      %s218 = scalar_lea.vmem %s3, %s217
      %p219 = pneg %p118
      %p220 = pneg %p115
      %p221 = pneg %p146
      %p222 = pneg %p143
      %s223 = smul.u32 32, %s20
      %p224 = scmp.lt.s32.totalorder %s19, 1
      %s225 = scalar_select %p224, %s19, 1
      %p226 = scmp.lt.s32.totalorder %s223, 31
      %s227 = scalar_select %p226, %s223, 31
      %s228 = smul.addr %s225, 32
      %s229 = sadd.s32 %s227, %s228
      %s230 = smul.addr %s229, 4
      %s231 = scalar_lea.vmem %s4, %s230
      %p232 = scmp.lt.s32.totalorder %s19, 1
      %s233 = scalar_select %p232, %s19, 1
      %s234 = smul.addr %s233, 54
      %s235 = smul.addr %s234, 4
      %s236 = scalar_lea.vmem %s0, %s235
      %s237 = smul.u32 32, %s20
      %p238 = scmp.lt.s32.totalorder %s19, 1
      %s239 = scalar_select %p238, %s19, 1
      %p240 = scmp.lt.s32.totalorder %s237, 31
      %s241 = scalar_select %p240, %s237, 31
      %s242 = smul.addr %s239, 32
      %s243 = sadd.s32 %s241, %s242
      %s244 = smul.addr %s243, 4
      %s245 = scalar_lea.vmem %s3, %s244
      %s246 = smul.u32 32, %s20
      %s247 = smul.u32 32, %s20
      %p248 = scmp.lt.s32.totalorder %s19, 1
      %s249 = scalar_select %p248, %s19, 1
      %p250 = scmp.lt.s32.totalorder %s247, 31
      %s251 = scalar_select %p250, %s247, 31
      %s252 = smul.addr %s249, 32
      %s253 = sadd.s32 %s251, %s252
      %s254 = smul.addr %s253, 4
      %s255 = scalar_lea.vmem %s4, %s254
      %s256 = smul.u32 32, %s20
      %s257 = smul.u32 %s20, 16
      %s258 = smul.u32 %s257, 3
      %s259 = smul.addr %s258, 4
      %s260 = scalar_lea.vmem %s236, %s259
      %v261 = vld [vmem:[%s260] sm:$0xf]
      %v262 = vld [vmem:[%s260 + $0x4] sm:$0xf]
      %v263 = vld [vmem:[%s260 + $0xc] sm:$0xf]
      %v264 = vld [vmem:[%s260 + $0x10] sm:$0xf]
      %v265 = vld [vmem:[%s260 + $0x18] sm:$0xf]
      %v266 = vld [vmem:[%s260 + $0x1c] sm:$0xf]
      %v267 = vld [vmem:[%s260 + $0x24] sm:$0xf]
      %v268 = vld [vmem:[%s260 + $0x28] sm:$0xf]
      %v269 = vld [vmem:[%s260 + $0x30] sm:$0xf]
      %v270 = vld [vmem:[%s260 + $0x34] sm:$0xf]
      %v271 = vld [vmem:[%s260 + $0x3c] sm:$0xf]
      %v272 = vld [vmem:[%s260 + $0x40] sm:$0xf]
      %v273 = vld [vmem:[%s260 + $0x48] sm:$0xf]
      %v274 = vld [vmem:[%s260 + $0x4c] sm:$0xf]
      %v275 = vld [vmem:[%s260 + $0x54] sm:$0xf]
      %v276 = vld [vmem:[%s260 + $0x58] sm:$0xf]
      %v277 = vld [vmem:[%s260 + $0x60] sm:$0xf]
      %v278 = vld [vmem:[%s260 + $0x64] sm:$0xf]
      %v279 = vld [vmem:[%s260 + $0x6c] sm:$0xf]
      %v280 = vld [vmem:[%s260 + $0x70] sm:$0xf]
      %v281 = vld [vmem:[%s260 + $0x78] sm:$0xf]
      %v282 = vld [vmem:[%s260 + $0x7c] sm:$0xf]
      %v283 = vld [vmem:[%s260 + $0x84] sm:$0xf]
      %v284 = vld [vmem:[%s260 + $0x88] sm:$0xf]
      %v285 = vld [vmem:[%s260 + $0x90] sm:$0xf]
      %v286 = vld [vmem:[%s260 + $0x94] sm:$0xf]
      %v287 = vld [vmem:[%s260 + $0x9c] sm:$0xf]
      %v288 = vld [vmem:[%s260 + $0xa0] sm:$0xf]
      %v289 = vld [vmem:[%s260 + $0xa8] sm:$0xf]
      %v290 = vld [vmem:[%s260 + $0xac] sm:$0xf]
      %v291 = vld [vmem:[%s260 + $0xb4] sm:$0xf]
      %v292 = vld [vmem:[%s260 + $0xb8] sm:$0xf]
      %v293 = vld [vmem:[%s260 + $0x8] sm:$0x1]
      %v294 = vld [vmem:[%s260 + $0x14] sm:$0x1]
      %v295 = vld [vmem:[%s260 + $0x20] sm:$0x1]
      %v296 = vld [vmem:[%s260 + $0x2c] sm:$0x1]
      %v297 = vld [vmem:[%s260 + $0x38] sm:$0x1]
      %v298 = vld [vmem:[%s260 + $0x44] sm:$0x1]
      %v299 = vld [vmem:[%s260 + $0x50] sm:$0x1]
      %v300 = vld [vmem:[%s260 + $0x5c] sm:$0x1]
      %v301 = vld [vmem:[%s260 + $0x68] sm:$0x1]
      %v302 = vld [vmem:[%s260 + $0x74] sm:$0x1]
      %v303 = vld [vmem:[%s260 + $0x80] sm:$0x1]
      %v304 = vld [vmem:[%s260 + $0x8c] sm:$0x1]
      %v305 = vld [vmem:[%s260 + $0x98] sm:$0x1]
      %v306 = vld [vmem:[%s260 + $0xa4] sm:$0x1]
      %v307 = vld [vmem:[%s260 + $0xb0] sm:$0x1]
      %v308 = vld [vmem:[%s260 + $0xbc] sm:$0x1]
      %v309 = vld [vmem:[%s260] sm:$0xe]
      %v310 = vld [vmem:[%s260 + $0xc] sm:$0xe]
      %v311 = vld [vmem:[%s260 + $0x18] sm:$0xe]
      %v312 = vld [vmem:[%s260 + $0x24] sm:$0xe]
      %v313 = vld [vmem:[%s260 + $0x30] sm:$0xe]
      %v314 = vld [vmem:[%s260 + $0x3c] sm:$0xe]
      %v315 = vld [vmem:[%s260 + $0x48] sm:$0xe]
      %v316 = vld [vmem:[%s260 + $0x54] sm:$0xe]
      %v317 = vld [vmem:[%s260 + $0x60] sm:$0xe]
      %v318 = vld [vmem:[%s260 + $0x6c] sm:$0xe]
      %v319 = vld [vmem:[%s260 + $0x78] sm:$0xe]
      %v320 = vld [vmem:[%s260 + $0x84] sm:$0xe]
      %v321 = vld [vmem:[%s260 + $0x90] sm:$0xe]
      %v322 = vld [vmem:[%s260 + $0x9c] sm:$0xe]
      %v323 = vld [vmem:[%s260 + $0xa8] sm:$0xe]
      %v324 = vld [vmem:[%s260 + $0xb4] sm:$0xe]
      %s325 = sadd.s32 %s257, 1
      %s326 = smul.u32 %s325, 3
      %s327 = smul.addr %s326, 4
      %s328 = scalar_lea.vmem %s236, %s327
      %v329 = vld [vmem:[%s328] sm:$0xf]
      %v330 = vld [vmem:[%s328 + $0x4] sm:$0xf]
      %v331 = vld [vmem:[%s328 + $0xc] sm:$0xf]
      %v332 = vld [vmem:[%s328 + $0x10] sm:$0xf]
      %v333 = vld [vmem:[%s328 + $0x18] sm:$0xf]
      %v334 = vld [vmem:[%s328 + $0x1c] sm:$0xf]
      %v335 = vld [vmem:[%s328 + $0x24] sm:$0xf]
      %v336 = vld [vmem:[%s328 + $0x28] sm:$0xf]
      %v337 = vld [vmem:[%s328 + $0x30] sm:$0xf]
      %v338 = vld [vmem:[%s328 + $0x34] sm:$0xf]
      %v339 = vld [vmem:[%s328 + $0x3c] sm:$0xf]
      %v340 = vld [vmem:[%s328 + $0x40] sm:$0xf]
      %v341 = vld [vmem:[%s328 + $0x48] sm:$0xf]
      %v342 = vld [vmem:[%s328 + $0x4c] sm:$0xf]
      %v343 = vld [vmem:[%s328 + $0x54] sm:$0xf]
      %v344 = vld [vmem:[%s328 + $0x58] sm:$0xf]
      %v345 = vld [vmem:[%s328 + $0x60] sm:$0xf]
      %v346 = vld [vmem:[%s328 + $0x64] sm:$0xf]
      %v347 = vld [vmem:[%s328 + $0x6c] sm:$0xf]
      %v348 = vld [vmem:[%s328 + $0x70] sm:$0xf]
      %v349 = vld [vmem:[%s328 + $0x78] sm:$0xf]
      %v350 = vld [vmem:[%s328 + $0x7c] sm:$0xf]
      %v351 = vld [vmem:[%s328 + $0x84] sm:$0xf]
      %v352 = vld [vmem:[%s328 + $0x88] sm:$0xf]
      %v353 = vld [vmem:[%s328 + $0x90] sm:$0xf]
      %v354 = vld [vmem:[%s328 + $0x94] sm:$0xf]
      %v355 = vld [vmem:[%s328 + $0x9c] sm:$0xf]
      %v356 = vld [vmem:[%s328 + $0xa0] sm:$0xf]
      %v357 = vld [vmem:[%s328 + $0xa8] sm:$0xf]
      %v358 = vld [vmem:[%s328 + $0xac] sm:$0xf]
      %v359 = vld [vmem:[%s328 + $0xb4] sm:$0xf]
      %v360 = vld [vmem:[%s328 + $0xb8] sm:$0xf]
      %v361 = vld [vmem:[%s328 + $0x8] sm:$0x1]
      %v362 = vld [vmem:[%s328 + $0x14] sm:$0x1]
      %v363 = vld [vmem:[%s328 + $0x20] sm:$0x1]
      %v364 = vld [vmem:[%s328 + $0x2c] sm:$0x1]
      %v365 = vld [vmem:[%s328 + $0x38] sm:$0x1]
      %v366 = vld [vmem:[%s328 + $0x44] sm:$0x1]
      %v367 = vld [vmem:[%s328 + $0x50] sm:$0x1]
      %v368 = vld [vmem:[%s328 + $0x5c] sm:$0x1]
      %v369 = vld [vmem:[%s328 + $0x68] sm:$0x1]
      %v370 = vld [vmem:[%s328 + $0x74] sm:$0x1]
      %v371 = vld [vmem:[%s328 + $0x80] sm:$0x1]
      %v372 = vld [vmem:[%s328 + $0x8c] sm:$0x1]
      %v373 = vld [vmem:[%s328 + $0x98] sm:$0x1]
      %v374 = vld [vmem:[%s328 + $0xa4] sm:$0x1]
      %v375 = vld [vmem:[%s328 + $0xb0] sm:$0x1]
      %v376 = vld [vmem:[%s328 + $0xbc] sm:$0x1]
      %v377 = vld [vmem:[%s328] sm:$0xe]
      %v378 = vld [vmem:[%s328 + $0xc] sm:$0xe]
      %v379 = vld [vmem:[%s328 + $0x18] sm:$0xe]
      %v380 = vld [vmem:[%s328 + $0x24] sm:$0xe]
      %v381 = vld [vmem:[%s328 + $0x30] sm:$0xe]
      %v382 = vld [vmem:[%s328 + $0x3c] sm:$0xe]
      %v383 = vld [vmem:[%s328 + $0x48] sm:$0xe]
      %v384 = vld [vmem:[%s328 + $0x54] sm:$0xe]
      %v385 = vld [vmem:[%s328 + $0x60] sm:$0xe]
      %v386 = vld [vmem:[%s328 + $0x6c] sm:$0xe]
      %v387 = vld [vmem:[%s328 + $0x78] sm:$0xe]
      %v388 = vld [vmem:[%s328 + $0x84] sm:$0xe]
      %v389 = vld [vmem:[%s328 + $0x90] sm:$0xe]
      %v390 = vld [vmem:[%s328 + $0x9c] sm:$0xe]
      %v391 = vld [vmem:[%s328 + $0xa8] sm:$0xe]
      %v392 = vld [vmem:[%s328 + $0xb4] sm:$0xe]
      %s393 = sadd.s32 %s257, 2
      %s394 = smul.u32 %s393, 3
      %s395 = smul.addr %s394, 4
      %s396 = scalar_lea.vmem %s236, %s395
      %v397 = vld [vmem:[%s396] sm:$0xf]
      %v398 = vld [vmem:[%s396 + $0x4] sm:$0xf]
      %v399 = vld [vmem:[%s396 + $0xc] sm:$0xf]
      %v400 = vld [vmem:[%s396 + $0x10] sm:$0xf]
      %v401 = vld [vmem:[%s396 + $0x18] sm:$0xf]
      %v402 = vld [vmem:[%s396 + $0x1c] sm:$0xf]
      %v403 = vld [vmem:[%s396 + $0x24] sm:$0xf]
      %v404 = vld [vmem:[%s396 + $0x28] sm:$0xf]
      %v405 = vld [vmem:[%s396 + $0x30] sm:$0xf]
      %v406 = vld [vmem:[%s396 + $0x34] sm:$0xf]
      %v407 = vld [vmem:[%s396 + $0x3c] sm:$0xf]
      %v408 = vld [vmem:[%s396 + $0x40] sm:$0xf]
      %v409 = vld [vmem:[%s396 + $0x48] sm:$0xf]
      %v410 = vld [vmem:[%s396 + $0x4c] sm:$0xf]
      %v411 = vld [vmem:[%s396 + $0x54] sm:$0xf]
      %v412 = vld [vmem:[%s396 + $0x58] sm:$0xf]
      %v413 = vld [vmem:[%s396 + $0x60] sm:$0xf]
      %v414 = vld [vmem:[%s396 + $0x64] sm:$0xf]
      %v415 = vld [vmem:[%s396 + $0x6c] sm:$0xf]
      %v416 = vld [vmem:[%s396 + $0x70] sm:$0xf]
      %v417 = vld [vmem:[%s396 + $0x78] sm:$0xf]
      %v418 = vld [vmem:[%s396 + $0x7c] sm:$0xf]
      %v419 = vld [vmem:[%s396 + $0x84] sm:$0xf]
      %v420 = vld [vmem:[%s396 + $0x88] sm:$0xf]
      %v421 = vld [vmem:[%s396 + $0x90] sm:$0xf]
      %v422 = vld [vmem:[%s396 + $0x94] sm:$0xf]
      %v423 = vld [vmem:[%s396 + $0x9c] sm:$0xf]
      %v424 = vld [vmem:[%s396 + $0xa0] sm:$0xf]
      %v425 = vld [vmem:[%s396 + $0xa8] sm:$0xf]
      %v426 = vld [vmem:[%s396 + $0xac] sm:$0xf]
      %v427 = vld [vmem:[%s396 + $0xb4] sm:$0xf]
      %v428 = vld [vmem:[%s396 + $0xb8] sm:$0xf]
      %v429 = vld [vmem:[%s396 + $0x8] sm:$0x1]
      %v430 = vld [vmem:[%s396 + $0x14] sm:$0x1]
      %v431 = vld [vmem:[%s396 + $0x20] sm:$0x1]
      %v432 = vld [vmem:[%s396 + $0x2c] sm:$0x1]
      %v433 = vld [vmem:[%s396 + $0x38] sm:$0x1]
      %v434 = vld [vmem:[%s396 + $0x44] sm:$0x1]
      %v435 = vld [vmem:[%s396 + $0x50] sm:$0x1]
      %v436 = vld [vmem:[%s396 + $0x5c] sm:$0x1]
      %v437 = vld [vmem:[%s396 + $0x68] sm:$0x1]
      %v438 = vld [vmem:[%s396 + $0x74] sm:$0x1]
      %v439 = vld [vmem:[%s396 + $0x80] sm:$0x1]
      %v440 = vld [vmem:[%s396 + $0x8c] sm:$0x1]
      %v441 = vld [vmem:[%s396 + $0x98] sm:$0x1]
      %v442 = vld [vmem:[%s396 + $0xa4] sm:$0x1]
      %v443 = vld [vmem:[%s396 + $0xb0] sm:$0x1]
      %v444 = vld [vmem:[%s396 + $0xbc] sm:$0x1]
      %v445 = vld [vmem:[%s396] sm:$0xe]
      %v446 = vld [vmem:[%s396 + $0xc] sm:$0xe]
      %v447 = vld [vmem:[%s396 + $0x18] sm:$0xe]
      %v448 = vld [vmem:[%s396 + $0x24] sm:$0xe]
      %v449 = vld [vmem:[%s396 + $0x30] sm:$0xe]
      %v450 = vld [vmem:[%s396 + $0x3c] sm:$0xe]
      %v451 = vld [vmem:[%s396 + $0x48] sm:$0xe]
      %v452 = vld [vmem:[%s396 + $0x54] sm:$0xe]
      %v453 = vld [vmem:[%s396 + $0x60] sm:$0xe]
      %v454 = vld [vmem:[%s396 + $0x6c] sm:$0xe]
      %v455 = vld [vmem:[%s396 + $0x78] sm:$0xe]
      %v456 = vld [vmem:[%s396 + $0x84] sm:$0xe]
      %v457 = vld [vmem:[%s396 + $0x90] sm:$0xe]
      %v458 = vld [vmem:[%s396 + $0x9c] sm:$0xe]
      %v459 = vld [vmem:[%s396 + $0xa8] sm:$0xe]
      %v460 = vld [vmem:[%s396 + $0xb4] sm:$0xe]
      %v493 = vunpack.c.l.b16 %v261
      %v494 = vunpack.c.l.b16 %v262
      %v495 = vunpack.c.l.b16 %v263
      %v496 = vunpack.c.l.b16 %v264
      %v497 = vunpack.c.l.b16 %v265
      %v498 = vunpack.c.l.b16 %v266
      %v499 = vunpack.c.l.b16 %v267
      %v500 = vunpack.c.l.b16 %v268
      %v501 = vunpack.c.l.b16 %v269
      %v502 = vunpack.c.l.b16 %v270
      %v503 = vunpack.c.l.b16 %v271
      %v504 = vunpack.c.l.b16 %v272
      %v505 = vunpack.c.l.b16 %v273
      %v506 = vunpack.c.l.b16 %v274
      %v507 = vunpack.c.l.b16 %v275
      %v508 = vunpack.c.l.b16 %v276
      %v509 = vunpack.c.l.b16 %v277
      %v510 = vunpack.c.l.b16 %v278
      %v511 = vunpack.c.l.b16 %v279
      %v512 = vunpack.c.l.b16 %v280
      %v513 = vunpack.c.l.b16 %v281
      %v514 = vunpack.c.l.b16 %v282
      %v515 = vunpack.c.l.b16 %v283
      %v516 = vunpack.c.l.b16 %v284
      %v517 = vunpack.c.l.b16 %v285
      %v518 = vunpack.c.l.b16 %v286
      %v519 = vunpack.c.l.b16 %v287
      %v520 = vunpack.c.l.b16 %v288
      %v521 = vunpack.c.l.b16 %v289
      %v522 = vunpack.c.l.b16 %v290
      %v523 = vunpack.c.l.b16 %v291
      %v524 = vunpack.c.l.b16 %v292
      %v525 = vpack.c.b16 %v494, %v493
      %v526 = vpack.c.b16 %v496, %v495
      %v527 = vpack.c.b16 %v498, %v497
      %v528 = vpack.c.b16 %v500, %v499
      %v529 = vpack.c.b16 %v502, %v501
      %v530 = vpack.c.b16 %v504, %v503
      %v531 = vpack.c.b16 %v506, %v505
      %v532 = vpack.c.b16 %v508, %v507
      %v533 = vpack.c.b16 %v510, %v509
      %v534 = vpack.c.b16 %v512, %v511
      %v535 = vpack.c.b16 %v514, %v513
      %v536 = vpack.c.b16 %v516, %v515
      %v537 = vpack.c.b16 %v518, %v517
      %v538 = vpack.c.b16 %v520, %v519
      %v539 = vpack.c.b16 %v522, %v521
      %v540 = vpack.c.b16 %v524, %v523
      %v573 = vunpack.c.l.b16 %v293
      %v574 = vunpack.c.l.b16 %v294
      %v575 = vunpack.c.l.b16 %v295
      %v576 = vunpack.c.l.b16 %v296
      %v577 = vunpack.c.l.b16 %v297
      %v578 = vunpack.c.l.b16 %v298
      %v579 = vunpack.c.l.b16 %v299
      %v580 = vunpack.c.l.b16 %v300
      %v581 = vunpack.c.l.b16 %v301
      %v582 = vunpack.c.l.b16 %v302
      %v583 = vunpack.c.l.b16 %v303
      %v584 = vunpack.c.l.b16 %v304
      %v585 = vunpack.c.l.b16 %v305
      %v586 = vunpack.c.l.b16 %v306
      %v587 = vunpack.c.l.b16 %v307
      %v588 = vunpack.c.l.b16 %v308
      %v589 = vpack.c.b16 %v573, %v573
      %v590 = vpack.c.b16 %v574, %v574
      %v591 = vpack.c.b16 %v575, %v575
      %v592 = vpack.c.b16 %v576, %v576
      %v593 = vpack.c.b16 %v577, %v577
      %v594 = vpack.c.b16 %v578, %v578
      %v595 = vpack.c.b16 %v579, %v579
      %v596 = vpack.c.b16 %v580, %v580
      %v597 = vpack.c.b16 %v581, %v581
      %v598 = vpack.c.b16 %v582, %v582
      %v599 = vpack.c.b16 %v583, %v583
      %v600 = vpack.c.b16 %v584, %v584
      %v601 = vpack.c.b16 %v585, %v585
      %v602 = vpack.c.b16 %v586, %v586
      %v603 = vpack.c.b16 %v587, %v587
      %v604 = vpack.c.b16 %v588, %v588
      %vm605 = vsmask.f32 7424
      %v607 = vshrl.u32 %v525, 16
      %v609 = vshll.u32 %v525, 16
      %v611 = vrot.slane %v609, 1
      %v612 = vor.u32 %v607, %v611
      %v614 = vshll.u32 %v589, 16
      %v616 = vrot.slane %v614, 1
      %v617 = vsel %vm605, %v612, %v616
      %v619 = vshrl.u32 %v526, 16
      %v621 = vshll.u32 %v526, 16
      %v623 = vrot.slane %v621, 1
      %v624 = vor.u32 %v619, %v623
      %v626 = vshll.u32 %v590, 16
      %v628 = vrot.slane %v626, 1
      %v629 = vsel %vm605, %v624, %v628
      %v631 = vshrl.u32 %v527, 16
      %v633 = vshll.u32 %v527, 16
      %v635 = vrot.slane %v633, 1
      %v636 = vor.u32 %v631, %v635
      %v638 = vshll.u32 %v591, 16
      %v640 = vrot.slane %v638, 1
      %v641 = vsel %vm605, %v636, %v640
      %v643 = vshrl.u32 %v528, 16
      %v645 = vshll.u32 %v528, 16
      %v647 = vrot.slane %v645, 1
      %v648 = vor.u32 %v643, %v647
      %v650 = vshll.u32 %v592, 16
      %v652 = vrot.slane %v650, 1
      %v653 = vsel %vm605, %v648, %v652
      %v655 = vshrl.u32 %v529, 16
      %v657 = vshll.u32 %v529, 16
      %v659 = vrot.slane %v657, 1
      %v660 = vor.u32 %v655, %v659
      %v662 = vshll.u32 %v593, 16
      %v664 = vrot.slane %v662, 1
      %v665 = vsel %vm605, %v660, %v664
      %v667 = vshrl.u32 %v530, 16
      %v669 = vshll.u32 %v530, 16
      %v671 = vrot.slane %v669, 1
      %v672 = vor.u32 %v667, %v671
      %v674 = vshll.u32 %v594, 16
      %v676 = vrot.slane %v674, 1
      %v677 = vsel %vm605, %v672, %v676
      %v679 = vshrl.u32 %v531, 16
      %v681 = vshll.u32 %v531, 16
      %v683 = vrot.slane %v681, 1
      %v684 = vor.u32 %v679, %v683
      %v686 = vshll.u32 %v595, 16
      %v688 = vrot.slane %v686, 1
      %v689 = vsel %vm605, %v684, %v688
      %v691 = vshrl.u32 %v532, 16
      %v693 = vshll.u32 %v532, 16
      %v695 = vrot.slane %v693, 1
      %v696 = vor.u32 %v691, %v695
      %v698 = vshll.u32 %v596, 16
      %v700 = vrot.slane %v698, 1
      %v701 = vsel %vm605, %v696, %v700
      %v703 = vshrl.u32 %v533, 16
      %v705 = vshll.u32 %v533, 16
      %v707 = vrot.slane %v705, 1
      %v708 = vor.u32 %v703, %v707
      %v710 = vshll.u32 %v597, 16
      %v712 = vrot.slane %v710, 1
      %v713 = vsel %vm605, %v708, %v712
      %v715 = vshrl.u32 %v534, 16
      %v717 = vshll.u32 %v534, 16
      %v719 = vrot.slane %v717, 1
      %v720 = vor.u32 %v715, %v719
      %v722 = vshll.u32 %v598, 16
      %v724 = vrot.slane %v722, 1
      %v725 = vsel %vm605, %v720, %v724
      %v727 = vshrl.u32 %v535, 16
      %v729 = vshll.u32 %v535, 16
      %v731 = vrot.slane %v729, 1
      %v732 = vor.u32 %v727, %v731
      %v734 = vshll.u32 %v599, 16
      %v736 = vrot.slane %v734, 1
      %v737 = vsel %vm605, %v732, %v736
      %v739 = vshrl.u32 %v536, 16
      %v741 = vshll.u32 %v536, 16
      %v743 = vrot.slane %v741, 1
      %v744 = vor.u32 %v739, %v743
      %v746 = vshll.u32 %v600, 16
      %v748 = vrot.slane %v746, 1
      %v749 = vsel %vm605, %v744, %v748
      %v751 = vshrl.u32 %v537, 16
      %v753 = vshll.u32 %v537, 16
      %v755 = vrot.slane %v753, 1
      %v756 = vor.u32 %v751, %v755
      %v758 = vshll.u32 %v601, 16
      %v760 = vrot.slane %v758, 1
      %v761 = vsel %vm605, %v756, %v760
      %v763 = vshrl.u32 %v538, 16
      %v765 = vshll.u32 %v538, 16
      %v767 = vrot.slane %v765, 1
      %v768 = vor.u32 %v763, %v767
      %v770 = vshll.u32 %v602, 16
      %v772 = vrot.slane %v770, 1
      %v773 = vsel %vm605, %v768, %v772
      %v775 = vshrl.u32 %v539, 16
      %v777 = vshll.u32 %v539, 16
      %v779 = vrot.slane %v777, 1
      %v780 = vor.u32 %v775, %v779
      %v782 = vshll.u32 %v603, 16
      %v784 = vrot.slane %v782, 1
      %v785 = vsel %vm605, %v780, %v784
      %v787 = vshrl.u32 %v540, 16
      %v789 = vshll.u32 %v540, 16
      %v791 = vrot.slane %v789, 1
      %v792 = vor.u32 %v787, %v791
      %v794 = vshll.u32 %v604, 16
      %v796 = vrot.slane %v794, 1
      %v797 = vsel %vm605, %v792, %v796
      %v830 = vunpack.c.l.b16 %v309
      %v831 = vunpack.c.l.b16 %v310
      %v832 = vunpack.c.l.b16 %v311
      %v833 = vunpack.c.l.b16 %v312
      %v834 = vunpack.c.l.b16 %v313
      %v835 = vunpack.c.l.b16 %v314
      %v836 = vunpack.c.l.b16 %v315
      %v837 = vunpack.c.l.b16 %v316
      %v838 = vunpack.c.l.b16 %v317
      %v839 = vunpack.c.l.b16 %v318
      %v840 = vunpack.c.l.b16 %v319
      %v841 = vunpack.c.l.b16 %v320
      %v842 = vunpack.c.l.b16 %v321
      %v843 = vunpack.c.l.b16 %v322
      %v844 = vunpack.c.l.b16 %v323
      %v845 = vunpack.c.l.b16 %v324
      %v846 = vpack.c.b16 %v494, %v830
      %v847 = vpack.c.b16 %v496, %v831
      %v848 = vpack.c.b16 %v498, %v832
      %v849 = vpack.c.b16 %v500, %v833
      %v850 = vpack.c.b16 %v502, %v834
      %v851 = vpack.c.b16 %v504, %v835
      %v852 = vpack.c.b16 %v506, %v836
      %v853 = vpack.c.b16 %v508, %v837
      %v854 = vpack.c.b16 %v510, %v838
      %v855 = vpack.c.b16 %v512, %v839
      %v856 = vpack.c.b16 %v514, %v840
      %v857 = vpack.c.b16 %v516, %v841
      %v858 = vpack.c.b16 %v518, %v842
      %v859 = vpack.c.b16 %v520, %v843
      %v860 = vpack.c.b16 %v522, %v844
      %v861 = vpack.c.b16 %v524, %v845
      %vm862 = vcmask 1046528
      %v863 = vrot.slane %v846, 1
      %v864 = vrot.slane %v589, 1
      %v865 = vsel %vm862, %v863, %v864
      %v866 = vrot.slane %v847, 1
      %v867 = vrot.slane %v590, 1
      %v868 = vsel %vm862, %v866, %v867
      %v869 = vrot.slane %v848, 1
      %v870 = vrot.slane %v591, 1
      %v871 = vsel %vm862, %v869, %v870
      %v872 = vrot.slane %v849, 1
      %v873 = vrot.slane %v592, 1
      %v874 = vsel %vm862, %v872, %v873
      %v875 = vrot.slane %v850, 1
      %v876 = vrot.slane %v593, 1
      %v877 = vsel %vm862, %v875, %v876
      %v878 = vrot.slane %v851, 1
      %v879 = vrot.slane %v594, 1
      %v880 = vsel %vm862, %v878, %v879
      %v881 = vrot.slane %v852, 1
      %v882 = vrot.slane %v595, 1
      %v883 = vsel %vm862, %v881, %v882
      %v884 = vrot.slane %v853, 1
      %v885 = vrot.slane %v596, 1
      %v886 = vsel %vm862, %v884, %v885
      %v887 = vrot.slane %v854, 1
      %v888 = vrot.slane %v597, 1
      %v889 = vsel %vm862, %v887, %v888
      %v890 = vrot.slane %v855, 1
      %v891 = vrot.slane %v598, 1
      %v892 = vsel %vm862, %v890, %v891
      %v893 = vrot.slane %v856, 1
      %v894 = vrot.slane %v599, 1
      %v895 = vsel %vm862, %v893, %v894
      %v896 = vrot.slane %v857, 1
      %v897 = vrot.slane %v600, 1
      %v898 = vsel %vm862, %v896, %v897
      %v899 = vrot.slane %v858, 1
      %v900 = vrot.slane %v601, 1
      %v901 = vsel %vm862, %v899, %v900
      %v902 = vrot.slane %v859, 1
      %v903 = vrot.slane %v602, 1
      %v904 = vsel %vm862, %v902, %v903
      %v905 = vrot.slane %v860, 1
      %v906 = vrot.slane %v603, 1
      %v907 = vsel %vm862, %v905, %v906
      %v908 = vrot.slane %v861, 1
      %v909 = vrot.slane %v604, 1
      %v910 = vsel %vm862, %v908, %v909
      %v959 = vunpack.c.l.b16 %v329
      %v960 = vunpack.c.l.b16 %v330
      %v961 = vunpack.c.l.b16 %v331
      %v962 = vunpack.c.l.b16 %v332
      %v963 = vunpack.c.l.b16 %v333
      %v964 = vunpack.c.l.b16 %v334
      %v965 = vunpack.c.l.b16 %v335
      %v966 = vunpack.c.l.b16 %v336
      %v967 = vunpack.c.l.b16 %v337
      %v968 = vunpack.c.l.b16 %v338
      %v969 = vunpack.c.l.b16 %v339
      %v970 = vunpack.c.l.b16 %v340
      %v971 = vunpack.c.l.b16 %v341
      %v972 = vunpack.c.l.b16 %v342
      %v973 = vunpack.c.l.b16 %v343
      %v974 = vunpack.c.l.b16 %v344
      %v975 = vunpack.c.l.b16 %v345
      %v976 = vunpack.c.l.b16 %v346
      %v977 = vunpack.c.l.b16 %v347
      %v978 = vunpack.c.l.b16 %v348
      %v979 = vunpack.c.l.b16 %v349
      %v980 = vunpack.c.l.b16 %v350
      %v981 = vunpack.c.l.b16 %v351
      %v982 = vunpack.c.l.b16 %v352
      %v983 = vunpack.c.l.b16 %v353
      %v984 = vunpack.c.l.b16 %v354
      %v985 = vunpack.c.l.b16 %v355
      %v986 = vunpack.c.l.b16 %v356
      %v987 = vunpack.c.l.b16 %v357
      %v988 = vunpack.c.l.b16 %v358
      %v989 = vunpack.c.l.b16 %v359
      %v990 = vunpack.c.l.b16 %v360
      %v991 = vpack.c.b16 %v960, %v959
      %v992 = vpack.c.b16 %v962, %v961
      %v993 = vpack.c.b16 %v964, %v963
      %v994 = vpack.c.b16 %v966, %v965
      %v995 = vpack.c.b16 %v968, %v967
      %v996 = vpack.c.b16 %v970, %v969
      %v997 = vpack.c.b16 %v972, %v971
      %v998 = vpack.c.b16 %v974, %v973
      %v999 = vpack.c.b16 %v976, %v975
      %v1000 = vpack.c.b16 %v978, %v977
      %v1001 = vpack.c.b16 %v980, %v979
      %v1002 = vpack.c.b16 %v982, %v981
      %v1003 = vpack.c.b16 %v984, %v983
      %v1004 = vpack.c.b16 %v986, %v985
      %v1005 = vpack.c.b16 %v988, %v987
      %v1006 = vpack.c.b16 %v990, %v989
      %v1039 = vunpack.c.l.b16 %v361
      %v1040 = vunpack.c.l.b16 %v362
      %v1041 = vunpack.c.l.b16 %v363
      %v1042 = vunpack.c.l.b16 %v364
      %v1043 = vunpack.c.l.b16 %v365
      %v1044 = vunpack.c.l.b16 %v366
      %v1045 = vunpack.c.l.b16 %v367
      %v1046 = vunpack.c.l.b16 %v368
      %v1047 = vunpack.c.l.b16 %v369
      %v1048 = vunpack.c.l.b16 %v370
      %v1049 = vunpack.c.l.b16 %v371
      %v1050 = vunpack.c.l.b16 %v372
      %v1051 = vunpack.c.l.b16 %v373
      %v1052 = vunpack.c.l.b16 %v374
      %v1053 = vunpack.c.l.b16 %v375
      %v1054 = vunpack.c.l.b16 %v376
      %v1055 = vpack.c.b16 %v1039, %v1039
      %v1056 = vpack.c.b16 %v1040, %v1040
      %v1057 = vpack.c.b16 %v1041, %v1041
      %v1058 = vpack.c.b16 %v1042, %v1042
      %v1059 = vpack.c.b16 %v1043, %v1043
      %v1060 = vpack.c.b16 %v1044, %v1044
      %v1061 = vpack.c.b16 %v1045, %v1045
      %v1062 = vpack.c.b16 %v1046, %v1046
      %v1063 = vpack.c.b16 %v1047, %v1047
      %v1064 = vpack.c.b16 %v1048, %v1048
      %v1065 = vpack.c.b16 %v1049, %v1049
      %v1066 = vpack.c.b16 %v1050, %v1050
      %v1067 = vpack.c.b16 %v1051, %v1051
      %v1068 = vpack.c.b16 %v1052, %v1052
      %v1069 = vpack.c.b16 %v1053, %v1053
      %v1070 = vpack.c.b16 %v1054, %v1054
      %v1072 = vshrl.u32 %v991, 16
      %v1074 = vshll.u32 %v991, 16
      %v1076 = vrot.slane %v1074, 1
      %v1077 = vor.u32 %v1072, %v1076
      %v1079 = vshll.u32 %v1055, 16
      %v1081 = vrot.slane %v1079, 1
      %v1082 = vsel %vm605, %v1077, %v1081
      %v1084 = vshrl.u32 %v992, 16
      %v1086 = vshll.u32 %v992, 16
      %v1088 = vrot.slane %v1086, 1
      %v1089 = vor.u32 %v1084, %v1088
      %v1091 = vshll.u32 %v1056, 16
      %v1093 = vrot.slane %v1091, 1
      %v1094 = vsel %vm605, %v1089, %v1093
      %v1096 = vshrl.u32 %v993, 16
      %v1098 = vshll.u32 %v993, 16
      %v1100 = vrot.slane %v1098, 1
      %v1101 = vor.u32 %v1096, %v1100
      %v1103 = vshll.u32 %v1057, 16
      %v1105 = vrot.slane %v1103, 1
      %v1106 = vsel %vm605, %v1101, %v1105
      %v1108 = vshrl.u32 %v994, 16
      %v1110 = vshll.u32 %v994, 16
      %v1112 = vrot.slane %v1110, 1
      %v1113 = vor.u32 %v1108, %v1112
      %v1115 = vshll.u32 %v1058, 16
      %v1117 = vrot.slane %v1115, 1
      %v1118 = vsel %vm605, %v1113, %v1117
      %v1120 = vshrl.u32 %v995, 16
      %v1122 = vshll.u32 %v995, 16
      %v1124 = vrot.slane %v1122, 1
      %v1125 = vor.u32 %v1120, %v1124
      %v1127 = vshll.u32 %v1059, 16
      %v1129 = vrot.slane %v1127, 1
      %v1130 = vsel %vm605, %v1125, %v1129
      %v1132 = vshrl.u32 %v996, 16
      %v1134 = vshll.u32 %v996, 16
      %v1136 = vrot.slane %v1134, 1
      %v1137 = vor.u32 %v1132, %v1136
      %v1139 = vshll.u32 %v1060, 16
      %v1141 = vrot.slane %v1139, 1
      %v1142 = vsel %vm605, %v1137, %v1141
      %v1144 = vshrl.u32 %v997, 16
      %v1146 = vshll.u32 %v997, 16
      %v1148 = vrot.slane %v1146, 1
      %v1149 = vor.u32 %v1144, %v1148
      %v1151 = vshll.u32 %v1061, 16
      %v1153 = vrot.slane %v1151, 1
      %v1154 = vsel %vm605, %v1149, %v1153
      %v1156 = vshrl.u32 %v998, 16
      %v1158 = vshll.u32 %v998, 16
      %v1160 = vrot.slane %v1158, 1
      %v1161 = vor.u32 %v1156, %v1160
      %v1163 = vshll.u32 %v1062, 16
      %v1165 = vrot.slane %v1163, 1
      %v1166 = vsel %vm605, %v1161, %v1165
      %v1168 = vshrl.u32 %v999, 16
      %v1170 = vshll.u32 %v999, 16
      %v1172 = vrot.slane %v1170, 1
      %v1173 = vor.u32 %v1168, %v1172
      %v1175 = vshll.u32 %v1063, 16
      %v1177 = vrot.slane %v1175, 1
      %v1178 = vsel %vm605, %v1173, %v1177
      %v1180 = vshrl.u32 %v1000, 16
      %v1182 = vshll.u32 %v1000, 16
      %v1184 = vrot.slane %v1182, 1
      %v1185 = vor.u32 %v1180, %v1184
      %v1187 = vshll.u32 %v1064, 16
      %v1189 = vrot.slane %v1187, 1
      %v1190 = vsel %vm605, %v1185, %v1189
      %v1192 = vshrl.u32 %v1001, 16
      %v1194 = vshll.u32 %v1001, 16
      %v1196 = vrot.slane %v1194, 1
      %v1197 = vor.u32 %v1192, %v1196
      %v1199 = vshll.u32 %v1065, 16
      %v1201 = vrot.slane %v1199, 1
      %v1202 = vsel %vm605, %v1197, %v1201
      %v1204 = vshrl.u32 %v1002, 16
      %v1206 = vshll.u32 %v1002, 16
      %v1208 = vrot.slane %v1206, 1
      %v1209 = vor.u32 %v1204, %v1208
      %v1211 = vshll.u32 %v1066, 16
      %v1213 = vrot.slane %v1211, 1
      %v1214 = vsel %vm605, %v1209, %v1213
      %v1216 = vshrl.u32 %v1003, 16
      %v1218 = vshll.u32 %v1003, 16
      %v1220 = vrot.slane %v1218, 1
      %v1221 = vor.u32 %v1216, %v1220
      %v1223 = vshll.u32 %v1067, 16
      %v1225 = vrot.slane %v1223, 1
      %v1226 = vsel %vm605, %v1221, %v1225
      %v1228 = vshrl.u32 %v1004, 16
      %v1230 = vshll.u32 %v1004, 16
      %v1232 = vrot.slane %v1230, 1
      %v1233 = vor.u32 %v1228, %v1232
      %v1235 = vshll.u32 %v1068, 16
      %v1237 = vrot.slane %v1235, 1
      %v1238 = vsel %vm605, %v1233, %v1237
      %v1240 = vshrl.u32 %v1005, 16
      %v1242 = vshll.u32 %v1005, 16
      %v1244 = vrot.slane %v1242, 1
      %v1245 = vor.u32 %v1240, %v1244
      %v1247 = vshll.u32 %v1069, 16
      %v1249 = vrot.slane %v1247, 1
      %v1250 = vsel %vm605, %v1245, %v1249
      %v1252 = vshrl.u32 %v1006, 16
      %v1254 = vshll.u32 %v1006, 16
      %v1256 = vrot.slane %v1254, 1
      %v1257 = vor.u32 %v1252, %v1256
      %v1259 = vshll.u32 %v1070, 16
      %v1261 = vrot.slane %v1259, 1
      %v1262 = vsel %vm605, %v1257, %v1261
      %v1295 = vunpack.c.l.b16 %v377
      %v1296 = vunpack.c.l.b16 %v378
      %v1297 = vunpack.c.l.b16 %v379
      %v1298 = vunpack.c.l.b16 %v380
      %v1299 = vunpack.c.l.b16 %v381
      %v1300 = vunpack.c.l.b16 %v382
      %v1301 = vunpack.c.l.b16 %v383
      %v1302 = vunpack.c.l.b16 %v384
      %v1303 = vunpack.c.l.b16 %v385
      %v1304 = vunpack.c.l.b16 %v386
      %v1305 = vunpack.c.l.b16 %v387
      %v1306 = vunpack.c.l.b16 %v388
      %v1307 = vunpack.c.l.b16 %v389
      %v1308 = vunpack.c.l.b16 %v390
      %v1309 = vunpack.c.l.b16 %v391
      %v1310 = vunpack.c.l.b16 %v392
      %v1311 = vpack.c.b16 %v960, %v1295
      %v1312 = vpack.c.b16 %v962, %v1296
      %v1313 = vpack.c.b16 %v964, %v1297
      %v1314 = vpack.c.b16 %v966, %v1298
      %v1315 = vpack.c.b16 %v968, %v1299
      %v1316 = vpack.c.b16 %v970, %v1300
      %v1317 = vpack.c.b16 %v972, %v1301
      %v1318 = vpack.c.b16 %v974, %v1302
      %v1319 = vpack.c.b16 %v976, %v1303
      %v1320 = vpack.c.b16 %v978, %v1304
      %v1321 = vpack.c.b16 %v980, %v1305
      %v1322 = vpack.c.b16 %v982, %v1306
      %v1323 = vpack.c.b16 %v984, %v1307
      %v1324 = vpack.c.b16 %v986, %v1308
      %v1325 = vpack.c.b16 %v988, %v1309
      %v1326 = vpack.c.b16 %v990, %v1310
      %v1327 = vrot.slane %v1311, 1
      %v1328 = vrot.slane %v1055, 1
      %v1329 = vsel %vm862, %v1327, %v1328
      %v1330 = vrot.slane %v1312, 1
      %v1331 = vrot.slane %v1056, 1
      %v1332 = vsel %vm862, %v1330, %v1331
      %v1333 = vrot.slane %v1313, 1
      %v1334 = vrot.slane %v1057, 1
      %v1335 = vsel %vm862, %v1333, %v1334
      %v1336 = vrot.slane %v1314, 1
      %v1337 = vrot.slane %v1058, 1
      %v1338 = vsel %vm862, %v1336, %v1337
      %v1339 = vrot.slane %v1315, 1
      %v1340 = vrot.slane %v1059, 1
      %v1341 = vsel %vm862, %v1339, %v1340
      %v1342 = vrot.slane %v1316, 1
      %v1343 = vrot.slane %v1060, 1
      %v1344 = vsel %vm862, %v1342, %v1343
      %v1345 = vrot.slane %v1317, 1
      %v1346 = vrot.slane %v1061, 1
      %v1347 = vsel %vm862, %v1345, %v1346
      %v1348 = vrot.slane %v1318, 1
      %v1349 = vrot.slane %v1062, 1
      %v1350 = vsel %vm862, %v1348, %v1349
      %v1351 = vrot.slane %v1319, 1
      %v1352 = vrot.slane %v1063, 1
      %v1353 = vsel %vm862, %v1351, %v1352
      %v1354 = vrot.slane %v1320, 1
      %v1355 = vrot.slane %v1064, 1
      %v1356 = vsel %vm862, %v1354, %v1355
      %v1357 = vrot.slane %v1321, 1
      %v1358 = vrot.slane %v1065, 1
      %v1359 = vsel %vm862, %v1357, %v1358
      %v1360 = vrot.slane %v1322, 1
      %v1361 = vrot.slane %v1066, 1
      %v1362 = vsel %vm862, %v1360, %v1361
      %v1363 = vrot.slane %v1323, 1
      %v1364 = vrot.slane %v1067, 1
      %v1365 = vsel %vm862, %v1363, %v1364
      %v1366 = vrot.slane %v1324, 1
      %v1367 = vrot.slane %v1068, 1
      %v1368 = vsel %vm862, %v1366, %v1367
      %v1369 = vrot.slane %v1325, 1
      %v1370 = vrot.slane %v1069, 1
      %v1371 = vsel %vm862, %v1369, %v1370
      %v1372 = vrot.slane %v1326, 1
      %v1373 = vrot.slane %v1070, 1
      %v1374 = vsel %vm862, %v1372, %v1373
      %v1423 = vunpack.c.l.b16 %v397
      %v1424 = vunpack.c.l.b16 %v398
      %v1425 = vunpack.c.l.b16 %v399
      %v1426 = vunpack.c.l.b16 %v400
      %v1427 = vunpack.c.l.b16 %v401
      %v1428 = vunpack.c.l.b16 %v402
      %v1429 = vunpack.c.l.b16 %v403
      %v1430 = vunpack.c.l.b16 %v404
      %v1431 = vunpack.c.l.b16 %v405
      %v1432 = vunpack.c.l.b16 %v406
      %v1433 = vunpack.c.l.b16 %v407
      %v1434 = vunpack.c.l.b16 %v408
      %v1435 = vunpack.c.l.b16 %v409
      %v1436 = vunpack.c.l.b16 %v410
      %v1437 = vunpack.c.l.b16 %v411
      %v1438 = vunpack.c.l.b16 %v412
      %v1439 = vunpack.c.l.b16 %v413
      %v1440 = vunpack.c.l.b16 %v414
      %v1441 = vunpack.c.l.b16 %v415
      %v1442 = vunpack.c.l.b16 %v416
      %v1443 = vunpack.c.l.b16 %v417
      %v1444 = vunpack.c.l.b16 %v418
      %v1445 = vunpack.c.l.b16 %v419
      %v1446 = vunpack.c.l.b16 %v420
      %v1447 = vunpack.c.l.b16 %v421
      %v1448 = vunpack.c.l.b16 %v422
      %v1449 = vunpack.c.l.b16 %v423
      %v1450 = vunpack.c.l.b16 %v424
      %v1451 = vunpack.c.l.b16 %v425
      %v1452 = vunpack.c.l.b16 %v426
      %v1453 = vunpack.c.l.b16 %v427
      %v1454 = vunpack.c.l.b16 %v428
      %v1455 = vpack.c.b16 %v1424, %v1423
      %v1456 = vpack.c.b16 %v1426, %v1425
      %v1457 = vpack.c.b16 %v1428, %v1427
      %v1458 = vpack.c.b16 %v1430, %v1429
      %v1459 = vpack.c.b16 %v1432, %v1431
      %v1460 = vpack.c.b16 %v1434, %v1433
      %v1461 = vpack.c.b16 %v1436, %v1435
      %v1462 = vpack.c.b16 %v1438, %v1437
      %v1463 = vpack.c.b16 %v1440, %v1439
      %v1464 = vpack.c.b16 %v1442, %v1441
      %v1465 = vpack.c.b16 %v1444, %v1443
      %v1466 = vpack.c.b16 %v1446, %v1445
      %v1467 = vpack.c.b16 %v1448, %v1447
      %v1468 = vpack.c.b16 %v1450, %v1449
      %v1469 = vpack.c.b16 %v1452, %v1451
      %v1470 = vpack.c.b16 %v1454, %v1453
      %v1503 = vunpack.c.l.b16 %v429
      %v1504 = vunpack.c.l.b16 %v430
      %v1505 = vunpack.c.l.b16 %v431
      %v1506 = vunpack.c.l.b16 %v432
      %v1507 = vunpack.c.l.b16 %v433
      %v1508 = vunpack.c.l.b16 %v434
      %v1509 = vunpack.c.l.b16 %v435
      %v1510 = vunpack.c.l.b16 %v436
      %v1511 = vunpack.c.l.b16 %v437
      %v1512 = vunpack.c.l.b16 %v438
      %v1513 = vunpack.c.l.b16 %v439
      %v1514 = vunpack.c.l.b16 %v440
      %v1515 = vunpack.c.l.b16 %v441
      %v1516 = vunpack.c.l.b16 %v442
      %v1517 = vunpack.c.l.b16 %v443
      %v1518 = vunpack.c.l.b16 %v444
      %v1519 = vpack.c.b16 %v1503, %v1503
      %v1520 = vpack.c.b16 %v1504, %v1504
      %v1521 = vpack.c.b16 %v1505, %v1505
      %v1522 = vpack.c.b16 %v1506, %v1506
      %v1523 = vpack.c.b16 %v1507, %v1507
      %v1524 = vpack.c.b16 %v1508, %v1508
      %v1525 = vpack.c.b16 %v1509, %v1509
      %v1526 = vpack.c.b16 %v1510, %v1510
      %v1527 = vpack.c.b16 %v1511, %v1511
      %v1528 = vpack.c.b16 %v1512, %v1512
      %v1529 = vpack.c.b16 %v1513, %v1513
      %v1530 = vpack.c.b16 %v1514, %v1514
      %v1531 = vpack.c.b16 %v1515, %v1515
      %v1532 = vpack.c.b16 %v1516, %v1516
      %v1533 = vpack.c.b16 %v1517, %v1517
      %v1534 = vpack.c.b16 %v1518, %v1518
      %v1536 = vshrl.u32 %v1455, 16
      %v1538 = vshll.u32 %v1455, 16
      %v1540 = vrot.slane %v1538, 1
      %v1541 = vor.u32 %v1536, %v1540
      %v1543 = vshll.u32 %v1519, 16
      %v1545 = vrot.slane %v1543, 1
      %v1546 = vsel %vm605, %v1541, %v1545
      %v1548 = vshrl.u32 %v1456, 16
      %v1550 = vshll.u32 %v1456, 16
      %v1552 = vrot.slane %v1550, 1
      %v1553 = vor.u32 %v1548, %v1552
      %v1555 = vshll.u32 %v1520, 16
      %v1557 = vrot.slane %v1555, 1
      %v1558 = vsel %vm605, %v1553, %v1557
      %v1560 = vshrl.u32 %v1457, 16
      %v1562 = vshll.u32 %v1457, 16
      %v1564 = vrot.slane %v1562, 1
      %v1565 = vor.u32 %v1560, %v1564
      %v1567 = vshll.u32 %v1521, 16
      %v1569 = vrot.slane %v1567, 1
      %v1570 = vsel %vm605, %v1565, %v1569
      %v1572 = vshrl.u32 %v1458, 16
      %v1574 = vshll.u32 %v1458, 16
      %v1576 = vrot.slane %v1574, 1
      %v1577 = vor.u32 %v1572, %v1576
      %v1579 = vshll.u32 %v1522, 16
      %v1581 = vrot.slane %v1579, 1
      %v1582 = vsel %vm605, %v1577, %v1581
      %v1584 = vshrl.u32 %v1459, 16
      %v1586 = vshll.u32 %v1459, 16
      %v1588 = vrot.slane %v1586, 1
      %v1589 = vor.u32 %v1584, %v1588
      %v1591 = vshll.u32 %v1523, 16
      %v1593 = vrot.slane %v1591, 1
      %v1594 = vsel %vm605, %v1589, %v1593
      %v1596 = vshrl.u32 %v1460, 16
      %v1598 = vshll.u32 %v1460, 16
      %v1600 = vrot.slane %v1598, 1
      %v1601 = vor.u32 %v1596, %v1600
      %v1603 = vshll.u32 %v1524, 16
      %v1605 = vrot.slane %v1603, 1
      %v1606 = vsel %vm605, %v1601, %v1605
      %v1608 = vshrl.u32 %v1461, 16
      %v1610 = vshll.u32 %v1461, 16
      %v1612 = vrot.slane %v1610, 1
      %v1613 = vor.u32 %v1608, %v1612
      %v1615 = vshll.u32 %v1525, 16
      %v1617 = vrot.slane %v1615, 1
      %v1618 = vsel %vm605, %v1613, %v1617
      %v1620 = vshrl.u32 %v1462, 16
      %v1622 = vshll.u32 %v1462, 16
      %v1624 = vrot.slane %v1622, 1
      %v1625 = vor.u32 %v1620, %v1624
      %v1627 = vshll.u32 %v1526, 16
      %v1629 = vrot.slane %v1627, 1
      %v1630 = vsel %vm605, %v1625, %v1629
      %v1632 = vshrl.u32 %v1463, 16
      %v1634 = vshll.u32 %v1463, 16
      %v1636 = vrot.slane %v1634, 1
      %v1637 = vor.u32 %v1632, %v1636
      %v1639 = vshll.u32 %v1527, 16
      %v1641 = vrot.slane %v1639, 1
      %v1642 = vsel %vm605, %v1637, %v1641
      %v1644 = vshrl.u32 %v1464, 16
      %v1646 = vshll.u32 %v1464, 16
      %v1648 = vrot.slane %v1646, 1
      %v1649 = vor.u32 %v1644, %v1648
      %v1651 = vshll.u32 %v1528, 16
      %v1653 = vrot.slane %v1651, 1
      %v1654 = vsel %vm605, %v1649, %v1653
      %v1656 = vshrl.u32 %v1465, 16
      %v1658 = vshll.u32 %v1465, 16
      %v1660 = vrot.slane %v1658, 1
      %v1661 = vor.u32 %v1656, %v1660
      %v1663 = vshll.u32 %v1529, 16
      %v1665 = vrot.slane %v1663, 1
      %v1666 = vsel %vm605, %v1661, %v1665
      %v1668 = vshrl.u32 %v1466, 16
      %v1670 = vshll.u32 %v1466, 16
      %v1672 = vrot.slane %v1670, 1
      %v1673 = vor.u32 %v1668, %v1672
      %v1675 = vshll.u32 %v1530, 16
      %v1677 = vrot.slane %v1675, 1
      %v1678 = vsel %vm605, %v1673, %v1677
      %v1680 = vshrl.u32 %v1467, 16
      %v1682 = vshll.u32 %v1467, 16
      %v1684 = vrot.slane %v1682, 1
      %v1685 = vor.u32 %v1680, %v1684
      %v1687 = vshll.u32 %v1531, 16
      %v1689 = vrot.slane %v1687, 1
      %v1690 = vsel %vm605, %v1685, %v1689
      %v1692 = vshrl.u32 %v1468, 16
      %v1694 = vshll.u32 %v1468, 16
      %v1696 = vrot.slane %v1694, 1
      %v1697 = vor.u32 %v1692, %v1696
      %v1699 = vshll.u32 %v1532, 16
      %v1701 = vrot.slane %v1699, 1
      %v1702 = vsel %vm605, %v1697, %v1701
      %v1704 = vshrl.u32 %v1469, 16
      %v1706 = vshll.u32 %v1469, 16
      %v1708 = vrot.slane %v1706, 1
      %v1709 = vor.u32 %v1704, %v1708
      %v1711 = vshll.u32 %v1533, 16
      %v1713 = vrot.slane %v1711, 1
      %v1714 = vsel %vm605, %v1709, %v1713
      %v1716 = vshrl.u32 %v1470, 16
      %v1718 = vshll.u32 %v1470, 16
      %v1720 = vrot.slane %v1718, 1
      %v1721 = vor.u32 %v1716, %v1720
      %v1723 = vshll.u32 %v1534, 16
      %v1725 = vrot.slane %v1723, 1
      %v1726 = vsel %vm605, %v1721, %v1725
      %v1759 = vunpack.c.l.b16 %v445
      %v1760 = vunpack.c.l.b16 %v446
      %v1761 = vunpack.c.l.b16 %v447
      %v1762 = vunpack.c.l.b16 %v448
      %v1763 = vunpack.c.l.b16 %v449
      %v1764 = vunpack.c.l.b16 %v450
      %v1765 = vunpack.c.l.b16 %v451
      %v1766 = vunpack.c.l.b16 %v452
      %v1767 = vunpack.c.l.b16 %v453
      %v1768 = vunpack.c.l.b16 %v454
      %v1769 = vunpack.c.l.b16 %v455
      %v1770 = vunpack.c.l.b16 %v456
      %v1771 = vunpack.c.l.b16 %v457
      %v1772 = vunpack.c.l.b16 %v458
      %v1773 = vunpack.c.l.b16 %v459
      %v1774 = vunpack.c.l.b16 %v460
      %v1775 = vpack.c.b16 %v1424, %v1759
      %v1776 = vpack.c.b16 %v1426, %v1760
      %v1777 = vpack.c.b16 %v1428, %v1761
      %v1778 = vpack.c.b16 %v1430, %v1762
      %v1779 = vpack.c.b16 %v1432, %v1763
      %v1780 = vpack.c.b16 %v1434, %v1764
      %v1781 = vpack.c.b16 %v1436, %v1765
      %v1782 = vpack.c.b16 %v1438, %v1766
      %v1783 = vpack.c.b16 %v1440, %v1767
      %v1784 = vpack.c.b16 %v1442, %v1768
      %v1785 = vpack.c.b16 %v1444, %v1769
      %v1786 = vpack.c.b16 %v1446, %v1770
      %v1787 = vpack.c.b16 %v1448, %v1771
      %v1788 = vpack.c.b16 %v1450, %v1772
      %v1789 = vpack.c.b16 %v1452, %v1773
      %v1790 = vpack.c.b16 %v1454, %v1774
      %v1791 = vrot.slane %v1775, 1
      %v1792 = vrot.slane %v1519, 1
      %v1793 = vsel %vm862, %v1791, %v1792
      %v1794 = vrot.slane %v1776, 1
      %v1795 = vrot.slane %v1520, 1
      %v1796 = vsel %vm862, %v1794, %v1795
      %v1797 = vrot.slane %v1777, 1
      %v1798 = vrot.slane %v1521, 1
      %v1799 = vsel %vm862, %v1797, %v1798
      %v1800 = vrot.slane %v1778, 1
      %v1801 = vrot.slane %v1522, 1
      %v1802 = vsel %vm862, %v1800, %v1801
      %v1803 = vrot.slane %v1779, 1
      %v1804 = vrot.slane %v1523, 1
      %v1805 = vsel %vm862, %v1803, %v1804
      %v1806 = vrot.slane %v1780, 1
      %v1807 = vrot.slane %v1524, 1
      %v1808 = vsel %vm862, %v1806, %v1807
      %v1809 = vrot.slane %v1781, 1
      %v1810 = vrot.slane %v1525, 1
      %v1811 = vsel %vm862, %v1809, %v1810
      %v1812 = vrot.slane %v1782, 1
      %v1813 = vrot.slane %v1526, 1
      %v1814 = vsel %vm862, %v1812, %v1813
      %v1815 = vrot.slane %v1783, 1
      %v1816 = vrot.slane %v1527, 1
      %v1817 = vsel %vm862, %v1815, %v1816
      %v1818 = vrot.slane %v1784, 1
      %v1819 = vrot.slane %v1528, 1
      %v1820 = vsel %vm862, %v1818, %v1819
      %v1821 = vrot.slane %v1785, 1
      %v1822 = vrot.slane %v1529, 1
      %v1823 = vsel %vm862, %v1821, %v1822
      %v1824 = vrot.slane %v1786, 1
      %v1825 = vrot.slane %v1530, 1
      %v1826 = vsel %vm862, %v1824, %v1825
      %v1827 = vrot.slane %v1787, 1
      %v1828 = vrot.slane %v1531, 1
      %v1829 = vsel %vm862, %v1827, %v1828
      %v1830 = vrot.slane %v1788, 1
      %v1831 = vrot.slane %v1532, 1
      %v1832 = vsel %vm862, %v1830, %v1831
      %v1833 = vrot.slane %v1789, 1
      %v1834 = vrot.slane %v1533, 1
      %v1835 = vsel %vm862, %v1833, %v1834
      %v1836 = vrot.slane %v1790, 1
      %v1837 = vrot.slane %v1534, 1
      %v1838 = vsel %vm862, %v1836, %v1837
      %v1855 = vld [vmem:[%s1] sm:$0xf]
      %v1856 = vld [vmem:[%s1 + $0x4] sm:$0xf]
      %v1857 = vld [vmem:[%s1 + $0x8] sm:$0xf]
      %v1858 = vld [vmem:[%s1 + $0xc] sm:$0xf]
      %v1859 = vld [vmem:[%s1 + $0x10] sm:$0xf]
      %v1860 = vld [vmem:[%s1 + $0x14] sm:$0xf]
      %v1861 = vld [vmem:[%s1 + $0x18] sm:$0xf]
      %v1862 = vld [vmem:[%s1 + $0x1c] sm:$0xf]
      %v1863 = vld [vmem:[%s1 + $0x20] sm:$0xf]
      %v1864 = vld [vmem:[%s1 + $0x24] sm:$0xf]
      %v1865 = vld [vmem:[%s1 + $0x28] sm:$0xf]
      %v1866 = vld [vmem:[%s1 + $0x2c] sm:$0xf]
      %v1867 = vld [vmem:[%s1 + $0x30] sm:$0xf]
      %v1868 = vld [vmem:[%s1 + $0x34] sm:$0xf]
      %v1869 = vld [vmem:[%s1 + $0x38] sm:$0xf]
      %v1870 = vld [vmem:[%s1 + $0x3c] sm:$0xf]
      %v1871 = vld [vmem:[%s1 + $0x40] sm:$0xf]
      %v1872 = vld [vmem:[%s1 + $0x44] sm:$0xf]
      %v1873 = vld [vmem:[%s1 + $0x48] sm:$0xf]
      %v1874 = vld [vmem:[%s1 + $0x4c] sm:$0xf]
      %v1875 = vld [vmem:[%s1 + $0x50] sm:$0xf]
      %v1876 = vld [vmem:[%s1 + $0x54] sm:$0xf]
      %v1877 = vld [vmem:[%s1 + $0x58] sm:$0xf]
      %v1878 = vld [vmem:[%s1 + $0x5c] sm:$0xf]
      %v1879 = vld [vmem:[%s1 + $0x60] sm:$0xf]
      %v1880 = vld [vmem:[%s1 + $0x64] sm:$0xf]
      %v1881 = vld [vmem:[%s1 + $0x68] sm:$0xf]
      %v1882 = vld [vmem:[%s1 + $0x6c] sm:$0xf]
      %v1883 = vld [vmem:[%s1 + $0x70] sm:$0xf]
      %v1884 = vld [vmem:[%s1 + $0x74] sm:$0xf]
      %v1885 = vld [vmem:[%s1 + $0x78] sm:$0xf]
      %v1886 = vld [vmem:[%s1 + $0x7c] sm:$0xf]
      %v1887 = vld [vmem:[%s1 + $0x80] sm:$0xf]
      %v1888 = vld [vmem:[%s1 + $0x84] sm:$0xf]
      %v1889 = vld [vmem:[%s1 + $0x88] sm:$0xf]
      %v1890 = vld [vmem:[%s1 + $0x8c] sm:$0xf]
      %v1891 = vld [vmem:[%s1 + $0x90] sm:$0xf]
      %v1892 = vld [vmem:[%s1 + $0x94] sm:$0xf]
      %v1893 = vld [vmem:[%s1 + $0x98] sm:$0xf]
      %v1894 = vld [vmem:[%s1 + $0x9c] sm:$0xf]
      %v1895 = vld [vmem:[%s1 + $0xa0] sm:$0xf]
      %v1896 = vld [vmem:[%s1 + $0xa4] sm:$0xf]
      %v1897 = vld [vmem:[%s1 + $0xa8] sm:$0xf]
      %v1898 = vld [vmem:[%s1 + $0xac] sm:$0xf]
      %v1899 = vld [vmem:[%s1 + $0xb0] sm:$0xf]
      %v1900 = vld [vmem:[%s1 + $0xb4] sm:$0xf]
      %v1901 = vld [vmem:[%s1 + $0xb8] sm:$0xf]
      %v1902 = vld [vmem:[%s1 + $0xbc] sm:$0xf]
      %v1903 = vld [vmem:[%s1 + $0xc0] sm:$0xf]
      %v1904 = vld [vmem:[%s1 + $0xc4] sm:$0xf]
      %v1905 = vld [vmem:[%s1 + $0xc8] sm:$0xf]
      %v1906 = vld [vmem:[%s1 + $0xcc] sm:$0xf]
      %v1907 = vld [vmem:[%s1 + $0xd0] sm:$0xf]
      %v1908 = vld [vmem:[%s1 + $0xd4] sm:$0xf]
      %v1909 = vld [vmem:[%s1 + $0xd8] sm:$0xf]
      %v1910 = vld [vmem:[%s1 + $0xdc] sm:$0xf]
      %v1911 = vld [vmem:[%s1 + $0xe0] sm:$0xf]
      %v1912 = vld [vmem:[%s1 + $0xe4] sm:$0xf]
      %v1913 = vld [vmem:[%s1 + $0xe8] sm:$0xf]
      %v1914 = vld [vmem:[%s1 + $0xec] sm:$0xf]
      %v1915 = vld [vmem:[%s1 + $0xf0] sm:$0xf]
      %v1916 = vld [vmem:[%s1 + $0xf4] sm:$0xf]
      %v1917 = vld [vmem:[%s1 + $0xf8] sm:$0xf]
      %v1918 = vld [vmem:[%s1 + $0xfc] sm:$0xf]
      %v1919 = vld [vmem:[%s1 + $0x100] sm:$0xf]
      %v1920 = vld [vmem:[%s1 + $0x104] sm:$0xf]
      %v1921 = vld [vmem:[%s1 + $0x108] sm:$0xf]
      %v1922 = vld [vmem:[%s1 + $0x10c] sm:$0xf]
      %v1923 = vld [vmem:[%s1 + $0x110] sm:$0xf]
      %v1924 = vld [vmem:[%s1 + $0x114] sm:$0xf]
      %v1925 = vld [vmem:[%s1 + $0x118] sm:$0xf]
      %v1926 = vld [vmem:[%s1 + $0x11c] sm:$0xf]
      %v1927 = vld [vmem:[%s1 + $0x120] sm:$0xf]
      %v1928 = vld [vmem:[%s1 + $0x124] sm:$0xf]
      %v1929 = vld [vmem:[%s1 + $0x128] sm:$0xf]
      %v1930 = vld [vmem:[%s1 + $0x12c] sm:$0xf]
      %v1931 = vld [vmem:[%s1 + $0x130] sm:$0xf]
      %v1932 = vld [vmem:[%s1 + $0x134] sm:$0xf]
      %v1933 = vld [vmem:[%s1 + $0x138] sm:$0xf]
      %v1934 = vld [vmem:[%s1 + $0x13c] sm:$0xf]
      %v1935 = vld [vmem:[%s1 + $0x140] sm:$0xf]
      %v1936 = vld [vmem:[%s1 + $0x144] sm:$0xf]
      %v1937 = vld [vmem:[%s1 + $0x148] sm:$0xf]
      %v1938 = vld [vmem:[%s1 + $0x14c] sm:$0xf]
      %v1939 = vld [vmem:[%s1 + $0x150] sm:$0xf]
      %v1940 = vld [vmem:[%s1 + $0x154] sm:$0xf]
      %v1941 = vld [vmem:[%s1 + $0x158] sm:$0xf]
      %v1942 = vld [vmem:[%s1 + $0x15c] sm:$0xf]
      %v1943 = vld [vmem:[%s1 + $0x160] sm:$0xf]
      %v1944 = vld [vmem:[%s1 + $0x164] sm:$0xf]
      %v1945 = vld [vmem:[%s1 + $0x168] sm:$0xf]
      %v1946 = vld [vmem:[%s1 + $0x16c] sm:$0xf]
      %v1947 = vld [vmem:[%s1 + $0x170] sm:$0xf]
      %v1948 = vld [vmem:[%s1 + $0x174] sm:$0xf]
      %v1949 = vld [vmem:[%s1 + $0x178] sm:$0xf]
      %v1950 = vld [vmem:[%s1 + $0x17c] sm:$0xf]
      %v1951 = vld [vmem:[%s1 + $0x180] sm:$0xf]
      %v1952 = vld [vmem:[%s1 + $0x184] sm:$0xf]
      %v1953 = vld [vmem:[%s1 + $0x188] sm:$0xf]
      %v1954 = vld [vmem:[%s1 + $0x18c] sm:$0xf]
      %v1955 = vld [vmem:[%s1 + $0x190] sm:$0xf]
      %v1956 = vld [vmem:[%s1 + $0x194] sm:$0xf]
      %v1957 = vld [vmem:[%s1 + $0x198] sm:$0xf]
      %v1958 = vld [vmem:[%s1 + $0x19c] sm:$0xf]
      %v1959 = vld [vmem:[%s1 + $0x1a0] sm:$0xf]
      %v1960 = vld [vmem:[%s1 + $0x1a4] sm:$0xf]
      %v1961 = vld [vmem:[%s1 + $0x1a8] sm:$0xf]
      %v1962 = vld [vmem:[%s1 + $0x1ac] sm:$0xf]
      %v1963 = vld [vmem:[%s1 + $0x1b0] sm:$0xf]
      %v1964 = vld [vmem:[%s1 + $0x1b4] sm:$0xf]
      %v1965 = vld [vmem:[%s1 + $0x1b8] sm:$0xf]
      %v1966 = vld [vmem:[%s1 + $0x1bc] sm:$0xf]
      %v1967 = vld [vmem:[%s1 + $0x1c0] sm:$0xf]
      %v1968 = vld [vmem:[%s1 + $0x1c4] sm:$0xf]
      %v1969 = vld [vmem:[%s1 + $0x1c8] sm:$0xf]
      %v1970 = vld [vmem:[%s1 + $0x1cc] sm:$0xf]
      %v1971 = vld [vmem:[%s1 + $0x1d0] sm:$0xf]
      %v1972 = vld [vmem:[%s1 + $0x1d4] sm:$0xf]
      %v1973 = vld [vmem:[%s1 + $0x1d8] sm:$0xf]
      %v1974 = vld [vmem:[%s1 + $0x1dc] sm:$0xf]
      %v1975 = vld [vmem:[%s1 + $0x1e0] sm:$0xf]
      %v1976 = vld [vmem:[%s1 + $0x1e4] sm:$0xf]
      %v1977 = vld [vmem:[%s1 + $0x1e8] sm:$0xf]
      %v1978 = vld [vmem:[%s1 + $0x1ec] sm:$0xf]
      %v1979 = vld [vmem:[%s1 + $0x1f0] sm:$0xf]
      %v1980 = vld [vmem:[%s1 + $0x1f4] sm:$0xf]
      %v1981 = vld [vmem:[%s1 + $0x1f8] sm:$0xf]
      %v1982 = vld [vmem:[%s1 + $0x1fc] sm:$0xf]
      %v1983 = vld [vmem:[%s1 + $0x200] sm:$0xf]
      %v1984 = vld [vmem:[%s1 + $0x204] sm:$0xf]
      %v1985 = vld [vmem:[%s1 + $0x208] sm:$0xf]
      %v1986 = vld [vmem:[%s1 + $0x20c] sm:$0xf]
      %v1987 = vld [vmem:[%s1 + $0x210] sm:$0xf]
      %v1988 = vld [vmem:[%s1 + $0x214] sm:$0xf]
      %v1989 = vld [vmem:[%s1 + $0x218] sm:$0xf]
      %v1990 = vld [vmem:[%s1 + $0x21c] sm:$0xf]
      %v1991 = vld [vmem:[%s1 + $0x220] sm:$0xf]
      %v1992 = vld [vmem:[%s1 + $0x224] sm:$0xf]
      %v1993 = vld [vmem:[%s1 + $0x228] sm:$0xf]
      %v1994 = vld [vmem:[%s1 + $0x22c] sm:$0xf]
      %v1995 = vld [vmem:[%s1 + $0x230] sm:$0xf]
      %v1996 = vld [vmem:[%s1 + $0x234] sm:$0xf]
      %v1997 = vld [vmem:[%s1 + $0x238] sm:$0xf]
      %v1998 = vld [vmem:[%s1 + $0x23c] sm:$0xf]
      %v1999 = vld [vmem:[%s2] sm:$0x1]
      %v2001 = vperm.slane %v1999, 0
      %v2147 = vunpack.c.l.b16 %v1855
      %v2148 = vunpack.c.l.b16 %v1856
      %v2149 = vunpack.c.l.b16 %v1857
      %v2150 = vunpack.c.l.b16 %v1858
      %v2151 = vunpack.c.l.b16 %v1859
      %v2152 = vunpack.c.l.b16 %v1860
      %v2153 = vunpack.c.l.b16 %v1861
      %v2154 = vunpack.c.l.b16 %v1862
      %v2155 = vunpack.c.l.b16 %v1863
      %v2156 = vunpack.c.l.b16 %v1864
      %v2157 = vunpack.c.l.b16 %v1865
      %v2158 = vunpack.c.l.b16 %v1866
      %v2159 = vunpack.c.l.b16 %v1867
      %v2160 = vunpack.c.l.b16 %v1868
      %v2161 = vunpack.c.l.b16 %v1869
      %v2162 = vunpack.c.l.b16 %v1870
      %v2163 = vunpack.c.l.b16 %v1871
      %v2164 = vunpack.c.l.b16 %v1872
      %v2165 = vunpack.c.l.b16 %v1873
      %v2166 = vunpack.c.l.b16 %v1874
      %v2167 = vunpack.c.l.b16 %v1875
      %v2168 = vunpack.c.l.b16 %v1876
      %v2169 = vunpack.c.l.b16 %v1877
      %v2170 = vunpack.c.l.b16 %v1878
      %v2171 = vunpack.c.l.b16 %v1879
      %v2172 = vunpack.c.l.b16 %v1880
      %v2173 = vunpack.c.l.b16 %v1881
      %v2174 = vunpack.c.l.b16 %v1882
      %v2175 = vunpack.c.l.b16 %v1883
      %v2176 = vunpack.c.l.b16 %v1884
      %v2177 = vunpack.c.l.b16 %v1885
      %v2178 = vunpack.c.l.b16 %v1886
      %v2179 = vunpack.c.l.b16 %v1887
      %v2180 = vunpack.c.l.b16 %v1888
      %v2181 = vunpack.c.l.b16 %v1889
      %v2182 = vunpack.c.l.b16 %v1890
      %v2183 = vunpack.c.l.b16 %v1891
      %v2184 = vunpack.c.l.b16 %v1892
      %v2185 = vunpack.c.l.b16 %v1893
      %v2186 = vunpack.c.l.b16 %v1894
      %v2187 = vunpack.c.l.b16 %v1895
      %v2188 = vunpack.c.l.b16 %v1896
      %v2189 = vunpack.c.l.b16 %v1897
      %v2190 = vunpack.c.l.b16 %v1898
      %v2191 = vunpack.c.l.b16 %v1899
      %v2192 = vunpack.c.l.b16 %v1900
      %v2193 = vunpack.c.l.b16 %v1901
      %v2194 = vunpack.c.l.b16 %v1902
      %v2195 = vunpack.c.l.b16 %v1903
      %v2196 = vunpack.c.l.b16 %v1904
      %v2197 = vunpack.c.l.b16 %v1905
      %v2198 = vunpack.c.l.b16 %v1906
      %v2199 = vunpack.c.l.b16 %v1907
      %v2200 = vunpack.c.l.b16 %v1908
      %v2201 = vunpack.c.l.b16 %v1909
      %v2202 = vunpack.c.l.b16 %v1910
      %v2203 = vunpack.c.l.b16 %v1911
      %v2204 = vunpack.c.l.b16 %v1912
      %v2205 = vunpack.c.l.b16 %v1913
      %v2206 = vunpack.c.l.b16 %v1914
      %v2207 = vunpack.c.l.b16 %v1915
      %v2208 = vunpack.c.l.b16 %v1916
      %v2209 = vunpack.c.l.b16 %v1917
      %v2210 = vunpack.c.l.b16 %v1918
      %v2211 = vunpack.c.l.b16 %v1919
      %v2212 = vunpack.c.l.b16 %v1920
      %v2213 = vunpack.c.l.b16 %v1921
      %v2214 = vunpack.c.l.b16 %v1922
      %v2215 = vunpack.c.l.b16 %v1923
      %v2216 = vunpack.c.l.b16 %v1924
      %v2217 = vunpack.c.l.b16 %v1925
      %v2218 = vunpack.c.l.b16 %v1926
      %v2219 = vunpack.c.l.b16 %v1927
      %v2220 = vunpack.c.l.b16 %v1928
      %v2221 = vunpack.c.l.b16 %v1929
      %v2222 = vunpack.c.l.b16 %v1930
      %v2223 = vunpack.c.l.b16 %v1931
      %v2224 = vunpack.c.l.b16 %v1932
      %v2225 = vunpack.c.l.b16 %v1933
      %v2226 = vunpack.c.l.b16 %v1934
      %v2227 = vunpack.c.l.b16 %v1935
      %v2228 = vunpack.c.l.b16 %v1936
      %v2229 = vunpack.c.l.b16 %v1937
      %v2230 = vunpack.c.l.b16 %v1938
      %v2231 = vunpack.c.l.b16 %v1939
      %v2232 = vunpack.c.l.b16 %v1940
      %v2233 = vunpack.c.l.b16 %v1941
      %v2234 = vunpack.c.l.b16 %v1942
      %v2235 = vunpack.c.l.b16 %v1943
      %v2236 = vunpack.c.l.b16 %v1944
      %v2237 = vunpack.c.l.b16 %v1945
      %v2238 = vunpack.c.l.b16 %v1946
      %v2239 = vunpack.c.l.b16 %v1947
      %v2240 = vunpack.c.l.b16 %v1948
      %v2241 = vunpack.c.l.b16 %v1949
      %v2242 = vunpack.c.l.b16 %v1950
      %v2243 = vunpack.c.l.b16 %v1951
      %v2244 = vunpack.c.l.b16 %v1952
      %v2245 = vunpack.c.l.b16 %v1953
      %v2246 = vunpack.c.l.b16 %v1954
      %v2247 = vunpack.c.l.b16 %v1955
      %v2248 = vunpack.c.l.b16 %v1956
      %v2249 = vunpack.c.l.b16 %v1957
      %v2250 = vunpack.c.l.b16 %v1958
      %v2251 = vunpack.c.l.b16 %v1959
      %v2252 = vunpack.c.l.b16 %v1960
      %v2253 = vunpack.c.l.b16 %v1961
      %v2254 = vunpack.c.l.b16 %v1962
      %v2255 = vunpack.c.l.b16 %v1963
      %v2256 = vunpack.c.l.b16 %v1964
      %v2257 = vunpack.c.l.b16 %v1965
      %v2258 = vunpack.c.l.b16 %v1966
      %v2259 = vunpack.c.l.b16 %v1967
      %v2260 = vunpack.c.l.b16 %v1968
      %v2261 = vunpack.c.l.b16 %v1969
      %v2262 = vunpack.c.l.b16 %v1970
      %v2263 = vunpack.c.l.b16 %v1971
      %v2264 = vunpack.c.l.b16 %v1972
      %v2265 = vunpack.c.l.b16 %v1973
      %v2266 = vunpack.c.l.b16 %v1974
      %v2267 = vunpack.c.l.b16 %v1975
      %v2268 = vunpack.c.l.b16 %v1976
      %v2269 = vunpack.c.l.b16 %v1977
      %v2270 = vunpack.c.l.b16 %v1978
      %v2271 = vunpack.c.l.b16 %v1979
      %v2272 = vunpack.c.l.b16 %v1980
      %v2273 = vunpack.c.l.b16 %v1981
      %v2274 = vunpack.c.l.b16 %v1982
      %v2275 = vunpack.c.l.b16 %v1983
      %v2276 = vunpack.c.l.b16 %v1984
      %v2277 = vunpack.c.l.b16 %v1985
      %v2278 = vunpack.c.l.b16 %v1986
      %v2279 = vunpack.c.l.b16 %v1987
      %v2280 = vunpack.c.l.b16 %v1988
      %v2281 = vunpack.c.l.b16 %v1989
      %v2282 = vunpack.c.l.b16 %v1990
      %v2283 = vunpack.c.l.b16 %v1991
      %v2284 = vunpack.c.l.b16 %v1992
      %v2285 = vunpack.c.l.b16 %v1993
      %v2286 = vunpack.c.l.b16 %v1994
      %v2287 = vunpack.c.l.b16 %v1995
      %v2288 = vunpack.c.l.b16 %v1996
      %v2289 = vunpack.c.l.b16 %v1997
      %v2290 = vunpack.c.l.b16 %v1998
      %v2291 = vpack.c.b16 %v2148, %v2147
      %v2292 = vpack.c.b16 %v2150, %v2149
      %v2293 = vpack.c.b16 %v2152, %v2151
      %v2294 = vpack.c.b16 %v2154, %v2153
      %v2295 = vpack.c.b16 %v2156, %v2155
      %v2296 = vpack.c.b16 %v2158, %v2157
      %v2297 = vpack.c.b16 %v2160, %v2159
      %v2298 = vpack.c.b16 %v2162, %v2161
      %v2299 = vpack.c.b16 %v2164, %v2163
      %v2300 = vpack.c.b16 %v2166, %v2165
      %v2301 = vpack.c.b16 %v2168, %v2167
      %v2302 = vpack.c.b16 %v2170, %v2169
      %v2303 = vpack.c.b16 %v2172, %v2171
      %v2304 = vpack.c.b16 %v2174, %v2173
      %v2305 = vpack.c.b16 %v2176, %v2175
      %v2306 = vpack.c.b16 %v2178, %v2177
      %v2307 = vpack.c.b16 %v2180, %v2179
      %v2308 = vpack.c.b16 %v2182, %v2181
      %v2309 = vpack.c.b16 %v2184, %v2183
      %v2310 = vpack.c.b16 %v2186, %v2185
      %v2311 = vpack.c.b16 %v2188, %v2187
      %v2312 = vpack.c.b16 %v2190, %v2189
      %v2313 = vpack.c.b16 %v2192, %v2191
      %v2314 = vpack.c.b16 %v2194, %v2193
      %v2315 = vpack.c.b16 %v2196, %v2195
      %v2316 = vpack.c.b16 %v2198, %v2197
      %v2317 = vpack.c.b16 %v2200, %v2199
      %v2318 = vpack.c.b16 %v2202, %v2201
      %v2319 = vpack.c.b16 %v2204, %v2203
      %v2320 = vpack.c.b16 %v2206, %v2205
      %v2321 = vpack.c.b16 %v2208, %v2207
      %v2322 = vpack.c.b16 %v2210, %v2209
      %v2323 = vpack.c.b16 %v2212, %v2211
      %v2324 = vpack.c.b16 %v2214, %v2213
      %v2325 = vpack.c.b16 %v2216, %v2215
      %v2326 = vpack.c.b16 %v2218, %v2217
      %v2327 = vpack.c.b16 %v2220, %v2219
      %v2328 = vpack.c.b16 %v2222, %v2221
      %v2329 = vpack.c.b16 %v2224, %v2223
      %v2330 = vpack.c.b16 %v2226, %v2225
      %v2331 = vpack.c.b16 %v2228, %v2227
      %v2332 = vpack.c.b16 %v2230, %v2229
      %v2333 = vpack.c.b16 %v2232, %v2231
      %v2334 = vpack.c.b16 %v2234, %v2233
      %v2335 = vpack.c.b16 %v2236, %v2235
      %v2336 = vpack.c.b16 %v2238, %v2237
      %v2337 = vpack.c.b16 %v2240, %v2239
      %v2338 = vpack.c.b16 %v2242, %v2241
      %v2339 = vpack.c.b16 %v2244, %v2243
      %v2340 = vpack.c.b16 %v2246, %v2245
      %v2341 = vpack.c.b16 %v2248, %v2247
      %v2342 = vpack.c.b16 %v2250, %v2249
      %v2343 = vpack.c.b16 %v2252, %v2251
      %v2344 = vpack.c.b16 %v2254, %v2253
      %v2345 = vpack.c.b16 %v2256, %v2255
      %v2346 = vpack.c.b16 %v2258, %v2257
      %v2347 = vpack.c.b16 %v2260, %v2259
      %v2348 = vpack.c.b16 %v2262, %v2261
      %v2349 = vpack.c.b16 %v2264, %v2263
      %v2350 = vpack.c.b16 %v2266, %v2265
      %v2351 = vpack.c.b16 %v2268, %v2267
      %v2352 = vpack.c.b16 %v2270, %v2269
      %v2353 = vpack.c.b16 %v2272, %v2271
      %v2354 = vpack.c.b16 %v2274, %v2273
      %v2355 = vpack.c.b16 %v2276, %v2275
      %v2356 = vpack.c.b16 %v2278, %v2277
      %v2357 = vpack.c.b16 %v2280, %v2279
      %v2358 = vpack.c.b16 %v2282, %v2281
      %v2359 = vpack.c.b16 %v2284, %v2283
      %v2360 = vpack.c.b16 %v2286, %v2285
      %v2361 = vpack.c.b16 %v2288, %v2287
      %v2362 = vpack.c.b16 %v2290, %v2289
      %2435 = vmatpush.bf16.msra.mxu0 %v2298
      %2436 = vmatpush.bf16.msra.mxu0 %v2297
      %2437 = vmatpush.bf16.msra.mxu0 %v2296
      %2438 = vmatpush.bf16.msra.mxu0 %v2295
      %2439 = vmatpush.bf16.msra.mxu0 %v2294
      %2440 = vmatpush.bf16.msra.mxu0 %v2293
      %2441 = vmatpush.bf16.msra.mxu0 %v2292
      %2442 = vmatpush.bf16.msra.mxu0 %v2291
      %2443 = vmatmul.bf16.gmra.mxu0 %v525
      %v2444 = vpop.f32.mrf.mxu0
      %v2445 = vadd.f32 %v2001, %v2444
      %v2446 = vpop.f32.mrf.mxu0
      %v2447 = vadd.f32 %v2001, %v2446
      %2448 = vmatmul.bf16.gmra.mxu0 %v526
      %v2449 = vpop.f32.mrf.mxu0
      %v2450 = vadd.f32 %v2001, %v2449
      %v2451 = vpop.f32.mrf.mxu0
      %v2452 = vadd.f32 %v2001, %v2451
      %2453 = vmatmul.bf16.gmra.mxu0 %v527
      %v2454 = vpop.f32.mrf.mxu0
      %v2455 = vadd.f32 %v2001, %v2454
      %v2456 = vpop.f32.mrf.mxu0
      %v2457 = vadd.f32 %v2001, %v2456
      %2458 = vmatmul.bf16.gmra.mxu0 %v528
      %v2459 = vpop.f32.mrf.mxu0
      %v2460 = vadd.f32 %v2001, %v2459
      %v2461 = vpop.f32.mrf.mxu0
      %v2462 = vadd.f32 %v2001, %v2461
      %2463 = vmatmul.bf16.gmra.mxu0 %v529
      %v2464 = vpop.f32.mrf.mxu0
      %v2465 = vadd.f32 %v2001, %v2464
      %v2466 = vpop.f32.mrf.mxu0
      %v2467 = vadd.f32 %v2001, %v2466
      %2468 = vmatmul.bf16.gmra.mxu0 %v530
      %v2469 = vpop.f32.mrf.mxu0
      %v2470 = vadd.f32 %v2001, %v2469
      %v2471 = vpop.f32.mrf.mxu0
      %v2472 = vadd.f32 %v2001, %v2471
      %2473 = vmatmul.bf16.gmra.mxu0 %v531
      %v2474 = vpop.f32.mrf.mxu0
      %v2475 = vadd.f32 %v2001, %v2474
      %v2476 = vpop.f32.mrf.mxu0
      %v2477 = vadd.f32 %v2001, %v2476
      %2478 = vmatmul.bf16.gmra.mxu0 %v532
      %v2479 = vpop.f32.mrf.mxu0
      %v2480 = vadd.f32 %v2001, %v2479
      %v2481 = vpop.f32.mrf.mxu0
      %v2482 = vadd.f32 %v2001, %v2481
      %2483 = vmatmul.bf16.gmra.mxu0 %v533
      %v2484 = vpop.f32.mrf.mxu0
      %v2485 = vadd.f32 %v2001, %v2484
      %v2486 = vpop.f32.mrf.mxu0
      %v2487 = vadd.f32 %v2001, %v2486
      %2488 = vmatmul.bf16.gmra.mxu0 %v534
      %v2489 = vpop.f32.mrf.mxu0
      %v2490 = vadd.f32 %v2001, %v2489
      %v2491 = vpop.f32.mrf.mxu0
      %v2492 = vadd.f32 %v2001, %v2491
      %2493 = vmatmul.bf16.gmra.mxu0 %v535
      %v2494 = vpop.f32.mrf.mxu0
      %v2495 = vadd.f32 %v2001, %v2494
      %v2496 = vpop.f32.mrf.mxu0
      %v2497 = vadd.f32 %v2001, %v2496
      %2498 = vmatmul.bf16.gmra.mxu0 %v536
      %v2499 = vpop.f32.mrf.mxu0
      %v2500 = vadd.f32 %v2001, %v2499
      %v2501 = vpop.f32.mrf.mxu0
      %v2502 = vadd.f32 %v2001, %v2501
      %2503 = vmatmul.bf16.gmra.mxu0 %v537
      %v2504 = vpop.f32.mrf.mxu0
      %v2505 = vadd.f32 %v2001, %v2504
      %v2506 = vpop.f32.mrf.mxu0
      %v2507 = vadd.f32 %v2001, %v2506
      %2508 = vmatmul.bf16.gmra.mxu0 %v538
      %v2509 = vpop.f32.mrf.mxu0
      %v2510 = vadd.f32 %v2001, %v2509
      %v2511 = vpop.f32.mrf.mxu0
      %v2512 = vadd.f32 %v2001, %v2511
      %2513 = vmatmul.bf16.gmra.mxu0 %v539
      %v2514 = vpop.f32.mrf.mxu0
      %v2515 = vadd.f32 %v2001, %v2514
      %v2516 = vpop.f32.mrf.mxu0
      %v2517 = vadd.f32 %v2001, %v2516
      %2518 = vmatmul.bf16.gmra.mxu0 %v540
      %v2519 = vpop.f32.mrf.mxu0
      %v2520 = vadd.f32 %v2001, %v2519
      %v2521 = vpop.f32.mrf.mxu0
      %v2522 = vadd.f32 %v2001, %v2521
      %2523 = vdwg.mxu0
      %2524 = vmatpush.bf16.msra.mxu0 %v2306
      %2525 = vmatpush.bf16.msra.mxu0 %v2305
      %2526 = vmatpush.bf16.msra.mxu0 %v2304
      %2527 = vmatpush.bf16.msra.mxu0 %v2303
      %2528 = vmatpush.bf16.msra.mxu0 %v2302
      %2529 = vmatpush.bf16.msra.mxu0 %v2301
      %2530 = vmatpush.bf16.msra.mxu0 %v2300
      %2531 = vmatpush.bf16.msra.mxu0 %v2299
      %2532 = vmatmul.bf16.gmra.mxu0 %v617
      %v2533 = vpop.f32.mrf.mxu0
      %v2534 = vadd.f32 %v2445, %v2533
      %v2535 = vpop.f32.mrf.mxu0
      %v2536 = vadd.f32 %v2447, %v2535
      %2537 = vmatmul.bf16.gmra.mxu0 %v629
      %v2538 = vpop.f32.mrf.mxu0
      %v2539 = vadd.f32 %v2450, %v2538
      %v2540 = vpop.f32.mrf.mxu0
      %v2541 = vadd.f32 %v2452, %v2540
      %2542 = vmatmul.bf16.gmra.mxu0 %v641
      %v2543 = vpop.f32.mrf.mxu0
      %v2544 = vadd.f32 %v2455, %v2543
      %v2545 = vpop.f32.mrf.mxu0
      %v2546 = vadd.f32 %v2457, %v2545
      %2547 = vmatmul.bf16.gmra.mxu0 %v653
      %v2548 = vpop.f32.mrf.mxu0
      %v2549 = vadd.f32 %v2460, %v2548
      %v2550 = vpop.f32.mrf.mxu0
      %v2551 = vadd.f32 %v2462, %v2550
      %2552 = vmatmul.bf16.gmra.mxu0 %v665
      %v2553 = vpop.f32.mrf.mxu0
      %v2554 = vadd.f32 %v2465, %v2553
      %v2555 = vpop.f32.mrf.mxu0
      %v2556 = vadd.f32 %v2467, %v2555
      %2557 = vmatmul.bf16.gmra.mxu0 %v677
      %v2558 = vpop.f32.mrf.mxu0
      %v2559 = vadd.f32 %v2470, %v2558
      %v2560 = vpop.f32.mrf.mxu0
      %v2561 = vadd.f32 %v2472, %v2560
      %2562 = vmatmul.bf16.gmra.mxu0 %v689
      %v2563 = vpop.f32.mrf.mxu0
      %v2564 = vadd.f32 %v2475, %v2563
      %v2565 = vpop.f32.mrf.mxu0
      %v2566 = vadd.f32 %v2477, %v2565
      %2567 = vmatmul.bf16.gmra.mxu0 %v701
      %v2568 = vpop.f32.mrf.mxu0
      %v2569 = vadd.f32 %v2480, %v2568
      %v2570 = vpop.f32.mrf.mxu0
      %v2571 = vadd.f32 %v2482, %v2570
      %2572 = vmatmul.bf16.gmra.mxu0 %v713
      %v2573 = vpop.f32.mrf.mxu0
      %v2574 = vadd.f32 %v2485, %v2573
      %v2575 = vpop.f32.mrf.mxu0
      %v2576 = vadd.f32 %v2487, %v2575
      %2577 = vmatmul.bf16.gmra.mxu0 %v725
      %v2578 = vpop.f32.mrf.mxu0
      %v2579 = vadd.f32 %v2490, %v2578
      %v2580 = vpop.f32.mrf.mxu0
      %v2581 = vadd.f32 %v2492, %v2580
      %2582 = vmatmul.bf16.gmra.mxu0 %v737
      %v2583 = vpop.f32.mrf.mxu0
      %v2584 = vadd.f32 %v2495, %v2583
      %v2585 = vpop.f32.mrf.mxu0
      %v2586 = vadd.f32 %v2497, %v2585
      %2587 = vmatmul.bf16.gmra.mxu0 %v749
      %v2588 = vpop.f32.mrf.mxu0
      %v2589 = vadd.f32 %v2500, %v2588
      %v2590 = vpop.f32.mrf.mxu0
      %v2591 = vadd.f32 %v2502, %v2590
      %2592 = vmatmul.bf16.gmra.mxu0 %v761
      %v2593 = vpop.f32.mrf.mxu0
      %v2594 = vadd.f32 %v2505, %v2593
      %v2595 = vpop.f32.mrf.mxu0
      %v2596 = vadd.f32 %v2507, %v2595
      %2597 = vmatmul.bf16.gmra.mxu0 %v773
      %v2598 = vpop.f32.mrf.mxu0
      %v2599 = vadd.f32 %v2510, %v2598
      %v2600 = vpop.f32.mrf.mxu0
      %v2601 = vadd.f32 %v2512, %v2600
      %2602 = vmatmul.bf16.gmra.mxu0 %v785
      %v2603 = vpop.f32.mrf.mxu0
      %v2604 = vadd.f32 %v2515, %v2603
      %v2605 = vpop.f32.mrf.mxu0
      %v2606 = vadd.f32 %v2517, %v2605
      %2607 = vmatmul.bf16.gmra.mxu0 %v797
      %v2608 = vpop.f32.mrf.mxu0
      %v2609 = vadd.f32 %v2520, %v2608
      %v2610 = vpop.f32.mrf.mxu0
      %v2611 = vadd.f32 %v2522, %v2610
      %2612 = vdwg.mxu0
      %2613 = vmatpush.bf16.msra.mxu0 %v2314
      %2614 = vmatpush.bf16.msra.mxu0 %v2313
      %2615 = vmatpush.bf16.msra.mxu0 %v2312
      %2616 = vmatpush.bf16.msra.mxu0 %v2311
      %2617 = vmatpush.bf16.msra.mxu0 %v2310
      %2618 = vmatpush.bf16.msra.mxu0 %v2309
      %2619 = vmatpush.bf16.msra.mxu0 %v2308
      %2620 = vmatpush.bf16.msra.mxu0 %v2307
      %2621 = vmatmul.bf16.gmra.mxu0 %v865
      %v2622 = vpop.f32.mrf.mxu0
      %v2623 = vadd.f32 %v2534, %v2622
      %v2624 = vpop.f32.mrf.mxu0
      %v2625 = vadd.f32 %v2536, %v2624
      %2626 = vmatmul.bf16.gmra.mxu0 %v868
      %v2627 = vpop.f32.mrf.mxu0
      %v2628 = vadd.f32 %v2539, %v2627
      %v2629 = vpop.f32.mrf.mxu0
      %v2630 = vadd.f32 %v2541, %v2629
      %2631 = vmatmul.bf16.gmra.mxu0 %v871
      %v2632 = vpop.f32.mrf.mxu0
      %v2633 = vadd.f32 %v2544, %v2632
      %v2634 = vpop.f32.mrf.mxu0
      %v2635 = vadd.f32 %v2546, %v2634
      %2636 = vmatmul.bf16.gmra.mxu0 %v874
      %v2637 = vpop.f32.mrf.mxu0
      %v2638 = vadd.f32 %v2549, %v2637
      %v2639 = vpop.f32.mrf.mxu0
      %v2640 = vadd.f32 %v2551, %v2639
      %2641 = vmatmul.bf16.gmra.mxu0 %v877
      %v2642 = vpop.f32.mrf.mxu0
      %v2643 = vadd.f32 %v2554, %v2642
      %v2644 = vpop.f32.mrf.mxu0
      %v2645 = vadd.f32 %v2556, %v2644
      %2646 = vmatmul.bf16.gmra.mxu0 %v880
      %v2647 = vpop.f32.mrf.mxu0
      %v2648 = vadd.f32 %v2559, %v2647
      %v2649 = vpop.f32.mrf.mxu0
      %v2650 = vadd.f32 %v2561, %v2649
      %2651 = vmatmul.bf16.gmra.mxu0 %v883
      %v2652 = vpop.f32.mrf.mxu0
      %v2653 = vadd.f32 %v2564, %v2652
      %v2654 = vpop.f32.mrf.mxu0
      %v2655 = vadd.f32 %v2566, %v2654
      %2656 = vmatmul.bf16.gmra.mxu0 %v886
      %v2657 = vpop.f32.mrf.mxu0
      %v2658 = vadd.f32 %v2569, %v2657
      %v2659 = vpop.f32.mrf.mxu0
      %v2660 = vadd.f32 %v2571, %v2659
      %2661 = vmatmul.bf16.gmra.mxu0 %v889
      %v2662 = vpop.f32.mrf.mxu0
      %v2663 = vadd.f32 %v2574, %v2662
      %v2664 = vpop.f32.mrf.mxu0
      %v2665 = vadd.f32 %v2576, %v2664
      %2666 = vmatmul.bf16.gmra.mxu0 %v892
      %v2667 = vpop.f32.mrf.mxu0
      %v2668 = vadd.f32 %v2579, %v2667
      %v2669 = vpop.f32.mrf.mxu0
      %v2670 = vadd.f32 %v2581, %v2669
      %2671 = vmatmul.bf16.gmra.mxu0 %v895
      %v2672 = vpop.f32.mrf.mxu0
      %v2673 = vadd.f32 %v2584, %v2672
      %v2674 = vpop.f32.mrf.mxu0
      %v2675 = vadd.f32 %v2586, %v2674
      %2676 = vmatmul.bf16.gmra.mxu0 %v898
      %v2677 = vpop.f32.mrf.mxu0
      %v2678 = vadd.f32 %v2589, %v2677
      %v2679 = vpop.f32.mrf.mxu0
      %v2680 = vadd.f32 %v2591, %v2679
      %2681 = vmatmul.bf16.gmra.mxu0 %v901
      %v2682 = vpop.f32.mrf.mxu0
      %v2683 = vadd.f32 %v2594, %v2682
      %v2684 = vpop.f32.mrf.mxu0
      %v2685 = vadd.f32 %v2596, %v2684
      %2686 = vmatmul.bf16.gmra.mxu0 %v904
      %v2687 = vpop.f32.mrf.mxu0
      %v2688 = vadd.f32 %v2599, %v2687
      %v2689 = vpop.f32.mrf.mxu0
      %v2690 = vadd.f32 %v2601, %v2689
      %2691 = vmatmul.bf16.gmra.mxu0 %v907
      %v2692 = vpop.f32.mrf.mxu0
      %v2693 = vadd.f32 %v2604, %v2692
      %v2694 = vpop.f32.mrf.mxu0
      %v2695 = vadd.f32 %v2606, %v2694
      %2696 = vmatmul.bf16.gmra.mxu0 %v910
      %v2697 = vpop.f32.mrf.mxu0
      %v2698 = vadd.f32 %v2609, %v2697
      %v2699 = vpop.f32.mrf.mxu0
      %v2700 = vadd.f32 %v2611, %v2699
      %2701 = vdwg.mxu0
      %2702 = vmatpush.bf16.msra.mxu0 %v2322
      %2703 = vmatpush.bf16.msra.mxu0 %v2321
      %2704 = vmatpush.bf16.msra.mxu0 %v2320
      %2705 = vmatpush.bf16.msra.mxu0 %v2319
      %2706 = vmatpush.bf16.msra.mxu0 %v2318
      %2707 = vmatpush.bf16.msra.mxu0 %v2317
      %2708 = vmatpush.bf16.msra.mxu0 %v2316
      %2709 = vmatpush.bf16.msra.mxu0 %v2315
      %2710 = vmatmul.bf16.gmra.mxu0 %v991
      %v2711 = vpop.f32.mrf.mxu0
      %v2712 = vadd.f32 %v2623, %v2711
      %v2713 = vpop.f32.mrf.mxu0
      %v2714 = vadd.f32 %v2625, %v2713
      %2715 = vmatmul.bf16.gmra.mxu0 %v992
      %v2716 = vpop.f32.mrf.mxu0
      %v2717 = vadd.f32 %v2628, %v2716
      %v2718 = vpop.f32.mrf.mxu0
      %v2719 = vadd.f32 %v2630, %v2718
      %2720 = vmatmul.bf16.gmra.mxu0 %v993
      %v2721 = vpop.f32.mrf.mxu0
      %v2722 = vadd.f32 %v2633, %v2721
      %v2723 = vpop.f32.mrf.mxu0
      %v2724 = vadd.f32 %v2635, %v2723
      %2725 = vmatmul.bf16.gmra.mxu0 %v994
      %v2726 = vpop.f32.mrf.mxu0
      %v2727 = vadd.f32 %v2638, %v2726
      %v2728 = vpop.f32.mrf.mxu0
      %v2729 = vadd.f32 %v2640, %v2728
      %2730 = vmatmul.bf16.gmra.mxu0 %v995
      %v2731 = vpop.f32.mrf.mxu0
      %v2732 = vadd.f32 %v2643, %v2731
      %v2733 = vpop.f32.mrf.mxu0
      %v2734 = vadd.f32 %v2645, %v2733
      %2735 = vmatmul.bf16.gmra.mxu0 %v996
      %v2736 = vpop.f32.mrf.mxu0
      %v2737 = vadd.f32 %v2648, %v2736
      %v2738 = vpop.f32.mrf.mxu0
      %v2739 = vadd.f32 %v2650, %v2738
      %2740 = vmatmul.bf16.gmra.mxu0 %v997
      %v2741 = vpop.f32.mrf.mxu0
      %v2742 = vadd.f32 %v2653, %v2741
      %v2743 = vpop.f32.mrf.mxu0
      %v2744 = vadd.f32 %v2655, %v2743
      %2745 = vmatmul.bf16.gmra.mxu0 %v998
      %v2746 = vpop.f32.mrf.mxu0
      %v2747 = vadd.f32 %v2658, %v2746
      %v2748 = vpop.f32.mrf.mxu0
      %v2749 = vadd.f32 %v2660, %v2748
      %2750 = vmatmul.bf16.gmra.mxu0 %v999
      %v2751 = vpop.f32.mrf.mxu0
      %v2752 = vadd.f32 %v2663, %v2751
      %v2753 = vpop.f32.mrf.mxu0
      %v2754 = vadd.f32 %v2665, %v2753
      %2755 = vmatmul.bf16.gmra.mxu0 %v1000
      %v2756 = vpop.f32.mrf.mxu0
      %v2757 = vadd.f32 %v2668, %v2756
      %v2758 = vpop.f32.mrf.mxu0
      %v2759 = vadd.f32 %v2670, %v2758
      %2760 = vmatmul.bf16.gmra.mxu0 %v1001
      %v2761 = vpop.f32.mrf.mxu0
      %v2762 = vadd.f32 %v2673, %v2761
      %v2763 = vpop.f32.mrf.mxu0
      %v2764 = vadd.f32 %v2675, %v2763
      %2765 = vmatmul.bf16.gmra.mxu0 %v1002
      %v2766 = vpop.f32.mrf.mxu0
      %v2767 = vadd.f32 %v2678, %v2766
      %v2768 = vpop.f32.mrf.mxu0
      %v2769 = vadd.f32 %v2680, %v2768
      %2770 = vmatmul.bf16.gmra.mxu0 %v1003
      %v2771 = vpop.f32.mrf.mxu0
      %v2772 = vadd.f32 %v2683, %v2771
      %v2773 = vpop.f32.mrf.mxu0
      %v2774 = vadd.f32 %v2685, %v2773
      %2775 = vmatmul.bf16.gmra.mxu0 %v1004
      %v2776 = vpop.f32.mrf.mxu0
      %v2777 = vadd.f32 %v2688, %v2776
      %v2778 = vpop.f32.mrf.mxu0
      %v2779 = vadd.f32 %v2690, %v2778
      %2780 = vmatmul.bf16.gmra.mxu0 %v1005
      %v2781 = vpop.f32.mrf.mxu0
      %v2782 = vadd.f32 %v2693, %v2781
      %v2783 = vpop.f32.mrf.mxu0
      %v2784 = vadd.f32 %v2695, %v2783
      %2785 = vmatmul.bf16.gmra.mxu0 %v1006
      %v2786 = vpop.f32.mrf.mxu0
      %v2787 = vadd.f32 %v2698, %v2786
      %v2788 = vpop.f32.mrf.mxu0
      %v2789 = vadd.f32 %v2700, %v2788
      %2790 = vdwg.mxu0
      %2791 = vmatpush.bf16.msra.mxu0 %v2330
      %2792 = vmatpush.bf16.msra.mxu0 %v2329
      %2793 = vmatpush.bf16.msra.mxu0 %v2328
      %2794 = vmatpush.bf16.msra.mxu0 %v2327
      %2795 = vmatpush.bf16.msra.mxu0 %v2326
      %2796 = vmatpush.bf16.msra.mxu0 %v2325
      %2797 = vmatpush.bf16.msra.mxu0 %v2324
      %2798 = vmatpush.bf16.msra.mxu0 %v2323
      %2799 = vmatmul.bf16.gmra.mxu0 %v1082
      %v2800 = vpop.f32.mrf.mxu0
      %v2801 = vadd.f32 %v2712, %v2800
      %v2802 = vpop.f32.mrf.mxu0
      %v2803 = vadd.f32 %v2714, %v2802
      %2804 = vmatmul.bf16.gmra.mxu0 %v1094
      %v2805 = vpop.f32.mrf.mxu0
      %v2806 = vadd.f32 %v2717, %v2805
      %v2807 = vpop.f32.mrf.mxu0
      %v2808 = vadd.f32 %v2719, %v2807
      %2809 = vmatmul.bf16.gmra.mxu0 %v1106
      %v2810 = vpop.f32.mrf.mxu0
      %v2811 = vadd.f32 %v2722, %v2810
      %v2812 = vpop.f32.mrf.mxu0
      %v2813 = vadd.f32 %v2724, %v2812
      %2814 = vmatmul.bf16.gmra.mxu0 %v1118
      %v2815 = vpop.f32.mrf.mxu0
      %v2816 = vadd.f32 %v2727, %v2815
      %v2817 = vpop.f32.mrf.mxu0
      %v2818 = vadd.f32 %v2729, %v2817
      %2819 = vmatmul.bf16.gmra.mxu0 %v1130
      %v2820 = vpop.f32.mrf.mxu0
      %v2821 = vadd.f32 %v2732, %v2820
      %v2822 = vpop.f32.mrf.mxu0
      %v2823 = vadd.f32 %v2734, %v2822
      %2824 = vmatmul.bf16.gmra.mxu0 %v1142
      %v2825 = vpop.f32.mrf.mxu0
      %v2826 = vadd.f32 %v2737, %v2825
      %v2827 = vpop.f32.mrf.mxu0
      %v2828 = vadd.f32 %v2739, %v2827
      %2829 = vmatmul.bf16.gmra.mxu0 %v1154
      %v2830 = vpop.f32.mrf.mxu0
      %v2831 = vadd.f32 %v2742, %v2830
      %v2832 = vpop.f32.mrf.mxu0
      %v2833 = vadd.f32 %v2744, %v2832
      %2834 = vmatmul.bf16.gmra.mxu0 %v1166
      %v2835 = vpop.f32.mrf.mxu0
      %v2836 = vadd.f32 %v2747, %v2835
      %v2837 = vpop.f32.mrf.mxu0
      %v2838 = vadd.f32 %v2749, %v2837
      %2839 = vmatmul.bf16.gmra.mxu0 %v1178
      %v2840 = vpop.f32.mrf.mxu0
      %v2841 = vadd.f32 %v2752, %v2840
      %v2842 = vpop.f32.mrf.mxu0
      %v2843 = vadd.f32 %v2754, %v2842
      %2844 = vmatmul.bf16.gmra.mxu0 %v1190
      %v2845 = vpop.f32.mrf.mxu0
      %v2846 = vadd.f32 %v2757, %v2845
      %v2847 = vpop.f32.mrf.mxu0
      %v2848 = vadd.f32 %v2759, %v2847
      %2849 = vmatmul.bf16.gmra.mxu0 %v1202
      %v2850 = vpop.f32.mrf.mxu0
      %v2851 = vadd.f32 %v2762, %v2850
      %v2852 = vpop.f32.mrf.mxu0
      %v2853 = vadd.f32 %v2764, %v2852
      %2854 = vmatmul.bf16.gmra.mxu0 %v1214
      %v2855 = vpop.f32.mrf.mxu0
      %v2856 = vadd.f32 %v2767, %v2855
      %v2857 = vpop.f32.mrf.mxu0
      %v2858 = vadd.f32 %v2769, %v2857
      %2859 = vmatmul.bf16.gmra.mxu0 %v1226
      %v2860 = vpop.f32.mrf.mxu0
      %v2861 = vadd.f32 %v2772, %v2860
      %v2862 = vpop.f32.mrf.mxu0
      %v2863 = vadd.f32 %v2774, %v2862
      %2864 = vmatmul.bf16.gmra.mxu0 %v1238
      %v2865 = vpop.f32.mrf.mxu0
      %v2866 = vadd.f32 %v2777, %v2865
      %v2867 = vpop.f32.mrf.mxu0
      %v2868 = vadd.f32 %v2779, %v2867
      %2869 = vmatmul.bf16.gmra.mxu0 %v1250
      %v2870 = vpop.f32.mrf.mxu0
      %v2871 = vadd.f32 %v2782, %v2870
      %v2872 = vpop.f32.mrf.mxu0
      %v2873 = vadd.f32 %v2784, %v2872
      %2874 = vmatmul.bf16.gmra.mxu0 %v1262
      %v2875 = vpop.f32.mrf.mxu0
      %v2876 = vadd.f32 %v2787, %v2875
      %v2877 = vpop.f32.mrf.mxu0
      %v2878 = vadd.f32 %v2789, %v2877
      %2879 = vdwg.mxu0
      %2880 = vmatpush.bf16.msra.mxu0 %v2338
      %2881 = vmatpush.bf16.msra.mxu0 %v2337
      %2882 = vmatpush.bf16.msra.mxu0 %v2336
      %2883 = vmatpush.bf16.msra.mxu0 %v2335
      %2884 = vmatpush.bf16.msra.mxu0 %v2334
      %2885 = vmatpush.bf16.msra.mxu0 %v2333
      %2886 = vmatpush.bf16.msra.mxu0 %v2332
      %2887 = vmatpush.bf16.msra.mxu0 %v2331
      %2888 = vmatmul.bf16.gmra.mxu0 %v1329
      %v2889 = vpop.f32.mrf.mxu0
      %v2890 = vadd.f32 %v2801, %v2889
      %v2891 = vpop.f32.mrf.mxu0
      %v2892 = vadd.f32 %v2803, %v2891
      %2893 = vmatmul.bf16.gmra.mxu0 %v1332
      %v2894 = vpop.f32.mrf.mxu0
      %v2895 = vadd.f32 %v2806, %v2894
      %v2896 = vpop.f32.mrf.mxu0
      %v2897 = vadd.f32 %v2808, %v2896
      %2898 = vmatmul.bf16.gmra.mxu0 %v1335
      %v2899 = vpop.f32.mrf.mxu0
      %v2900 = vadd.f32 %v2811, %v2899
      %v2901 = vpop.f32.mrf.mxu0
      %v2902 = vadd.f32 %v2813, %v2901
      %2903 = vmatmul.bf16.gmra.mxu0 %v1338
      %v2904 = vpop.f32.mrf.mxu0
      %v2905 = vadd.f32 %v2816, %v2904
      %v2906 = vpop.f32.mrf.mxu0
      %v2907 = vadd.f32 %v2818, %v2906
      %2908 = vmatmul.bf16.gmra.mxu0 %v1341
      %v2909 = vpop.f32.mrf.mxu0
      %v2910 = vadd.f32 %v2821, %v2909
      %v2911 = vpop.f32.mrf.mxu0
      %v2912 = vadd.f32 %v2823, %v2911
      %2913 = vmatmul.bf16.gmra.mxu0 %v1344
      %v2914 = vpop.f32.mrf.mxu0
      %v2915 = vadd.f32 %v2826, %v2914
      %v2916 = vpop.f32.mrf.mxu0
      %v2917 = vadd.f32 %v2828, %v2916
      %2918 = vmatmul.bf16.gmra.mxu0 %v1347
      %v2919 = vpop.f32.mrf.mxu0
      %v2920 = vadd.f32 %v2831, %v2919
      %v2921 = vpop.f32.mrf.mxu0
      %v2922 = vadd.f32 %v2833, %v2921
      %2923 = vmatmul.bf16.gmra.mxu0 %v1350
      %v2924 = vpop.f32.mrf.mxu0
      %v2925 = vadd.f32 %v2836, %v2924
      %v2926 = vpop.f32.mrf.mxu0
      %v2927 = vadd.f32 %v2838, %v2926
      %2928 = vmatmul.bf16.gmra.mxu0 %v1353
      %v2929 = vpop.f32.mrf.mxu0
      %v2930 = vadd.f32 %v2841, %v2929
      %v2931 = vpop.f32.mrf.mxu0
      %v2932 = vadd.f32 %v2843, %v2931
      %2933 = vmatmul.bf16.gmra.mxu0 %v1356
      %v2934 = vpop.f32.mrf.mxu0
      %v2935 = vadd.f32 %v2846, %v2934
      %v2936 = vpop.f32.mrf.mxu0
      %v2937 = vadd.f32 %v2848, %v2936
      %2938 = vmatmul.bf16.gmra.mxu0 %v1359
      %v2939 = vpop.f32.mrf.mxu0
      %v2940 = vadd.f32 %v2851, %v2939
      %v2941 = vpop.f32.mrf.mxu0
      %v2942 = vadd.f32 %v2853, %v2941
      %2943 = vmatmul.bf16.gmra.mxu0 %v1362
      %v2944 = vpop.f32.mrf.mxu0
      %v2945 = vadd.f32 %v2856, %v2944
      %v2946 = vpop.f32.mrf.mxu0
      %v2947 = vadd.f32 %v2858, %v2946
      %2948 = vmatmul.bf16.gmra.mxu0 %v1365
      %v2949 = vpop.f32.mrf.mxu0
      %v2950 = vadd.f32 %v2861, %v2949
      %v2951 = vpop.f32.mrf.mxu0
      %v2952 = vadd.f32 %v2863, %v2951
      %2953 = vmatmul.bf16.gmra.mxu0 %v1368
      %v2954 = vpop.f32.mrf.mxu0
      %v2955 = vadd.f32 %v2866, %v2954
      %v2956 = vpop.f32.mrf.mxu0
      %v2957 = vadd.f32 %v2868, %v2956
      %2958 = vmatmul.bf16.gmra.mxu0 %v1371
      %v2959 = vpop.f32.mrf.mxu0
      %v2960 = vadd.f32 %v2871, %v2959
      %v2961 = vpop.f32.mrf.mxu0
      %v2962 = vadd.f32 %v2873, %v2961
      %2963 = vmatmul.bf16.gmra.mxu0 %v1374
      %v2964 = vpop.f32.mrf.mxu0
      %v2965 = vadd.f32 %v2876, %v2964
      %v2966 = vpop.f32.mrf.mxu0
      %v2967 = vadd.f32 %v2878, %v2966
      %2968 = vdwg.mxu0
      %2969 = vmatpush.bf16.msra.mxu0 %v2346
      %2970 = vmatpush.bf16.msra.mxu0 %v2345
      %2971 = vmatpush.bf16.msra.mxu0 %v2344
      %2972 = vmatpush.bf16.msra.mxu0 %v2343
      %2973 = vmatpush.bf16.msra.mxu0 %v2342
      %2974 = vmatpush.bf16.msra.mxu0 %v2341
      %2975 = vmatpush.bf16.msra.mxu0 %v2340
      %2976 = vmatpush.bf16.msra.mxu0 %v2339
      %2977 = vmatmul.bf16.gmra.mxu0 %v1455
      %v2978 = vpop.f32.mrf.mxu0
      %v2979 = vadd.f32 %v2890, %v2978
      %v2980 = vpop.f32.mrf.mxu0
      %v2981 = vadd.f32 %v2892, %v2980
      %2982 = vmatmul.bf16.gmra.mxu0 %v1456
      %v2983 = vpop.f32.mrf.mxu0
      %v2984 = vadd.f32 %v2895, %v2983
      %v2985 = vpop.f32.mrf.mxu0
      %v2986 = vadd.f32 %v2897, %v2985
      %2987 = vmatmul.bf16.gmra.mxu0 %v1457
      %v2988 = vpop.f32.mrf.mxu0
      %v2989 = vadd.f32 %v2900, %v2988
      %v2990 = vpop.f32.mrf.mxu0
      %v2991 = vadd.f32 %v2902, %v2990
      %2992 = vmatmul.bf16.gmra.mxu0 %v1458
      %v2993 = vpop.f32.mrf.mxu0
      %v2994 = vadd.f32 %v2905, %v2993
      %v2995 = vpop.f32.mrf.mxu0
      %v2996 = vadd.f32 %v2907, %v2995
      %2997 = vmatmul.bf16.gmra.mxu0 %v1459
      %v2998 = vpop.f32.mrf.mxu0
      %v2999 = vadd.f32 %v2910, %v2998
      %v3000 = vpop.f32.mrf.mxu0
      %v3001 = vadd.f32 %v2912, %v3000
      %3002 = vmatmul.bf16.gmra.mxu0 %v1460
      %v3003 = vpop.f32.mrf.mxu0
      %v3004 = vadd.f32 %v2915, %v3003
      %v3005 = vpop.f32.mrf.mxu0
      %v3006 = vadd.f32 %v2917, %v3005
      %3007 = vmatmul.bf16.gmra.mxu0 %v1461
      %v3008 = vpop.f32.mrf.mxu0
      %v3009 = vadd.f32 %v2920, %v3008
      %v3010 = vpop.f32.mrf.mxu0
      %v3011 = vadd.f32 %v2922, %v3010
      %3012 = vmatmul.bf16.gmra.mxu0 %v1462
      %v3013 = vpop.f32.mrf.mxu0
      %v3014 = vadd.f32 %v2925, %v3013
      %v3015 = vpop.f32.mrf.mxu0
      %v3016 = vadd.f32 %v2927, %v3015
      %3017 = vmatmul.bf16.gmra.mxu0 %v1463
      %v3018 = vpop.f32.mrf.mxu0
      %v3019 = vadd.f32 %v2930, %v3018
      %v3020 = vpop.f32.mrf.mxu0
      %v3021 = vadd.f32 %v2932, %v3020
      %3022 = vmatmul.bf16.gmra.mxu0 %v1464
      %v3023 = vpop.f32.mrf.mxu0
      %v3024 = vadd.f32 %v2935, %v3023
      %v3025 = vpop.f32.mrf.mxu0
      %v3026 = vadd.f32 %v2937, %v3025
      %3027 = vmatmul.bf16.gmra.mxu0 %v1465
      %v3028 = vpop.f32.mrf.mxu0
      %v3029 = vadd.f32 %v2940, %v3028
      %v3030 = vpop.f32.mrf.mxu0
      %v3031 = vadd.f32 %v2942, %v3030
      %3032 = vmatmul.bf16.gmra.mxu0 %v1466
      %v3033 = vpop.f32.mrf.mxu0
      %v3034 = vadd.f32 %v2945, %v3033
      %v3035 = vpop.f32.mrf.mxu0
      %v3036 = vadd.f32 %v2947, %v3035
      %3037 = vmatmul.bf16.gmra.mxu0 %v1467
      %v3038 = vpop.f32.mrf.mxu0
      %v3039 = vadd.f32 %v2950, %v3038
      %v3040 = vpop.f32.mrf.mxu0
      %v3041 = vadd.f32 %v2952, %v3040
      %3042 = vmatmul.bf16.gmra.mxu0 %v1468
      %v3043 = vpop.f32.mrf.mxu0
      %v3044 = vadd.f32 %v2955, %v3043
      %v3045 = vpop.f32.mrf.mxu0
      %v3046 = vadd.f32 %v2957, %v3045
      %3047 = vmatmul.bf16.gmra.mxu0 %v1469
      %v3048 = vpop.f32.mrf.mxu0
      %v3049 = vadd.f32 %v2960, %v3048
      %v3050 = vpop.f32.mrf.mxu0
      %v3051 = vadd.f32 %v2962, %v3050
      %3052 = vmatmul.bf16.gmra.mxu0 %v1470
      %v3053 = vpop.f32.mrf.mxu0
      %v3054 = vadd.f32 %v2965, %v3053
      %v3055 = vpop.f32.mrf.mxu0
      %v3056 = vadd.f32 %v2967, %v3055
      %3057 = vdwg.mxu0
      %3058 = vmatpush.bf16.msra.mxu0 %v2354
      %3059 = vmatpush.bf16.msra.mxu0 %v2353
      %3060 = vmatpush.bf16.msra.mxu0 %v2352
      %3061 = vmatpush.bf16.msra.mxu0 %v2351
      %3062 = vmatpush.bf16.msra.mxu0 %v2350
      %3063 = vmatpush.bf16.msra.mxu0 %v2349
      %3064 = vmatpush.bf16.msra.mxu0 %v2348
      %3065 = vmatpush.bf16.msra.mxu0 %v2347
      %3066 = vmatmul.bf16.gmra.mxu0 %v1546
      %v3067 = vpop.f32.mrf.mxu0
      %v3068 = vadd.f32 %v2979, %v3067
      %v3069 = vpop.f32.mrf.mxu0
      %v3070 = vadd.f32 %v2981, %v3069
      %3071 = vmatmul.bf16.gmra.mxu0 %v1558
      %v3072 = vpop.f32.mrf.mxu0
      %v3073 = vadd.f32 %v2984, %v3072
      %v3074 = vpop.f32.mrf.mxu0
      %v3075 = vadd.f32 %v2986, %v3074
      %3076 = vmatmul.bf16.gmra.mxu0 %v1570
      %v3077 = vpop.f32.mrf.mxu0
      %v3078 = vadd.f32 %v2989, %v3077
      %v3079 = vpop.f32.mrf.mxu0
      %v3080 = vadd.f32 %v2991, %v3079
      %3081 = vmatmul.bf16.gmra.mxu0 %v1582
      %v3082 = vpop.f32.mrf.mxu0
      %v3083 = vadd.f32 %v2994, %v3082
      %v3084 = vpop.f32.mrf.mxu0
      %v3085 = vadd.f32 %v2996, %v3084
      %3086 = vmatmul.bf16.gmra.mxu0 %v1594
      %v3087 = vpop.f32.mrf.mxu0
      %v3088 = vadd.f32 %v2999, %v3087
      %v3089 = vpop.f32.mrf.mxu0
      %v3090 = vadd.f32 %v3001, %v3089
      %3091 = vmatmul.bf16.gmra.mxu0 %v1606
      %v3092 = vpop.f32.mrf.mxu0
      %v3093 = vadd.f32 %v3004, %v3092
      %v3094 = vpop.f32.mrf.mxu0
      %v3095 = vadd.f32 %v3006, %v3094
      %3096 = vmatmul.bf16.gmra.mxu0 %v1618
      %v3097 = vpop.f32.mrf.mxu0
      %v3098 = vadd.f32 %v3009, %v3097
      %v3099 = vpop.f32.mrf.mxu0
      %v3100 = vadd.f32 %v3011, %v3099
      %3101 = vmatmul.bf16.gmra.mxu0 %v1630
      %v3102 = vpop.f32.mrf.mxu0
      %v3103 = vadd.f32 %v3014, %v3102
      %v3104 = vpop.f32.mrf.mxu0
      %v3105 = vadd.f32 %v3016, %v3104
      %3106 = vmatmul.bf16.gmra.mxu0 %v1642
      %v3107 = vpop.f32.mrf.mxu0
      %v3108 = vadd.f32 %v3019, %v3107
      %v3109 = vpop.f32.mrf.mxu0
      %v3110 = vadd.f32 %v3021, %v3109
      %3111 = vmatmul.bf16.gmra.mxu0 %v1654
      %v3112 = vpop.f32.mrf.mxu0
      %v3113 = vadd.f32 %v3024, %v3112
      %v3114 = vpop.f32.mrf.mxu0
      %v3115 = vadd.f32 %v3026, %v3114
      %3116 = vmatmul.bf16.gmra.mxu0 %v1666
      %v3117 = vpop.f32.mrf.mxu0
      %v3118 = vadd.f32 %v3029, %v3117
      %v3119 = vpop.f32.mrf.mxu0
      %v3120 = vadd.f32 %v3031, %v3119
      %3121 = vmatmul.bf16.gmra.mxu0 %v1678
      %v3122 = vpop.f32.mrf.mxu0
      %v3123 = vadd.f32 %v3034, %v3122
      %v3124 = vpop.f32.mrf.mxu0
      %v3125 = vadd.f32 %v3036, %v3124
      %3126 = vmatmul.bf16.gmra.mxu0 %v1690
      %v3127 = vpop.f32.mrf.mxu0
      %v3128 = vadd.f32 %v3039, %v3127
      %v3129 = vpop.f32.mrf.mxu0
      %v3130 = vadd.f32 %v3041, %v3129
      %3131 = vmatmul.bf16.gmra.mxu0 %v1702
      %v3132 = vpop.f32.mrf.mxu0
      %v3133 = vadd.f32 %v3044, %v3132
      %v3134 = vpop.f32.mrf.mxu0
      %v3135 = vadd.f32 %v3046, %v3134
      %3136 = vmatmul.bf16.gmra.mxu0 %v1714
      %v3137 = vpop.f32.mrf.mxu0
      %v3138 = vadd.f32 %v3049, %v3137
      %v3139 = vpop.f32.mrf.mxu0
      %v3140 = vadd.f32 %v3051, %v3139
      %3141 = vmatmul.bf16.gmra.mxu0 %v1726
      %v3142 = vpop.f32.mrf.mxu0
      %v3143 = vadd.f32 %v3054, %v3142
      %v3144 = vpop.f32.mrf.mxu0
      %v3145 = vadd.f32 %v3056, %v3144
      %3146 = vdwg.mxu0
      %3147 = vmatpush.bf16.msra.mxu0 %v2362
      %3148 = vmatpush.bf16.msra.mxu0 %v2361
      %3149 = vmatpush.bf16.msra.mxu0 %v2360
      %3150 = vmatpush.bf16.msra.mxu0 %v2359
      %3151 = vmatpush.bf16.msra.mxu0 %v2358
      %3152 = vmatpush.bf16.msra.mxu0 %v2357
      %3153 = vmatpush.bf16.msra.mxu0 %v2356
      %3154 = vmatpush.bf16.msra.mxu0 %v2355
      %3155 = vmatmul.bf16.gmra.mxu0 %v1793
      %v3156 = vpop.f32.mrf.mxu0
      %v3157 = vadd.f32 %v3068, %v3156
      %v3158 = vpop.f32.mrf.mxu0
      %v3159 = vadd.f32 %v3070, %v3158
      %3160 = vmatmul.bf16.gmra.mxu0 %v1796
      %v3161 = vpop.f32.mrf.mxu0
      %v3162 = vadd.f32 %v3073, %v3161
      %v3163 = vpop.f32.mrf.mxu0
      %v3164 = vadd.f32 %v3075, %v3163
      %3165 = vmatmul.bf16.gmra.mxu0 %v1799
      %v3166 = vpop.f32.mrf.mxu0
      %v3167 = vadd.f32 %v3078, %v3166
      %v3168 = vpop.f32.mrf.mxu0
      %v3169 = vadd.f32 %v3080, %v3168
      %3170 = vmatmul.bf16.gmra.mxu0 %v1802
      %v3171 = vpop.f32.mrf.mxu0
      %v3172 = vadd.f32 %v3083, %v3171
      %v3173 = vpop.f32.mrf.mxu0
      %v3174 = vadd.f32 %v3085, %v3173
      %3175 = vmatmul.bf16.gmra.mxu0 %v1805
      %v3176 = vpop.f32.mrf.mxu0
      %v3177 = vadd.f32 %v3088, %v3176
      %v3178 = vpop.f32.mrf.mxu0
      %v3179 = vadd.f32 %v3090, %v3178
      %3180 = vmatmul.bf16.gmra.mxu0 %v1808
      %v3181 = vpop.f32.mrf.mxu0
      %v3182 = vadd.f32 %v3093, %v3181
      %v3183 = vpop.f32.mrf.mxu0
      %v3184 = vadd.f32 %v3095, %v3183
      %3185 = vmatmul.bf16.gmra.mxu0 %v1811
      %v3186 = vpop.f32.mrf.mxu0
      %v3187 = vadd.f32 %v3098, %v3186
      %v3188 = vpop.f32.mrf.mxu0
      %v3189 = vadd.f32 %v3100, %v3188
      %3190 = vmatmul.bf16.gmra.mxu0 %v1814
      %v3191 = vpop.f32.mrf.mxu0
      %v3192 = vadd.f32 %v3103, %v3191
      %v3193 = vpop.f32.mrf.mxu0
      %v3194 = vadd.f32 %v3105, %v3193
      %3195 = vmatmul.bf16.gmra.mxu0 %v1817
      %v3196 = vpop.f32.mrf.mxu0
      %v3197 = vadd.f32 %v3108, %v3196
      %v3198 = vpop.f32.mrf.mxu0
      %v3199 = vadd.f32 %v3110, %v3198
      %3200 = vmatmul.bf16.gmra.mxu0 %v1820
      %v3201 = vpop.f32.mrf.mxu0
      %v3202 = vadd.f32 %v3113, %v3201
      %v3203 = vpop.f32.mrf.mxu0
      %v3204 = vadd.f32 %v3115, %v3203
      %3205 = vmatmul.bf16.gmra.mxu0 %v1823
      %v3206 = vpop.f32.mrf.mxu0
      %v3207 = vadd.f32 %v3118, %v3206
      %v3208 = vpop.f32.mrf.mxu0
      %v3209 = vadd.f32 %v3120, %v3208
      %3210 = vmatmul.bf16.gmra.mxu0 %v1826
      %v3211 = vpop.f32.mrf.mxu0
      %v3212 = vadd.f32 %v3123, %v3211
      %v3213 = vpop.f32.mrf.mxu0
      %v3214 = vadd.f32 %v3125, %v3213
      %3215 = vmatmul.bf16.gmra.mxu0 %v1829
      %v3216 = vpop.f32.mrf.mxu0
      %v3217 = vadd.f32 %v3128, %v3216
      %v3218 = vpop.f32.mrf.mxu0
      %v3219 = vadd.f32 %v3130, %v3218
      %3220 = vmatmul.bf16.gmra.mxu0 %v1832
      %v3221 = vpop.f32.mrf.mxu0
      %v3222 = vadd.f32 %v3133, %v3221
      %v3223 = vpop.f32.mrf.mxu0
      %v3224 = vadd.f32 %v3135, %v3223
      %3225 = vmatmul.bf16.gmra.mxu0 %v1835
      %v3226 = vpop.f32.mrf.mxu0
      %v3227 = vadd.f32 %v3138, %v3226
      %v3228 = vpop.f32.mrf.mxu0
      %v3229 = vadd.f32 %v3140, %v3228
      %3230 = vmatmul.bf16.gmra.mxu0 %v1838
      %v3231 = vpop.f32.mrf.mxu0
      %v3232 = vadd.f32 %v3143, %v3231
      %v3233 = vpop.f32.mrf.mxu0
      %v3234 = vadd.f32 %v3145, %v3233
      %3235 = vdwg.mxu0
      %v3236 = vld [vmem:[%s245] sm:$0xf]
      %v3237 = vld [vmem:[%s245 + $0x4] sm:$0xf]
      %v3238 = vld [vmem:[%s245 + $0x8] sm:$0xf]
      %v3239 = vld [vmem:[%s245 + $0xc] sm:$0xf]
      %v3240 = vld [vmem:[%s245 + $0x10] sm:$0xf]
      %v3241 = vld [vmem:[%s245 + $0x14] sm:$0xf]
      %v3242 = vld [vmem:[%s245 + $0x18] sm:$0xf]
      %v3243 = vld [vmem:[%s245 + $0x1c] sm:$0xf]
      %v3244 = vld [vmem:[%s245 + $0x20] sm:$0xf]
      %v3245 = vld [vmem:[%s245 + $0x24] sm:$0xf]
      %v3246 = vld [vmem:[%s245 + $0x28] sm:$0xf]
      %v3247 = vld [vmem:[%s245 + $0x2c] sm:$0xf]
      %v3248 = vld [vmem:[%s245 + $0x30] sm:$0xf]
      %v3249 = vld [vmem:[%s245 + $0x34] sm:$0xf]
      %v3250 = vld [vmem:[%s245 + $0x38] sm:$0xf]
      %v3251 = vld [vmem:[%s245 + $0x3c] sm:$0xf]
      %v3252 = vld [vmem:[%s245 + $0x40] sm:$0xf]
      %v3253 = vld [vmem:[%s245 + $0x44] sm:$0xf]
      %v3254 = vld [vmem:[%s245 + $0x48] sm:$0xf]
      %v3255 = vld [vmem:[%s245 + $0x4c] sm:$0xf]
      %v3256 = vld [vmem:[%s245 + $0x50] sm:$0xf]
      %v3257 = vld [vmem:[%s245 + $0x54] sm:$0xf]
      %v3258 = vld [vmem:[%s245 + $0x58] sm:$0xf]
      %v3259 = vld [vmem:[%s245 + $0x5c] sm:$0xf]
      %v3260 = vld [vmem:[%s245 + $0x60] sm:$0xf]
      %v3261 = vld [vmem:[%s245 + $0x64] sm:$0xf]
      %v3262 = vld [vmem:[%s245 + $0x68] sm:$0xf]
      %v3263 = vld [vmem:[%s245 + $0x6c] sm:$0xf]
      %v3264 = vld [vmem:[%s245 + $0x70] sm:$0xf]
      %v3265 = vld [vmem:[%s245 + $0x74] sm:$0xf]
      %v3266 = vld [vmem:[%s245 + $0x78] sm:$0xf]
      %v3267 = vld [vmem:[%s245 + $0x7c] sm:$0xf]
      %v3268 = vunpack.c.l.bf16 %v3236
      %v3269 = vunpack.c.l.bf16 %v3237
      %v3270 = vunpack.c.l.bf16 %v3238
      %v3271 = vunpack.c.l.bf16 %v3239
      %v3272 = vunpack.c.l.bf16 %v3240
      %v3273 = vunpack.c.l.bf16 %v3241
      %v3274 = vunpack.c.l.bf16 %v3242
      %v3275 = vunpack.c.l.bf16 %v3243
      %v3276 = vunpack.c.l.bf16 %v3244
      %v3277 = vunpack.c.l.bf16 %v3245
      %v3278 = vunpack.c.l.bf16 %v3246
      %v3279 = vunpack.c.l.bf16 %v3247
      %v3280 = vunpack.c.l.bf16 %v3248
      %v3281 = vunpack.c.l.bf16 %v3249
      %v3282 = vunpack.c.l.bf16 %v3250
      %v3283 = vunpack.c.l.bf16 %v3251
      %v3284 = vunpack.c.l.bf16 %v3252
      %v3285 = vunpack.c.l.bf16 %v3253
      %v3286 = vunpack.c.l.bf16 %v3254
      %v3287 = vunpack.c.l.bf16 %v3255
      %v3288 = vunpack.c.l.bf16 %v3256
      %v3289 = vunpack.c.l.bf16 %v3257
      %v3290 = vunpack.c.l.bf16 %v3258
      %v3291 = vunpack.c.l.bf16 %v3259
      %v3292 = vunpack.c.l.bf16 %v3260
      %v3293 = vunpack.c.l.bf16 %v3261
      %v3294 = vunpack.c.l.bf16 %v3262
      %v3295 = vunpack.c.l.bf16 %v3263
      %v3296 = vunpack.c.l.bf16 %v3264
      %v3297 = vunpack.c.l.bf16 %v3265
      %v3298 = vunpack.c.l.bf16 %v3266
      %v3299 = vunpack.c.l.bf16 %v3267
      %v3300 = vadd.f32 %v3157, %v3268
      %v3301 = vadd.f32 %v3159, %v3269
      %v3302 = vadd.f32 %v3162, %v3270
      %v3303 = vadd.f32 %v3164, %v3271
      %v3304 = vadd.f32 %v3167, %v3272
      %v3305 = vadd.f32 %v3169, %v3273
      %v3306 = vadd.f32 %v3172, %v3274
      %v3307 = vadd.f32 %v3174, %v3275
      %v3308 = vadd.f32 %v3177, %v3276
      %v3309 = vadd.f32 %v3179, %v3277
      %v3310 = vadd.f32 %v3182, %v3278
      %v3311 = vadd.f32 %v3184, %v3279
      %v3312 = vadd.f32 %v3187, %v3280
      %v3313 = vadd.f32 %v3189, %v3281
      %v3314 = vadd.f32 %v3192, %v3282
      %v3315 = vadd.f32 %v3194, %v3283
      %v3316 = vadd.f32 %v3197, %v3284
      %v3317 = vadd.f32 %v3199, %v3285
      %v3318 = vadd.f32 %v3202, %v3286
      %v3319 = vadd.f32 %v3204, %v3287
      %v3320 = vadd.f32 %v3207, %v3288
      %v3321 = vadd.f32 %v3209, %v3289
      %v3322 = vadd.f32 %v3212, %v3290
      %v3323 = vadd.f32 %v3214, %v3291
      %v3324 = vadd.f32 %v3217, %v3292
      %v3325 = vadd.f32 %v3219, %v3293
      %v3326 = vadd.f32 %v3222, %v3294
      %v3327 = vadd.f32 %v3224, %v3295
      %v3328 = vadd.f32 %v3227, %v3296
      %v3329 = vadd.f32 %v3229, %v3297
      %v3330 = vadd.f32 %v3232, %v3298
      %v3331 = vadd.f32 %v3234, %v3299
      %v3332 = vmax.f32 %v3300, 0.0
      %v3333 = vmax.f32 %v3301, 0.0
      %v3334 = vmax.f32 %v3302, 0.0
      %v3335 = vmax.f32 %v3303, 0.0
      %v3336 = vmax.f32 %v3304, 0.0
      %v3337 = vmax.f32 %v3305, 0.0
      %v3338 = vmax.f32 %v3306, 0.0
      %v3339 = vmax.f32 %v3307, 0.0
      %v3340 = vmax.f32 %v3308, 0.0
      %v3341 = vmax.f32 %v3309, 0.0
      %v3342 = vmax.f32 %v3310, 0.0
      %v3343 = vmax.f32 %v3311, 0.0
      %v3344 = vmax.f32 %v3312, 0.0
      %v3345 = vmax.f32 %v3313, 0.0
      %v3346 = vmax.f32 %v3314, 0.0
      %v3347 = vmax.f32 %v3315, 0.0
      %v3348 = vmax.f32 %v3316, 0.0
      %v3349 = vmax.f32 %v3317, 0.0
      %v3350 = vmax.f32 %v3318, 0.0
      %v3351 = vmax.f32 %v3319, 0.0
      %v3352 = vmax.f32 %v3320, 0.0
      %v3353 = vmax.f32 %v3321, 0.0
      %v3354 = vmax.f32 %v3322, 0.0
      %v3355 = vmax.f32 %v3323, 0.0
      %v3356 = vmax.f32 %v3324, 0.0
      %v3357 = vmax.f32 %v3325, 0.0
      %v3358 = vmax.f32 %v3326, 0.0
      %v3359 = vmax.f32 %v3327, 0.0
      %v3360 = vmax.f32 %v3328, 0.0
      %v3361 = vmax.f32 %v3329, 0.0
      %v3362 = vmax.f32 %v3330, 0.0
      %v3363 = vmax.f32 %v3331, 0.0
      %v3364 = vmin.f32 %v3332, 1.0
      %v3365 = vmin.f32 %v3333, 1.0
      %v3366 = vmin.f32 %v3334, 1.0
      %v3367 = vmin.f32 %v3335, 1.0
      %v3368 = vmin.f32 %v3336, 1.0
      %v3369 = vmin.f32 %v3337, 1.0
      %v3370 = vmin.f32 %v3338, 1.0
      %v3371 = vmin.f32 %v3339, 1.0
      %v3372 = vmin.f32 %v3340, 1.0
      %v3373 = vmin.f32 %v3341, 1.0
      %v3374 = vmin.f32 %v3342, 1.0
      %v3375 = vmin.f32 %v3343, 1.0
      %v3376 = vmin.f32 %v3344, 1.0
      %v3377 = vmin.f32 %v3345, 1.0
      %v3378 = vmin.f32 %v3346, 1.0
      %v3379 = vmin.f32 %v3347, 1.0
      %v3380 = vmin.f32 %v3348, 1.0
      %v3381 = vmin.f32 %v3349, 1.0
      %v3382 = vmin.f32 %v3350, 1.0
      %v3383 = vmin.f32 %v3351, 1.0
      %v3384 = vmin.f32 %v3352, 1.0
      %v3385 = vmin.f32 %v3353, 1.0
      %v3386 = vmin.f32 %v3354, 1.0
      %v3387 = vmin.f32 %v3355, 1.0
      %v3388 = vmin.f32 %v3356, 1.0
      %v3389 = vmin.f32 %v3357, 1.0
      %v3390 = vmin.f32 %v3358, 1.0
      %v3391 = vmin.f32 %v3359, 1.0
      %v3392 = vmin.f32 %v3360, 1.0
      %v3393 = vmin.f32 %v3361, 1.0
      %v3394 = vmin.f32 %v3362, 1.0
      %v3395 = vmin.f32 %v3363, 1.0
      %v3396 = vmul.f32 %v3364, 15.0
      %v3397 = vmul.f32 %v3365, 15.0
      %v3398 = vmul.f32 %v3366, 15.0
      %v3399 = vmul.f32 %v3367, 15.0
      %v3400 = vmul.f32 %v3368, 15.0
      %v3401 = vmul.f32 %v3369, 15.0
      %v3402 = vmul.f32 %v3370, 15.0
      %v3403 = vmul.f32 %v3371, 15.0
      %v3404 = vmul.f32 %v3372, 15.0
      %v3405 = vmul.f32 %v3373, 15.0
      %v3406 = vmul.f32 %v3374, 15.0
      %v3407 = vmul.f32 %v3375, 15.0
      %v3408 = vmul.f32 %v3376, 15.0
      %v3409 = vmul.f32 %v3377, 15.0
      %v3410 = vmul.f32 %v3378, 15.0
      %v3411 = vmul.f32 %v3379, 15.0
      %v3412 = vmul.f32 %v3380, 15.0
      %v3413 = vmul.f32 %v3381, 15.0
      %v3414 = vmul.f32 %v3382, 15.0
      %v3415 = vmul.f32 %v3383, 15.0
      %v3416 = vmul.f32 %v3384, 15.0
      %v3417 = vmul.f32 %v3385, 15.0
      %v3418 = vmul.f32 %v3386, 15.0
      %v3419 = vmul.f32 %v3387, 15.0
      %v3420 = vmul.f32 %v3388, 15.0
      %v3421 = vmul.f32 %v3389, 15.0
      %v3422 = vmul.f32 %v3390, 15.0
      %v3423 = vmul.f32 %v3391, 15.0
      %v3424 = vmul.f32 %v3392, 15.0
      %v3425 = vmul.f32 %v3393, 15.0
      %v3426 = vmul.f32 %v3394, 15.0
      %v3427 = vmul.f32 %v3395, 15.0
      %v3428 = vround.ne.pseudo %v3396
      %v3429 = vround.ne.pseudo %v3397
      %v3430 = vround.ne.pseudo %v3398
      %v3431 = vround.ne.pseudo %v3399
      %v3432 = vround.ne.pseudo %v3400
      %v3433 = vround.ne.pseudo %v3401
      %v3434 = vround.ne.pseudo %v3402
      %v3435 = vround.ne.pseudo %v3403
      %v3436 = vround.ne.pseudo %v3404
      %v3437 = vround.ne.pseudo %v3405
      %v3438 = vround.ne.pseudo %v3406
      %v3439 = vround.ne.pseudo %v3407
      %v3440 = vround.ne.pseudo %v3408
      %v3441 = vround.ne.pseudo %v3409
      %v3442 = vround.ne.pseudo %v3410
      %v3443 = vround.ne.pseudo %v3411
      %v3444 = vround.ne.pseudo %v3412
      %v3445 = vround.ne.pseudo %v3413
      %v3446 = vround.ne.pseudo %v3414
      %v3447 = vround.ne.pseudo %v3415
      %v3448 = vround.ne.pseudo %v3416
      %v3449 = vround.ne.pseudo %v3417
      %v3450 = vround.ne.pseudo %v3418
      %v3451 = vround.ne.pseudo %v3419
      %v3452 = vround.ne.pseudo %v3420
      %v3453 = vround.ne.pseudo %v3421
      %v3454 = vround.ne.pseudo %v3422
      %v3455 = vround.ne.pseudo %v3423
      %v3456 = vround.ne.pseudo %v3424
      %v3457 = vround.ne.pseudo %v3425
      %v3458 = vround.ne.pseudo %v3426
      %v3459 = vround.ne.pseudo %v3427
      %v3460 = vmul.f32 %v3428, 0.06666667
      %v3461 = vmul.f32 %v3429, 0.06666667
      %v3462 = vmul.f32 %v3430, 0.06666667
      %v3463 = vmul.f32 %v3431, 0.06666667
      %v3464 = vmul.f32 %v3432, 0.06666667
      %v3465 = vmul.f32 %v3433, 0.06666667
      %v3466 = vmul.f32 %v3434, 0.06666667
      %v3467 = vmul.f32 %v3435, 0.06666667
      %v3468 = vmul.f32 %v3436, 0.06666667
      %v3469 = vmul.f32 %v3437, 0.06666667
      %v3470 = vmul.f32 %v3438, 0.06666667
      %v3471 = vmul.f32 %v3439, 0.06666667
      %v3472 = vmul.f32 %v3440, 0.06666667
      %v3473 = vmul.f32 %v3441, 0.06666667
      %v3474 = vmul.f32 %v3442, 0.06666667
      %v3475 = vmul.f32 %v3443, 0.06666667
      %v3476 = vmul.f32 %v3444, 0.06666667
      %v3477 = vmul.f32 %v3445, 0.06666667
      %v3478 = vmul.f32 %v3446, 0.06666667
      %v3479 = vmul.f32 %v3447, 0.06666667
      %v3480 = vmul.f32 %v3448, 0.06666667
      %v3481 = vmul.f32 %v3449, 0.06666667
      %v3482 = vmul.f32 %v3450, 0.06666667
      %v3483 = vmul.f32 %v3451, 0.06666667
      %v3484 = vmul.f32 %v3452, 0.06666667
      %v3485 = vmul.f32 %v3453, 0.06666667
      %v3486 = vmul.f32 %v3454, 0.06666667
      %v3487 = vmul.f32 %v3455, 0.06666667
      %v3488 = vmul.f32 %v3456, 0.06666667
      %v3489 = vmul.f32 %v3457, 0.06666667
      %v3490 = vmul.f32 %v3458, 0.06666667
      %v3491 = vmul.f32 %v3459, 0.06666667
      %v3492 = vpack.c.bf16 %v3460, %v3460
      %v3493 = vpack.c.bf16 %v3461, %v3461
      %v3494 = vpack.c.bf16 %v3462, %v3462
      %v3495 = vpack.c.bf16 %v3463, %v3463
      %v3496 = vpack.c.bf16 %v3464, %v3464
      %v3497 = vpack.c.bf16 %v3465, %v3465
      %v3498 = vpack.c.bf16 %v3466, %v3466
      %v3499 = vpack.c.bf16 %v3467, %v3467
      %v3500 = vpack.c.bf16 %v3468, %v3468
      %v3501 = vpack.c.bf16 %v3469, %v3469
      %v3502 = vpack.c.bf16 %v3470, %v3470
      %v3503 = vpack.c.bf16 %v3471, %v3471
      %v3504 = vpack.c.bf16 %v3472, %v3472
      %v3505 = vpack.c.bf16 %v3473, %v3473
      %v3506 = vpack.c.bf16 %v3474, %v3474
      %v3507 = vpack.c.bf16 %v3475, %v3475
      %v3508 = vpack.c.bf16 %v3476, %v3476
      %v3509 = vpack.c.bf16 %v3477, %v3477
      %v3510 = vpack.c.bf16 %v3478, %v3478
      %v3511 = vpack.c.bf16 %v3479, %v3479
      %v3512 = vpack.c.bf16 %v3480, %v3480
      %v3513 = vpack.c.bf16 %v3481, %v3481
      %v3514 = vpack.c.bf16 %v3482, %v3482
      %v3515 = vpack.c.bf16 %v3483, %v3483
      %v3516 = vpack.c.bf16 %v3484, %v3484
      %v3517 = vpack.c.bf16 %v3485, %v3485
      %v3518 = vpack.c.bf16 %v3486, %v3486
      %v3519 = vpack.c.bf16 %v3487, %v3487
      %v3520 = vpack.c.bf16 %v3488, %v3488
      %v3521 = vpack.c.bf16 %v3489, %v3489
      %v3522 = vpack.c.bf16 %v3490, %v3490
      %v3523 = vpack.c.bf16 %v3491, %v3491
      %3524 = vst [vmem:[%s255] sm:$0xf] %v3492
      %3525 = vst [vmem:[%s255 + $0x4] sm:$0xf] %v3493
      %3526 = vst [vmem:[%s255 + $0x8] sm:$0xf] %v3494
      %3527 = vst [vmem:[%s255 + $0xc] sm:$0xf] %v3495
      %3528 = vst [vmem:[%s255 + $0x10] sm:$0xf] %v3496
      %3529 = vst [vmem:[%s255 + $0x14] sm:$0xf] %v3497
      %3530 = vst [vmem:[%s255 + $0x18] sm:$0xf] %v3498
      %3531 = vst [vmem:[%s255 + $0x1c] sm:$0xf] %v3499
      %3532 = vst [vmem:[%s255 + $0x20] sm:$0xf] %v3500
      %3533 = vst [vmem:[%s255 + $0x24] sm:$0xf] %v3501
      %3534 = vst [vmem:[%s255 + $0x28] sm:$0xf] %v3502
      %3535 = vst [vmem:[%s255 + $0x2c] sm:$0xf] %v3503
      %3536 = vst [vmem:[%s255 + $0x30] sm:$0xf] %v3504
      %3537 = vst [vmem:[%s255 + $0x34] sm:$0xf] %v3505
      %3538 = vst [vmem:[%s255 + $0x38] sm:$0xf] %v3506
      %3539 = vst [vmem:[%s255 + $0x3c] sm:$0xf] %v3507
      %3540 = vst [vmem:[%s255 + $0x40] sm:$0xf] %v3508
      %3541 = vst [vmem:[%s255 + $0x44] sm:$0xf] %v3509
      %3542 = vst [vmem:[%s255 + $0x48] sm:$0xf] %v3510
      %3543 = vst [vmem:[%s255 + $0x4c] sm:$0xf] %v3511
      %3544 = vst [vmem:[%s255 + $0x50] sm:$0xf] %v3512
      %3545 = vst [vmem:[%s255 + $0x54] sm:$0xf] %v3513
      %3546 = vst [vmem:[%s255 + $0x58] sm:$0xf] %v3514
      %3547 = vst [vmem:[%s255 + $0x5c] sm:$0xf] %v3515
      %3548 = vst [vmem:[%s255 + $0x60] sm:$0xf] %v3516
      %3549 = vst [vmem:[%s255 + $0x64] sm:$0xf] %v3517
      %3550 = vst [vmem:[%s255 + $0x68] sm:$0xf] %v3518
      %3551 = vst [vmem:[%s255 + $0x6c] sm:$0xf] %v3519
      %3552 = vst [vmem:[%s255 + $0x70] sm:$0xf] %v3520
      %3553 = vst [vmem:[%s255 + $0x74] sm:$0xf] %v3521
      %3554 = vst [vmem:[%s255 + $0x78] sm:$0xf] %v3522
      %3555 = vst [vmem:[%s255 + $0x7c] sm:$0xf] %v3523
      %s3556 = smul.u32 32, %s20
      %p3557 = scmp.lt.s32.totalorder %s19, 1
      %s3558 = scalar_select %p3557, %s19, 1
      %p3559 = scmp.lt.s32.totalorder %s3556, 31
      %s3560 = scalar_select %p3559, %s3556, 31
      %s3561 = smul.addr %s3558, 32
      %s3562 = sadd.s32 %s3560, %s3561
      %s3563 = smul.addr %s3562, 4
      %s3564 = scalar_lea.vmem %s4, %s3563
      // Predicated region
      $region37: #{basic_block_q_forward.3} parent=35 // pred_check
        %p3565 = pneg %p143
      $region38: #{basic_block_q_forward.3} parent=35 // pred_check_branch
        %3567 = sbr.rel (%p3565) target = $region40
      $region39: #{basic_block_q_forward.3} parent=35 // pred_region
        %s3568 = smul.u32 32, %s20
      $region40: #{basic_block_q_forward.3} parent=35 // pred_fallthru
        _
    $region36: #{basic_block_q_forward.3} parent=5 // pred_fallthru
      _
    %p3569 = scmp.le.s32.totalorder 2, %s10
    // Predicated region
    $region41: #{basic_block_q_forward.3} parent=5 // pred_check
      %p3570 = pneg %p3569
    $region42: #{basic_block_q_forward.3} parent=5 // pred_check_branch
      %3572 = sbr.rel (%p3570) target = $region44
    $region43: #{basic_block_q_forward.3} parent=5 // pred_region
      %s3573 = ssub.s32 %s10, 2
      // Predicated region
      $region45: #{basic_block_q_forward.3} parent=43 // pred_check
        %p3574 = pneg %p149
      $region46: #{basic_block_q_forward.3} parent=43 // pred_check_branch
        %3576 = sbr.rel (%p3574) target = $region48
      $region47: #{basic_block_q_forward.3} parent=43 // pred_region
        %s3577 = smul.u32 32, %s22
        %p3578 = scmp.lt.s32.totalorder %s21, 1
        %s3579 = scalar_select %p3578, %s21, 1
        %p3580 = scmp.lt.s32.totalorder %s3577, 31
        %s3581 = scalar_select %p3580, %s3577, 31
        %s3582 = smul.addr %s3579, 32
        %s3583 = sadd.s32 %s3581, %s3582
        %s3584 = smul.addr %s3583, 4
        %s3585 = scalar_lea.vmem %s4, %s3584
      $region48: #{basic_block_q_forward.3} parent=43 // pred_fallthru
        _
    $region44: #{basic_block_q_forward.3} parent=5 // pred_fallthru
      _
  $region6: #{basic_block_q_forward.3} parent=0 // loop_footer
    %s14 = sadd.s32 1, %s10
  $region7: #{basic_block_q_forward.3} parent=0 // loop_footer_branch
    %9 = sbr.rel target = $region3
  $region8: #{basic_block_q_forward.3} parent=0 // loop_exit
    _

</llo_original>
